<compile_context>
chip_gen: v7x
topology: tpu7x:2x2x1
jax: 0.10.0
libtpu: 0.0.40
codegen_flags: <defaults>
</compile_context>

<pallas_src>
import functools

import jax
import jax.numpy as jnp
from jax.experimental import pallas as pl
from jax.experimental.pallas import tpu as pltpu


# ----------------------------------------------------------------------------
# Activations (used both inside kernels and in the pure-JAX reference)
# ----------------------------------------------------------------------------
def _apply_act(y, act):
    if act == "relu":
        return jnp.maximum(y, 0.0)
    if act == "relu6":
        return jnp.clip(y, 0.0, 6.0)
    if act == "tanh":
        return jnp.tanh(y)
    if act == "ternary_tanh":
        # TernaryTanh (QBN repo, Koul et al.): 1.5*tanh(x) + 0.5*tanh(-3x)
        return 1.5 * jnp.tanh(y) + 0.5 * jnp.tanh(-3.0 * y)
    if act == "sigmoid":
        return jax.nn.sigmoid(y)
    raise ValueError(f"unknown activation {act}")


# ----------------------------------------------------------------------------
# Pallas kernel 1: fused  out = activation(A @ W + b)
# ----------------------------------------------------------------------------
def _mm_bias_act_kernel(a_ref, w_ref, b_ref, o_ref, *, act):
    y = jnp.dot(a_ref[...], w_ref[...], preferred_element_type=jnp.float32)
    y = y + b_ref[...]                      # (TM, N) + (1, N) broadcast
    o_ref[...] = _apply_act(y, act).astype(o_ref.dtype)


def matmul_bias_act(a, w, b, act, max_tm=2048):
    """a: (M, K), w: (K, N), b: (N,) -> act(a @ w + b), computed in Pallas.

    Tiling policy: whole-M single grid step when M <= max_tm, otherwise split
    into the minimal number of equal, 8-aligned tiles (2 steps for the biggest
    layers here -> both TCs on v7x).  M is only padded when it is not already
    a multiple of 8 (a few rows at most for this network), so the big conv
    layers run with zero HBM pad/slice copies.
    """
    M, K = a.shape
    Kw, N = w.shape
    assert K == Kw
    if M <= max_tm:
        steps = 1
        tm = max(8, ((M + 7) // 8) * 8)
    else:
        steps = pl.cdiv(M, max_tm)
        tm = (((M + steps - 1) // steps) + 7) // 8 * 8
    Mp = tm * steps
    a_in = a if Mp == M else jnp.pad(a, ((0, Mp - M), (0, 0)))

    out = pl.pallas_call(
        functools.partial(_mm_bias_act_kernel, act=act),
        out_shape=jax.ShapeDtypeStruct((Mp, N), jnp.float32),
        grid=(steps,),
        in_specs=[
            pl.BlockSpec((tm, K), lambda i: (i, 0)),   # A tile (rows i)
            pl.BlockSpec((K, N), lambda i: (0, 0)),    # full W, resident
            pl.BlockSpec((1, N), lambda i: (0, 0)),    # bias, resident
        ],
        out_specs=pl.BlockSpec((tm, N), lambda i: (i, 0)),
        compiler_params=pltpu.CompilerParams(
            dimension_semantics=("parallel",),
            vmem_limit_bytes=32 * 1024 * 1024,
        ),
    )(a_in, w, b.reshape(1, N))
    return out if Mp == M else out[:M]


# ----------------------------------------------------------------------------
# Pallas kernel 2: fused bottleneck chain
#   linear_encoder (Linear+Tanh, Linear+TernaryTanh)
#   linear_decoder (Linear+Tanh, Linear+ReLU6)
# All four weight matrices (~250 KB) stay resident in VMEM; one launch.
# ----------------------------------------------------------------------------
def _bottleneck_kernel(x_ref, w1_ref, b1_ref, w2_ref, b2_ref,
                       w3_ref, b3_ref, w4_ref, b4_ref, enc_ref, dec_ref):
    h = jnp.tanh(jnp.dot(x_ref[...], w1_ref[...],
                         preferred_element_type=jnp.float32) + b1_ref[...])
    e = jnp.dot(h, w2_ref[...], preferred_element_type=jnp.float32) + b2_ref[...]
    enc = 1.5 * jnp.tanh(e) + 0.5 * jnp.tanh(-3.0 * e)     # TernaryTanh
    enc_ref[...] = enc.astype(enc_ref.dtype)
    h2 = jnp.tanh(jnp.dot(enc, w3_ref[...],
                          preferred_element_type=jnp.float32) + b3_ref[...])
    d = jnp.dot(h2, w4_ref[...], preferred_element_type=jnp.float32) + b4_ref[...]
    dec_ref[...] = jnp.clip(d, 0.0, 6.0).astype(dec_ref.dtype)


def bottleneck_chain(lin_in, p):
    """lin_in: (B, 200) -> (linear_encoded (B, x_features), lin_dec (B, 200))."""
    B, qbn = lin_in.shape
    f1 = p["le1_w"].shape[1]
    xf = p["le2_w"].shape[1]
    Bp = ((B + 7) // 8) * 8                     # align sublanes (tiny pad)
    x_in = lin_in if Bp == B else jnp.pad(lin_in, ((0, Bp - B), (0, 0)))

    def spec(shape):
        return pl.BlockSpec(shape, lambda i, _s=shape: (0,) * len(_s))

    args = (x_in,
            p["le1_w"], p["le1_b"].reshape(1, f1),
            p["le2_w"], p["le2_b"].reshape(1, xf),
            p["ld1_w"], p["ld1_b"].reshape(1, f1),
            p["ld2_w"], p["ld2_b"].reshape(1, qbn))

    enc, dec = pl.pallas_call(
        _bottleneck_kernel,
        out_shape=(jax.ShapeDtypeStruct((Bp, xf), jnp.float32),
                   jax.ShapeDtypeStruct((Bp, qbn), jnp.float32)),
        grid=(1,),
        in_specs=[spec(a.shape) for a in args],
        out_specs=(spec((Bp, xf)), spec((Bp, qbn))),
        compiler_params=pltpu.CompilerParams(
            dimension_semantics=("arbitrary",)),
    )(*args)
    return enc[:B], dec[:B]


# ----------------------------------------------------------------------------
# im2col glue (plain JAX) for the stride-2 encoder convolutions
# ----------------------------------------------------------------------------
def _extract_patches(xp, k, stride):
    """xp: already-padded NHWC (B,Hp,Wp,C) -> ((B*Ho*Wo, k*k*C), Ho, Wo)."""
    B, Hp, Wp, C = xp.shape
    Ho = (Hp - k) // stride + 1
    Wo = (Wp - k) // stride + 1
    cols = []
    for i in range(k):
        for j in range(k):
            cols.append(xp[:, i:i + stride * (Ho - 1) + 1:stride,
                            j:j + stride * (Wo - 1) + 1:stride, :])
    cols = jnp.concatenate(cols, axis=-1)      # (B, Ho, Wo, k*k*C)
    return cols.reshape(B * Ho * Wo, k * k * C), Ho, Wo


def conv2d(x, w, b, stride, pad, act):
    """x: NHWC, w: (k, k, Cin, Cout).  Matches nn.Conv2d(k, stride, pad)."""
    B = x.shape[0]
    k, _, Cin, Cout = w.shape
    xp = jnp.pad(x, ((0, 0), (pad, pad), (pad, pad), (0, 0)))
    cols, Ho, Wo = _extract_patches(xp, k, stride)
    y = matmul_bias_act(cols, w.reshape(k * k * Cin, Cout), b, act)
    return y.reshape(B, Ho, Wo, Cout)


# ----------------------------------------------------------------------------
# Transposed conv via subpixel / phase decomposition (single matmul,
# K = 4*Cin, N = 4*Cout, evaluated at the *input* resolution)
# ----------------------------------------------------------------------------
def _convt_combined_weight(w_eq):
    """Build the (4*Cin, 4*Cout) combined phase weight.

    `w_eq` (3,3,Cin,Cout) is the equivalent stride-1 kernel, i.e. the spatially
    flipped, in/out-transposed ConvTranspose2d weight.  With stride=2, pad=1,
    output_padding=1 the output phases are:
        o[2m  ,2n  ] = x[m,n]   w11
        o[2m  ,2n+1] = x[m,n]   w10 + x[m,n+1]  w12
        o[2m+1,2n  ] = x[m,n]   w01 + x[m+1,n]  w21
        o[2m+1,2n+1] = x[m,n]   w00 + x[m,n+1]  w02 + x[m+1,n] w20 + x[m+1,n+1] w22
    Row blocks = input taps [(m,n),(m,n+1),(m+1,n),(m+1,n+1)];
    column blocks = output phases [(0,0),(0,1),(1,0),(1,1)].
    """
    Cin, Cout = w_eq.shape[2], w_eq.shape[3]
    z = jnp.zeros((Cin, Cout), w_eq.dtype)
    blocks = [
        [w_eq[1, 1], w_eq[1, 0], w_eq[0, 1], w_eq[0, 0]],   # tap (m,   n)
        [z,          w_eq[1, 2], z,          w_eq[0, 2]],   # tap (m,   n+1)
        [z,          z,          w_eq[2, 1], w_eq[2, 0]],   # tap (m+1, n)
        [z,          z,          z,          w_eq[2, 2]],   # tap (m+1, n+1)
    ]
    return jnp.concatenate([jnp.concatenate(r, axis=1) for r in blocks], axis=0)


def conv_transpose2d(x, w_eq, b, act):
    """nn.ConvTranspose2d(3, stride=2, padding=1, output_padding=1).

    NOTE: `w_eq` must already be the spatially flipped, in/out-transposed
    equivalent of the PyTorch ConvTranspose2d weight (shape (3,3,Cin,Cout)).
    `init_params` below generates it directly in that form; real checkpoints
    must be converted (w_eq = flip(flip(w_t, 0), 1) with in/out axes swapped).
    """
    B, H, W, Cin = x.shape
    Cout = w_eq.shape[-1]
    xq = jnp.pad(x, ((0, 0), (0, 1), (0, 1), (0, 0)))   # zero row/col at bottom/right
    cols = jnp.concatenate(
        [xq[:, :H, :W, :], xq[:, :H, 1:, :],
         xq[:, 1:, :W, :], xq[:, 1:, 1:, :]], axis=-1).reshape(B * H * W, 4 * Cin)
    wc = _convt_combined_weight(w_eq)                    # (4*Cin, 4*Cout)
    bc = jnp.tile(b, 4)                                  # (4*Cout,)
    y = matmul_bias_act(cols, wc, bc, act)               # (B*H*W, 4*Cout)
    y = y.reshape(B, H, W, 2, 2, Cout)                   # (.., dy, dx, C)
    return y.transpose(0, 1, 3, 2, 4, 5).reshape(B, 2 * H, 2 * W, Cout)


# ----------------------------------------------------------------------------
# Deterministic synthetic parameters (shapes from ConvObsQBNet.__init__)
# ----------------------------------------------------------------------------
def init_params(key, channels, x_features):
    f1 = 8 * x_features
    qbn_in = 8 * 5 * 5
    ks = jax.random.split(key, 12)

    def conv_w(k, cin, cout):
        return jax.random.normal(k, (3, 3, cin, cout), jnp.float32) / jnp.sqrt(9.0 * cin)

    def lin_w(k, fin, fout):
        return jax.random.normal(k, (fin, fout), jnp.float32) / jnp.sqrt(float(fin))

    z = lambda n: jnp.zeros((n,), jnp.float32)
    return {
        # conv_encoder
        "ce1_w": conv_w(ks[0], channels, 32), "ce1_b": z(32),
        "ce2_w": conv_w(ks[1], 32, 32),       "ce2_b": z(32),
        "ce3_w": conv_w(ks[2], 32, 16),       "ce3_b": z(16),
        "ce4_w": conv_w(ks[3], 16, 8),        "ce4_b": z(8),
        # linear_encoder
        "le1_w": lin_w(ks[4], qbn_in, f1),    "le1_b": z(f1),
        "le2_w": lin_w(ks[5], f1, x_features),"le2_b": z(x_features),
        # linear_decoder
        "ld1_w": lin_w(ks[6], x_features, f1),"ld1_b": z(f1),
        "ld2_w": lin_w(ks[7], f1, qbn_in),    "ld2_b": z(qbn_in),
        # conv_decoder (equivalent stride-1 conv weights, shape (3,3,Cin,Cout))
        "cd1_w": conv_w(ks[8], 8, 16),        "cd1_b": z(16),
        "cd2_w": conv_w(ks[9], 16, 32),       "cd2_b": z(32),
        "cd3_w": conv_w(ks[10], 32, 32),      "cd3_b": z(32),
        "cd4_w": conv_w(ks[11], 32, channels),"cd4_b": z(channels),
    }


# ----------------------------------------------------------------------------
# Forward pass (matches ConvObsQBNet.forward)
# ----------------------------------------------------------------------------
def forward(params, x_nchw):
    B = x_nchw.shape[0]
    x = jnp.transpose(x_nchw, (0, 2, 3, 1))                          # NHWC

    # conv_encoder: Conv(s2,p1)+ReLU x3, Conv(s2,p1)+ReLU6
    h = conv2d(x, params["ce1_w"], params["ce1_b"], 2, 1, "relu")
    h = conv2d(h, params["ce2_w"], params["ce2_b"], 2, 1, "relu")
    h = conv2d(h, params["ce3_w"], params["ce3_b"], 2, 1, "relu")
    h = conv2d(h, params["ce4_w"], params["ce4_b"], 2, 1, "relu6")   # (B,5,5,8)

    # reshape(x.shape[0], 8*5*5) in PyTorch NCHW order
    lin_in = jnp.transpose(h, (0, 3, 1, 2)).reshape(B, 8 * 5 * 5)

    # fused: linear_encoder (Tanh, TernaryTanh) + linear_decoder (Tanh, ReLU6)
    linear_encoded, lin_dec = bottleneck_chain(lin_in, params)

    # reshape to (B,8,5,5) NCHW, then to NHWC for the conv decoder
    d = jnp.transpose(lin_dec.reshape(B, 8, 5, 5), (0, 2, 3, 1))

    # conv_decoder: ConvT(s2,p1,op1)+ReLU x3, ConvT(s2,p1,op1)+Sigmoid
    d = conv_transpose2d(d, params["cd1_w"], params["cd1_b"], "relu")
    d = conv_transpose2d(d, params["cd2_w"], params["cd2_b"], "relu")
    d = conv_transpose2d(d, params["cd3_w"], params["cd3_b"], "relu")
    d = conv_transpose2d(d, params["cd4_w"], params["cd4_b"], "sigmoid")

    conv_decoded = jnp.transpose(d, (0, 3, 1, 2))                    # NCHW
    return conv_decoded, linear_encoded


# ----------------------------------------------------------------------------
# Pure-JAX reference (no Pallas): im2col + jnp matmul; transposed convs via
# the zero-dilated formulation — cross-validates both the Pallas kernels and
# the phase decomposition.
# ----------------------------------------------------------------------------
def _ref_mm(a, w, b, act):
    return _apply_act(jnp.dot(a, w, preferred_element_type=jnp.float32) + b[None, :], act)


def _ref_conv2d(x, w, b, stride, pad, act):
    B = x.shape[0]
    k, _, Cin, Cout = w.shape
    xp = jnp.pad(x, ((0, 0), (pad, pad), (pad, pad), (0, 0)))
    cols, Ho, Wo = _extract_patches(xp, k, stride)
    return _ref_mm(cols, w.reshape(k * k * Cin, Cout), b, act).reshape(B, Ho, Wo, Cout)


def _ref_conv_transpose2d(x, w_eq, b, act):
    B, H, W, C = x.shape
    xd = jnp.zeros((B, 2 * H - 1, 2 * W - 1, C), x.dtype).at[:, ::2, ::2, :].set(x)
    xp = jnp.pad(xd, ((0, 0), (1, 2), (1, 2), (0, 0)))
    cols, Ho, Wo = _extract_patches(xp, 3, 1)
    Cout = w_eq.shape[-1]
    return _ref_mm(cols, w_eq.reshape(9 * C, Cout), b, act).reshape(B, Ho, Wo, Cout)


def reference_forward(params, x_nchw):
    B = x_nchw.shape[0]
    x = jnp.transpose(x_nchw, (0, 2, 3, 1))
    h = _ref_conv2d(x, params["ce1_w"], params["ce1_b"], 2, 1, "relu")
    h = _ref_conv2d(h, params["ce2_w"], params["ce2_b"], 2, 1, "relu")
    h = _ref_conv2d(h, params["ce3_w"], params["ce3_b"], 2, 1, "relu")
    h = _ref_conv2d(h, params["ce4_w"], params["ce4_b"], 2, 1, "relu6")
    lin_in = jnp.transpose(h, (0, 3, 1, 2)).reshape(B, 8 * 5 * 5)
    z = _ref_mm(lin_in, params["le1_w"], params["le1_b"], "tanh")
    enc = _ref_mm(z, params["le2_w"], params["le2_b"], "ternary_tanh")
    z = _ref_mm(enc, params["ld1_w"], params["ld1_b"], "tanh")
    dec = _ref_mm(z, params["ld2_w"], params["ld2_b"], "relu6")
    d = jnp.transpose(dec.reshape(B, 8, 5, 5), (0, 2, 3, 1))
    d = _ref_conv_transpose2d(d, params["cd1_w"], params["cd1_b"], "relu")
    d = _ref_conv_transpose2d(d, params["cd2_w"], params["cd2_b"], "relu")
    d = _ref_conv_transpose2d(d, params["cd3_w"], params["cd3_b"], "relu")
    d = _ref_conv_transpose2d(d, params["cd4_w"], params["cd4_b"], "sigmoid")
    return jnp.transpose(d, (0, 3, 1, 2)), enc


if __name__ == "__main__":
    key = jax.random.PRNGKey(0)
    channels, x_features = 4, 16
    # qbn_input_size = 8*5*5 requires the encoder bottleneck to be 5x5, so the
    # input spatial size must be 80 (80 -> 40 -> 20 -> 10 -> 5).
    B, H, W = 2, 80, 80
    kx, kp = jax.random.split(key)
    x = jax.random.normal(kx, (B, channels, H, W), jnp.float32)
    params = init_params(kp, channels, x_features)

    fwd = jax.jit(forward)
    conv_decoded, linear_encoded = fwd(params, x)
    jax.block_until_ready((conv_decoded, linear_encoded))

    assert conv_decoded.shape == (B, channels, H, W), conv_decoded.shape
    assert linear_encoded.shape == (B, x_features), linear_encoded.shape
    assert conv_decoded.dtype == jnp.float32 and linear_encoded.dtype == jnp.float32

    # Numerical cross-check against the pure-JAX reference.
    ref_cd, ref_le = jax.jit(reference_forward)(params, x)
    jax.block_until_ready((ref_cd, ref_le))
    assert bool(jnp.allclose(conv_decoded, ref_cd, atol=2e-2, rtol=2e-2)), \
        float(jnp.max(jnp.abs(conv_decoded - ref_cd)))
    assert bool(jnp.allclose(linear_encoded, ref_le, atol=2e-2, rtol=2e-2)), \
        float(jnp.max(jnp.abs(linear_encoded - ref_le)))

    print("KERNEL_OK")
</pallas_src>

<mosaic_0001>
module attributes {stable_mosaic.version = 11 : i64} {
  func.func @_mm_bias_act_kernel(%arg0: i32, %arg1: memref<1600x36xf32, #tpu.memory_space<vmem>>, %arg2: memref<36x32xf32, #tpu.memory_space<vmem>>, %arg3: memref<1x32xf32, #tpu.memory_space<vmem>>, %arg4: memref<1600x32xf32, #tpu.memory_space<vmem>>) attributes {dimension_semantics = [#tpu.dimension_semantics<parallel>], iteration_bounds = array<i64: 2>, scalar_prefetch = 0 : i64, scratch_operands = 0 : i64, tpu.core_type = #tpu.core_type<tc>, window_params = [{transform_indices = @transform_0, window_bounds = array<i64: 1600, 36>}, {pipeline_mode = #tpu.pipeline_mode<synchronous>, transform_indices = @transform_1, window_bounds = array<i64: 36, 32>}, {pipeline_mode = #tpu.pipeline_mode<synchronous>, transform_indices = @transform_2, window_bounds = array<i64: 1, 32>}, {transform_indices = @transform_3, window_bounds = array<i64: 1600, 32>}]} {
    %c0 = arith.constant 0 : index
    %c0_0 = arith.constant 0 : index
    %0 = vector.load %arg1[%c0, %c0_0] : memref<1600x36xf32, #tpu.memory_space<vmem>>, vector<1600x36xf32>
    %c0_1 = arith.constant 0 : index
    %c0_2 = arith.constant 0 : index
    %1 = vector.load %arg2[%c0_1, %c0_2] : memref<36x32xf32, #tpu.memory_space<vmem>>, vector<36x32xf32>
    %cst = arith.constant dense<0.000000e+00> : vector<1600x32xf32>
    %2 = tpu.matmul %0, %1, %cst {dimension_numbers = #tpu.dot_dimension_numbers<[1], [0], [0], [1], [0, 0, 1, 1], [], []>} : vector<1600x36xf32>, vector<36x32xf32>, vector<1600x32xf32> -> vector<1600x32xf32>
    %c0_3 = arith.constant 0 : index
    %c0_4 = arith.constant 0 : index
    %3 = vector.load %arg3[%c0_3, %c0_4] : memref<1x32xf32, #tpu.memory_space<vmem>>, vector<1x32xf32>
    %4 = vector.broadcast %3 : vector<1x32xf32> to vector<1600x32xf32>
    %5 = arith.addf %2, %4 : vector<1600x32xf32>
    %cst_5 = arith.constant 0.000000e+00 : f32
    %6 = vector.broadcast %cst_5 : f32 to vector<1600x32xf32>
    %7 = arith.maximumf %5, %6 : vector<1600x32xf32>
    %c0_6 = arith.constant 0 : index
    %c0_7 = arith.constant 0 : index
    %8 = vector.load %arg4[%c0_6, %c0_7] : memref<1600x32xf32, #tpu.memory_space<vmem>>, vector<1600x32xf32>
    tpu.vector_store %arg4[%c0_6, %c0_7], %7 {strides = array<i32>} : memref<1600x32xf32, #tpu.memory_space<vmem>>, vector<1600x32xf32>,
    return
  }
  func.func @transform_0(%arg0: i32) -> (i32, i32) {
    %c0_i32 = arith.constant 0 : i32
    %c0_i32_0 = arith.constant 0 : i32
    return %arg0, %c0_i32 : i32, i32
  }
  func.func @transform_1(%arg0: i32) -> (i32, i32) {
    %c0_i32 = arith.constant 0 : i32
    %c0_i32_0 = arith.constant 0 : i32
    %c0_i32_1 = arith.constant 0 : i32
    return %c0_i32, %c0_i32_0 : i32, i32
  }
  func.func @transform_2(%arg0: i32) -> (i32, i32) {
    %c0_i32 = arith.constant 0 : i32
    %c0_i32_0 = arith.constant 0 : i32
    %c0_i32_1 = arith.constant 0 : i32
    return %c0_i32, %c0_i32_0 : i32, i32
  }
  func.func @transform_3(%arg0: i32) -> (i32, i32) {
    %c0_i32 = arith.constant 0 : i32
    %c0_i32_0 = arith.constant 0 : i32
    return %arg0, %c0_i32 : i32, i32
  }
}

module attributes {stable_mosaic.version = 11 : i64} {
  func.func @_mm_bias_act_kernel(%arg0: i32, %arg1: memref<800x288xf32, #tpu.memory_space<vmem>>, %arg2: memref<288x32xf32, #tpu.memory_space<vmem>>, %arg3: memref<1x32xf32, #tpu.memory_space<vmem>>, %arg4: memref<800x32xf32, #tpu.memory_space<vmem>>) attributes {dimension_semantics = [#tpu.dimension_semantics<parallel>], iteration_bounds = array<i64: 1>, scalar_prefetch = 0 : i64, scratch_operands = 0 : i64, tpu.core_type = #tpu.core_type<tc>, window_params = [{transform_indices = @transform_0, window_bounds = array<i64: 800, 288>}, {pipeline_mode = #tpu.pipeline_mode<synchronous>, transform_indices = @transform_1, window_bounds = array<i64: 288, 32>}, {pipeline_mode = #tpu.pipeline_mode<synchronous>, transform_indices = @transform_2, window_bounds = array<i64: 1, 32>}, {transform_indices = @transform_3, window_bounds = array<i64: 800, 32>}]} {
    %c0 = arith.constant 0 : index
    %c0_0 = arith.constant 0 : index
    %0 = vector.load %arg1[%c0, %c0_0] : memref<800x288xf32, #tpu.memory_space<vmem>>, vector<800x288xf32>
    %c0_1 = arith.constant 0 : index
    %c0_2 = arith.constant 0 : index
    %1 = vector.load %arg2[%c0_1, %c0_2] : memref<288x32xf32, #tpu.memory_space<vmem>>, vector<288x32xf32>
    %cst = arith.constant dense<0.000000e+00> : vector<800x32xf32>
    %2 = tpu.matmul %0, %1, %cst {dimension_numbers = #tpu.dot_dimension_numbers<[1], [0], [0], [1], [0, 0, 1, 1], [], []>} : vector<800x288xf32>, vector<288x32xf32>, vector<800x32xf32> -> vector<800x32xf32>
    %c0_3 = arith.constant 0 : index
    %c0_4 = arith.constant 0 : index
    %3 = vector.load %arg3[%c0_3, %c0_4] : memref<1x32xf32, #tpu.memory_space<vmem>>, vector<1x32xf32>
    %4 = vector.broadcast %3 : vector<1x32xf32> to vector<800x32xf32>
    %5 = arith.addf %2, %4 : vector<800x32xf32>
    %cst_5 = arith.constant 0.000000e+00 : f32
    %6 = vector.broadcast %cst_5 : f32 to vector<800x32xf32>
    %7 = arith.maximumf %5, %6 : vector<800x32xf32>
    %c0_6 = arith.constant 0 : index
    %c0_7 = arith.constant 0 : index
    %8 = vector.load %arg4[%c0_6, %c0_7] : memref<800x32xf32, #tpu.memory_space<vmem>>, vector<800x32xf32>
    tpu.vector_store %arg4[%c0_6, %c0_7], %7 {strides = array<i32>} : memref<800x32xf32, #tpu.memory_space<vmem>>, vector<800x32xf32>,
    return
  }
  func.func @transform_0(%arg0: i32) -> (i32, i32) {
    %c0_i32 = arith.constant 0 : i32
    %c0_i32_0 = arith.constant 0 : i32
    return %arg0, %c0_i32 : i32, i32
  }
  func.func @transform_1(%arg0: i32) -> (i32, i32) {
    %c0_i32 = arith.constant 0 : i32
    %c0_i32_0 = arith.constant 0 : i32
    %c0_i32_1 = arith.constant 0 : i32
    return %c0_i32, %c0_i32_0 : i32, i32
  }
  func.func @transform_2(%arg0: i32) -> (i32, i32) {
    %c0_i32 = arith.constant 0 : i32
    %c0_i32_0 = arith.constant 0 : i32
    %c0_i32_1 = arith.constant 0 : i32
    return %c0_i32, %c0_i32_0 : i32, i32
  }
  func.func @transform_3(%arg0: i32) -> (i32, i32) {
    %c0_i32 = arith.constant 0 : i32
    %c0_i32_0 = arith.constant 0 : i32
    return %arg0, %c0_i32 : i32, i32
  }
}

module attributes {stable_mosaic.version = 11 : i64} {
  func.func @_mm_bias_act_kernel(%arg0: i32, %arg1: memref<200x288xf32, #tpu.memory_space<vmem>>, %arg2: memref<288x16xf32, #tpu.memory_space<vmem>>, %arg3: memref<1x16xf32, #tpu.memory_space<vmem>>, %arg4: memref<200x16xf32, #tpu.memory_space<vmem>>) attributes {dimension_semantics = [#tpu.dimension_semantics<parallel>], iteration_bounds = array<i64: 1>, scalar_prefetch = 0 : i64, scratch_operands = 0 : i64, tpu.core_type = #tpu.core_type<tc>, window_params = [{transform_indices = @transform_0, window_bounds = array<i64: 200, 288>}, {pipeline_mode = #tpu.pipeline_mode<synchronous>, transform_indices = @transform_1, window_bounds = array<i64: 288, 16>}, {pipeline_mode = #tpu.pipeline_mode<synchronous>, transform_indices = @transform_2, window_bounds = array<i64: 1, 16>}, {transform_indices = @transform_3, window_bounds = array<i64: 200, 16>}]} {
    %c0 = arith.constant 0 : index
    %c0_0 = arith.constant 0 : index
    %0 = vector.load %arg1[%c0, %c0_0] : memref<200x288xf32, #tpu.memory_space<vmem>>, vector<200x288xf32>
    %c0_1 = arith.constant 0 : index
    %c0_2 = arith.constant 0 : index
    %1 = vector.load %arg2[%c0_1, %c0_2] : memref<288x16xf32, #tpu.memory_space<vmem>>, vector<288x16xf32>
    %cst = arith.constant dense<0.000000e+00> : vector<200x16xf32>
    %2 = tpu.matmul %0, %1, %cst {dimension_numbers = #tpu.dot_dimension_numbers<[1], [0], [0], [1], [0, 0, 1, 1], [], []>} : vector<200x288xf32>, vector<288x16xf32>, vector<200x16xf32> -> vector<200x16xf32>
    %c0_3 = arith.constant 0 : index
    %c0_4 = arith.constant 0 : index
    %3 = vector.load %arg3[%c0_3, %c0_4] : memref<1x16xf32, #tpu.memory_space<vmem>>, vector<1x16xf32>
    %4 = vector.broadcast %3 : vector<1x16xf32> to vector<200x16xf32>
    %5 = arith.addf %2, %4 : vector<200x16xf32>
    %cst_5 = arith.constant 0.000000e+00 : f32
    %6 = vector.broadcast %cst_5 : f32 to vector<200x16xf32>
    %7 = arith.maximumf %5, %6 : vector<200x16xf32>
    %c0_6 = arith.constant 0 : index
    %c0_7 = arith.constant 0 : index
    %8 = vector.load %arg4[%c0_6, %c0_7] : memref<200x16xf32, #tpu.memory_space<vmem>>, vector<200x16xf32>
    tpu.vector_store %arg4[%c0_6, %c0_7], %7 {strides = array<i32>} : memref<200x16xf32, #tpu.memory_space<vmem>>, vector<200x16xf32>,
    return
  }
  func.func @transform_0(%arg0: i32) -> (i32, i32) {
    %c0_i32 = arith.constant 0 : i32
    %c0_i32_0 = arith.constant 0 : i32
    return %arg0, %c0_i32 : i32, i32
  }
  func.func @transform_1(%arg0: i32) -> (i32, i32) {
    %c0_i32 = arith.constant 0 : i32
    %c0_i32_0 = arith.constant 0 : i32
    %c0_i32_1 = arith.constant 0 : i32
    return %c0_i32, %c0_i32_0 : i32, i32
  }
  func.func @transform_2(%arg0: i32) -> (i32, i32) {
    %c0_i32 = arith.constant 0 : i32
    %c0_i32_0 = arith.constant 0 : i32
    %c0_i32_1 = arith.constant 0 : i32
    return %c0_i32, %c0_i32_0 : i32, i32
  }
  func.func @transform_3(%arg0: i32) -> (i32, i32) {
    %c0_i32 = arith.constant 0 : i32
    %c0_i32_0 = arith.constant 0 : i32
    return %arg0, %c0_i32 : i32, i32
  }
}

module attributes {stable_mosaic.version = 11 : i64} {
  func.func @_mm_bias_act_kernel(%arg0: i32, %arg1: memref<56x144xf32, #tpu.memory_space<vmem>>, %arg2: memref<144x8xf32, #tpu.memory_space<vmem>>, %arg3: memref<1x8xf32, #tpu.memory_space<vmem>>, %arg4: memref<56x8xf32, #tpu.memory_space<vmem>>) attributes {dimension_semantics = [#tpu.dimension_semantics<parallel>], iteration_bounds = array<i64: 1>, scalar_prefetch = 0 : i64, scratch_operands = 0 : i64, tpu.core_type = #tpu.core_type<tc>, window_params = [{transform_indices = @transform_0, window_bounds = array<i64: 56, 144>}, {pipeline_mode = #tpu.pipeline_mode<synchronous>, transform_indices = @transform_1, window_bounds = array<i64: 144, 8>}, {pipeline_mode = #tpu.pipeline_mode<synchronous>, transform_indices = @transform_2, window_bounds = array<i64: 1, 8>}, {transform_indices = @transform_3, window_bounds = array<i64: 56, 8>}]} {
    %c0 = arith.constant 0 : index
    %c0_0 = arith.constant 0 : index
    %0 = vector.load %arg1[%c0, %c0_0] : memref<56x144xf32, #tpu.memory_space<vmem>>, vector<56x144xf32>
    %c0_1 = arith.constant 0 : index
    %c0_2 = arith.constant 0 : index
    %1 = vector.load %arg2[%c0_1, %c0_2] : memref<144x8xf32, #tpu.memory_space<vmem>>, vector<144x8xf32>
    %cst = arith.constant dense<0.000000e+00> : vector<56x8xf32>
    %2 = tpu.matmul %0, %1, %cst {dimension_numbers = #tpu.dot_dimension_numbers<[1], [0], [0], [1], [0, 0, 1, 1], [], []>} : vector<56x144xf32>, vector<144x8xf32>, vector<56x8xf32> -> vector<56x8xf32>
    %c0_3 = arith.constant 0 : index
    %c0_4 = arith.constant 0 : index
    %3 = vector.load %arg3[%c0_3, %c0_4] : memref<1x8xf32, #tpu.memory_space<vmem>>, vector<1x8xf32>
    %4 = vector.broadcast %3 : vector<1x8xf32> to vector<56x8xf32>
    %5 = arith.addf %2, %4 : vector<56x8xf32>
    %cst_5 = arith.constant 0.000000e+00 : f32
    %cst_6 = arith.constant 6.000000e+00 : f32
    %6 = vector.broadcast %cst_5 : f32 to vector<56x8xf32>
    %7 = arith.maximumf %6, %5 : vector<56x8xf32>
    %8 = vector.broadcast %cst_6 : f32 to vector<56x8xf32>
    %9 = arith.minimumf %8, %7 : vector<56x8xf32>
    %c0_7 = arith.constant 0 : index
    %c0_8 = arith.constant 0 : index
    %10 = vector.load %arg4[%c0_7, %c0_8] : memref<56x8xf32, #tpu.memory_space<vmem>>, vector<56x8xf32>
    tpu.vector_store %arg4[%c0_7, %c0_8], %9 {strides = array<i32>} : memref<56x8xf32, #tpu.memory_space<vmem>>, vector<56x8xf32>,
    return
  }
  func.func @transform_0(%arg0: i32) -> (i32, i32) {
    %c0_i32 = arith.constant 0 : i32
    %c0_i32_0 = arith.constant 0 : i32
    return %arg0, %c0_i32 : i32, i32
  }
  func.func @transform_1(%arg0: i32) -> (i32, i32) {
    %c0_i32 = arith.constant 0 : i32
    %c0_i32_0 = arith.constant 0 : i32
    %c0_i32_1 = arith.constant 0 : i32
    return %c0_i32, %c0_i32_0 : i32, i32
  }
  func.func @transform_2(%arg0: i32) -> (i32, i32) {
    %c0_i32 = arith.constant 0 : i32
    %c0_i32_0 = arith.constant 0 : i32
    %c0_i32_1 = arith.constant 0 : i32
    return %c0_i32, %c0_i32_0 : i32, i32
  }
  func.func @transform_3(%arg0: i32) -> (i32, i32) {
    %c0_i32 = arith.constant 0 : i32
    %c0_i32_0 = arith.constant 0 : i32
    return %arg0, %c0_i32 : i32, i32
  }
}

module attributes {stable_mosaic.version = 11 : i64} {
  func.func @_bottleneck_kernel(%arg0: i32, %arg1: memref<8x200xf32, #tpu.memory_space<vmem>>, %arg2: memref<200x128xf32, #tpu.memory_space<vmem>>, %arg3: memref<1x128xf32, #tpu.memory_space<vmem>>, %arg4: memref<128x16xf32, #tpu.memory_space<vmem>>, %arg5: memref<1x16xf32, #tpu.memory_space<vmem>>, %arg6: memref<16x128xf32, #tpu.memory_space<vmem>>, %arg7: memref<1x128xf32, #tpu.memory_space<vmem>>, %arg8: memref<128x200xf32, #tpu.memory_space<vmem>>, %arg9: memref<1x200xf32, #tpu.memory_space<vmem>>, %arg10: memref<8x16xf32, #tpu.memory_space<vmem>>, %arg11: memref<8x200xf32, #tpu.memory_space<vmem>>) attributes {dimension_semantics = [#tpu.dimension_semantics<arbitrary>], iteration_bounds = array<i64: 1>, scalar_prefetch = 0 : i64, scratch_operands = 0 : i64, tpu.core_type = #tpu.core_type<tc>, window_params = [{pipeline_mode = #tpu.pipeline_mode<synchronous>, transform_indices = @transform_0, window_bounds = array<i64: 8, 200>}, {pipeline_mode = #tpu.pipeline_mode<synchronous>, transform_indices = @transform_1, window_bounds = array<i64: 200, 128>}, {pipeline_mode = #tpu.pipeline_mode<synchronous>, transform_indices = @transform_2, window_bounds = array<i64: 1, 128>}, {pipeline_mode = #tpu.pipeline_mode<synchronous>, transform_indices = @transform_3, window_bounds = array<i64: 128, 16>}, {pipeline_mode = #tpu.pipeline_mode<synchronous>, transform_indices = @transform_4, window_bounds = array<i64: 1, 16>}, {pipeline_mode = #tpu.pipeline_mode<synchronous>, transform_indices = @transform_5, window_bounds = array<i64: 16, 128>}, {pipeline_mode = #tpu.pipeline_mode<synchronous>, transform_indices = @transform_6, window_bounds = array<i64: 1, 128>}, {pipeline_mode = #tpu.pipeline_mode<synchronous>, transform_indices = @transform_7, window_bounds = array<i64: 128, 200>}, {pipeline_mode = #tpu.pipeline_mode<synchronous>, transform_indices = @transform_8, window_bounds = array<i64: 1, 200>}, {pipeline_mode = #tpu.pipeline_mode<synchronous>, transform_indices = @transform_9, window_bounds = array<i64: 8, 16>}, {pipeline_mode = #tpu.pipeline_mode<synchronous>, transform_indices = @transform_10, window_bounds = array<i64: 8, 200>}]} {
    %c0 = arith.constant 0 : index
    %c0_0 = arith.constant 0 : index
    %0 = vector.load %arg1[%c0, %c0_0] : memref<8x200xf32, #tpu.memory_space<vmem>>, vector<8x200xf32>
    %c0_1 = arith.constant 0 : index
    %c0_2 = arith.constant 0 : index
    %1 = vector.load %arg2[%c0_1, %c0_2] : memref<200x128xf32, #tpu.memory_space<vmem>>, vector<200x128xf32>
    %cst = arith.constant dense<0.000000e+00> : vector<8x128xf32>
    %2 = tpu.matmul %0, %1, %cst {dimension_numbers = #tpu.dot_dimension_numbers<[1], [0], [0], [1], [0, 0, 1, 1], [], []>} : vector<8x200xf32>, vector<200x128xf32>, vector<8x128xf32> -> vector<8x128xf32>
    %c0_3 = arith.constant 0 : index
    %c0_4 = arith.constant 0 : index
    %3 = vector.load %arg3[%c0_3, %c0_4] : memref<1x128xf32, #tpu.memory_space<vmem>>, vector<1x128xf32>
    %4 = vector.broadcast %3 : vector<1x128xf32> to vector<8x128xf32>
    %5 = arith.addf %2, %4 : vector<8x128xf32>
    %6 = math.tanh %5 : vector<8x128xf32>
    %c0_5 = arith.constant 0 : index
    %c0_6 = arith.constant 0 : index
    %7 = vector.load %arg4[%c0_5, %c0_6] : memref<128x16xf32, #tpu.memory_space<vmem>>, vector<128x16xf32>
    %cst_7 = arith.constant dense<0.000000e+00> : vector<8x16xf32>
    %8 = tpu.matmul %6, %7, %cst_7 {dimension_numbers = #tpu.dot_dimension_numbers<[1], [0], [0], [1], [0, 0, 1, 1], [], []>} : vector<8x128xf32>, vector<128x16xf32>, vector<8x16xf32> -> vector<8x16xf32>
    %c0_8 = arith.constant 0 : index
    %c0_9 = arith.constant 0 : index
    %9 = vector.load %arg5[%c0_8, %c0_9] : memref<1x16xf32, #tpu.memory_space<vmem>>, vector<1x16xf32>
    %10 = vector.broadcast %9 : vector<1x16xf32> to vector<8x16xf32>
    %11 = arith.addf %8, %10 : vector<8x16xf32>
    %12 = math.tanh %11 : vector<8x16xf32>
    %cst_10 = arith.constant 1.500000e+00 : f32
    %13 = vector.broadcast %cst_10 : f32 to vector<8x16xf32>
    %14 = arith.mulf %13, %12 : vector<8x16xf32>
    %cst_11 = arith.constant -3.000000e+00 : f32
    %15 = vector.broadcast %cst_11 : f32 to vector<8x16xf32>
    %16 = arith.mulf %15, %11 : vector<8x16xf32>
    %17 = math.tanh %16 : vector<8x16xf32>
    %cst_12 = arith.constant 5.000000e-01 : f32
    %18 = vector.broadcast %cst_12 : f32 to vector<8x16xf32>
    %19 = arith.mulf %18, %17 : vector<8x16xf32>
    %20 = arith.addf %14, %19 : vector<8x16xf32>
    %c0_13 = arith.constant 0 : index
    %c0_14 = arith.constant 0 : index
    %21 = vector.load %arg10[%c0_13, %c0_14] : memref<8x16xf32, #tpu.memory_space<vmem>>, vector<8x16xf32>
    tpu.vector_store %arg10[%c0_13, %c0_14], %20 {strides = array<i32>} : memref<8x16xf32, #tpu.memory_space<vmem>>, vector<8x16xf32>,
    %c0_15 = arith.constant 0 : index
    %c0_16 = arith.constant 0 : index
    %22 = vector.load %arg6[%c0_15, %c0_16] : memref<16x128xf32, #tpu.memory_space<vmem>>, vector<16x128xf32>
    %cst_17 = arith.constant dense<0.000000e+00> : vector<8x128xf32>
    %23 = tpu.matmul %20, %22, %cst_17 {dimension_numbers = #tpu.dot_dimension_numbers<[1], [0], [0], [1], [0, 0, 1, 1], [], []>} : vector<8x16xf32>, vector<16x128xf32>, vector<8x128xf32> -> vector<8x128xf32>
    %c0_18 = arith.constant 0 : index
    %c0_19 = arith.constant 0 : index
    %24 = vector.load %arg7[%c0_18, %c0_19] : memref<1x128xf32, #tpu.memory_space<vmem>>, vector<1x128xf32>
    %25 = vector.broadcast %24 : vector<1x128xf32> to vector<8x128xf32>
    %26 = arith.addf %23, %25 : vector<8x128xf32>
    %27 = math.tanh %26 : vector<8x128xf32>
    %c0_20 = arith.constant 0 : index
    %c0_21 = arith.constant 0 : index
    %28 = vector.load %arg8[%c0_20, %c0_21] : memref<128x200xf32, #tpu.memory_space<vmem>>, vector<128x200xf32>
    %cst_22 = arith.constant dense<0.000000e+00> : vector<8x200xf32>
    %29 = tpu.matmul %27, %28, %cst_22 {dimension_numbers = #tpu.dot_dimension_numbers<[1], [0], [0], [1], [0, 0, 1, 1], [], []>} : vector<8x128xf32>, vector<128x200xf32>, vector<8x200xf32> -> vector<8x200xf32>
    %c0_23 = arith.constant 0 : index
    %c0_24 = arith.constant 0 : index
    %30 = vector.load %arg9[%c0_23, %c0_24] : memref<1x200xf32, #tpu.memory_space<vmem>>, vector<1x200xf32>
    %31 = vector.broadcast %30 : vector<1x200xf32> to vector<8x200xf32>
    %32 = arith.addf %29, %31 : vector<8x200xf32>
    %cst_25 = arith.constant 0.000000e+00 : f32
    %cst_26 = arith.constant 6.000000e+00 : f32
    %33 = vector.broadcast %cst_25 : f32 to vector<8x200xf32>
    %34 = arith.maximumf %33, %32 : vector<8x200xf32>
    %35 = vector.broadcast %cst_26 : f32 to vector<8x200xf32>
    %36 = arith.minimumf %35, %34 : vector<8x200xf32>
    %c0_27 = arith.constant 0 : index
    %c0_28 = arith.constant 0 : index
    %37 = vector.load %arg11[%c0_27, %c0_28] : memref<8x200xf32, #tpu.memory_space<vmem>>, vector<8x200xf32>
    tpu.vector_store %arg11[%c0_27, %c0_28], %36 {strides = array<i32>} : memref<8x200xf32, #tpu.memory_space<vmem>>, vector<8x200xf32>,
    return
  }
  func.func @transform_0(%arg0: i32) -> (i32, i32) {
    %c0_i32 = arith.constant 0 : i32
    %c0_i32_0 = arith.constant 0 : i32
    %c0_i32_1 = arith.constant 0 : i32
    return %c0_i32, %c0_i32_0 : i32, i32
  }
  func.func @transform_1(%arg0: i32) -> (i32, i32) {
    %c0_i32 = arith.constant 0 : i32
    %c0_i32_0 = arith.constant 0 : i32
    %c0_i32_1 = arith.constant 0 : i32
    return %c0_i32, %c0_i32_0 : i32, i32
  }
  func.func @transform_2(%arg0: i32) -> (i32, i32) {
    %c0_i32 = arith.constant 0 : i32
    %c0_i32_0 = arith.constant 0 : i32
    %c0_i32_1 = arith.constant 0 : i32
    return %c0_i32, %c0_i32_0 : i32, i32
  }
  func.func @transform_3(%arg0: i32) -> (i32, i32) {
    %c0_i32 = arith.constant 0 : i32
    %c0_i32_0 = arith.constant 0 : i32
    %c0_i32_1 = arith.constant 0 : i32
    return %c0_i32, %c0_i32_0 : i32, i32
  }
  func.func @transform_4(%arg0: i32) -> (i32, i32) {
    %c0_i32 = arith.constant 0 : i32
    %c0_i32_0 = arith.constant 0 : i32
    %c0_i32_1 = arith.constant 0 : i32
    return %c0_i32, %c0_i32_0 : i32, i32
  }
  func.func @transform_5(%arg0: i32) -> (i32, i32) {
    %c0_i32 = arith.constant 0 : i32
    %c0_i32_0 = arith.constant 0 : i32
    %c0_i32_1 = arith.constant 0 : i32
    return %c0_i32, %c0_i32_0 : i32, i32
  }
  func.func @transform_6(%arg0: i32) -> (i32, i32) {
    %c0_i32 = arith.constant 0 : i32
    %c0_i32_0 = arith.constant 0 : i32
    %c0_i32_1 = arith.constant 0 : i32
    return %c0_i32, %c0_i32_0 : i32, i32
  }
  func.func @transform_7(%arg0: i32) -> (i32, i32) {
    %c0_i32 = arith.constant 0 : i32
    %c0_i32_0 = arith.constant 0 : i32
    %c0_i32_1 = arith.constant 0 : i32
    return %c0_i32, %c0_i32_0 : i32, i32
  }
  func.func @transform_8(%arg0: i32) -> (i32, i32) {
    %c0_i32 = arith.constant 0 : i32
    %c0_i32_0 = arith.constant 0 : i32
    %c0_i32_1 = arith.constant 0 : i32
    return %c0_i32, %c0_i32_0 : i32, i32
  }
  func.func @transform_9(%arg0: i32) -> (i32, i32) {
    %c0_i32 = arith.constant 0 : i32
    %c0_i32_0 = arith.constant 0 : i32
    %c0_i32_1 = arith.constant 0 : i32
    return %c0_i32, %c0_i32_0 : i32, i32
  }
  func.func @transform_10(%arg0: i32) -> (i32, i32) {
    %c0_i32 = arith.constant 0 : i32
    %c0_i32_0 = arith.constant 0 : i32
    %c0_i32_1 = arith.constant 0 : i32
    return %c0_i32, %c0_i32_0 : i32, i32
  }
}

module attributes {stable_mosaic.version = 11 : i64} {
  func.func @_mm_bias_act_kernel(%arg0: i32, %arg1: memref<56x32xf32, #tpu.memory_space<vmem>>, %arg2: memref<32x64xf32, #tpu.memory_space<vmem>>, %arg3: memref<1x64xf32, #tpu.memory_space<vmem>>, %arg4: memref<56x64xf32, #tpu.memory_space<vmem>>) attributes {dimension_semantics = [#tpu.dimension_semantics<parallel>], iteration_bounds = array<i64: 1>, scalar_prefetch = 0 : i64, scratch_operands = 0 : i64, tpu.core_type = #tpu.core_type<tc>, window_params = [{transform_indices = @transform_0, window_bounds = array<i64: 56, 32>}, {pipeline_mode = #tpu.pipeline_mode<synchronous>, transform_indices = @transform_1, window_bounds = array<i64: 32, 64>}, {pipeline_mode = #tpu.pipeline_mode<synchronous>, transform_indices = @transform_2, window_bounds = array<i64: 1, 64>}, {transform_indices = @transform_3, window_bounds = array<i64: 56, 64>}]} {
    %c0 = arith.constant 0 : index
    %c0_0 = arith.constant 0 : index
    %0 = vector.load %arg1[%c0, %c0_0] : memref<56x32xf32, #tpu.memory_space<vmem>>, vector<56x32xf32>
    %c0_1 = arith.constant 0 : index
    %c0_2 = arith.constant 0 : index
    %1 = vector.load %arg2[%c0_1, %c0_2] : memref<32x64xf32, #tpu.memory_space<vmem>>, vector<32x64xf32>
    %cst = arith.constant dense<0.000000e+00> : vector<56x64xf32>
    %2 = tpu.matmul %0, %1, %cst {dimension_numbers = #tpu.dot_dimension_numbers<[1], [0], [0], [1], [0, 0, 1, 1], [], []>} : vector<56x32xf32>, vector<32x64xf32>, vector<56x64xf32> -> vector<56x64xf32>
    %c0_3 = arith.constant 0 : index
    %c0_4 = arith.constant 0 : index
    %3 = vector.load %arg3[%c0_3, %c0_4] : memref<1x64xf32, #tpu.memory_space<vmem>>, vector<1x64xf32>
    %4 = vector.broadcast %3 : vector<1x64xf32> to vector<56x64xf32>
    %5 = arith.addf %2, %4 : vector<56x64xf32>
    %cst_5 = arith.constant 0.000000e+00 : f32
    %6 = vector.broadcast %cst_5 : f32 to vector<56x64xf32>
    %7 = arith.maximumf %5, %6 : vector<56x64xf32>
    %c0_6 = arith.constant 0 : index
    %c0_7 = arith.constant 0 : index
    %8 = vector.load %arg4[%c0_6, %c0_7] : memref<56x64xf32, #tpu.memory_space<vmem>>, vector<56x64xf32>
    tpu.vector_store %arg4[%c0_6, %c0_7], %7 {strides = array<i32>} : memref<56x64xf32, #tpu.memory_space<vmem>>, vector<56x64xf32>,
    return
  }
  func.func @transform_0(%arg0: i32) -> (i32, i32) {
    %c0_i32 = arith.constant 0 : i32
    %c0_i32_0 = arith.constant 0 : i32
    return %arg0, %c0_i32 : i32, i32
  }
  func.func @transform_1(%arg0: i32) -> (i32, i32) {
    %c0_i32 = arith.constant 0 : i32
    %c0_i32_0 = arith.constant 0 : i32
    %c0_i32_1 = arith.constant 0 : i32
    return %c0_i32, %c0_i32_0 : i32, i32
  }
  func.func @transform_2(%arg0: i32) -> (i32, i32) {
    %c0_i32 = arith.constant 0 : i32
    %c0_i32_0 = arith.constant 0 : i32
    %c0_i32_1 = arith.constant 0 : i32
    return %c0_i32, %c0_i32_0 : i32, i32
  }
  func.func @transform_3(%arg0: i32) -> (i32, i32) {
    %c0_i32 = arith.constant 0 : i32
    %c0_i32_0 = arith.constant 0 : i32
    return %arg0, %c0_i32 : i32, i32
  }
}

module attributes {stable_mosaic.version = 11 : i64} {
  func.func @_mm_bias_act_kernel(%arg0: i32, %arg1: memref<200x64xf32, #tpu.memory_space<vmem>>, %arg2: memref<64x128xf32, #tpu.memory_space<vmem>>, %arg3: memref<1x128xf32, #tpu.memory_space<vmem>>, %arg4: memref<200x128xf32, #tpu.memory_space<vmem>>) attributes {dimension_semantics = [#tpu.dimension_semantics<parallel>], iteration_bounds = array<i64: 1>, scalar_prefetch = 0 : i64, scratch_operands = 0 : i64, tpu.core_type = #tpu.core_type<tc>, window_params = [{transform_indices = @transform_0, window_bounds = array<i64: 200, 64>}, {pipeline_mode = #tpu.pipeline_mode<synchronous>, transform_indices = @transform_1, window_bounds = array<i64: 64, 128>}, {pipeline_mode = #tpu.pipeline_mode<synchronous>, transform_indices = @transform_2, window_bounds = array<i64: 1, 128>}, {transform_indices = @transform_3, window_bounds = array<i64: 200, 128>}]} {
    %c0 = arith.constant 0 : index
    %c0_0 = arith.constant 0 : index
    %0 = vector.load %arg1[%c0, %c0_0] : memref<200x64xf32, #tpu.memory_space<vmem>>, vector<200x64xf32>
    %c0_1 = arith.constant 0 : index
    %c0_2 = arith.constant 0 : index
    %1 = vector.load %arg2[%c0_1, %c0_2] : memref<64x128xf32, #tpu.memory_space<vmem>>, vector<64x128xf32>
    %cst = arith.constant dense<0.000000e+00> : vector<200x128xf32>
    %2 = tpu.matmul %0, %1, %cst {dimension_numbers = #tpu.dot_dimension_numbers<[1], [0], [0], [1], [0, 0, 1, 1], [], []>} : vector<200x64xf32>, vector<64x128xf32>, vector<200x128xf32> -> vector<200x128xf32>
    %c0_3 = arith.constant 0 : index
    %c0_4 = arith.constant 0 : index
    %3 = vector.load %arg3[%c0_3, %c0_4] : memref<1x128xf32, #tpu.memory_space<vmem>>, vector<1x128xf32>
    %4 = vector.broadcast %3 : vector<1x128xf32> to vector<200x128xf32>
    %5 = arith.addf %2, %4 : vector<200x128xf32>
    %cst_5 = arith.constant 0.000000e+00 : f32
    %6 = vector.broadcast %cst_5 : f32 to vector<200x128xf32>
    %7 = arith.maximumf %5, %6 : vector<200x128xf32>
    %c0_6 = arith.constant 0 : index
    %c0_7 = arith.constant 0 : index
    %8 = vector.load %arg4[%c0_6, %c0_7] : memref<200x128xf32, #tpu.memory_space<vmem>>, vector<200x128xf32>
    tpu.vector_store %arg4[%c0_6, %c0_7], %7 {strides = array<i32>} : memref<200x128xf32, #tpu.memory_space<vmem>>, vector<200x128xf32>,
    return
  }
  func.func @transform_0(%arg0: i32) -> (i32, i32) {
    %c0_i32 = arith.constant 0 : i32
    %c0_i32_0 = arith.constant 0 : i32
    return %arg0, %c0_i32 : i32, i32
  }
  func.func @transform_1(%arg0: i32) -> (i32, i32) {
    %c0_i32 = arith.constant 0 : i32
    %c0_i32_0 = arith.constant 0 : i32
    %c0_i32_1 = arith.constant 0 : i32
    return %c0_i32, %c0_i32_0 : i32, i32
  }
  func.func @transform_2(%arg0: i32) -> (i32, i32) {
    %c0_i32 = arith.constant 0 : i32
    %c0_i32_0 = arith.constant 0 : i32
    %c0_i32_1 = arith.constant 0 : i32
    return %c0_i32, %c0_i32_0 : i32, i32
  }
  func.func @transform_3(%arg0: i32) -> (i32, i32) {
    %c0_i32 = arith.constant 0 : i32
    %c0_i32_0 = arith.constant 0 : i32
    return %arg0, %c0_i32 : i32, i32
  }
}

module attributes {stable_mosaic.version = 11 : i64} {
  func.func @_mm_bias_act_kernel(%arg0: i32, %arg1: memref<800x128xf32, #tpu.memory_space<vmem>>, %arg2: memref<128x128xf32, #tpu.memory_space<vmem>>, %arg3: memref<1x128xf32, #tpu.memory_space<vmem>>, %arg4: memref<800x128xf32, #tpu.memory_space<vmem>>) attributes {dimension_semantics = [#tpu.dimension_semantics<parallel>], iteration_bounds = array<i64: 1>, scalar_prefetch = 0 : i64, scratch_operands = 0 : i64, tpu.core_type = #tpu.core_type<tc>, window_params = [{transform_indices = @transform_0, window_bounds = array<i64: 800, 128>}, {pipeline_mode = #tpu.pipeline_mode<synchronous>, transform_indices = @transform_1, window_bounds = array<i64: 128, 128>}, {pipeline_mode = #tpu.pipeline_mode<synchronous>, transform_indices = @transform_2, window_bounds = array<i64: 1, 128>}, {transform_indices = @transform_3, window_bounds = array<i64: 800, 128>}]} {
    %c0 = arith.constant 0 : index
    %c0_0 = arith.constant 0 : index
    %0 = vector.load %arg1[%c0, %c0_0] : memref<800x128xf32, #tpu.memory_space<vmem>>, vector<800x128xf32>
    %c0_1 = arith.constant 0 : index
    %c0_2 = arith.constant 0 : index
    %1 = vector.load %arg2[%c0_1, %c0_2] : memref<128x128xf32, #tpu.memory_space<vmem>>, vector<128x128xf32>
    %cst = arith.constant dense<0.000000e+00> : vector<800x128xf32>
    %2 = tpu.matmul %0, %1, %cst {dimension_numbers = #tpu.dot_dimension_numbers<[1], [0], [0], [1], [0, 0, 1, 1], [], []>} : vector<800x128xf32>, vector<128x128xf32>, vector<800x128xf32> -> vector<800x128xf32>
    %c0_3 = arith.constant 0 : index
    %c0_4 = arith.constant 0 : index
    %3 = vector.load %arg3[%c0_3, %c0_4] : memref<1x128xf32, #tpu.memory_space<vmem>>, vector<1x128xf32>
    %4 = vector.broadcast %3 : vector<1x128xf32> to vector<800x128xf32>
    %5 = arith.addf %2, %4 : vector<800x128xf32>
    %cst_5 = arith.constant 0.000000e+00 : f32
    %6 = vector.broadcast %cst_5 : f32 to vector<800x128xf32>
    %7 = arith.maximumf %5, %6 : vector<800x128xf32>
    %c0_6 = arith.constant 0 : index
    %c0_7 = arith.constant 0 : index
    %8 = vector.load %arg4[%c0_6, %c0_7] : memref<800x128xf32, #tpu.memory_space<vmem>>, vector<800x128xf32>
    tpu.vector_store %arg4[%c0_6, %c0_7], %7 {strides = array<i32>} : memref<800x128xf32, #tpu.memory_space<vmem>>, vector<800x128xf32>,
    return
  }
  func.func @transform_0(%arg0: i32) -> (i32, i32) {
    %c0_i32 = arith.constant 0 : i32
    %c0_i32_0 = arith.constant 0 : i32
    return %arg0, %c0_i32 : i32, i32
  }
  func.func @transform_1(%arg0: i32) -> (i32, i32) {
    %c0_i32 = arith.constant 0 : i32
    %c0_i32_0 = arith.constant 0 : i32
    %c0_i32_1 = arith.constant 0 : i32
    return %c0_i32, %c0_i32_0 : i32, i32
  }
  func.func @transform_2(%arg0: i32) -> (i32, i32) {
    %c0_i32 = arith.constant 0 : i32
    %c0_i32_0 = arith.constant 0 : i32
    %c0_i32_1 = arith.constant 0 : i32
    return %c0_i32, %c0_i32_0 : i32, i32
  }
  func.func @transform_3(%arg0: i32) -> (i32, i32) {
    %c0_i32 = arith.constant 0 : i32
    %c0_i32_0 = arith.constant 0 : i32
    return %arg0, %c0_i32 : i32, i32
  }
}

module attributes {stable_mosaic.version = 11 : i64} {
  func.func @_mm_bias_act_kernel(%arg0: i32, %arg1: memref<1600x128xf32, #tpu.memory_space<vmem>>, %arg2: memref<128x16xf32, #tpu.memory_space<vmem>>, %arg3: memref<1x16xf32, #tpu.memory_space<vmem>>, %arg4: memref<1600x16xf32, #tpu.memory_space<vmem>>) attributes {dimension_semantics = [#tpu.dimension_semantics<parallel>], iteration_bounds = array<i64: 2>, scalar_prefetch = 0 : i64, scratch_operands = 0 : i64, tpu.core_type = #tpu.core_type<tc>, window_params = [{transform_indices = @transform_0, window_bounds = array<i64: 1600, 128>}, {pipeline_mode = #tpu.pipeline_mode<synchronous>, transform_indices = @transform_1, window_bounds = array<i64: 128, 16>}, {pipeline_mode = #tpu.pipeline_mode<synchronous>, transform_indices = @transform_2, window_bounds = array<i64: 1, 16>}, {transform_indices = @transform_3, window_bounds = array<i64: 1600, 16>}]} {
    %c0 = arith.constant 0 : index
    %c0_0 = arith.constant 0 : index
    %0 = vector.load %arg1[%c0, %c0_0] : memref<1600x128xf32, #tpu.memory_space<vmem>>, vector<1600x128xf32>
    %c0_1 = arith.constant 0 : index
    %c0_2 = arith.constant 0 : index
    %1 = vector.load %arg2[%c0_1, %c0_2] : memref<128x16xf32, #tpu.memory_space<vmem>>, vector<128x16xf32>
    %cst = arith.constant dense<0.000000e+00> : vector<1600x16xf32>
    %2 = tpu.matmul %0, %1, %cst {dimension_numbers = #tpu.dot_dimension_numbers<[1], [0], [0], [1], [0, 0, 1, 1], [], []>} : vector<1600x128xf32>, vector<128x16xf32>, vector<1600x16xf32> -> vector<1600x16xf32>
    %c0_3 = arith.constant 0 : index
    %c0_4 = arith.constant 0 : index
    %3 = vector.load %arg3[%c0_3, %c0_4] : memref<1x16xf32, #tpu.memory_space<vmem>>, vector<1x16xf32>
    %4 = vector.broadcast %3 : vector<1x16xf32> to vector<1600x16xf32>
    %5 = arith.addf %2, %4 : vector<1600x16xf32>
    %6 = arith.negf %5 : vector<1600x16xf32>
    %7 = math.exp %6 : vector<1600x16xf32>
    %cst_5 = arith.constant 1.000000e+00 : f32
    %8 = vector.broadcast %cst_5 : f32 to vector<1600x16xf32>
    %9 = arith.addf %8, %7 : vector<1600x16xf32>
    %10 = arith.divf %8, %9 : vector<1600x16xf32>
    %c0_6 = arith.constant 0 : index
    %c0_7 = arith.constant 0 : index
    %11 = vector.load %arg4[%c0_6, %c0_7] : memref<1600x16xf32, #tpu.memory_space<vmem>>, vector<1600x16xf32>
    tpu.vector_store %arg4[%c0_6, %c0_7], %10 {strides = array<i32>} : memref<1600x16xf32, #tpu.memory_space<vmem>>, vector<1600x16xf32>,
    return
  }
  func.func @transform_0(%arg0: i32) -> (i32, i32) {
    %c0_i32 = arith.constant 0 : i32
    %c0_i32_0 = arith.constant 0 : i32
    return %arg0, %c0_i32 : i32, i32
  }
  func.func @transform_1(%arg0: i32) -> (i32, i32) {
    %c0_i32 = arith.constant 0 : i32
    %c0_i32_0 = arith.constant 0 : i32
    %c0_i32_1 = arith.constant 0 : i32
    return %c0_i32, %c0_i32_0 : i32, i32
  }
  func.func @transform_2(%arg0: i32) -> (i32, i32) {
    %c0_i32 = arith.constant 0 : i32
    %c0_i32_0 = arith.constant 0 : i32
    %c0_i32_1 = arith.constant 0 : i32
    return %c0_i32, %c0_i32_0 : i32, i32
  }
  func.func @transform_3(%arg0: i32) -> (i32, i32) {
    %c0_i32 = arith.constant 0 : i32
    %c0_i32_0 = arith.constant 0 : i32
    return %arg0, %c0_i32 : i32, i32
  }
}

</mosaic_0001>

<llo_original>
// kernel: forward.9
$region0: #{forward.9}
  #allocation0 [shape = 'u32[]', space=smem, size = 0x4, offset = 0x4, fixed_abs, tag = 'smem constant byte address 0x4 - core index']
  #allocation1 [shape = 'u32[144,128]{1,0:T(1,128)}', space=vmem, size = 0x12000, scoped, tag = 'internal scratch']
  %s0 = inlined_call_operand.vmem [shape: f32[3200,36], index: 0, kind: input, shape index: {}]
  %s1 = inlined_call_operand.vmem [shape: f32[36,32], index: 1, kind: input, shape index: {}]
  %s2 = inlined_call_operand.vmem [shape: f32[1,32], index: 2, kind: input, shape index: {}]
  %s3 = inlined_call_operand.vmem [shape: f32[3200,32], index: 3, kind: output, shape index: {}]
  %s4 = sld [smem:[#allocation0]]
  $region45: #{forward.9} parent=0
    _
  %s6 = ssub.s32 1, %s4
  %s7 = scalar_select 0, %s6, %s4
  loop: start=0, step=1, limit=4
  $region2: #{forward.9} parent=0 // loop_pre_header
    _
  $region3: #{forward.9} parent=0 // loop_header
    %s9 = sphi 0, %s13
    %p10 = scmp.ge.s32.totalorder %s9, 4
    %s19 = sphi 0, %s21
    %s22 = sphi 0, %s19
    %s23 = sphi 0, %s22
    %s39 = sphi 0, %s23
    %s43 = sphi 0, %s43
    %s45 = sphi 0, %s43
    %s46 = sphi 0, %s45
    %s60 = sphi 0, %s46
    %s64 = sphi 0, %s64
    %s66 = sphi 0, %s64
    %s67 = sphi 0, %s66
    %s81 = sphi 0, %s67
    %s87 = sphi 0, %s89
    %s90 = sphi 0, %s87
    %s91 = sphi 0, %s90
    %s107 = sphi 0, %s91
  $region4: #{forward.9} parent=0 // loop_header_branch
    %12 = sbr.rel (%p10) target = $region8
  $region5: #{forward.9} parent=0 // loop_body
    %s14 = ssub.s32 %s9, 1
    %s15 = ssub.s32 %s9, 2
    %s16 = sadd.s32 %s9, 1
    %s17 = ssub.s32 %s9, %s16
    %p18 = scmp.eq.s32.totalorder %s17, 0
    %s20 = sadd.s32 %s19, 1
    %s21 = scalar_select %p18, %s19, %s20
    %p24 = pneg %p18
    %p25 = scmp.eq.s32.totalorder %s9, 1
    %p26 = por %p24, %p25
    %p27 = scmp.ne.s32.totalorder %s19, %s22
    %p28 = scmp.eq.s32.totalorder %s9, 0
    %p29 = por %p27, %p28
    %p30 = scmp.ne.s32.totalorder %s19, %s22
    %p31 = scmp.eq.s32.totalorder %s14, 1
    %p32 = por %p30, %p31
    %p33 = scmp.ne.s32.totalorder %s22, %s23
    %p34 = scmp.eq.s32.totalorder %s14, 0
    %p35 = por %p33, %p34
    %p36 = scmp.ne.s32.totalorder %s22, %s23
    %p37 = scmp.eq.s32.totalorder %s15, 1
    %p38 = por %p36, %p37
    %p40 = scmp.ne.s32.totalorder %s23, %s39
    %p41 = scmp.eq.s32.totalorder %s15, 0
    %p42 = por %p40, %p41
    %s44 = sadd.s32 %s43, 1
    %p47 = scmp.eq.s32.totalorder %s9, 1
    %p48 = scmp.ne.s32.totalorder %s43, %s45
    %p49 = scmp.eq.s32.totalorder %s9, 0
    %p50 = por %p48, %p49
    %p51 = scmp.ne.s32.totalorder %s43, %s45
    %p52 = scmp.eq.s32.totalorder %s14, 1
    %p53 = por %p51, %p52
    %p54 = scmp.ne.s32.totalorder %s45, %s46
    %p55 = scmp.eq.s32.totalorder %s14, 0
    %p56 = por %p54, %p55
    %p57 = scmp.ne.s32.totalorder %s45, %s46
    %p58 = scmp.eq.s32.totalorder %s15, 1
    %p59 = por %p57, %p58
    %p61 = scmp.ne.s32.totalorder %s46, %s60
    %p62 = scmp.eq.s32.totalorder %s15, 0
    %p63 = por %p61, %p62
    %s65 = sadd.s32 %s64, 1
    %p68 = scmp.eq.s32.totalorder %s9, 1
    %p69 = scmp.ne.s32.totalorder %s64, %s66
    %p70 = scmp.eq.s32.totalorder %s9, 0
    %p71 = por %p69, %p70
    %p72 = scmp.ne.s32.totalorder %s64, %s66
    %p73 = scmp.eq.s32.totalorder %s14, 1
    %p74 = por %p72, %p73
    %p75 = scmp.ne.s32.totalorder %s66, %s67
    %p76 = scmp.eq.s32.totalorder %s14, 0
    %p77 = por %p75, %p76
    %p78 = scmp.ne.s32.totalorder %s66, %s67
    %p79 = scmp.eq.s32.totalorder %s15, 1
    %p80 = por %p78, %p79
    %p82 = scmp.ne.s32.totalorder %s67, %s81
    %p83 = scmp.eq.s32.totalorder %s15, 0
    %p84 = por %p82, %p83
    %s85 = ssub.s32 %s9, %s16
    %p86 = scmp.eq.s32.totalorder %s85, 0
    %s88 = sadd.s32 %s87, 1
    %s89 = scalar_select %p86, %s87, %s88
    %p92 = pneg %p86
    %p93 = scmp.eq.s32.totalorder %s9, 1
    %p94 = por %p92, %p93
    %p95 = scmp.ne.s32.totalorder %s87, %s90
    %p96 = scmp.eq.s32.totalorder %s9, 0
    %p97 = por %p95, %p96
    %p98 = scmp.ne.s32.totalorder %s87, %s90
    %p99 = scmp.eq.s32.totalorder %s14, 1
    %p100 = por %p98, %p99
    %p101 = scmp.ne.s32.totalorder %s90, %s91
    %p102 = scmp.eq.s32.totalorder %s14, 0
    %p103 = por %p101, %p102
    %p104 = scmp.ne.s32.totalorder %s90, %s91
    %p105 = scmp.eq.s32.totalorder %s15, 1
    %p106 = por %p104, %p105
    %p108 = scmp.ne.s32.totalorder %s91, %s107
    %p109 = scmp.eq.s32.totalorder %s15, 0
    %p110 = por %p108, %p109
    %p111 = scmp.le.s32.totalorder 1, %s9
    %p112 = scmp.lt.s32.totalorder %s9, 3
    %p113 = pnand %p111, %p112
    %p114 = pneg %p113
    // Predicated region
    $region9: #{forward.9} parent=5 // pred_check
      _
    $region10: #{forward.9} parent=5 // pred_check_branch
      %116 = sbr.rel (%p113) target = $region12
    $region11: #{forward.9} parent=5 // pred_region
      %s117 = ssub.s32 %s9, 1
      // Predicated region
      $region13: #{forward.9} parent=11 // pred_check
        %p118 = pneg %p56
      $region14: #{forward.9} parent=11 // pred_check_branch
        %120 = sbr.rel (%p118) target = $region16
      $region15: #{forward.9} parent=11 // pred_region
        _
      $region16: #{forward.9} parent=11 // pred_fallthru
        _
      // Predicated region
      $region17: #{forward.9} parent=11 // pred_check
        %p121 = pneg %p77
      $region18: #{forward.9} parent=11 // pred_check_branch
        %123 = sbr.rel (%p121) target = $region20
      $region19: #{forward.9} parent=11 // pred_region
        _
      $region20: #{forward.9} parent=11 // pred_fallthru
        _
    $region12: #{forward.9} parent=5 // pred_fallthru
      _
    %p124 = scmp.lt.s32.totalorder %s9, 2
    // Predicated region
    $region21: #{forward.9} parent=5 // pred_check
      %p125 = pneg %p124
    $region22: #{forward.9} parent=5 // pred_check_branch
      %127 = sbr.rel (%p125) target = $region24
    $region23: #{forward.9} parent=5 // pred_region
      // Predicated region
      $region25: #{forward.9} parent=23 // pred_check
        %p128 = pneg %p29
      $region26: #{forward.9} parent=23 // pred_check_branch
        %130 = sbr.rel (%p128) target = $region28
      $region27: #{forward.9} parent=23 // pred_region
        %s131 = smul.u32 200, %s9
        %p132 = scmp.lt.s32.totalorder %s131, 399
        %s133 = scalar_select %p132, %s131, 399
        %s134 = smul.addr %s133, 8
        %s135 = scalar_lea.vmem %s0, %s134
        %s136 = smul.u32 200, %s9
      $region28: #{forward.9} parent=23 // pred_fallthru
        _
    $region24: #{forward.9} parent=5 // pred_fallthru
      _
    %p137 = scmp.le.s32.totalorder 1, %s9
    %p138 = scmp.lt.s32.totalorder %s9, 3
    %p139 = pnand %p137, %p138
    %p140 = pneg %p139
    // Predicated region
    $region29: #{forward.9} parent=5 // pred_check
      _
    $region30: #{forward.9} parent=5 // pred_check_branch
      %142 = sbr.rel (%p139) target = $region32
    $region31: #{forward.9} parent=5 // pred_region
      %s143 = ssub.s32 %s9, 1
      %s144 = smul.u32 200, %s14
      %p145 = scmp.lt.s32.totalorder %s144, 399
      %s146 = scalar_select %p145, %s144, 399
      %s147 = smul.addr %s146, 8
      %s148 = scalar_lea.vmem %s0, %s147
      %p149 = pneg %p35
      %p150 = pneg %p32
      %p151 = pneg %p56
      %p152 = pneg %p53
      %p153 = pneg %p77
      %p154 = pneg %p74
      %p155 = pneg %p103
      %p156 = pneg %p100
      %s157 = smul.u32 200, %s14
      %p158 = scmp.lt.s32.totalorder %s157, 399
      %s159 = scalar_select %p158, %s157, 399
      %s160 = smul.addr %s159, 8
      %s161 = scalar_lea.vmem %s3, %s160
      %s162 = smul.u32 200, %s14
      %p163 = scmp.lt.s32.totalorder %s162, 399
      %s164 = scalar_select %p163, %s162, 399
      %s165 = smul.addr %s164, 8
      %s166 = scalar_lea.vmem %s0, %s165
      %s167 = smul.u32 200, %s14
      %s168 = smul.u32 200, %s14
      %p169 = scmp.lt.s32.totalorder %s168, 399
      %s170 = scalar_select %p169, %s168, 399
      %s171 = smul.addr %s170, 8
      %s172 = scalar_lea.vmem %s3, %s171
      %s173 = smul.u32 200, %s14
      %v174 = vld [vmem:[%s166] sm:$0xff]
      %v175 = vld [vmem:[%s166 + $0x8] sm:$0xff]
      %v176 = vld [vmem:[%s166 + $0x10] sm:$0xff]
      %v177 = vld [vmem:[%s166 + $0x18] sm:$0xff]
      %v178 = vld [vmem:[%s166 + $0x20] sm:$0xff]
      %v179 = vld [vmem:[%s166 + $0x28] sm:$0xff]
      %v180 = vld [vmem:[%s166 + $0x30] sm:$0xff]
      %v181 = vld [vmem:[%s166 + $0x38] sm:$0xff]
      %v182 = vld [vmem:[%s166 + $0x40] sm:$0xff]
      %v183 = vld [vmem:[%s166 + $0x48] sm:$0xff]
      %v184 = vld [vmem:[%s166 + $0x50] sm:$0xff]
      %v185 = vld [vmem:[%s166 + $0x58] sm:$0xff]
      %v186 = vld [vmem:[%s166 + $0x60] sm:$0xff]
      %v187 = vld [vmem:[%s166 + $0x68] sm:$0xff]
      %v188 = vld [vmem:[%s166 + $0x70] sm:$0xff]
      %v189 = vld [vmem:[%s166 + $0x78] sm:$0xff]
      %v190 = vld [vmem:[%s166 + $0x80] sm:$0xff]
      %v191 = vld [vmem:[%s166 + $0x88] sm:$0xff]
      %v192 = vld [vmem:[%s166 + $0x90] sm:$0xff]
      %v193 = vld [vmem:[%s166 + $0x98] sm:$0xff]
      %v194 = vld [vmem:[%s166 + $0xa0] sm:$0xff]
      %v195 = vld [vmem:[%s166 + $0xa8] sm:$0xff]
      %v196 = vld [vmem:[%s166 + $0xb0] sm:$0xff]
      %v197 = vld [vmem:[%s166 + $0xb8] sm:$0xff]
      %v198 = vld [vmem:[%s166 + $0xc0] sm:$0xff]
      %v199 = vld [vmem:[%s166 + $0xc8] sm:$0xff]
      %v200 = vld [vmem:[%s166 + $0xd0] sm:$0xff]
      %v201 = vld [vmem:[%s166 + $0xd8] sm:$0xff]
      %v202 = vld [vmem:[%s166 + $0xe0] sm:$0xff]
      %v203 = vld [vmem:[%s166 + $0xe8] sm:$0xff]
      %v204 = vld [vmem:[%s166 + $0xf0] sm:$0xff]
      %v205 = vld [vmem:[%s166 + $0xf8] sm:$0xff]
      %v206 = vld [vmem:[%s166 + $0x100] sm:$0xff]
      %v207 = vld [vmem:[%s166 + $0x108] sm:$0xff]
      %v208 = vld [vmem:[%s166 + $0x110] sm:$0xff]
      %v209 = vld [vmem:[%s166 + $0x118] sm:$0xff]
      %v210 = vld [vmem:[%s166 + $0x120] sm:$0xff]
      %v211 = vld [vmem:[%s166 + $0x128] sm:$0xff]
      %v212 = vld [vmem:[%s166 + $0x130] sm:$0xff]
      %v213 = vld [vmem:[%s166 + $0x138] sm:$0xff]
      %v214 = vld [vmem:[%s166 + $0x140] sm:$0xff]
      %v215 = vld [vmem:[%s166 + $0x148] sm:$0xff]
      %v216 = vld [vmem:[%s166 + $0x150] sm:$0xff]
      %v217 = vld [vmem:[%s166 + $0x158] sm:$0xff]
      %v218 = vld [vmem:[%s166 + $0x160] sm:$0xff]
      %v219 = vld [vmem:[%s166 + $0x168] sm:$0xff]
      %v220 = vld [vmem:[%s166 + $0x170] sm:$0xff]
      %v221 = vld [vmem:[%s166 + $0x178] sm:$0xff]
      %v222 = vld [vmem:[%s166 + $0x180] sm:$0xff]
      %v223 = vld [vmem:[%s166 + $0x188] sm:$0xff]
      %v224 = vld [vmem:[%s166 + $0x190] sm:$0xff]
      %v225 = vld [vmem:[%s166 + $0x198] sm:$0xff]
      %v226 = vld [vmem:[%s166 + $0x1a0] sm:$0xff]
      %v227 = vld [vmem:[%s166 + $0x1a8] sm:$0xff]
      %v228 = vld [vmem:[%s166 + $0x1b0] sm:$0xff]
      %v229 = vld [vmem:[%s166 + $0x1b8] sm:$0xff]
      %v230 = vld [vmem:[%s166 + $0x1c0] sm:$0xff]
      %v231 = vld [vmem:[%s166 + $0x1c8] sm:$0xff]
      %v232 = vld [vmem:[%s166 + $0x1d0] sm:$0xff]
      %v233 = vld [vmem:[%s166 + $0x1d8] sm:$0xff]
      %v234 = vld [vmem:[%s166 + $0x1e0] sm:$0xff]
      %v235 = vld [vmem:[%s166 + $0x1e8] sm:$0xff]
      %v236 = vld [vmem:[%s166 + $0x1f0] sm:$0xff]
      %v237 = vld [vmem:[%s166 + $0x1f8] sm:$0xff]
      %v238 = vld [vmem:[%s166 + $0x200] sm:$0xff]
      %v239 = vld [vmem:[%s166 + $0x208] sm:$0xff]
      %v240 = vld [vmem:[%s166 + $0x210] sm:$0xff]
      %v241 = vld [vmem:[%s166 + $0x218] sm:$0xff]
      %v242 = vld [vmem:[%s166 + $0x220] sm:$0xff]
      %v243 = vld [vmem:[%s166 + $0x228] sm:$0xff]
      %v244 = vld [vmem:[%s166 + $0x230] sm:$0xff]
      %v245 = vld [vmem:[%s166 + $0x238] sm:$0xff]
      %v246 = vld [vmem:[%s166 + $0x240] sm:$0xff]
      %v247 = vld [vmem:[%s166 + $0x248] sm:$0xff]
      %v248 = vld [vmem:[%s166 + $0x250] sm:$0xff]
      %v249 = vld [vmem:[%s166 + $0x258] sm:$0xff]
      %v250 = vld [vmem:[%s166 + $0x260] sm:$0xff]
      %v251 = vld [vmem:[%s166 + $0x268] sm:$0xff]
      %v252 = vld [vmem:[%s166 + $0x270] sm:$0xff]
      %v253 = vld [vmem:[%s166 + $0x278] sm:$0xff]
      %v254 = vld [vmem:[%s166 + $0x280] sm:$0xff]
      %v255 = vld [vmem:[%s166 + $0x288] sm:$0xff]
      %v256 = vld [vmem:[%s166 + $0x290] sm:$0xff]
      %v257 = vld [vmem:[%s166 + $0x298] sm:$0xff]
      %v258 = vld [vmem:[%s166 + $0x2a0] sm:$0xff]
      %v259 = vld [vmem:[%s166 + $0x2a8] sm:$0xff]
      %v260 = vld [vmem:[%s166 + $0x2b0] sm:$0xff]
      %v261 = vld [vmem:[%s166 + $0x2b8] sm:$0xff]
      %v262 = vld [vmem:[%s166 + $0x2c0] sm:$0xff]
      %v263 = vld [vmem:[%s166 + $0x2c8] sm:$0xff]
      %v264 = vld [vmem:[%s166 + $0x2d0] sm:$0xff]
      %v265 = vld [vmem:[%s166 + $0x2d8] sm:$0xff]
      %v266 = vld [vmem:[%s166 + $0x2e0] sm:$0xff]
      %v267 = vld [vmem:[%s166 + $0x2e8] sm:$0xff]
      %v268 = vld [vmem:[%s166 + $0x2f0] sm:$0xff]
      %v269 = vld [vmem:[%s166 + $0x2f8] sm:$0xff]
      %v270 = vld [vmem:[%s166 + $0x300] sm:$0xff]
      %v271 = vld [vmem:[%s166 + $0x308] sm:$0xff]
      %v272 = vld [vmem:[%s166 + $0x310] sm:$0xff]
      %v273 = vld [vmem:[%s166 + $0x318] sm:$0xff]
      %v274 = vld [vmem:[%s166 + $0x320] sm:$0xff]
      %v275 = vld [vmem:[%s166 + $0x328] sm:$0xff]
      %v276 = vld [vmem:[%s166 + $0x330] sm:$0xff]
      %v277 = vld [vmem:[%s166 + $0x338] sm:$0xff]
      %v278 = vld [vmem:[%s166 + $0x340] sm:$0xff]
      %v279 = vld [vmem:[%s166 + $0x348] sm:$0xff]
      %v280 = vld [vmem:[%s166 + $0x350] sm:$0xff]
      %v281 = vld [vmem:[%s166 + $0x358] sm:$0xff]
      %v282 = vld [vmem:[%s166 + $0x360] sm:$0xff]
      %v283 = vld [vmem:[%s166 + $0x368] sm:$0xff]
      %v284 = vld [vmem:[%s166 + $0x370] sm:$0xff]
      %v285 = vld [vmem:[%s166 + $0x378] sm:$0xff]
      %v286 = vld [vmem:[%s166 + $0x380] sm:$0xff]
      %v287 = vld [vmem:[%s166 + $0x388] sm:$0xff]
      %v288 = vld [vmem:[%s166 + $0x390] sm:$0xff]
      %v289 = vld [vmem:[%s166 + $0x398] sm:$0xff]
      %v290 = vld [vmem:[%s166 + $0x3a0] sm:$0xff]
      %v291 = vld [vmem:[%s166 + $0x3a8] sm:$0xff]
      %v292 = vld [vmem:[%s166 + $0x3b0] sm:$0xff]
      %v293 = vld [vmem:[%s166 + $0x3b8] sm:$0xff]
      %v294 = vld [vmem:[%s166 + $0x3c0] sm:$0xff]
      %v295 = vld [vmem:[%s166 + $0x3c8] sm:$0xff]
      %v296 = vld [vmem:[%s166 + $0x3d0] sm:$0xff]
      %v297 = vld [vmem:[%s166 + $0x3d8] sm:$0xff]
      %v298 = vld [vmem:[%s166 + $0x3e0] sm:$0xff]
      %v299 = vld [vmem:[%s166 + $0x3e8] sm:$0xff]
      %v300 = vld [vmem:[%s166 + $0x3f0] sm:$0xff]
      %v301 = vld [vmem:[%s166 + $0x3f8] sm:$0xff]
      %v302 = vld [vmem:[%s166 + $0x400] sm:$0xff]
      %v303 = vld [vmem:[%s166 + $0x408] sm:$0xff]
      %v304 = vld [vmem:[%s166 + $0x410] sm:$0xff]
      %v305 = vld [vmem:[%s166 + $0x418] sm:$0xff]
      %v306 = vld [vmem:[%s166 + $0x420] sm:$0xff]
      %v307 = vld [vmem:[%s166 + $0x428] sm:$0xff]
      %v308 = vld [vmem:[%s166 + $0x430] sm:$0xff]
      %v309 = vld [vmem:[%s166 + $0x438] sm:$0xff]
      %v310 = vld [vmem:[%s166 + $0x440] sm:$0xff]
      %v311 = vld [vmem:[%s166 + $0x448] sm:$0xff]
      %v312 = vld [vmem:[%s166 + $0x450] sm:$0xff]
      %v313 = vld [vmem:[%s166 + $0x458] sm:$0xff]
      %v314 = vld [vmem:[%s166 + $0x460] sm:$0xff]
      %v315 = vld [vmem:[%s166 + $0x468] sm:$0xff]
      %v316 = vld [vmem:[%s166 + $0x470] sm:$0xff]
      %v317 = vld [vmem:[%s166 + $0x478] sm:$0xff]
      %v318 = vld [vmem:[%s166 + $0x480] sm:$0xff]
      %v319 = vld [vmem:[%s166 + $0x488] sm:$0xff]
      %v320 = vld [vmem:[%s166 + $0x490] sm:$0xff]
      %v321 = vld [vmem:[%s166 + $0x498] sm:$0xff]
      %v322 = vld [vmem:[%s166 + $0x4a0] sm:$0xff]
      %v323 = vld [vmem:[%s166 + $0x4a8] sm:$0xff]
      %v324 = vld [vmem:[%s166 + $0x4b0] sm:$0xff]
      %v325 = vld [vmem:[%s166 + $0x4b8] sm:$0xff]
      %v326 = vld [vmem:[%s166 + $0x4c0] sm:$0xff]
      %v327 = vld [vmem:[%s166 + $0x4c8] sm:$0xff]
      %v328 = vld [vmem:[%s166 + $0x4d0] sm:$0xff]
      %v329 = vld [vmem:[%s166 + $0x4d8] sm:$0xff]
      %v330 = vld [vmem:[%s166 + $0x4e0] sm:$0xff]
      %v331 = vld [vmem:[%s166 + $0x4e8] sm:$0xff]
      %v332 = vld [vmem:[%s166 + $0x4f0] sm:$0xff]
      %v333 = vld [vmem:[%s166 + $0x4f8] sm:$0xff]
      %v334 = vld [vmem:[%s166 + $0x500] sm:$0xff]
      %v335 = vld [vmem:[%s166 + $0x508] sm:$0xff]
      %v336 = vld [vmem:[%s166 + $0x510] sm:$0xff]
      %v337 = vld [vmem:[%s166 + $0x518] sm:$0xff]
      %v338 = vld [vmem:[%s166 + $0x520] sm:$0xff]
      %v339 = vld [vmem:[%s166 + $0x528] sm:$0xff]
      %v340 = vld [vmem:[%s166 + $0x530] sm:$0xff]
      %v341 = vld [vmem:[%s166 + $0x538] sm:$0xff]
      %v342 = vld [vmem:[%s166 + $0x540] sm:$0xff]
      %v343 = vld [vmem:[%s166 + $0x548] sm:$0xff]
      %v344 = vld [vmem:[%s166 + $0x550] sm:$0xff]
      %v345 = vld [vmem:[%s166 + $0x558] sm:$0xff]
      %v346 = vld [vmem:[%s166 + $0x560] sm:$0xff]
      %v347 = vld [vmem:[%s166 + $0x568] sm:$0xff]
      %v348 = vld [vmem:[%s166 + $0x570] sm:$0xff]
      %v349 = vld [vmem:[%s166 + $0x578] sm:$0xff]
      %v350 = vld [vmem:[%s166 + $0x580] sm:$0xff]
      %v351 = vld [vmem:[%s166 + $0x588] sm:$0xff]
      %v352 = vld [vmem:[%s166 + $0x590] sm:$0xff]
      %v353 = vld [vmem:[%s166 + $0x598] sm:$0xff]
      %v354 = vld [vmem:[%s166 + $0x5a0] sm:$0xff]
      %v355 = vld [vmem:[%s166 + $0x5a8] sm:$0xff]
      %v356 = vld [vmem:[%s166 + $0x5b0] sm:$0xff]
      %v357 = vld [vmem:[%s166 + $0x5b8] sm:$0xff]
      %v358 = vld [vmem:[%s166 + $0x5c0] sm:$0xff]
      %v359 = vld [vmem:[%s166 + $0x5c8] sm:$0xff]
      %v360 = vld [vmem:[%s166 + $0x5d0] sm:$0xff]
      %v361 = vld [vmem:[%s166 + $0x5d8] sm:$0xff]
      %v362 = vld [vmem:[%s166 + $0x5e0] sm:$0xff]
      %v363 = vld [vmem:[%s166 + $0x5e8] sm:$0xff]
      %v364 = vld [vmem:[%s166 + $0x5f0] sm:$0xff]
      %v365 = vld [vmem:[%s166 + $0x5f8] sm:$0xff]
      %v366 = vld [vmem:[%s166 + $0x600] sm:$0xff]
      %v367 = vld [vmem:[%s166 + $0x608] sm:$0xff]
      %v368 = vld [vmem:[%s166 + $0x610] sm:$0xff]
      %v369 = vld [vmem:[%s166 + $0x618] sm:$0xff]
      %v370 = vld [vmem:[%s166 + $0x620] sm:$0xff]
      %v371 = vld [vmem:[%s166 + $0x628] sm:$0xff]
      %v372 = vld [vmem:[%s166 + $0x630] sm:$0xff]
      %v373 = vld [vmem:[%s166 + $0x638] sm:$0xff]
      %v374 = vld [vmem:[%s1] sm:$0xff]
      %v375 = vld [vmem:[%s1 + $0x8] sm:$0xff]
      %v376 = vld [vmem:[%s1 + $0x10] sm:$0xff]
      %v377 = vld [vmem:[%s1 + $0x18] sm:$0xff]
      %v378 = vld [vmem:[%s1 + $0x20] sm:$0xf]
      %v379 = vld [vmem:[%s2] sm:$0x1]
      %v381 = vlaneseq
      %v382 = vshrl.u32 %v381, 7
      %v383 = vsub.s32 0, %v382
      %v384 = vrot.slane %v379, %v383
      %vm386 = vcmask 293888
      %v388 = vsel %vm386, %v174, 0
      %v391 = vsel %vm386, %v175, 0
      %v394 = vsel %vm386, %v176, 0
      %v397 = vsel %vm386, %v177, 0
      %v400 = vsel %vm386, %v178, 0
      %v403 = vsel %vm386, %v179, 0
      %v406 = vsel %vm386, %v180, 0
      %v409 = vsel %vm386, %v181, 0
      %v412 = vsel %vm386, %v182, 0
      %v415 = vsel %vm386, %v183, 0
      %v418 = vsel %vm386, %v184, 0
      %v421 = vsel %vm386, %v185, 0
      %v424 = vsel %vm386, %v186, 0
      %v427 = vsel %vm386, %v187, 0
      %v430 = vsel %vm386, %v188, 0
      %v433 = vsel %vm386, %v189, 0
      %v436 = vsel %vm386, %v190, 0
      %v439 = vsel %vm386, %v191, 0
      %v442 = vsel %vm386, %v192, 0
      %v445 = vsel %vm386, %v193, 0
      %v448 = vsel %vm386, %v194, 0
      %v451 = vsel %vm386, %v195, 0
      %v454 = vsel %vm386, %v196, 0
      %v457 = vsel %vm386, %v197, 0
      %v460 = vsel %vm386, %v198, 0
      %v463 = vsel %vm386, %v199, 0
      %v466 = vsel %vm386, %v200, 0
      %v469 = vsel %vm386, %v201, 0
      %v472 = vsel %vm386, %v202, 0
      %v475 = vsel %vm386, %v203, 0
      %v478 = vsel %vm386, %v204, 0
      %v481 = vsel %vm386, %v205, 0
      %v484 = vsel %vm386, %v206, 0
      %v487 = vsel %vm386, %v207, 0
      %v490 = vsel %vm386, %v208, 0
      %v493 = vsel %vm386, %v209, 0
      %v496 = vsel %vm386, %v210, 0
      %v499 = vsel %vm386, %v211, 0
      %v502 = vsel %vm386, %v212, 0
      %v505 = vsel %vm386, %v213, 0
      %v508 = vsel %vm386, %v214, 0
      %v511 = vsel %vm386, %v215, 0
      %v514 = vsel %vm386, %v216, 0
      %v517 = vsel %vm386, %v217, 0
      %v520 = vsel %vm386, %v218, 0
      %v523 = vsel %vm386, %v219, 0
      %v526 = vsel %vm386, %v220, 0
      %v529 = vsel %vm386, %v221, 0
      %v532 = vsel %vm386, %v222, 0
      %v535 = vsel %vm386, %v223, 0
      %v538 = vsel %vm386, %v224, 0
      %v541 = vsel %vm386, %v225, 0
      %v544 = vsel %vm386, %v226, 0
      %v547 = vsel %vm386, %v227, 0
      %v550 = vsel %vm386, %v228, 0
      %v553 = vsel %vm386, %v229, 0
      %v556 = vsel %vm386, %v230, 0
      %v559 = vsel %vm386, %v231, 0
      %v562 = vsel %vm386, %v232, 0
      %v565 = vsel %vm386, %v233, 0
      %v568 = vsel %vm386, %v234, 0
      %v571 = vsel %vm386, %v235, 0
      %v574 = vsel %vm386, %v236, 0
      %v577 = vsel %vm386, %v237, 0
      %v580 = vsel %vm386, %v238, 0
      %v583 = vsel %vm386, %v239, 0
      %v586 = vsel %vm386, %v240, 0
      %v589 = vsel %vm386, %v241, 0
      %v592 = vsel %vm386, %v242, 0
      %v595 = vsel %vm386, %v243, 0
      %v598 = vsel %vm386, %v244, 0
      %v601 = vsel %vm386, %v245, 0
      %v604 = vsel %vm386, %v246, 0
      %v607 = vsel %vm386, %v247, 0
      %v610 = vsel %vm386, %v248, 0
      %v613 = vsel %vm386, %v249, 0
      %v616 = vsel %vm386, %v250, 0
      %v619 = vsel %vm386, %v251, 0
      %v622 = vsel %vm386, %v252, 0
      %v625 = vsel %vm386, %v253, 0
      %v628 = vsel %vm386, %v254, 0
      %v631 = vsel %vm386, %v255, 0
      %v634 = vsel %vm386, %v256, 0
      %v637 = vsel %vm386, %v257, 0
      %v640 = vsel %vm386, %v258, 0
      %v643 = vsel %vm386, %v259, 0
      %v646 = vsel %vm386, %v260, 0
      %v649 = vsel %vm386, %v261, 0
      %v652 = vsel %vm386, %v262, 0
      %v655 = vsel %vm386, %v263, 0
      %v658 = vsel %vm386, %v264, 0
      %v661 = vsel %vm386, %v265, 0
      %v664 = vsel %vm386, %v266, 0
      %v667 = vsel %vm386, %v267, 0
      %v670 = vsel %vm386, %v268, 0
      %v673 = vsel %vm386, %v269, 0
      %v676 = vsel %vm386, %v270, 0
      %v679 = vsel %vm386, %v271, 0
      %v682 = vsel %vm386, %v272, 0
      %v685 = vsel %vm386, %v273, 0
      %v688 = vsel %vm386, %v274, 0
      %v691 = vsel %vm386, %v275, 0
      %v694 = vsel %vm386, %v276, 0
      %v697 = vsel %vm386, %v277, 0
      %v700 = vsel %vm386, %v278, 0
      %v703 = vsel %vm386, %v279, 0
      %v706 = vsel %vm386, %v280, 0
      %v709 = vsel %vm386, %v281, 0
      %v712 = vsel %vm386, %v282, 0
      %v715 = vsel %vm386, %v283, 0
      %v718 = vsel %vm386, %v284, 0
      %v721 = vsel %vm386, %v285, 0
      %v724 = vsel %vm386, %v286, 0
      %v727 = vsel %vm386, %v287, 0
      %v730 = vsel %vm386, %v288, 0
      %v733 = vsel %vm386, %v289, 0
      %v736 = vsel %vm386, %v290, 0
      %v739 = vsel %vm386, %v291, 0
      %v742 = vsel %vm386, %v292, 0
      %v745 = vsel %vm386, %v293, 0
      %v748 = vsel %vm386, %v294, 0
      %v751 = vsel %vm386, %v295, 0
      %v754 = vsel %vm386, %v296, 0
      %v757 = vsel %vm386, %v297, 0
      %v760 = vsel %vm386, %v298, 0
      %v763 = vsel %vm386, %v299, 0
      %v766 = vsel %vm386, %v300, 0
      %v769 = vsel %vm386, %v301, 0
      %v772 = vsel %vm386, %v302, 0
      %v775 = vsel %vm386, %v303, 0
      %v778 = vsel %vm386, %v304, 0
      %v781 = vsel %vm386, %v305, 0
      %v784 = vsel %vm386, %v306, 0
      %v787 = vsel %vm386, %v307, 0
      %v790 = vsel %vm386, %v308, 0
      %v793 = vsel %vm386, %v309, 0
      %v796 = vsel %vm386, %v310, 0
      %v799 = vsel %vm386, %v311, 0
      %v802 = vsel %vm386, %v312, 0
      %v805 = vsel %vm386, %v313, 0
      %v808 = vsel %vm386, %v314, 0
      %v811 = vsel %vm386, %v315, 0
      %v814 = vsel %vm386, %v316, 0
      %v817 = vsel %vm386, %v317, 0
      %v820 = vsel %vm386, %v318, 0
      %v823 = vsel %vm386, %v319, 0
      %v826 = vsel %vm386, %v320, 0
      %v829 = vsel %vm386, %v321, 0
      %v832 = vsel %vm386, %v322, 0
      %v835 = vsel %vm386, %v323, 0
      %v838 = vsel %vm386, %v324, 0
      %v841 = vsel %vm386, %v325, 0
      %v844 = vsel %vm386, %v326, 0
      %v847 = vsel %vm386, %v327, 0
      %v850 = vsel %vm386, %v328, 0
      %v853 = vsel %vm386, %v329, 0
      %v856 = vsel %vm386, %v330, 0
      %v859 = vsel %vm386, %v331, 0
      %v862 = vsel %vm386, %v332, 0
      %v865 = vsel %vm386, %v333, 0
      %v868 = vsel %vm386, %v334, 0
      %v871 = vsel %vm386, %v335, 0
      %v874 = vsel %vm386, %v336, 0
      %v877 = vsel %vm386, %v337, 0
      %v880 = vsel %vm386, %v338, 0
      %v883 = vsel %vm386, %v339, 0
      %v886 = vsel %vm386, %v340, 0
      %v889 = vsel %vm386, %v341, 0
      %v892 = vsel %vm386, %v342, 0
      %v895 = vsel %vm386, %v343, 0
      %v898 = vsel %vm386, %v344, 0
      %v901 = vsel %vm386, %v345, 0
      %v904 = vsel %vm386, %v346, 0
      %v907 = vsel %vm386, %v347, 0
      %v910 = vsel %vm386, %v348, 0
      %v913 = vsel %vm386, %v349, 0
      %v916 = vsel %vm386, %v350, 0
      %v919 = vsel %vm386, %v351, 0
      %v922 = vsel %vm386, %v352, 0
      %v925 = vsel %vm386, %v353, 0
      %v928 = vsel %vm386, %v354, 0
      %v931 = vsel %vm386, %v355, 0
      %v934 = vsel %vm386, %v356, 0
      %v937 = vsel %vm386, %v357, 0
      %v940 = vsel %vm386, %v358, 0
      %v943 = vsel %vm386, %v359, 0
      %v946 = vsel %vm386, %v360, 0
      %v949 = vsel %vm386, %v361, 0
      %v952 = vsel %vm386, %v362, 0
      %v955 = vsel %vm386, %v363, 0
      %v958 = vsel %vm386, %v364, 0
      %v961 = vsel %vm386, %v365, 0
      %v964 = vsel %vm386, %v366, 0
      %v967 = vsel %vm386, %v367, 0
      %v970 = vsel %vm386, %v368, 0
      %v973 = vsel %vm386, %v369, 0
      %v976 = vsel %vm386, %v370, 0
      %v979 = vsel %vm386, %v371, 0
      %v982 = vsel %vm386, %v372, 0
      %v985 = vsel %vm386, %v373, 0
      %vm987 = vcmask 1043456
      %v989 = vsel %vm987, %v378, 0
      %991 = vmatprep.subr.mxu0 0.0
      %992 = vmatpush1.msra.mxu0 %v374
      %993 = vmatprep.subr.mxu0 0.0
      %994 = vmatpush1.msra.mxu0 %v375
      %995 = vmatprep.subr.mxu0 0.0
      %996 = vmatpush1.msra.mxu0 %v376
      %997 = vmatprep.subr.mxu0 0.0
      %998 = vmatpush1.msra.mxu0 %v377
      %999 = vmatprep.subr.mxu0 0.0
      %1000 = vmatpush1.msra.mxu0 %v989
      %1001 = vmatprep.subr.mxu0 0.0
      %1002 = vmatpush1.msra.mxu0 0.0
      %1003 = vmatprep.subr.mxu0 0.0
      %1004 = vmatpush1.msra.mxu0 0.0
      %1005 = vmatprep.subr.mxu0 0.0
      %1006 = vmatpush1.msra.mxu0 0.0
      %1007 = vmatprep.subr.mxu0 0.0
      %1008 = vmatpush1.msra.mxu0 0.0
      %1009 = vmatprep.subr.mxu0 0.0
      %1010 = vmatpush1.msra.mxu0 0.0
      %1011 = vmatprep.subr.mxu0 0.0
      %1012 = vmatpush1.msra.mxu0 0.0
      %1013 = vmatprep.subr.mxu0 0.0
      %1014 = vmatpush1.msra.mxu0 0.0
      %1015 = vmatprep.subr.mxu0 0.0
      %1016 = vmatpush1.msra.mxu0 0.0
      %1017 = vmatprep.subr.mxu0 0.0
      %1018 = vmatpush1.msra.mxu0 0.0
      %1019 = vmatprep.subr.mxu0 0.0
      %1020 = vmatpush1.msra.mxu0 0.0
      %1021 = vmatprep.subr.mxu0 0.0
      %1022 = vmatpush1.msra.mxu0 0.0
      %1023 = vmatprep.subr.mxu0 0.0
      %1024 = vmatpush1.msra.mxu0 0.0
      %1025 = vmatprep.subr.mxu0 0.0
      %1026 = vmatpush1.msra.mxu0 0.0
      %1027 = vmatprep.subr.mxu0 0.0
      %1028 = vmatpush1.msra.mxu0 0.0
      %1029 = vmatprep.subr.mxu0 0.0
      %1030 = vmatpush1.msra.mxu0 0.0
      %1031 = vmatprep.subr.mxu0 0.0
      %1032 = vmatpush1.msra.mxu0 0.0
      %1033 = vmatprep.subr.mxu0 0.0
      %1034 = vmatpush1.msra.mxu0 0.0
      %1035 = vmatprep.subr.mxu0 0.0
      %1036 = vmatpush1.msra.mxu0 0.0
      %1037 = vmatprep.subr.mxu0 0.0
      %1038 = vmatpush1.msra.mxu0 0.0
      %1039 = vmatprep.subr.mxu0 0.0
      %1040 = vmatpush1.msra.mxu0 0.0
      %1041 = vmatprep.subr.mxu0 0.0
      %1042 = vmatpush1.msra.mxu0 0.0
      %1043 = vmatprep.subr.mxu0 0.0
      %1044 = vmatpush1.msra.mxu0 0.0
      %1045 = vmatprep.subr.mxu0 0.0
      %1046 = vmatpush1.msra.mxu0 0.0
      %1047 = vmatprep.subr.mxu0 0.0
      %1048 = vmatpush1.msra.mxu0 0.0
      %1049 = vmatprep.subr.mxu0 0.0
      %1050 = vmatpush1.msra.mxu0 0.0
      %1051 = vmatprep.subr.mxu0 0.0
      %1052 = vmatpush1.msra.mxu0 0.0
      %1053 = vmatprep.subr.mxu0 0.0
      %1054 = vmatpush1.msra.mxu0 0.0
      %1055 = vmatprep.mubr.f32.mxu0 0.0
      %1056 = vmatmul.mubr.f32.gmra.mrb[0].mxu0 %v388
      %v1057 = vpop.f32.mrb[0].mxu0
      %v1058 = vadd.f32 %v384, %v1057
      %v1059 = vpop.f32.mrb[0].mxu0
      %1060 = vmatprep.mubr.f32.mxu0 0.0
      %1061 = vmatmul.mubr.f32.gmra.mrb[0].mxu0 %v391
      %v1062 = vpop.f32.mrb[0].mxu0
      %v1063 = vadd.f32 %v384, %v1062
      %v1064 = vpop.f32.mrb[0].mxu0
      %1065 = vmatprep.mubr.f32.mxu0 0.0
      %1066 = vmatmul.mubr.f32.gmra.mrb[0].mxu0 %v394
      %v1067 = vpop.f32.mrb[0].mxu0
      %v1068 = vadd.f32 %v384, %v1067
      %v1069 = vpop.f32.mrb[0].mxu0
      %1070 = vmatprep.mubr.f32.mxu0 0.0
      %1071 = vmatmul.mubr.f32.gmra.mrb[0].mxu0 %v397
      %v1072 = vpop.f32.mrb[0].mxu0
      %v1073 = vadd.f32 %v384, %v1072
      %v1074 = vpop.f32.mrb[0].mxu0
      %1075 = vmatprep.mubr.f32.mxu0 0.0
      %1076 = vmatmul.mubr.f32.gmra.mrb[0].mxu0 %v400
      %v1077 = vpop.f32.mrb[0].mxu0
      %v1078 = vadd.f32 %v384, %v1077
      %v1079 = vpop.f32.mrb[0].mxu0
      %1080 = vmatprep.mubr.f32.mxu0 0.0
      %1081 = vmatmul.mubr.f32.gmra.mrb[0].mxu0 %v403
      %v1082 = vpop.f32.mrb[0].mxu0
      %v1083 = vadd.f32 %v384, %v1082
      %v1084 = vpop.f32.mrb[0].mxu0
      %1085 = vmatprep.mubr.f32.mxu0 0.0
      %1086 = vmatmul.mubr.f32.gmra.mrb[0].mxu0 %v406
      %v1087 = vpop.f32.mrb[0].mxu0
      %v1088 = vadd.f32 %v384, %v1087
      %v1089 = vpop.f32.mrb[0].mxu0
      %1090 = vmatprep.mubr.f32.mxu0 0.0
      %1091 = vmatmul.mubr.f32.gmra.mrb[0].mxu0 %v409
      %v1092 = vpop.f32.mrb[0].mxu0
      %v1093 = vadd.f32 %v384, %v1092
      %v1094 = vpop.f32.mrb[0].mxu0
      %1095 = vmatprep.mubr.f32.mxu0 0.0
      %1096 = vmatmul.mubr.f32.gmra.mrb[0].mxu0 %v412
      %v1097 = vpop.f32.mrb[0].mxu0
      %v1098 = vadd.f32 %v384, %v1097
      %v1099 = vpop.f32.mrb[0].mxu0
      %1100 = vmatprep.mubr.f32.mxu0 0.0
      %1101 = vmatmul.mubr.f32.gmra.mrb[0].mxu0 %v415
      %v1102 = vpop.f32.mrb[0].mxu0
      %v1103 = vadd.f32 %v384, %v1102
      %v1104 = vpop.f32.mrb[0].mxu0
      %1105 = vmatprep.mubr.f32.mxu0 0.0
      %1106 = vmatmul.mubr.f32.gmra.mrb[0].mxu0 %v418
      %v1107 = vpop.f32.mrb[0].mxu0
      %v1108 = vadd.f32 %v384, %v1107
      %v1109 = vpop.f32.mrb[0].mxu0
      %1110 = vmatprep.mubr.f32.mxu0 0.0
      %1111 = vmatmul.mubr.f32.gmra.mrb[0].mxu0 %v421
      %v1112 = vpop.f32.mrb[0].mxu0
      %v1113 = vadd.f32 %v384, %v1112
      %v1114 = vpop.f32.mrb[0].mxu0
      %1115 = vmatprep.mubr.f32.mxu0 0.0
      %1116 = vmatmul.mubr.f32.gmra.mrb[0].mxu0 %v424
      %v1117 = vpop.f32.mrb[0].mxu0
      %v1118 = vadd.f32 %v384, %v1117
      %v1119 = vpop.f32.mrb[0].mxu0
      %1120 = vmatprep.mubr.f32.mxu0 0.0
      %1121 = vmatmul.mubr.f32.gmra.mrb[0].mxu0 %v427
      %v1122 = vpop.f32.mrb[0].mxu0
      %v1123 = vadd.f32 %v384, %v1122
      %v1124 = vpop.f32.mrb[0].mxu0
      %1125 = vmatprep.mubr.f32.mxu0 0.0
      %1126 = vmatmul.mubr.f32.gmra.mrb[0].mxu0 %v430
      %v1127 = vpop.f32.mrb[0].mxu0
      %v1128 = vadd.f32 %v384, %v1127
      %v1129 = vpop.f32.mrb[0].mxu0
      %1130 = vmatprep.mubr.f32.mxu0 0.0
      %1131 = vmatmul.mubr.f32.gmra.mrb[0].mxu0 %v433
      %v1132 = vpop.f32.mrb[0].mxu0
      %v1133 = vadd.f32 %v384, %v1132
      %v1134 = vpop.f32.mrb[0].mxu0
      %1135 = vmatprep.mubr.f32.mxu0 0.0
      %1136 = vmatmul.mubr.f32.gmra.mrb[0].mxu0 %v436
      %v1137 = vpop.f32.mrb[0].mxu0
      %v1138 = vadd.f32 %v384, %v1137
      %v1139 = vpop.f32.mrb[0].mxu0
      %1140 = vmatprep.mubr.f32.mxu0 0.0
      %1141 = vmatmul.mubr.f32.gmra.mrb[0].mxu0 %v439
      %v1142 = vpop.f32.mrb[0].mxu0
      %v1143 = vadd.f32 %v384, %v1142
      %v1144 = vpop.f32.mrb[0].mxu0
      %1145 = vmatprep.mubr.f32.mxu0 0.0
      %1146 = vmatmul.mubr.f32.gmra.mrb[0].mxu0 %v442
      %v1147 = vpop.f32.mrb[0].mxu0
      %v1148 = vadd.f32 %v384, %v1147
      %v1149 = vpop.f32.mrb[0].mxu0
      %1150 = vmatprep.mubr.f32.mxu0 0.0
      %1151 = vmatmul.mubr.f32.gmra.mrb[0].mxu0 %v445
      %v1152 = vpop.f32.mrb[0].mxu0
      %v1153 = vadd.f32 %v384, %v1152
      %v1154 = vpop.f32.mrb[0].mxu0
      %1155 = vmatprep.mubr.f32.mxu0 0.0
      %1156 = vmatmul.mubr.f32.gmra.mrb[0].mxu0 %v448
      %v1157 = vpop.f32.mrb[0].mxu0
      %v1158 = vadd.f32 %v384, %v1157
      %v1159 = vpop.f32.mrb[0].mxu0
      %1160 = vmatprep.mubr.f32.mxu0 0.0
      %1161 = vmatmul.mubr.f32.gmra.mrb[0].mxu0 %v451
      %v1162 = vpop.f32.mrb[0].mxu0
      %v1163 = vadd.f32 %v384, %v1162
      %v1164 = vpop.f32.mrb[0].mxu0
      %1165 = vmatprep.mubr.f32.mxu0 0.0
      %1166 = vmatmul.mubr.f32.gmra.mrb[0].mxu0 %v454
      %v1167 = vpop.f32.mrb[0].mxu0
      %v1168 = vadd.f32 %v384, %v1167
      %v1169 = vpop.f32.mrb[0].mxu0
      %1170 = vmatprep.mubr.f32.mxu0 0.0
      %1171 = vmatmul.mubr.f32.gmra.mrb[0].mxu0 %v457
      %v1172 = vpop.f32.mrb[0].mxu0
      %v1173 = vadd.f32 %v384, %v1172
      %v1174 = vpop.f32.mrb[0].mxu0
      %1175 = vmatprep.mubr.f32.mxu0 0.0
      %1176 = vmatmul.mubr.f32.gmra.mrb[0].mxu0 %v460
      %v1177 = vpop.f32.mrb[0].mxu0
      %v1178 = vadd.f32 %v384, %v1177
      %v1179 = vpop.f32.mrb[0].mxu0
      %1180 = vmatprep.mubr.f32.mxu0 0.0
      %1181 = vmatmul.mubr.f32.gmra.mrb[0].mxu0 %v463
      %v1182 = vpop.f32.mrb[0].mxu0
      %v1183 = vadd.f32 %v384, %v1182
      %v1184 = vpop.f32.mrb[0].mxu0
      %1185 = vmatprep.mubr.f32.mxu0 0.0
      %1186 = vmatmul.mubr.f32.gmra.mrb[0].mxu0 %v466
      %v1187 = vpop.f32.mrb[0].mxu0
      %v1188 = vadd.f32 %v384, %v1187
      %v1189 = vpop.f32.mrb[0].mxu0
      %1190 = vmatprep.mubr.f32.mxu0 0.0
      %1191 = vmatmul.mubr.f32.gmra.mrb[0].mxu0 %v469
      %v1192 = vpop.f32.mrb[0].mxu0
      %v1193 = vadd.f32 %v384, %v1192
      %v1194 = vpop.f32.mrb[0].mxu0
      %1195 = vmatprep.mubr.f32.mxu0 0.0
      %1196 = vmatmul.mubr.f32.gmra.mrb[0].mxu0 %v472
      %v1197 = vpop.f32.mrb[0].mxu0
      %v1198 = vadd.f32 %v384, %v1197
      %v1199 = vpop.f32.mrb[0].mxu0
      %1200 = vmatprep.mubr.f32.mxu0 0.0
      %1201 = vmatmul.mubr.f32.gmra.mrb[0].mxu0 %v475
      %v1202 = vpop.f32.mrb[0].mxu0
      %v1203 = vadd.f32 %v384, %v1202
      %v1204 = vpop.f32.mrb[0].mxu0
      %1205 = vmatprep.mubr.f32.mxu0 0.0
      %1206 = vmatmul.mubr.f32.gmra.mrb[0].mxu0 %v478
      %v1207 = vpop.f32.mrb[0].mxu0
      %v1208 = vadd.f32 %v384, %v1207
      %v1209 = vpop.f32.mrb[0].mxu0
      %1210 = vmatprep.mubr.f32.mxu0 0.0
      %1211 = vmatmul.mubr.f32.gmra.mrb[0].mxu0 %v481
      %v1212 = vpop.f32.mrb[0].mxu0
      %v1213 = vadd.f32 %v384, %v1212
      %v1214 = vpop.f32.mrb[0].mxu0
      %1215 = vmatprep.mubr.f32.mxu0 0.0
      %1216 = vmatmul.mubr.f32.gmra.mrb[0].mxu0 %v484
      %v1217 = vpop.f32.mrb[0].mxu0
      %v1218 = vadd.f32 %v384, %v1217
      %v1219 = vpop.f32.mrb[0].mxu0
      %1220 = vmatprep.mubr.f32.mxu0 0.0
      %1221 = vmatmul.mubr.f32.gmra.mrb[0].mxu0 %v487
      %v1222 = vpop.f32.mrb[0].mxu0
      %v1223 = vadd.f32 %v384, %v1222
      %v1224 = vpop.f32.mrb[0].mxu0
      %1225 = vmatprep.mubr.f32.mxu0 0.0
      %1226 = vmatmul.mubr.f32.gmra.mrb[0].mxu0 %v490
      %v1227 = vpop.f32.mrb[0].mxu0
      %v1228 = vadd.f32 %v384, %v1227
      %v1229 = vpop.f32.mrb[0].mxu0
      %1230 = vmatprep.mubr.f32.mxu0 0.0
      %1231 = vmatmul.mubr.f32.gmra.mrb[0].mxu0 %v493
      %v1232 = vpop.f32.mrb[0].mxu0
      %v1233 = vadd.f32 %v384, %v1232
      %v1234 = vpop.f32.mrb[0].mxu0
      %1235 = vmatprep.mubr.f32.mxu0 0.0
      %1236 = vmatmul.mubr.f32.gmra.mrb[0].mxu0 %v496
      %v1237 = vpop.f32.mrb[0].mxu0
      %v1238 = vadd.f32 %v384, %v1237
      %v1239 = vpop.f32.mrb[0].mxu0
      %1240 = vmatprep.mubr.f32.mxu0 0.0
      %1241 = vmatmul.mubr.f32.gmra.mrb[0].mxu0 %v499
      %v1242 = vpop.f32.mrb[0].mxu0
      %v1243 = vadd.f32 %v384, %v1242
      %v1244 = vpop.f32.mrb[0].mxu0
      %1245 = vmatprep.mubr.f32.mxu0 0.0
      %1246 = vmatmul.mubr.f32.gmra.mrb[0].mxu0 %v502
      %v1247 = vpop.f32.mrb[0].mxu0
      %v1248 = vadd.f32 %v384, %v1247
      %v1249 = vpop.f32.mrb[0].mxu0
      %1250 = vmatprep.mubr.f32.mxu0 0.0
      %1251 = vmatmul.mubr.f32.gmra.mrb[0].mxu0 %v505
      %v1252 = vpop.f32.mrb[0].mxu0
      %v1253 = vadd.f32 %v384, %v1252
      %v1254 = vpop.f32.mrb[0].mxu0
      %1255 = vmatprep.mubr.f32.mxu0 0.0
      %1256 = vmatmul.mubr.f32.gmra.mrb[0].mxu0 %v508
      %v1257 = vpop.f32.mrb[0].mxu0
      %v1258 = vadd.f32 %v384, %v1257
      %v1259 = vpop.f32.mrb[0].mxu0
      %1260 = vmatprep.mubr.f32.mxu0 0.0
      %1261 = vmatmul.mubr.f32.gmra.mrb[0].mxu0 %v511
      %v1262 = vpop.f32.mrb[0].mxu0
      %v1263 = vadd.f32 %v384, %v1262
      %v1264 = vpop.f32.mrb[0].mxu0
      %1265 = vmatprep.mubr.f32.mxu0 0.0
      %1266 = vmatmul.mubr.f32.gmra.mrb[0].mxu0 %v514
      %v1267 = vpop.f32.mrb[0].mxu0
      %v1268 = vadd.f32 %v384, %v1267
      %v1269 = vpop.f32.mrb[0].mxu0
      %1270 = vmatprep.mubr.f32.mxu0 0.0
      %1271 = vmatmul.mubr.f32.gmra.mrb[0].mxu0 %v517
      %v1272 = vpop.f32.mrb[0].mxu0
      %v1273 = vadd.f32 %v384, %v1272
      %v1274 = vpop.f32.mrb[0].mxu0
      %1275 = vmatprep.mubr.f32.mxu0 0.0
      %1276 = vmatmul.mubr.f32.gmra.mrb[0].mxu0 %v520
      %v1277 = vpop.f32.mrb[0].mxu0
      %v1278 = vadd.f32 %v384, %v1277
      %v1279 = vpop.f32.mrb[0].mxu0
      %1280 = vmatprep.mubr.f32.mxu0 0.0
      %1281 = vmatmul.mubr.f32.gmra.mrb[0].mxu0 %v523
      %v1282 = vpop.f32.mrb[0].mxu0
      %v1283 = vadd.f32 %v384, %v1282
      %v1284 = vpop.f32.mrb[0].mxu0
      %1285 = vmatprep.mubr.f32.mxu0 0.0
      %1286 = vmatmul.mubr.f32.gmra.mrb[0].mxu0 %v526
      %v1287 = vpop.f32.mrb[0].mxu0
      %v1288 = vadd.f32 %v384, %v1287
      %v1289 = vpop.f32.mrb[0].mxu0
      %1290 = vmatprep.mubr.f32.mxu0 0.0
      %1291 = vmatmul.mubr.f32.gmra.mrb[0].mxu0 %v529
      %v1292 = vpop.f32.mrb[0].mxu0
      %v1293 = vadd.f32 %v384, %v1292
      %v1294 = vpop.f32.mrb[0].mxu0
      %1295 = vmatprep.mubr.f32.mxu0 0.0
      %1296 = vmatmul.mubr.f32.gmra.mrb[0].mxu0 %v532
      %v1297 = vpop.f32.mrb[0].mxu0
      %v1298 = vadd.f32 %v384, %v1297
      %v1299 = vpop.f32.mrb[0].mxu0
      %1300 = vmatprep.mubr.f32.mxu0 0.0
      %1301 = vmatmul.mubr.f32.gmra.mrb[0].mxu0 %v535
      %v1302 = vpop.f32.mrb[0].mxu0
      %v1303 = vadd.f32 %v384, %v1302
      %v1304 = vpop.f32.mrb[0].mxu0
      %1305 = vmatprep.mubr.f32.mxu0 0.0
      %1306 = vmatmul.mubr.f32.gmra.mrb[0].mxu0 %v538
      %v1307 = vpop.f32.mrb[0].mxu0
      %v1308 = vadd.f32 %v384, %v1307
      %v1309 = vpop.f32.mrb[0].mxu0
      %1310 = vmatprep.mubr.f32.mxu0 0.0
      %1311 = vmatmul.mubr.f32.gmra.mrb[0].mxu0 %v541
      %v1312 = vpop.f32.mrb[0].mxu0
      %v1313 = vadd.f32 %v384, %v1312
      %v1314 = vpop.f32.mrb[0].mxu0
      %1315 = vmatprep.mubr.f32.mxu0 0.0
      %1316 = vmatmul.mubr.f32.gmra.mrb[0].mxu0 %v544
      %v1317 = vpop.f32.mrb[0].mxu0
      %v1318 = vadd.f32 %v384, %v1317
      %v1319 = vpop.f32.mrb[0].mxu0
      %1320 = vmatprep.mubr.f32.mxu0 0.0
      %1321 = vmatmul.mubr.f32.gmra.mrb[0].mxu0 %v547
      %v1322 = vpop.f32.mrb[0].mxu0
      %v1323 = vadd.f32 %v384, %v1322
      %v1324 = vpop.f32.mrb[0].mxu0
      %1325 = vmatprep.mubr.f32.mxu0 0.0
      %1326 = vmatmul.mubr.f32.gmra.mrb[0].mxu0 %v550
      %v1327 = vpop.f32.mrb[0].mxu0
      %v1328 = vadd.f32 %v384, %v1327
      %v1329 = vpop.f32.mrb[0].mxu0
      %1330 = vmatprep.mubr.f32.mxu0 0.0
      %1331 = vmatmul.mubr.f32.gmra.mrb[0].mxu0 %v553
      %v1332 = vpop.f32.mrb[0].mxu0
      %v1333 = vadd.f32 %v384, %v1332
      %v1334 = vpop.f32.mrb[0].mxu0
      %1335 = vmatprep.mubr.f32.mxu0 0.0
      %1336 = vmatmul.mubr.f32.gmra.mrb[0].mxu0 %v556
      %v1337 = vpop.f32.mrb[0].mxu0
      %v1338 = vadd.f32 %v384, %v1337
      %v1339 = vpop.f32.mrb[0].mxu0
      %1340 = vmatprep.mubr.f32.mxu0 0.0
      %1341 = vmatmul.mubr.f32.gmra.mrb[0].mxu0 %v559
      %v1342 = vpop.f32.mrb[0].mxu0
      %v1343 = vadd.f32 %v384, %v1342
      %v1344 = vpop.f32.mrb[0].mxu0
      %1345 = vmatprep.mubr.f32.mxu0 0.0
      %1346 = vmatmul.mubr.f32.gmra.mrb[0].mxu0 %v562
      %v1347 = vpop.f32.mrb[0].mxu0
      %v1348 = vadd.f32 %v384, %v1347
      %v1349 = vpop.f32.mrb[0].mxu0
      %1350 = vmatprep.mubr.f32.mxu0 0.0
      %1351 = vmatmul.mubr.f32.gmra.mrb[0].mxu0 %v565
      %v1352 = vpop.f32.mrb[0].mxu0
      %v1353 = vadd.f32 %v384, %v1352
      %v1354 = vpop.f32.mrb[0].mxu0
      %1355 = vmatprep.mubr.f32.mxu0 0.0
      %1356 = vmatmul.mubr.f32.gmra.mrb[0].mxu0 %v568
      %v1357 = vpop.f32.mrb[0].mxu0
      %v1358 = vadd.f32 %v384, %v1357
      %v1359 = vpop.f32.mrb[0].mxu0
      %1360 = vmatprep.mubr.f32.mxu0 0.0
      %1361 = vmatmul.mubr.f32.gmra.mrb[0].mxu0 %v571
      %v1362 = vpop.f32.mrb[0].mxu0
      %v1363 = vadd.f32 %v384, %v1362
      %v1364 = vpop.f32.mrb[0].mxu0
      %1365 = vmatprep.mubr.f32.mxu0 0.0
      %1366 = vmatmul.mubr.f32.gmra.mrb[0].mxu0 %v574
      %v1367 = vpop.f32.mrb[0].mxu0
      %v1368 = vadd.f32 %v384, %v1367
      %v1369 = vpop.f32.mrb[0].mxu0
      %1370 = vmatprep.mubr.f32.mxu0 0.0
      %1371 = vmatmul.mubr.f32.gmra.mrb[0].mxu0 %v577
      %v1372 = vpop.f32.mrb[0].mxu0
      %v1373 = vadd.f32 %v384, %v1372
      %v1374 = vpop.f32.mrb[0].mxu0
      %1375 = vmatprep.mubr.f32.mxu0 0.0
      %1376 = vmatmul.mubr.f32.gmra.mrb[0].mxu0 %v580
      %v1377 = vpop.f32.mrb[0].mxu0
      %v1378 = vadd.f32 %v384, %v1377
      %v1379 = vpop.f32.mrb[0].mxu0
      %1380 = vmatprep.mubr.f32.mxu0 0.0
      %1381 = vmatmul.mubr.f32.gmra.mrb[0].mxu0 %v583
      %v1382 = vpop.f32.mrb[0].mxu0
      %v1383 = vadd.f32 %v384, %v1382
      %v1384 = vpop.f32.mrb[0].mxu0
      %1385 = vmatprep.mubr.f32.mxu0 0.0
      %1386 = vmatmul.mubr.f32.gmra.mrb[0].mxu0 %v586
      %v1387 = vpop.f32.mrb[0].mxu0
      %v1388 = vadd.f32 %v384, %v1387
      %v1389 = vpop.f32.mrb[0].mxu0
      %1390 = vmatprep.mubr.f32.mxu0 0.0
      %1391 = vmatmul.mubr.f32.gmra.mrb[0].mxu0 %v589
      %v1392 = vpop.f32.mrb[0].mxu0
      %v1393 = vadd.f32 %v384, %v1392
      %v1394 = vpop.f32.mrb[0].mxu0
      %1395 = vmatprep.mubr.f32.mxu0 0.0
      %1396 = vmatmul.mubr.f32.gmra.mrb[0].mxu0 %v592
      %v1397 = vpop.f32.mrb[0].mxu0
      %v1398 = vadd.f32 %v384, %v1397
      %v1399 = vpop.f32.mrb[0].mxu0
      %1400 = vmatprep.mubr.f32.mxu0 0.0
      %1401 = vmatmul.mubr.f32.gmra.mrb[0].mxu0 %v595
      %v1402 = vpop.f32.mrb[0].mxu0
      %v1403 = vadd.f32 %v384, %v1402
      %v1404 = vpop.f32.mrb[0].mxu0
      %1405 = vmatprep.mubr.f32.mxu0 0.0
      %1406 = vmatmul.mubr.f32.gmra.mrb[0].mxu0 %v598
      %v1407 = vpop.f32.mrb[0].mxu0
      %v1408 = vadd.f32 %v384, %v1407
      %v1409 = vpop.f32.mrb[0].mxu0
      %1410 = vmatprep.mubr.f32.mxu0 0.0
      %1411 = vmatmul.mubr.f32.gmra.mrb[0].mxu0 %v601
      %v1412 = vpop.f32.mrb[0].mxu0
      %v1413 = vadd.f32 %v384, %v1412
      %v1414 = vpop.f32.mrb[0].mxu0
      %1415 = vmatprep.mubr.f32.mxu0 0.0
      %1416 = vmatmul.mubr.f32.gmra.mrb[0].mxu0 %v604
      %v1417 = vpop.f32.mrb[0].mxu0
      %v1418 = vadd.f32 %v384, %v1417
      %v1419 = vpop.f32.mrb[0].mxu0
      %1420 = vmatprep.mubr.f32.mxu0 0.0
      %1421 = vmatmul.mubr.f32.gmra.mrb[0].mxu0 %v607
      %v1422 = vpop.f32.mrb[0].mxu0
      %v1423 = vadd.f32 %v384, %v1422
      %v1424 = vpop.f32.mrb[0].mxu0
      %1425 = vmatprep.mubr.f32.mxu0 0.0
      %1426 = vmatmul.mubr.f32.gmra.mrb[0].mxu0 %v610
      %v1427 = vpop.f32.mrb[0].mxu0
      %v1428 = vadd.f32 %v384, %v1427
      %v1429 = vpop.f32.mrb[0].mxu0
      %1430 = vmatprep.mubr.f32.mxu0 0.0
      %1431 = vmatmul.mubr.f32.gmra.mrb[0].mxu0 %v613
      %v1432 = vpop.f32.mrb[0].mxu0
      %v1433 = vadd.f32 %v384, %v1432
      %v1434 = vpop.f32.mrb[0].mxu0
      %1435 = vmatprep.mubr.f32.mxu0 0.0
      %1436 = vmatmul.mubr.f32.gmra.mrb[0].mxu0 %v616
      %v1437 = vpop.f32.mrb[0].mxu0
      %v1438 = vadd.f32 %v384, %v1437
      %v1439 = vpop.f32.mrb[0].mxu0
      %1440 = vmatprep.mubr.f32.mxu0 0.0
      %1441 = vmatmul.mubr.f32.gmra.mrb[0].mxu0 %v619
      %v1442 = vpop.f32.mrb[0].mxu0
      %v1443 = vadd.f32 %v384, %v1442
      %v1444 = vpop.f32.mrb[0].mxu0
      %1445 = vmatprep.mubr.f32.mxu0 0.0
      %1446 = vmatmul.mubr.f32.gmra.mrb[0].mxu0 %v622
      %v1447 = vpop.f32.mrb[0].mxu0
      %v1448 = vadd.f32 %v384, %v1447
      %v1449 = vpop.f32.mrb[0].mxu0
      %1450 = vmatprep.mubr.f32.mxu0 0.0
      %1451 = vmatmul.mubr.f32.gmra.mrb[0].mxu0 %v625
      %v1452 = vpop.f32.mrb[0].mxu0
      %v1453 = vadd.f32 %v384, %v1452
      %v1454 = vpop.f32.mrb[0].mxu0
      %1455 = vmatprep.mubr.f32.mxu0 0.0
      %1456 = vmatmul.mubr.f32.gmra.mrb[0].mxu0 %v628
      %v1457 = vpop.f32.mrb[0].mxu0
      %v1458 = vadd.f32 %v384, %v1457
      %v1459 = vpop.f32.mrb[0].mxu0
      %1460 = vmatprep.mubr.f32.mxu0 0.0
      %1461 = vmatmul.mubr.f32.gmra.mrb[0].mxu0 %v631
      %v1462 = vpop.f32.mrb[0].mxu0
      %v1463 = vadd.f32 %v384, %v1462
      %v1464 = vpop.f32.mrb[0].mxu0
      %1465 = vmatprep.mubr.f32.mxu0 0.0
      %1466 = vmatmul.mubr.f32.gmra.mrb[0].mxu0 %v634
      %v1467 = vpop.f32.mrb[0].mxu0
      %v1468 = vadd.f32 %v384, %v1467
      %v1469 = vpop.f32.mrb[0].mxu0
      %1470 = vmatprep.mubr.f32.mxu0 0.0
      %1471 = vmatmul.mubr.f32.gmra.mrb[0].mxu0 %v637
      %v1472 = vpop.f32.mrb[0].mxu0
      %v1473 = vadd.f32 %v384, %v1472
      %v1474 = vpop.f32.mrb[0].mxu0
      %1475 = vmatprep.mubr.f32.mxu0 0.0
      %1476 = vmatmul.mubr.f32.gmra.mrb[0].mxu0 %v640
      %v1477 = vpop.f32.mrb[0].mxu0
      %v1478 = vadd.f32 %v384, %v1477
      %v1479 = vpop.f32.mrb[0].mxu0
      %1480 = vmatprep.mubr.f32.mxu0 0.0
      %1481 = vmatmul.mubr.f32.gmra.mrb[0].mxu0 %v643
      %v1482 = vpop.f32.mrb[0].mxu0
      %v1483 = vadd.f32 %v384, %v1482
      %v1484 = vpop.f32.mrb[0].mxu0
      %1485 = vmatprep.mubr.f32.mxu0 0.0
      %1486 = vmatmul.mubr.f32.gmra.mrb[0].mxu0 %v646
      %v1487 = vpop.f32.mrb[0].mxu0
      %v1488 = vadd.f32 %v384, %v1487
      %v1489 = vpop.f32.mrb[0].mxu0
      %1490 = vmatprep.mubr.f32.mxu0 0.0
      %1491 = vmatmul.mubr.f32.gmra.mrb[0].mxu0 %v649
      %v1492 = vpop.f32.mrb[0].mxu0
      %v1493 = vadd.f32 %v384, %v1492
      %v1494 = vpop.f32.mrb[0].mxu0
      %1495 = vmatprep.mubr.f32.mxu0 0.0
      %1496 = vmatmul.mubr.f32.gmra.mrb[0].mxu0 %v652
      %v1497 = vpop.f32.mrb[0].mxu0
      %v1498 = vadd.f32 %v384, %v1497
      %v1499 = vpop.f32.mrb[0].mxu0
      %1500 = vmatprep.mubr.f32.mxu0 0.0
      %1501 = vmatmul.mubr.f32.gmra.mrb[0].mxu0 %v655
      %v1502 = vpop.f32.mrb[0].mxu0
      %v1503 = vadd.f32 %v384, %v1502
      %v1504 = vpop.f32.mrb[0].mxu0
      %1505 = vmatprep.mubr.f32.mxu0 0.0
      %1506 = vmatmul.mubr.f32.gmra.mrb[0].mxu0 %v658
      %v1507 = vpop.f32.mrb[0].mxu0
      %v1508 = vadd.f32 %v384, %v1507
      %v1509 = vpop.f32.mrb[0].mxu0
      %1510 = vmatprep.mubr.f32.mxu0 0.0
      %1511 = vmatmul.mubr.f32.gmra.mrb[0].mxu0 %v661
      %v1512 = vpop.f32.mrb[0].mxu0
      %v1513 = vadd.f32 %v384, %v1512
      %v1514 = vpop.f32.mrb[0].mxu0
      %1515 = vmatprep.mubr.f32.mxu0 0.0
      %1516 = vmatmul.mubr.f32.gmra.mrb[0].mxu0 %v664
      %v1517 = vpop.f32.mrb[0].mxu0
      %v1518 = vadd.f32 %v384, %v1517
      %v1519 = vpop.f32.mrb[0].mxu0
      %1520 = vmatprep.mubr.f32.mxu0 0.0
      %1521 = vmatmul.mubr.f32.gmra.mrb[0].mxu0 %v667
      %v1522 = vpop.f32.mrb[0].mxu0
      %v1523 = vadd.f32 %v384, %v1522
      %v1524 = vpop.f32.mrb[0].mxu0
      %1525 = vmatprep.mubr.f32.mxu0 0.0
      %1526 = vmatmul.mubr.f32.gmra.mrb[0].mxu0 %v670
      %v1527 = vpop.f32.mrb[0].mxu0
      %v1528 = vadd.f32 %v384, %v1527
      %v1529 = vpop.f32.mrb[0].mxu0
      %1530 = vmatprep.mubr.f32.mxu0 0.0
      %1531 = vmatmul.mubr.f32.gmra.mrb[0].mxu0 %v673
      %v1532 = vpop.f32.mrb[0].mxu0
      %v1533 = vadd.f32 %v384, %v1532
      %v1534 = vpop.f32.mrb[0].mxu0
      %1535 = vmatprep.mubr.f32.mxu0 0.0
      %1536 = vmatmul.mubr.f32.gmra.mrb[0].mxu0 %v676
      %v1537 = vpop.f32.mrb[0].mxu0
      %v1538 = vadd.f32 %v384, %v1537
      %v1539 = vpop.f32.mrb[0].mxu0
      %1540 = vmatprep.mubr.f32.mxu0 0.0
      %1541 = vmatmul.mubr.f32.gmra.mrb[0].mxu0 %v679
      %v1542 = vpop.f32.mrb[0].mxu0
      %v1543 = vadd.f32 %v384, %v1542
      %v1544 = vpop.f32.mrb[0].mxu0
      %1545 = vmatprep.mubr.f32.mxu0 0.0
      %1546 = vmatmul.mubr.f32.gmra.mrb[0].mxu0 %v682
      %v1547 = vpop.f32.mrb[0].mxu0
      %v1548 = vadd.f32 %v384, %v1547
      %v1549 = vpop.f32.mrb[0].mxu0
      %1550 = vmatprep.mubr.f32.mxu0 0.0
      %1551 = vmatmul.mubr.f32.gmra.mrb[0].mxu0 %v685
      %v1552 = vpop.f32.mrb[0].mxu0
      %v1553 = vadd.f32 %v384, %v1552
      %v1554 = vpop.f32.mrb[0].mxu0
      %1555 = vmatprep.mubr.f32.mxu0 0.0
      %1556 = vmatmul.mubr.f32.gmra.mrb[0].mxu0 %v688
      %v1557 = vpop.f32.mrb[0].mxu0
      %v1558 = vadd.f32 %v384, %v1557
      %v1559 = vpop.f32.mrb[0].mxu0
      %1560 = vmatprep.mubr.f32.mxu0 0.0
      %1561 = vmatmul.mubr.f32.gmra.mrb[0].mxu0 %v691
      %v1562 = vpop.f32.mrb[0].mxu0
      %v1563 = vadd.f32 %v384, %v1562
      %v1564 = vpop.f32.mrb[0].mxu0
      %1565 = vmatprep.mubr.f32.mxu0 0.0
      %1566 = vmatmul.mubr.f32.gmra.mrb[0].mxu0 %v694
      %v1567 = vpop.f32.mrb[0].mxu0
      %v1568 = vadd.f32 %v384, %v1567
      %v1569 = vpop.f32.mrb[0].mxu0
      %1570 = vmatprep.mubr.f32.mxu0 0.0
      %1571 = vmatmul.mubr.f32.gmra.mrb[0].mxu0 %v697
      %v1572 = vpop.f32.mrb[0].mxu0
      %v1573 = vadd.f32 %v384, %v1572
      %v1574 = vpop.f32.mrb[0].mxu0
      %1575 = vmatprep.mubr.f32.mxu0 0.0
      %1576 = vmatmul.mubr.f32.gmra.mrb[0].mxu0 %v700
      %v1577 = vpop.f32.mrb[0].mxu0
      %v1578 = vadd.f32 %v384, %v1577
      %v1579 = vpop.f32.mrb[0].mxu0
      %1580 = vmatprep.mubr.f32.mxu0 0.0
      %1581 = vmatmul.mubr.f32.gmra.mrb[0].mxu0 %v703
      %v1582 = vpop.f32.mrb[0].mxu0
      %v1583 = vadd.f32 %v384, %v1582
      %v1584 = vpop.f32.mrb[0].mxu0
      %1585 = vmatprep.mubr.f32.mxu0 0.0
      %1586 = vmatmul.mubr.f32.gmra.mrb[0].mxu0 %v706
      %v1587 = vpop.f32.mrb[0].mxu0
      %v1588 = vadd.f32 %v384, %v1587
      %v1589 = vpop.f32.mrb[0].mxu0
      %1590 = vmatprep.mubr.f32.mxu0 0.0
      %1591 = vmatmul.mubr.f32.gmra.mrb[0].mxu0 %v709
      %v1592 = vpop.f32.mrb[0].mxu0
      %v1593 = vadd.f32 %v384, %v1592
      %v1594 = vpop.f32.mrb[0].mxu0
      %1595 = vmatprep.mubr.f32.mxu0 0.0
      %1596 = vmatmul.mubr.f32.gmra.mrb[0].mxu0 %v712
      %v1597 = vpop.f32.mrb[0].mxu0
      %v1598 = vadd.f32 %v384, %v1597
      %v1599 = vpop.f32.mrb[0].mxu0
      %1600 = vmatprep.mubr.f32.mxu0 0.0
      %1601 = vmatmul.mubr.f32.gmra.mrb[0].mxu0 %v715
      %v1602 = vpop.f32.mrb[0].mxu0
      %v1603 = vadd.f32 %v384, %v1602
      %v1604 = vpop.f32.mrb[0].mxu0
      %1605 = vmatprep.mubr.f32.mxu0 0.0
      %1606 = vmatmul.mubr.f32.gmra.mrb[0].mxu0 %v718
      %v1607 = vpop.f32.mrb[0].mxu0
      %v1608 = vadd.f32 %v384, %v1607
      %v1609 = vpop.f32.mrb[0].mxu0
      %1610 = vmatprep.mubr.f32.mxu0 0.0
      %1611 = vmatmul.mubr.f32.gmra.mrb[0].mxu0 %v721
      %v1612 = vpop.f32.mrb[0].mxu0
      %v1613 = vadd.f32 %v384, %v1612
      %v1614 = vpop.f32.mrb[0].mxu0
      %1615 = vmatprep.mubr.f32.mxu0 0.0
      %1616 = vmatmul.mubr.f32.gmra.mrb[0].mxu0 %v724
      %v1617 = vpop.f32.mrb[0].mxu0
      %v1618 = vadd.f32 %v384, %v1617
      %v1619 = vpop.f32.mrb[0].mxu0
      %1620 = vmatprep.mubr.f32.mxu0 0.0
      %1621 = vmatmul.mubr.f32.gmra.mrb[0].mxu0 %v727
      %v1622 = vpop.f32.mrb[0].mxu0
      %v1623 = vadd.f32 %v384, %v1622
      %v1624 = vpop.f32.mrb[0].mxu0
      %1625 = vmatprep.mubr.f32.mxu0 0.0
      %1626 = vmatmul.mubr.f32.gmra.mrb[0].mxu0 %v730
      %v1627 = vpop.f32.mrb[0].mxu0
      %v1628 = vadd.f32 %v384, %v1627
      %v1629 = vpop.f32.mrb[0].mxu0
      %1630 = vmatprep.mubr.f32.mxu0 0.0
      %1631 = vmatmul.mubr.f32.gmra.mrb[0].mxu0 %v733
      %v1632 = vpop.f32.mrb[0].mxu0
      %v1633 = vadd.f32 %v384, %v1632
      %v1634 = vpop.f32.mrb[0].mxu0
      %1635 = vmatprep.mubr.f32.mxu0 0.0
      %1636 = vmatmul.mubr.f32.gmra.mrb[0].mxu0 %v736
      %v1637 = vpop.f32.mrb[0].mxu0
      %v1638 = vadd.f32 %v384, %v1637
      %v1639 = vpop.f32.mrb[0].mxu0
      %1640 = vmatprep.mubr.f32.mxu0 0.0
      %1641 = vmatmul.mubr.f32.gmra.mrb[0].mxu0 %v739
      %v1642 = vpop.f32.mrb[0].mxu0
      %v1643 = vadd.f32 %v384, %v1642
      %v1644 = vpop.f32.mrb[0].mxu0
      %1645 = vmatprep.mubr.f32.mxu0 0.0
      %1646 = vmatmul.mubr.f32.gmra.mrb[0].mxu0 %v742
      %v1647 = vpop.f32.mrb[0].mxu0
      %v1648 = vadd.f32 %v384, %v1647
      %v1649 = vpop.f32.mrb[0].mxu0
      %1650 = vmatprep.mubr.f32.mxu0 0.0
      %1651 = vmatmul.mubr.f32.gmra.mrb[0].mxu0 %v745
      %v1652 = vpop.f32.mrb[0].mxu0
      %v1653 = vadd.f32 %v384, %v1652
      %v1654 = vpop.f32.mrb[0].mxu0
      %1655 = vmatprep.mubr.f32.mxu0 0.0
      %1656 = vmatmul.mubr.f32.gmra.mrb[0].mxu0 %v748
      %v1657 = vpop.f32.mrb[0].mxu0
      %v1658 = vadd.f32 %v384, %v1657
      %v1659 = vpop.f32.mrb[0].mxu0
      %1660 = vmatprep.mubr.f32.mxu0 0.0
      %1661 = vmatmul.mubr.f32.gmra.mrb[0].mxu0 %v751
      %v1662 = vpop.f32.mrb[0].mxu0
      %v1663 = vadd.f32 %v384, %v1662
      %v1664 = vpop.f32.mrb[0].mxu0
      %1665 = vmatprep.mubr.f32.mxu0 0.0
      %1666 = vmatmul.mubr.f32.gmra.mrb[0].mxu0 %v754
      %v1667 = vpop.f32.mrb[0].mxu0
      %v1668 = vadd.f32 %v384, %v1667
      %v1669 = vpop.f32.mrb[0].mxu0
      %1670 = vmatprep.mubr.f32.mxu0 0.0
      %1671 = vmatmul.mubr.f32.gmra.mrb[0].mxu0 %v757
      %v1672 = vpop.f32.mrb[0].mxu0
      %v1673 = vadd.f32 %v384, %v1672
      %v1674 = vpop.f32.mrb[0].mxu0
      %1675 = vmatprep.mubr.f32.mxu0 0.0
      %1676 = vmatmul.mubr.f32.gmra.mrb[0].mxu0 %v760
      %v1677 = vpop.f32.mrb[0].mxu0
      %v1678 = vadd.f32 %v384, %v1677
      %v1679 = vpop.f32.mrb[0].mxu0
      %1680 = vmatprep.mubr.f32.mxu0 0.0
      %1681 = vmatmul.mubr.f32.gmra.mrb[0].mxu0 %v763
      %v1682 = vpop.f32.mrb[0].mxu0
      %v1683 = vadd.f32 %v384, %v1682
      %v1684 = vpop.f32.mrb[0].mxu0
      %1685 = vmatprep.mubr.f32.mxu0 0.0
      %1686 = vmatmul.mubr.f32.gmra.mrb[0].mxu0 %v766
      %v1687 = vpop.f32.mrb[0].mxu0
      %v1688 = vadd.f32 %v384, %v1687
      %v1689 = vpop.f32.mrb[0].mxu0
      %1690 = vmatprep.mubr.f32.mxu0 0.0
      %1691 = vmatmul.mubr.f32.gmra.mrb[0].mxu0 %v769
      %v1692 = vpop.f32.mrb[0].mxu0
      %v1693 = vadd.f32 %v384, %v1692
      %v1694 = vpop.f32.mrb[0].mxu0
      %1695 = vmatprep.mubr.f32.mxu0 0.0
      %1696 = vmatmul.mubr.f32.gmra.mrb[0].mxu0 %v772
      %v1697 = vpop.f32.mrb[0].mxu0
      %v1698 = vadd.f32 %v384, %v1697
      %v1699 = vpop.f32.mrb[0].mxu0
      %1700 = vmatprep.mubr.f32.mxu0 0.0
      %1701 = vmatmul.mubr.f32.gmra.mrb[0].mxu0 %v775
      %v1702 = vpop.f32.mrb[0].mxu0
      %v1703 = vadd.f32 %v384, %v1702
      %v1704 = vpop.f32.mrb[0].mxu0
      %1705 = vmatprep.mubr.f32.mxu0 0.0
      %1706 = vmatmul.mubr.f32.gmra.mrb[0].mxu0 %v778
      %v1707 = vpop.f32.mrb[0].mxu0
      %v1708 = vadd.f32 %v384, %v1707
      %v1709 = vpop.f32.mrb[0].mxu0
      %1710 = vmatprep.mubr.f32.mxu0 0.0
      %1711 = vmatmul.mubr.f32.gmra.mrb[0].mxu0 %v781
      %v1712 = vpop.f32.mrb[0].mxu0
      %v1713 = vadd.f32 %v384, %v1712
      %v1714 = vpop.f32.mrb[0].mxu0
      %1715 = vmatprep.mubr.f32.mxu0 0.0
      %1716 = vmatmul.mubr.f32.gmra.mrb[0].mxu0 %v784
      %v1717 = vpop.f32.mrb[0].mxu0
      %v1718 = vadd.f32 %v384, %v1717
      %v1719 = vpop.f32.mrb[0].mxu0
      %1720 = vmatprep.mubr.f32.mxu0 0.0
      %1721 = vmatmul.mubr.f32.gmra.mrb[0].mxu0 %v787
      %v1722 = vpop.f32.mrb[0].mxu0
      %v1723 = vadd.f32 %v384, %v1722
      %v1724 = vpop.f32.mrb[0].mxu0
      %1725 = vmatprep.mubr.f32.mxu0 0.0
      %1726 = vmatmul.mubr.f32.gmra.mrb[0].mxu0 %v790
      %v1727 = vpop.f32.mrb[0].mxu0
      %v1728 = vadd.f32 %v384, %v1727
      %v1729 = vpop.f32.mrb[0].mxu0
      %1730 = vmatprep.mubr.f32.mxu0 0.0
      %1731 = vmatmul.mubr.f32.gmra.mrb[0].mxu0 %v793
      %v1732 = vpop.f32.mrb[0].mxu0
      %v1733 = vadd.f32 %v384, %v1732
      %v1734 = vpop.f32.mrb[0].mxu0
      %1735 = vmatprep.mubr.f32.mxu0 0.0
      %1736 = vmatmul.mubr.f32.gmra.mrb[0].mxu0 %v796
      %v1737 = vpop.f32.mrb[0].mxu0
      %v1738 = vadd.f32 %v384, %v1737
      %v1739 = vpop.f32.mrb[0].mxu0
      %1740 = vmatprep.mubr.f32.mxu0 0.0
      %1741 = vmatmul.mubr.f32.gmra.mrb[0].mxu0 %v799
      %v1742 = vpop.f32.mrb[0].mxu0
      %v1743 = vadd.f32 %v384, %v1742
      %v1744 = vpop.f32.mrb[0].mxu0
      %1745 = vmatprep.mubr.f32.mxu0 0.0
      %1746 = vmatmul.mubr.f32.gmra.mrb[0].mxu0 %v802
      %v1747 = vpop.f32.mrb[0].mxu0
      %v1748 = vadd.f32 %v384, %v1747
      %v1749 = vpop.f32.mrb[0].mxu0
      %1750 = vmatprep.mubr.f32.mxu0 0.0
      %1751 = vmatmul.mubr.f32.gmra.mrb[0].mxu0 %v805
      %v1752 = vpop.f32.mrb[0].mxu0
      %v1753 = vadd.f32 %v384, %v1752
      %v1754 = vpop.f32.mrb[0].mxu0
      %1755 = vmatprep.mubr.f32.mxu0 0.0
      %1756 = vmatmul.mubr.f32.gmra.mrb[0].mxu0 %v808
      %v1757 = vpop.f32.mrb[0].mxu0
      %v1758 = vadd.f32 %v384, %v1757
      %v1759 = vpop.f32.mrb[0].mxu0
      %1760 = vmatprep.mubr.f32.mxu0 0.0
      %1761 = vmatmul.mubr.f32.gmra.mrb[0].mxu0 %v811
      %v1762 = vpop.f32.mrb[0].mxu0
      %v1763 = vadd.f32 %v384, %v1762
      %v1764 = vpop.f32.mrb[0].mxu0
      %1765 = vmatprep.mubr.f32.mxu0 0.0
      %1766 = vmatmul.mubr.f32.gmra.mrb[0].mxu0 %v814
      %v1767 = vpop.f32.mrb[0].mxu0
      %v1768 = vadd.f32 %v384, %v1767
      %v1769 = vpop.f32.mrb[0].mxu0
      %1770 = vmatprep.mubr.f32.mxu0 0.0
      %1771 = vmatmul.mubr.f32.gmra.mrb[0].mxu0 %v817
      %v1772 = vpop.f32.mrb[0].mxu0
      %v1773 = vadd.f32 %v384, %v1772
      %v1774 = vpop.f32.mrb[0].mxu0
      %1775 = vmatprep.mubr.f32.mxu0 0.0
      %1776 = vmatmul.mubr.f32.gmra.mrb[0].mxu0 %v820
      %v1777 = vpop.f32.mrb[0].mxu0
      %v1778 = vadd.f32 %v384, %v1777
      %v1779 = vpop.f32.mrb[0].mxu0
      %1780 = vmatprep.mubr.f32.mxu0 0.0
      %1781 = vmatmul.mubr.f32.gmra.mrb[0].mxu0 %v823
      %v1782 = vpop.f32.mrb[0].mxu0
      %v1783 = vadd.f32 %v384, %v1782
      %v1784 = vpop.f32.mrb[0].mxu0
      %1785 = vmatprep.mubr.f32.mxu0 0.0
      %1786 = vmatmul.mubr.f32.gmra.mrb[0].mxu0 %v826
      %v1787 = vpop.f32.mrb[0].mxu0
      %v1788 = vadd.f32 %v384, %v1787
      %v1789 = vpop.f32.mrb[0].mxu0
      %1790 = vmatprep.mubr.f32.mxu0 0.0
      %1791 = vmatmul.mubr.f32.gmra.mrb[0].mxu0 %v829
      %v1792 = vpop.f32.mrb[0].mxu0
      %v1793 = vadd.f32 %v384, %v1792
      %v1794 = vpop.f32.mrb[0].mxu0
      %1795 = vmatprep.mubr.f32.mxu0 0.0
      %1796 = vmatmul.mubr.f32.gmra.mrb[0].mxu0 %v832
      %v1797 = vpop.f32.mrb[0].mxu0
      %v1798 = vadd.f32 %v384, %v1797
      %v1799 = vpop.f32.mrb[0].mxu0
      %1800 = vmatprep.mubr.f32.mxu0 0.0
      %1801 = vmatmul.mubr.f32.gmra.mrb[0].mxu0 %v835
      %v1802 = vpop.f32.mrb[0].mxu0
      %v1803 = vadd.f32 %v384, %v1802
      %v1804 = vpop.f32.mrb[0].mxu0
      %1805 = vmatprep.mubr.f32.mxu0 0.0
      %1806 = vmatmul.mubr.f32.gmra.mrb[0].mxu0 %v838
      %v1807 = vpop.f32.mrb[0].mxu0
      %v1808 = vadd.f32 %v384, %v1807
      %v1809 = vpop.f32.mrb[0].mxu0
      %1810 = vmatprep.mubr.f32.mxu0 0.0
      %1811 = vmatmul.mubr.f32.gmra.mrb[0].mxu0 %v841
      %v1812 = vpop.f32.mrb[0].mxu0
      %v1813 = vadd.f32 %v384, %v1812
      %v1814 = vpop.f32.mrb[0].mxu0
      %1815 = vmatprep.mubr.f32.mxu0 0.0
      %1816 = vmatmul.mubr.f32.gmra.mrb[0].mxu0 %v844
      %v1817 = vpop.f32.mrb[0].mxu0
      %v1818 = vadd.f32 %v384, %v1817
      %v1819 = vpop.f32.mrb[0].mxu0
      %1820 = vmatprep.mubr.f32.mxu0 0.0
      %1821 = vmatmul.mubr.f32.gmra.mrb[0].mxu0 %v847
      %v1822 = vpop.f32.mrb[0].mxu0
      %v1823 = vadd.f32 %v384, %v1822
      %v1824 = vpop.f32.mrb[0].mxu0
      %1825 = vmatprep.mubr.f32.mxu0 0.0
      %1826 = vmatmul.mubr.f32.gmra.mrb[0].mxu0 %v850
      %v1827 = vpop.f32.mrb[0].mxu0
      %v1828 = vadd.f32 %v384, %v1827
      %v1829 = vpop.f32.mrb[0].mxu0
      %1830 = vmatprep.mubr.f32.mxu0 0.0
      %1831 = vmatmul.mubr.f32.gmra.mrb[0].mxu0 %v853
      %v1832 = vpop.f32.mrb[0].mxu0
      %v1833 = vadd.f32 %v384, %v1832
      %v1834 = vpop.f32.mrb[0].mxu0
      %1835 = vmatprep.mubr.f32.mxu0 0.0
      %1836 = vmatmul.mubr.f32.gmra.mrb[0].mxu0 %v856
      %v1837 = vpop.f32.mrb[0].mxu0
      %v1838 = vadd.f32 %v384, %v1837
      %v1839 = vpop.f32.mrb[0].mxu0
      %1840 = vmatprep.mubr.f32.mxu0 0.0
      %1841 = vmatmul.mubr.f32.gmra.mrb[0].mxu0 %v859
      %v1842 = vpop.f32.mrb[0].mxu0
      %v1843 = vadd.f32 %v384, %v1842
      %v1844 = vpop.f32.mrb[0].mxu0
      %1845 = vmatprep.mubr.f32.mxu0 0.0
      %1846 = vmatmul.mubr.f32.gmra.mrb[0].mxu0 %v862
      %v1847 = vpop.f32.mrb[0].mxu0
      %v1848 = vadd.f32 %v384, %v1847
      %v1849 = vpop.f32.mrb[0].mxu0
      %1850 = vmatprep.mubr.f32.mxu0 0.0
      %1851 = vmatmul.mubr.f32.gmra.mrb[0].mxu0 %v865
      %v1852 = vpop.f32.mrb[0].mxu0
      %v1853 = vadd.f32 %v384, %v1852
      %v1854 = vpop.f32.mrb[0].mxu0
      %1855 = vmatprep.mubr.f32.mxu0 0.0
      %1856 = vmatmul.mubr.f32.gmra.mrb[0].mxu0 %v868
      %v1857 = vpop.f32.mrb[0].mxu0
      %v1858 = vadd.f32 %v384, %v1857
      %v1859 = vpop.f32.mrb[0].mxu0
      %1860 = vmatprep.mubr.f32.mxu0 0.0
      %1861 = vmatmul.mubr.f32.gmra.mrb[0].mxu0 %v871
      %v1862 = vpop.f32.mrb[0].mxu0
      %v1863 = vadd.f32 %v384, %v1862
      %v1864 = vpop.f32.mrb[0].mxu0
      %1865 = vmatprep.mubr.f32.mxu0 0.0
      %1866 = vmatmul.mubr.f32.gmra.mrb[0].mxu0 %v874
      %v1867 = vpop.f32.mrb[0].mxu0
      %v1868 = vadd.f32 %v384, %v1867
      %v1869 = vpop.f32.mrb[0].mxu0
      %1870 = vmatprep.mubr.f32.mxu0 0.0
      %1871 = vmatmul.mubr.f32.gmra.mrb[0].mxu0 %v877
      %v1872 = vpop.f32.mrb[0].mxu0
      %v1873 = vadd.f32 %v384, %v1872
      %v1874 = vpop.f32.mrb[0].mxu0
      %1875 = vmatprep.mubr.f32.mxu0 0.0
      %1876 = vmatmul.mubr.f32.gmra.mrb[0].mxu0 %v880
      %v1877 = vpop.f32.mrb[0].mxu0
      %v1878 = vadd.f32 %v384, %v1877
      %v1879 = vpop.f32.mrb[0].mxu0
      %1880 = vmatprep.mubr.f32.mxu0 0.0
      %1881 = vmatmul.mubr.f32.gmra.mrb[0].mxu0 %v883
      %v1882 = vpop.f32.mrb[0].mxu0
      %v1883 = vadd.f32 %v384, %v1882
      %v1884 = vpop.f32.mrb[0].mxu0
      %1885 = vmatprep.mubr.f32.mxu0 0.0
      %1886 = vmatmul.mubr.f32.gmra.mrb[0].mxu0 %v886
      %v1887 = vpop.f32.mrb[0].mxu0
      %v1888 = vadd.f32 %v384, %v1887
      %v1889 = vpop.f32.mrb[0].mxu0
      %1890 = vmatprep.mubr.f32.mxu0 0.0
      %1891 = vmatmul.mubr.f32.gmra.mrb[0].mxu0 %v889
      %v1892 = vpop.f32.mrb[0].mxu0
      %v1893 = vadd.f32 %v384, %v1892
      %v1894 = vpop.f32.mrb[0].mxu0
      %1895 = vmatprep.mubr.f32.mxu0 0.0
      %1896 = vmatmul.mubr.f32.gmra.mrb[0].mxu0 %v892
      %v1897 = vpop.f32.mrb[0].mxu0
      %v1898 = vadd.f32 %v384, %v1897
      %v1899 = vpop.f32.mrb[0].mxu0
      %1900 = vmatprep.mubr.f32.mxu0 0.0
      %1901 = vmatmul.mubr.f32.gmra.mrb[0].mxu0 %v895
      %v1902 = vpop.f32.mrb[0].mxu0
      %v1903 = vadd.f32 %v384, %v1902
      %v1904 = vpop.f32.mrb[0].mxu0
      %1905 = vmatprep.mubr.f32.mxu0 0.0
      %1906 = vmatmul.mubr.f32.gmra.mrb[0].mxu0 %v898
      %v1907 = vpop.f32.mrb[0].mxu0
      %v1908 = vadd.f32 %v384, %v1907
      %v1909 = vpop.f32.mrb[0].mxu0
      %1910 = vmatprep.mubr.f32.mxu0 0.0
      %1911 = vmatmul.mubr.f32.gmra.mrb[0].mxu0 %v901
      %v1912 = vpop.f32.mrb[0].mxu0
      %v1913 = vadd.f32 %v384, %v1912
      %v1914 = vpop.f32.mrb[0].mxu0
      %1915 = vmatprep.mubr.f32.mxu0 0.0
      %1916 = vmatmul.mubr.f32.gmra.mrb[0].mxu0 %v904
      %v1917 = vpop.f32.mrb[0].mxu0
      %v1918 = vadd.f32 %v384, %v1917
      %v1919 = vpop.f32.mrb[0].mxu0
      %1920 = vmatprep.mubr.f32.mxu0 0.0
      %1921 = vmatmul.mubr.f32.gmra.mrb[0].mxu0 %v907
      %v1922 = vpop.f32.mrb[0].mxu0
      %v1923 = vadd.f32 %v384, %v1922
      %v1924 = vpop.f32.mrb[0].mxu0
      %1925 = vmatprep.mubr.f32.mxu0 0.0
      %1926 = vmatmul.mubr.f32.gmra.mrb[0].mxu0 %v910
      %v1927 = vpop.f32.mrb[0].mxu0
      %v1928 = vadd.f32 %v384, %v1927
      %v1929 = vpop.f32.mrb[0].mxu0
      %1930 = vmatprep.mubr.f32.mxu0 0.0
      %1931 = vmatmul.mubr.f32.gmra.mrb[0].mxu0 %v913
      %v1932 = vpop.f32.mrb[0].mxu0
      %v1933 = vadd.f32 %v384, %v1932
      %v1934 = vpop.f32.mrb[0].mxu0
      %1935 = vmatprep.mubr.f32.mxu0 0.0
      %1936 = vmatmul.mubr.f32.gmra.mrb[0].mxu0 %v916
      %v1937 = vpop.f32.mrb[0].mxu0
      %v1938 = vadd.f32 %v384, %v1937
      %v1939 = vpop.f32.mrb[0].mxu0
      %1940 = vmatprep.mubr.f32.mxu0 0.0
      %1941 = vmatmul.mubr.f32.gmra.mrb[0].mxu0 %v919
      %v1942 = vpop.f32.mrb[0].mxu0
      %v1943 = vadd.f32 %v384, %v1942
      %v1944 = vpop.f32.mrb[0].mxu0
      %1945 = vmatprep.mubr.f32.mxu0 0.0
      %1946 = vmatmul.mubr.f32.gmra.mrb[0].mxu0 %v922
      %v1947 = vpop.f32.mrb[0].mxu0
      %v1948 = vadd.f32 %v384, %v1947
      %v1949 = vpop.f32.mrb[0].mxu0
      %1950 = vmatprep.mubr.f32.mxu0 0.0
      %1951 = vmatmul.mubr.f32.gmra.mrb[0].mxu0 %v925
      %v1952 = vpop.f32.mrb[0].mxu0
      %v1953 = vadd.f32 %v384, %v1952
      %v1954 = vpop.f32.mrb[0].mxu0
      %1955 = vmatprep.mubr.f32.mxu0 0.0
      %1956 = vmatmul.mubr.f32.gmra.mrb[0].mxu0 %v928
      %v1957 = vpop.f32.mrb[0].mxu0
      %v1958 = vadd.f32 %v384, %v1957
      %v1959 = vpop.f32.mrb[0].mxu0
      %1960 = vmatprep.mubr.f32.mxu0 0.0
      %1961 = vmatmul.mubr.f32.gmra.mrb[0].mxu0 %v931
      %v1962 = vpop.f32.mrb[0].mxu0
      %v1963 = vadd.f32 %v384, %v1962
      %v1964 = vpop.f32.mrb[0].mxu0
      %1965 = vmatprep.mubr.f32.mxu0 0.0
      %1966 = vmatmul.mubr.f32.gmra.mrb[0].mxu0 %v934
      %v1967 = vpop.f32.mrb[0].mxu0
      %v1968 = vadd.f32 %v384, %v1967
      %v1969 = vpop.f32.mrb[0].mxu0
      %1970 = vmatprep.mubr.f32.mxu0 0.0
      %1971 = vmatmul.mubr.f32.gmra.mrb[0].mxu0 %v937
      %v1972 = vpop.f32.mrb[0].mxu0
      %v1973 = vadd.f32 %v384, %v1972
      %v1974 = vpop.f32.mrb[0].mxu0
      %1975 = vmatprep.mubr.f32.mxu0 0.0
      %1976 = vmatmul.mubr.f32.gmra.mrb[0].mxu0 %v940
      %v1977 = vpop.f32.mrb[0].mxu0
      %v1978 = vadd.f32 %v384, %v1977
      %v1979 = vpop.f32.mrb[0].mxu0
      %1980 = vmatprep.mubr.f32.mxu0 0.0
      %1981 = vmatmul.mubr.f32.gmra.mrb[0].mxu0 %v943
      %v1982 = vpop.f32.mrb[0].mxu0
      %v1983 = vadd.f32 %v384, %v1982
      %v1984 = vpop.f32.mrb[0].mxu0
      %1985 = vmatprep.mubr.f32.mxu0 0.0
      %1986 = vmatmul.mubr.f32.gmra.mrb[0].mxu0 %v946
      %v1987 = vpop.f32.mrb[0].mxu0
      %v1988 = vadd.f32 %v384, %v1987
      %v1989 = vpop.f32.mrb[0].mxu0
      %1990 = vmatprep.mubr.f32.mxu0 0.0
      %1991 = vmatmul.mubr.f32.gmra.mrb[0].mxu0 %v949
      %v1992 = vpop.f32.mrb[0].mxu0
      %v1993 = vadd.f32 %v384, %v1992
      %v1994 = vpop.f32.mrb[0].mxu0
      %1995 = vmatprep.mubr.f32.mxu0 0.0
      %1996 = vmatmul.mubr.f32.gmra.mrb[0].mxu0 %v952
      %v1997 = vpop.f32.mrb[0].mxu0
      %v1998 = vadd.f32 %v384, %v1997
      %v1999 = vpop.f32.mrb[0].mxu0
      %2000 = vmatprep.mubr.f32.mxu0 0.0
      %2001 = vmatmul.mubr.f32.gmra.mrb[0].mxu0 %v955
      %v2002 = vpop.f32.mrb[0].mxu0
      %v2003 = vadd.f32 %v384, %v2002
      %v2004 = vpop.f32.mrb[0].mxu0
      %2005 = vmatprep.mubr.f32.mxu0 0.0
      %2006 = vmatmul.mubr.f32.gmra.mrb[0].mxu0 %v958
      %v2007 = vpop.f32.mrb[0].mxu0
      %v2008 = vadd.f32 %v384, %v2007
      %v2009 = vpop.f32.mrb[0].mxu0
      %2010 = vmatprep.mubr.f32.mxu0 0.0
      %2011 = vmatmul.mubr.f32.gmra.mrb[0].mxu0 %v961
      %v2012 = vpop.f32.mrb[0].mxu0
      %v2013 = vadd.f32 %v384, %v2012
      %v2014 = vpop.f32.mrb[0].mxu0
      %2015 = vmatprep.mubr.f32.mxu0 0.0
      %2016 = vmatmul.mubr.f32.gmra.mrb[0].mxu0 %v964
      %v2017 = vpop.f32.mrb[0].mxu0
      %v2018 = vadd.f32 %v384, %v2017
      %v2019 = vpop.f32.mrb[0].mxu0
      %2020 = vmatprep.mubr.f32.mxu0 0.0
      %2021 = vmatmul.mubr.f32.gmra.mrb[0].mxu0 %v967
      %v2022 = vpop.f32.mrb[0].mxu0
      %v2023 = vadd.f32 %v384, %v2022
      %v2024 = vpop.f32.mrb[0].mxu0
      %2025 = vmatprep.mubr.f32.mxu0 0.0
      %2026 = vmatmul.mubr.f32.gmra.mrb[0].mxu0 %v970
      %v2027 = vpop.f32.mrb[0].mxu0
      %v2028 = vadd.f32 %v384, %v2027
      %v2029 = vpop.f32.mrb[0].mxu0
      %2030 = vmatprep.mubr.f32.mxu0 0.0
      %2031 = vmatmul.mubr.f32.gmra.mrb[0].mxu0 %v973
      %v2032 = vpop.f32.mrb[0].mxu0
      %v2033 = vadd.f32 %v384, %v2032
      %v2034 = vpop.f32.mrb[0].mxu0
      %2035 = vmatprep.mubr.f32.mxu0 0.0
      %2036 = vmatmul.mubr.f32.gmra.mrb[0].mxu0 %v976
      %v2037 = vpop.f32.mrb[0].mxu0
      %v2038 = vadd.f32 %v384, %v2037
      %v2039 = vpop.f32.mrb[0].mxu0
      %2040 = vmatprep.mubr.f32.mxu0 0.0
      %2041 = vmatmul.mubr.f32.gmra.mrb[0].mxu0 %v979
      %v2042 = vpop.f32.mrb[0].mxu0
      %v2043 = vadd.f32 %v384, %v2042
      %v2044 = vpop.f32.mrb[0].mxu0
      %2045 = vmatprep.mubr.f32.mxu0 0.0
      %2046 = vmatmul.mubr.f32.gmra.mrb[0].mxu0 %v982
      %v2047 = vpop.f32.mrb[0].mxu0
      %v2048 = vadd.f32 %v384, %v2047
      %v2049 = vpop.f32.mrb[0].mxu0
      %2050 = vmatprep.mubr.f32.mxu0 0.0
      %2051 = vmatmul.mubr.f32.gmra.mrb[0].mxu0 %v985
      %v2052 = vpop.f32.mrb[0].mxu0
      %v2053 = vadd.f32 %v384, %v2052
      %v2054 = vpop.f32.mrb[0].mxu0
      %2055 = vdwg.mxu0
      %v2056 = vmax.f32 %v1058, 0.0
      %v2057 = vmax.f32 %v1063, 0.0
      %v2058 = vmax.f32 %v1068, 0.0
      %v2059 = vmax.f32 %v1073, 0.0
      %v2060 = vmax.f32 %v1078, 0.0
      %v2061 = vmax.f32 %v1083, 0.0
      %v2062 = vmax.f32 %v1088, 0.0
      %v2063 = vmax.f32 %v1093, 0.0
      %v2064 = vmax.f32 %v1098, 0.0
      %v2065 = vmax.f32 %v1103, 0.0
      %v2066 = vmax.f32 %v1108, 0.0
      %v2067 = vmax.f32 %v1113, 0.0
      %v2068 = vmax.f32 %v1118, 0.0
      %v2069 = vmax.f32 %v1123, 0.0
      %v2070 = vmax.f32 %v1128, 0.0
      %v2071 = vmax.f32 %v1133, 0.0
      %v2072 = vmax.f32 %v1138, 0.0
      %v2073 = vmax.f32 %v1143, 0.0
      %v2074 = vmax.f32 %v1148, 0.0
      %v2075 = vmax.f32 %v1153, 0.0
      %v2076 = vmax.f32 %v1158, 0.0
      %v2077 = vmax.f32 %v1163, 0.0
      %v2078 = vmax.f32 %v1168, 0.0
      %v2079 = vmax.f32 %v1173, 0.0
      %v2080 = vmax.f32 %v1178, 0.0
      %v2081 = vmax.f32 %v1183, 0.0
      %v2082 = vmax.f32 %v1188, 0.0
      %v2083 = vmax.f32 %v1193, 0.0
      %v2084 = vmax.f32 %v1198, 0.0
      %v2085 = vmax.f32 %v1203, 0.0
      %v2086 = vmax.f32 %v1208, 0.0
      %v2087 = vmax.f32 %v1213, 0.0
      %v2088 = vmax.f32 %v1218, 0.0
      %v2089 = vmax.f32 %v1223, 0.0
      %v2090 = vmax.f32 %v1228, 0.0
      %v2091 = vmax.f32 %v1233, 0.0
      %v2092 = vmax.f32 %v1238, 0.0
      %v2093 = vmax.f32 %v1243, 0.0
      %v2094 = vmax.f32 %v1248, 0.0
      %v2095 = vmax.f32 %v1253, 0.0
      %v2096 = vmax.f32 %v1258, 0.0
      %v2097 = vmax.f32 %v1263, 0.0
      %v2098 = vmax.f32 %v1268, 0.0
      %v2099 = vmax.f32 %v1273, 0.0
      %v2100 = vmax.f32 %v1278, 0.0
      %v2101 = vmax.f32 %v1283, 0.0
      %v2102 = vmax.f32 %v1288, 0.0
      %v2103 = vmax.f32 %v1293, 0.0
      %v2104 = vmax.f32 %v1298, 0.0
      %v2105 = vmax.f32 %v1303, 0.0
      %v2106 = vmax.f32 %v1308, 0.0
      %v2107 = vmax.f32 %v1313, 0.0
      %v2108 = vmax.f32 %v1318, 0.0
      %v2109 = vmax.f32 %v1323, 0.0
      %v2110 = vmax.f32 %v1328, 0.0
      %v2111 = vmax.f32 %v1333, 0.0
      %v2112 = vmax.f32 %v1338, 0.0
      %v2113 = vmax.f32 %v1343, 0.0
      %v2114 = vmax.f32 %v1348, 0.0
      %v2115 = vmax.f32 %v1353, 0.0
      %v2116 = vmax.f32 %v1358, 0.0
      %v2117 = vmax.f32 %v1363, 0.0
      %v2118 = vmax.f32 %v1368, 0.0
      %v2119 = vmax.f32 %v1373, 0.0
      %v2120 = vmax.f32 %v1378, 0.0
      %v2121 = vmax.f32 %v1383, 0.0
      %v2122 = vmax.f32 %v1388, 0.0
      %v2123 = vmax.f32 %v1393, 0.0
      %v2124 = vmax.f32 %v1398, 0.0
      %v2125 = vmax.f32 %v1403, 0.0
      %v2126 = vmax.f32 %v1408, 0.0
      %v2127 = vmax.f32 %v1413, 0.0
      %v2128 = vmax.f32 %v1418, 0.0
      %v2129 = vmax.f32 %v1423, 0.0
      %v2130 = vmax.f32 %v1428, 0.0
      %v2131 = vmax.f32 %v1433, 0.0
      %v2132 = vmax.f32 %v1438, 0.0
      %v2133 = vmax.f32 %v1443, 0.0
      %v2134 = vmax.f32 %v1448, 0.0
      %v2135 = vmax.f32 %v1453, 0.0
      %v2136 = vmax.f32 %v1458, 0.0
      %v2137 = vmax.f32 %v1463, 0.0
      %v2138 = vmax.f32 %v1468, 0.0
      %v2139 = vmax.f32 %v1473, 0.0
      %v2140 = vmax.f32 %v1478, 0.0
      %v2141 = vmax.f32 %v1483, 0.0
      %v2142 = vmax.f32 %v1488, 0.0
      %v2143 = vmax.f32 %v1493, 0.0
      %v2144 = vmax.f32 %v1498, 0.0
      %v2145 = vmax.f32 %v1503, 0.0
      %v2146 = vmax.f32 %v1508, 0.0
      %v2147 = vmax.f32 %v1513, 0.0
      %v2148 = vmax.f32 %v1518, 0.0
      %v2149 = vmax.f32 %v1523, 0.0
      %v2150 = vmax.f32 %v1528, 0.0
      %v2151 = vmax.f32 %v1533, 0.0
      %v2152 = vmax.f32 %v1538, 0.0
      %v2153 = vmax.f32 %v1543, 0.0
      %v2154 = vmax.f32 %v1548, 0.0
      %v2155 = vmax.f32 %v1553, 0.0
      %v2156 = vmax.f32 %v1558, 0.0
      %v2157 = vmax.f32 %v1563, 0.0
      %v2158 = vmax.f32 %v1568, 0.0
      %v2159 = vmax.f32 %v1573, 0.0
      %v2160 = vmax.f32 %v1578, 0.0
      %v2161 = vmax.f32 %v1583, 0.0
      %v2162 = vmax.f32 %v1588, 0.0
      %v2163 = vmax.f32 %v1593, 0.0
      %v2164 = vmax.f32 %v1598, 0.0
      %v2165 = vmax.f32 %v1603, 0.0
      %v2166 = vmax.f32 %v1608, 0.0
      %v2167 = vmax.f32 %v1613, 0.0
      %v2168 = vmax.f32 %v1618, 0.0
      %v2169 = vmax.f32 %v1623, 0.0
      %v2170 = vmax.f32 %v1628, 0.0
      %v2171 = vmax.f32 %v1633, 0.0
      %v2172 = vmax.f32 %v1638, 0.0
      %v2173 = vmax.f32 %v1643, 0.0
      %v2174 = vmax.f32 %v1648, 0.0
      %v2175 = vmax.f32 %v1653, 0.0
      %v2176 = vmax.f32 %v1658, 0.0
      %v2177 = vmax.f32 %v1663, 0.0
      %v2178 = vmax.f32 %v1668, 0.0
      %v2179 = vmax.f32 %v1673, 0.0
      %v2180 = vmax.f32 %v1678, 0.0
      %v2181 = vmax.f32 %v1683, 0.0
      %v2182 = vmax.f32 %v1688, 0.0
      %v2183 = vmax.f32 %v1693, 0.0
      %v2184 = vmax.f32 %v1698, 0.0
      %v2185 = vmax.f32 %v1703, 0.0
      %v2186 = vmax.f32 %v1708, 0.0
      %v2187 = vmax.f32 %v1713, 0.0
      %v2188 = vmax.f32 %v1718, 0.0
      %v2189 = vmax.f32 %v1723, 0.0
      %v2190 = vmax.f32 %v1728, 0.0
      %v2191 = vmax.f32 %v1733, 0.0
      %v2192 = vmax.f32 %v1738, 0.0
      %v2193 = vmax.f32 %v1743, 0.0
      %v2194 = vmax.f32 %v1748, 0.0
      %v2195 = vmax.f32 %v1753, 0.0
      %v2196 = vmax.f32 %v1758, 0.0
      %v2197 = vmax.f32 %v1763, 0.0
      %v2198 = vmax.f32 %v1768, 0.0
      %v2199 = vmax.f32 %v1773, 0.0
      %v2200 = vmax.f32 %v1778, 0.0
      %v2201 = vmax.f32 %v1783, 0.0
      %v2202 = vmax.f32 %v1788, 0.0
      %v2203 = vmax.f32 %v1793, 0.0
      %v2204 = vmax.f32 %v1798, 0.0
      %v2205 = vmax.f32 %v1803, 0.0
      %v2206 = vmax.f32 %v1808, 0.0
      %v2207 = vmax.f32 %v1813, 0.0
      %v2208 = vmax.f32 %v1818, 0.0
      %v2209 = vmax.f32 %v1823, 0.0
      %v2210 = vmax.f32 %v1828, 0.0
      %v2211 = vmax.f32 %v1833, 0.0
      %v2212 = vmax.f32 %v1838, 0.0
      %v2213 = vmax.f32 %v1843, 0.0
      %v2214 = vmax.f32 %v1848, 0.0
      %v2215 = vmax.f32 %v1853, 0.0
      %v2216 = vmax.f32 %v1858, 0.0
      %v2217 = vmax.f32 %v1863, 0.0
      %v2218 = vmax.f32 %v1868, 0.0
      %v2219 = vmax.f32 %v1873, 0.0
      %v2220 = vmax.f32 %v1878, 0.0
      %v2221 = vmax.f32 %v1883, 0.0
      %v2222 = vmax.f32 %v1888, 0.0
      %v2223 = vmax.f32 %v1893, 0.0
      %v2224 = vmax.f32 %v1898, 0.0
      %v2225 = vmax.f32 %v1903, 0.0
      %v2226 = vmax.f32 %v1908, 0.0
      %v2227 = vmax.f32 %v1913, 0.0
      %v2228 = vmax.f32 %v1918, 0.0
      %v2229 = vmax.f32 %v1923, 0.0
      %v2230 = vmax.f32 %v1928, 0.0
      %v2231 = vmax.f32 %v1933, 0.0
      %v2232 = vmax.f32 %v1938, 0.0
      %v2233 = vmax.f32 %v1943, 0.0
      %v2234 = vmax.f32 %v1948, 0.0
      %v2235 = vmax.f32 %v1953, 0.0
      %v2236 = vmax.f32 %v1958, 0.0
      %v2237 = vmax.f32 %v1963, 0.0
      %v2238 = vmax.f32 %v1968, 0.0
      %v2239 = vmax.f32 %v1973, 0.0
      %v2240 = vmax.f32 %v1978, 0.0
      %v2241 = vmax.f32 %v1983, 0.0
      %v2242 = vmax.f32 %v1988, 0.0
      %v2243 = vmax.f32 %v1993, 0.0
      %v2244 = vmax.f32 %v1998, 0.0
      %v2245 = vmax.f32 %v2003, 0.0
      %v2246 = vmax.f32 %v2008, 0.0
      %v2247 = vmax.f32 %v2013, 0.0
      %v2248 = vmax.f32 %v2018, 0.0
      %v2249 = vmax.f32 %v2023, 0.0
      %v2250 = vmax.f32 %v2028, 0.0
      %v2251 = vmax.f32 %v2033, 0.0
      %v2252 = vmax.f32 %v2038, 0.0
      %v2253 = vmax.f32 %v2043, 0.0
      %v2254 = vmax.f32 %v2048, 0.0
      %v2255 = vmax.f32 %v2053, 0.0
      %vm2256 = vcmask 261120
      %2257 = vst.msk [vmem:[%s172] sm:$0xff] %vm2256, %v2056
      %2258 = vst.msk [vmem:[%s172 + $0x8] sm:$0xff] %vm2256, %v2057
      %2259 = vst.msk [vmem:[%s172 + $0x10] sm:$0xff] %vm2256, %v2058
      %2260 = vst.msk [vmem:[%s172 + $0x18] sm:$0xff] %vm2256, %v2059
      %2261 = vst.msk [vmem:[%s172 + $0x20] sm:$0xff] %vm2256, %v2060
      %2262 = vst.msk [vmem:[%s172 + $0x28] sm:$0xff] %vm2256, %v2061
      %2263 = vst.msk [vmem:[%s172 + $0x30] sm:$0xff] %vm2256, %v2062
      %2264 = vst.msk [vmem:[%s172 + $0x38] sm:$0xff] %vm2256, %v2063
      %2265 = vst.msk [vmem:[%s172 + $0x40] sm:$0xff] %vm2256, %v2064
      %2266 = vst.msk [vmem:[%s172 + $0x48] sm:$0xff] %vm2256, %v2065
      %2267 = vst.msk [vmem:[%s172 + $0x50] sm:$0xff] %vm2256, %v2066
      %2268 = vst.msk [vmem:[%s172 + $0x58] sm:$0xff] %vm2256, %v2067
      %2269 = vst.msk [vmem:[%s172 + $0x60] sm:$0xff] %vm2256, %v2068
      %2270 = vst.msk [vmem:[%s172 + $0x68] sm:$0xff] %vm2256, %v2069
      %2271 = vst.msk [vmem:[%s172 + $0x70] sm:$0xff] %vm2256, %v2070
      %2272 = vst.msk [vmem:[%s172 + $0x78] sm:$0xff] %vm2256, %v2071
      %2273 = vst.msk [vmem:[%s172 + $0x80] sm:$0xff] %vm2256, %v2072
      %2274 = vst.msk [vmem:[%s172 + $0x88] sm:$0xff] %vm2256, %v2073
      %2275 = vst.msk [vmem:[%s172 + $0x90] sm:$0xff] %vm2256, %v2074
      %2276 = vst.msk [vmem:[%s172 + $0x98] sm:$0xff] %vm2256, %v2075
      %2277 = vst.msk [vmem:[%s172 + $0xa0] sm:$0xff] %vm2256, %v2076
      %2278 = vst.msk [vmem:[%s172 + $0xa8] sm:$0xff] %vm2256, %v2077
      %2279 = vst.msk [vmem:[%s172 + $0xb0] sm:$0xff] %vm2256, %v2078
      %2280 = vst.msk [vmem:[%s172 + $0xb8] sm:$0xff] %vm2256, %v2079
      %2281 = vst.msk [vmem:[%s172 + $0xc0] sm:$0xff] %vm2256, %v2080
      %2282 = vst.msk [vmem:[%s172 + $0xc8] sm:$0xff] %vm2256, %v2081
      %2283 = vst.msk [vmem:[%s172 + $0xd0] sm:$0xff] %vm2256, %v2082
      %2284 = vst.msk [vmem:[%s172 + $0xd8] sm:$0xff] %vm2256, %v2083
      %2285 = vst.msk [vmem:[%s172 + $0xe0] sm:$0xff] %vm2256, %v2084
      %2286 = vst.msk [vmem:[%s172 + $0xe8] sm:$0xff] %vm2256, %v2085
      %2287 = vst.msk [vmem:[%s172 + $0xf0] sm:$0xff] %vm2256, %v2086
      %2288 = vst.msk [vmem:[%s172 + $0xf8] sm:$0xff] %vm2256, %v2087
      %2289 = vst.msk [vmem:[%s172 + $0x100] sm:$0xff] %vm2256, %v2088
      %2290 = vst.msk [vmem:[%s172 + $0x108] sm:$0xff] %vm2256, %v2089
      %2291 = vst.msk [vmem:[%s172 + $0x110] sm:$0xff] %vm2256, %v2090
      %2292 = vst.msk [vmem:[%s172 + $0x118] sm:$0xff] %vm2256, %v2091
      %2293 = vst.msk [vmem:[%s172 + $0x120] sm:$0xff] %vm2256, %v2092
      %2294 = vst.msk [vmem:[%s172 + $0x128] sm:$0xff] %vm2256, %v2093
      %2295 = vst.msk [vmem:[%s172 + $0x130] sm:$0xff] %vm2256, %v2094
      %2296 = vst.msk [vmem:[%s172 + $0x138] sm:$0xff] %vm2256, %v2095
      %2297 = vst.msk [vmem:[%s172 + $0x140] sm:$0xff] %vm2256, %v2096
      %2298 = vst.msk [vmem:[%s172 + $0x148] sm:$0xff] %vm2256, %v2097
      %2299 = vst.msk [vmem:[%s172 + $0x150] sm:$0xff] %vm2256, %v2098
      %2300 = vst.msk [vmem:[%s172 + $0x158] sm:$0xff] %vm2256, %v2099
      %2301 = vst.msk [vmem:[%s172 + $0x160] sm:$0xff] %vm2256, %v2100
      %2302 = vst.msk [vmem:[%s172 + $0x168] sm:$0xff] %vm2256, %v2101
      %2303 = vst.msk [vmem:[%s172 + $0x170] sm:$0xff] %vm2256, %v2102
      %2304 = vst.msk [vmem:[%s172 + $0x178] sm:$0xff] %vm2256, %v2103
      %2305 = vst.msk [vmem:[%s172 + $0x180] sm:$0xff] %vm2256, %v2104
      %2306 = vst.msk [vmem:[%s172 + $0x188] sm:$0xff] %vm2256, %v2105
      %2307 = vst.msk [vmem:[%s172 + $0x190] sm:$0xff] %vm2256, %v2106
      %2308 = vst.msk [vmem:[%s172 + $0x198] sm:$0xff] %vm2256, %v2107
      %2309 = vst.msk [vmem:[%s172 + $0x1a0] sm:$0xff] %vm2256, %v2108
      %2310 = vst.msk [vmem:[%s172 + $0x1a8] sm:$0xff] %vm2256, %v2109
      %2311 = vst.msk [vmem:[%s172 + $0x1b0] sm:$0xff] %vm2256, %v2110
      %2312 = vst.msk [vmem:[%s172 + $0x1b8] sm:$0xff] %vm2256, %v2111
      %2313 = vst.msk [vmem:[%s172 + $0x1c0] sm:$0xff] %vm2256, %v2112
      %2314 = vst.msk [vmem:[%s172 + $0x1c8] sm:$0xff] %vm2256, %v2113
      %2315 = vst.msk [vmem:[%s172 + $0x1d0] sm:$0xff] %vm2256, %v2114
      %2316 = vst.msk [vmem:[%s172 + $0x1d8] sm:$0xff] %vm2256, %v2115
      %2317 = vst.msk [vmem:[%s172 + $0x1e0] sm:$0xff] %vm2256, %v2116
      %2318 = vst.msk [vmem:[%s172 + $0x1e8] sm:$0xff] %vm2256, %v2117
      %2319 = vst.msk [vmem:[%s172 + $0x1f0] sm:$0xff] %vm2256, %v2118
      %2320 = vst.msk [vmem:[%s172 + $0x1f8] sm:$0xff] %vm2256, %v2119
      %2321 = vst.msk [vmem:[%s172 + $0x200] sm:$0xff] %vm2256, %v2120
      %2322 = vst.msk [vmem:[%s172 + $0x208] sm:$0xff] %vm2256, %v2121
      %2323 = vst.msk [vmem:[%s172 + $0x210] sm:$0xff] %vm2256, %v2122
      %2324 = vst.msk [vmem:[%s172 + $0x218] sm:$0xff] %vm2256, %v2123
      %2325 = vst.msk [vmem:[%s172 + $0x220] sm:$0xff] %vm2256, %v2124
      %2326 = vst.msk [vmem:[%s172 + $0x228] sm:$0xff] %vm2256, %v2125
      %2327 = vst.msk [vmem:[%s172 + $0x230] sm:$0xff] %vm2256, %v2126
      %2328 = vst.msk [vmem:[%s172 + $0x238] sm:$0xff] %vm2256, %v2127
      %2329 = vst.msk [vmem:[%s172 + $0x240] sm:$0xff] %vm2256, %v2128
      %2330 = vst.msk [vmem:[%s172 + $0x248] sm:$0xff] %vm2256, %v2129
      %2331 = vst.msk [vmem:[%s172 + $0x250] sm:$0xff] %vm2256, %v2130
      %2332 = vst.msk [vmem:[%s172 + $0x258] sm:$0xff] %vm2256, %v2131
      %2333 = vst.msk [vmem:[%s172 + $0x260] sm:$0xff] %vm2256, %v2132
      %2334 = vst.msk [vmem:[%s172 + $0x268] sm:$0xff] %vm2256, %v2133
      %2335 = vst.msk [vmem:[%s172 + $0x270] sm:$0xff] %vm2256, %v2134
      %2336 = vst.msk [vmem:[%s172 + $0x278] sm:$0xff] %vm2256, %v2135
      %2337 = vst.msk [vmem:[%s172 + $0x280] sm:$0xff] %vm2256, %v2136
      %2338 = vst.msk [vmem:[%s172 + $0x288] sm:$0xff] %vm2256, %v2137
      %2339 = vst.msk [vmem:[%s172 + $0x290] sm:$0xff] %vm2256, %v2138
      %2340 = vst.msk [vmem:[%s172 + $0x298] sm:$0xff] %vm2256, %v2139
      %2341 = vst.msk [vmem:[%s172 + $0x2a0] sm:$0xff] %vm2256, %v2140
      %2342 = vst.msk [vmem:[%s172 + $0x2a8] sm:$0xff] %vm2256, %v2141
      %2343 = vst.msk [vmem:[%s172 + $0x2b0] sm:$0xff] %vm2256, %v2142
      %2344 = vst.msk [vmem:[%s172 + $0x2b8] sm:$0xff] %vm2256, %v2143
      %2345 = vst.msk [vmem:[%s172 + $0x2c0] sm:$0xff] %vm2256, %v2144
      %2346 = vst.msk [vmem:[%s172 + $0x2c8] sm:$0xff] %vm2256, %v2145
      %2347 = vst.msk [vmem:[%s172 + $0x2d0] sm:$0xff] %vm2256, %v2146
      %2348 = vst.msk [vmem:[%s172 + $0x2d8] sm:$0xff] %vm2256, %v2147
      %2349 = vst.msk [vmem:[%s172 + $0x2e0] sm:$0xff] %vm2256, %v2148
      %2350 = vst.msk [vmem:[%s172 + $0x2e8] sm:$0xff] %vm2256, %v2149
      %2351 = vst.msk [vmem:[%s172 + $0x2f0] sm:$0xff] %vm2256, %v2150
      %2352 = vst.msk [vmem:[%s172 + $0x2f8] sm:$0xff] %vm2256, %v2151
      %2353 = vst.msk [vmem:[%s172 + $0x300] sm:$0xff] %vm2256, %v2152
      %2354 = vst.msk [vmem:[%s172 + $0x308] sm:$0xff] %vm2256, %v2153
      %2355 = vst.msk [vmem:[%s172 + $0x310] sm:$0xff] %vm2256, %v2154
      %2356 = vst.msk [vmem:[%s172 + $0x318] sm:$0xff] %vm2256, %v2155
      %2357 = vst.msk [vmem:[%s172 + $0x320] sm:$0xff] %vm2256, %v2156
      %2358 = vst.msk [vmem:[%s172 + $0x328] sm:$0xff] %vm2256, %v2157
      %2359 = vst.msk [vmem:[%s172 + $0x330] sm:$0xff] %vm2256, %v2158
      %2360 = vst.msk [vmem:[%s172 + $0x338] sm:$0xff] %vm2256, %v2159
      %2361 = vst.msk [vmem:[%s172 + $0x340] sm:$0xff] %vm2256, %v2160
      %2362 = vst.msk [vmem:[%s172 + $0x348] sm:$0xff] %vm2256, %v2161
      %2363 = vst.msk [vmem:[%s172 + $0x350] sm:$0xff] %vm2256, %v2162
      %2364 = vst.msk [vmem:[%s172 + $0x358] sm:$0xff] %vm2256, %v2163
      %2365 = vst.msk [vmem:[%s172 + $0x360] sm:$0xff] %vm2256, %v2164
      %2366 = vst.msk [vmem:[%s172 + $0x368] sm:$0xff] %vm2256, %v2165
      %2367 = vst.msk [vmem:[%s172 + $0x370] sm:$0xff] %vm2256, %v2166
      %2368 = vst.msk [vmem:[%s172 + $0x378] sm:$0xff] %vm2256, %v2167
      %2369 = vst.msk [vmem:[%s172 + $0x380] sm:$0xff] %vm2256, %v2168
      %2370 = vst.msk [vmem:[%s172 + $0x388] sm:$0xff] %vm2256, %v2169
      %2371 = vst.msk [vmem:[%s172 + $0x390] sm:$0xff] %vm2256, %v2170
      %2372 = vst.msk [vmem:[%s172 + $0x398] sm:$0xff] %vm2256, %v2171
      %2373 = vst.msk [vmem:[%s172 + $0x3a0] sm:$0xff] %vm2256, %v2172
      %2374 = vst.msk [vmem:[%s172 + $0x3a8] sm:$0xff] %vm2256, %v2173
      %2375 = vst.msk [vmem:[%s172 + $0x3b0] sm:$0xff] %vm2256, %v2174
      %2376 = vst.msk [vmem:[%s172 + $0x3b8] sm:$0xff] %vm2256, %v2175
      %2377 = vst.msk [vmem:[%s172 + $0x3c0] sm:$0xff] %vm2256, %v2176
      %2378 = vst.msk [vmem:[%s172 + $0x3c8] sm:$0xff] %vm2256, %v2177
      %2379 = vst.msk [vmem:[%s172 + $0x3d0] sm:$0xff] %vm2256, %v2178
      %2380 = vst.msk [vmem:[%s172 + $0x3d8] sm:$0xff] %vm2256, %v2179
      %2381 = vst.msk [vmem:[%s172 + $0x3e0] sm:$0xff] %vm2256, %v2180
      %2382 = vst.msk [vmem:[%s172 + $0x3e8] sm:$0xff] %vm2256, %v2181
      %2383 = vst.msk [vmem:[%s172 + $0x3f0] sm:$0xff] %vm2256, %v2182
      %2384 = vst.msk [vmem:[%s172 + $0x3f8] sm:$0xff] %vm2256, %v2183
      %2385 = vst.msk [vmem:[%s172 + $0x400] sm:$0xff] %vm2256, %v2184
      %2386 = vst.msk [vmem:[%s172 + $0x408] sm:$0xff] %vm2256, %v2185
      %2387 = vst.msk [vmem:[%s172 + $0x410] sm:$0xff] %vm2256, %v2186
      %2388 = vst.msk [vmem:[%s172 + $0x418] sm:$0xff] %vm2256, %v2187
      %2389 = vst.msk [vmem:[%s172 + $0x420] sm:$0xff] %vm2256, %v2188
      %2390 = vst.msk [vmem:[%s172 + $0x428] sm:$0xff] %vm2256, %v2189
      %2391 = vst.msk [vmem:[%s172 + $0x430] sm:$0xff] %vm2256, %v2190
      %2392 = vst.msk [vmem:[%s172 + $0x438] sm:$0xff] %vm2256, %v2191
      %2393 = vst.msk [vmem:[%s172 + $0x440] sm:$0xff] %vm2256, %v2192
      %2394 = vst.msk [vmem:[%s172 + $0x448] sm:$0xff] %vm2256, %v2193
      %2395 = vst.msk [vmem:[%s172 + $0x450] sm:$0xff] %vm2256, %v2194
      %2396 = vst.msk [vmem:[%s172 + $0x458] sm:$0xff] %vm2256, %v2195
      %2397 = vst.msk [vmem:[%s172 + $0x460] sm:$0xff] %vm2256, %v2196
      %2398 = vst.msk [vmem:[%s172 + $0x468] sm:$0xff] %vm2256, %v2197
      %2399 = vst.msk [vmem:[%s172 + $0x470] sm:$0xff] %vm2256, %v2198
      %2400 = vst.msk [vmem:[%s172 + $0x478] sm:$0xff] %vm2256, %v2199
      %2401 = vst.msk [vmem:[%s172 + $0x480] sm:$0xff] %vm2256, %v2200
      %2402 = vst.msk [vmem:[%s172 + $0x488] sm:$0xff] %vm2256, %v2201
      %2403 = vst.msk [vmem:[%s172 + $0x490] sm:$0xff] %vm2256, %v2202
      %2404 = vst.msk [vmem:[%s172 + $0x498] sm:$0xff] %vm2256, %v2203
      %2405 = vst.msk [vmem:[%s172 + $0x4a0] sm:$0xff] %vm2256, %v2204
      %2406 = vst.msk [vmem:[%s172 + $0x4a8] sm:$0xff] %vm2256, %v2205
      %2407 = vst.msk [vmem:[%s172 + $0x4b0] sm:$0xff] %vm2256, %v2206
      %2408 = vst.msk [vmem:[%s172 + $0x4b8] sm:$0xff] %vm2256, %v2207
      %2409 = vst.msk [vmem:[%s172 + $0x4c0] sm:$0xff] %vm2256, %v2208
      %2410 = vst.msk [vmem:[%s172 + $0x4c8] sm:$0xff] %vm2256, %v2209
      %2411 = vst.msk [vmem:[%s172 + $0x4d0] sm:$0xff] %vm2256, %v2210
      %2412 = vst.msk [vmem:[%s172 + $0x4d8] sm:$0xff] %vm2256, %v2211
      %2413 = vst.msk [vmem:[%s172 + $0x4e0] sm:$0xff] %vm2256, %v2212
      %2414 = vst.msk [vmem:[%s172 + $0x4e8] sm:$0xff] %vm2256, %v2213
      %2415 = vst.msk [vmem:[%s172 + $0x4f0] sm:$0xff] %vm2256, %v2214
      %2416 = vst.msk [vmem:[%s172 + $0x4f8] sm:$0xff] %vm2256, %v2215
      %2417 = vst.msk [vmem:[%s172 + $0x500] sm:$0xff] %vm2256, %v2216
      %2418 = vst.msk [vmem:[%s172 + $0x508] sm:$0xff] %vm2256, %v2217
      %2419 = vst.msk [vmem:[%s172 + $0x510] sm:$0xff] %vm2256, %v2218
      %2420 = vst.msk [vmem:[%s172 + $0x518] sm:$0xff] %vm2256, %v2219
      %2421 = vst.msk [vmem:[%s172 + $0x520] sm:$0xff] %vm2256, %v2220
      %2422 = vst.msk [vmem:[%s172 + $0x528] sm:$0xff] %vm2256, %v2221
      %2423 = vst.msk [vmem:[%s172 + $0x530] sm:$0xff] %vm2256, %v2222
      %2424 = vst.msk [vmem:[%s172 + $0x538] sm:$0xff] %vm2256, %v2223
      %2425 = vst.msk [vmem:[%s172 + $0x540] sm:$0xff] %vm2256, %v2224
      %2426 = vst.msk [vmem:[%s172 + $0x548] sm:$0xff] %vm2256, %v2225
      %2427 = vst.msk [vmem:[%s172 + $0x550] sm:$0xff] %vm2256, %v2226
      %2428 = vst.msk [vmem:[%s172 + $0x558] sm:$0xff] %vm2256, %v2227
      %2429 = vst.msk [vmem:[%s172 + $0x560] sm:$0xff] %vm2256, %v2228
      %2430 = vst.msk [vmem:[%s172 + $0x568] sm:$0xff] %vm2256, %v2229
      %2431 = vst.msk [vmem:[%s172 + $0x570] sm:$0xff] %vm2256, %v2230
      %2432 = vst.msk [vmem:[%s172 + $0x578] sm:$0xff] %vm2256, %v2231
      %2433 = vst.msk [vmem:[%s172 + $0x580] sm:$0xff] %vm2256, %v2232
      %2434 = vst.msk [vmem:[%s172 + $0x588] sm:$0xff] %vm2256, %v2233
      %2435 = vst.msk [vmem:[%s172 + $0x590] sm:$0xff] %vm2256, %v2234
      %2436 = vst.msk [vmem:[%s172 + $0x598] sm:$0xff] %vm2256, %v2235
      %2437 = vst.msk [vmem:[%s172 + $0x5a0] sm:$0xff] %vm2256, %v2236
      %2438 = vst.msk [vmem:[%s172 + $0x5a8] sm:$0xff] %vm2256, %v2237
      %2439 = vst.msk [vmem:[%s172 + $0x5b0] sm:$0xff] %vm2256, %v2238
      %2440 = vst.msk [vmem:[%s172 + $0x5b8] sm:$0xff] %vm2256, %v2239
      %2441 = vst.msk [vmem:[%s172 + $0x5c0] sm:$0xff] %vm2256, %v2240
      %2442 = vst.msk [vmem:[%s172 + $0x5c8] sm:$0xff] %vm2256, %v2241
      %2443 = vst.msk [vmem:[%s172 + $0x5d0] sm:$0xff] %vm2256, %v2242
      %2444 = vst.msk [vmem:[%s172 + $0x5d8] sm:$0xff] %vm2256, %v2243
      %2445 = vst.msk [vmem:[%s172 + $0x5e0] sm:$0xff] %vm2256, %v2244
      %2446 = vst.msk [vmem:[%s172 + $0x5e8] sm:$0xff] %vm2256, %v2245
      %2447 = vst.msk [vmem:[%s172 + $0x5f0] sm:$0xff] %vm2256, %v2246
      %2448 = vst.msk [vmem:[%s172 + $0x5f8] sm:$0xff] %vm2256, %v2247
      %2449 = vst.msk [vmem:[%s172 + $0x600] sm:$0xff] %vm2256, %v2248
      %2450 = vst.msk [vmem:[%s172 + $0x608] sm:$0xff] %vm2256, %v2249
      %2451 = vst.msk [vmem:[%s172 + $0x610] sm:$0xff] %vm2256, %v2250
      %2452 = vst.msk [vmem:[%s172 + $0x618] sm:$0xff] %vm2256, %v2251
      %2453 = vst.msk [vmem:[%s172 + $0x620] sm:$0xff] %vm2256, %v2252
      %2454 = vst.msk [vmem:[%s172 + $0x628] sm:$0xff] %vm2256, %v2253
      %2455 = vst.msk [vmem:[%s172 + $0x630] sm:$0xff] %vm2256, %v2254
      %2456 = vst.msk [vmem:[%s172 + $0x638] sm:$0xff] %vm2256, %v2255
      %s2457 = smul.u32 200, %s14
      %p2458 = scmp.lt.s32.totalorder %s2457, 399
      %s2459 = scalar_select %p2458, %s2457, 399
      %s2460 = smul.addr %s2459, 8
      %s2461 = scalar_lea.vmem %s3, %s2460
      // Predicated region
      $region33: #{forward.9} parent=31 // pred_check
        %p2462 = pneg %p100
      $region34: #{forward.9} parent=31 // pred_check_branch
        %2464 = sbr.rel (%p2462) target = $region36
      $region35: #{forward.9} parent=31 // pred_region
        %s2465 = smul.u32 200, %s14
      $region36: #{forward.9} parent=31 // pred_fallthru
        _
    $region32: #{forward.9} parent=5 // pred_fallthru
      _
    %p2466 = scmp.le.s32.totalorder 2, %s9
    // Predicated region
    $region37: #{forward.9} parent=5 // pred_check
      %p2467 = pneg %p2466
    $region38: #{forward.9} parent=5 // pred_check_branch
      %2469 = sbr.rel (%p2467) target = $region40
    $region39: #{forward.9} parent=5 // pred_region
      %s2470 = ssub.s32 %s9, 2
      // Predicated region
      $region41: #{forward.9} parent=39 // pred_check
        %p2471 = pneg %p106
      $region42: #{forward.9} parent=39 // pred_check_branch
        %2473 = sbr.rel (%p2471) target = $region44
      $region43: #{forward.9} parent=39 // pred_region
        %s2474 = smul.u32 200, %s15
        %p2475 = scmp.lt.s32.totalorder %s2474, 399
        %s2476 = scalar_select %p2475, %s2474, 399
        %s2477 = smul.addr %s2476, 8
        %s2478 = scalar_lea.vmem %s3, %s2477
      $region44: #{forward.9} parent=39 // pred_fallthru
        _
    $region40: #{forward.9} parent=5 // pred_fallthru
      _
  $region6: #{forward.9} parent=0 // loop_footer
    %s13 = sadd.s32 1, %s9
  $region7: #{forward.9} parent=0 // loop_footer_branch
    %8 = sbr.rel target = $region3
  $region8: #{forward.9} parent=0 // loop_exit
    _

// kernel: forward.10
$region0: #{forward.10}
  #allocation0 [shape = 'u32[]', space=smem, size = 0x4, offset = 0x4, fixed_abs, tag = 'smem constant byte address 0x4 - core index']
  #allocation1 [shape = 'u32[144,128]{1,0:T(1,128)}', space=vmem, size = 0x12000, scoped, tag = 'internal scratch']
  %s0 = inlined_call_operand.vmem [shape: f32[800,288], index: 0, kind: input, shape index: {}]
  %s1 = inlined_call_operand.vmem [shape: f32[288,32], index: 1, kind: input, shape index: {}]
  %s2 = inlined_call_operand.vmem [shape: f32[1,32], index: 2, kind: input, shape index: {}]
  %s3 = inlined_call_operand.vmem [shape: f32[800,32], index: 3, kind: output, shape index: {}]
  %s4 = sld [smem:[#allocation0]]
  $region22: #{forward.10} parent=0
    _
  %s6 = ssub.s32 1, %s4
  %s7 = scalar_select 0, %s6, %s4
  // Predicated region
  $region2: #{forward.10} parent=0 // pred_check
    _
  $region3: #{forward.10} parent=0 // pred_check_branch
    %9 = sbr.rel (0) target = $region5
  $region4: #{forward.10} parent=0 // pred_region
    _
  $region5: #{forward.10} parent=0 // pred_fallthru
    _
  // Predicated region
  $region6: #{forward.10} parent=0 // pred_check
    _
  $region7: #{forward.10} parent=0 // pred_check_branch
    %11 = sbr.rel (0) target = $region9
  $region8: #{forward.10} parent=0 // pred_region
    _
  $region9: #{forward.10} parent=0 // pred_fallthru
    _
  // Predicated region
  $region10: #{forward.10} parent=0 // pred_check
    _
  $region11: #{forward.10} parent=0 // pred_check_branch
    %13 = sbr.rel (0) target = $region13
  $region12: #{forward.10} parent=0 // pred_region
    _
  $region13: #{forward.10} parent=0 // pred_fallthru
    _
  %v14 = vld [vmem:[%s0] sm:$0xff]
  %v15 = vld [vmem:[%s0 + $0x8] sm:$0xff]
  %v16 = vld [vmem:[%s0 + $0x10] sm:$0xff]
  %v17 = vld [vmem:[%s0 + $0x18] sm:$0xff]
  %v18 = vld [vmem:[%s0 + $0x20] sm:$0xff]
  %v19 = vld [vmem:[%s0 + $0x28] sm:$0xff]
  %v20 = vld [vmem:[%s0 + $0x30] sm:$0xff]
  %v21 = vld [vmem:[%s0 + $0x38] sm:$0xff]
  %v22 = vld [vmem:[%s0 + $0x40] sm:$0xff]
  %v23 = vld [vmem:[%s0 + $0x48] sm:$0xff]
  %v24 = vld [vmem:[%s0 + $0x50] sm:$0xff]
  %v25 = vld [vmem:[%s0 + $0x58] sm:$0xff]
  %v26 = vld [vmem:[%s0 + $0x60] sm:$0xff]
  %v27 = vld [vmem:[%s0 + $0x68] sm:$0xff]
  %v28 = vld [vmem:[%s0 + $0x70] sm:$0xff]
  %v29 = vld [vmem:[%s0 + $0x78] sm:$0xff]
  %v30 = vld [vmem:[%s0 + $0x80] sm:$0xff]
  %v31 = vld [vmem:[%s0 + $0x88] sm:$0xff]
  %v32 = vld [vmem:[%s0 + $0x90] sm:$0xff]
  %v33 = vld [vmem:[%s0 + $0x98] sm:$0xff]
  %v34 = vld [vmem:[%s0 + $0xa0] sm:$0xff]
  %v35 = vld [vmem:[%s0 + $0xa8] sm:$0xff]
  %v36 = vld [vmem:[%s0 + $0xb0] sm:$0xff]
  %v37 = vld [vmem:[%s0 + $0xb8] sm:$0xff]
  %v38 = vld [vmem:[%s0 + $0xc0] sm:$0xff]
  %v39 = vld [vmem:[%s0 + $0xc8] sm:$0xff]
  %v40 = vld [vmem:[%s0 + $0xd0] sm:$0xff]
  %v41 = vld [vmem:[%s0 + $0xd8] sm:$0xff]
  %v42 = vld [vmem:[%s0 + $0xe0] sm:$0xff]
  %v43 = vld [vmem:[%s0 + $0xe8] sm:$0xff]
  %v44 = vld [vmem:[%s0 + $0xf0] sm:$0xff]
  %v45 = vld [vmem:[%s0 + $0xf8] sm:$0xff]
  %v46 = vld [vmem:[%s0 + $0x100] sm:$0xff]
  %v47 = vld [vmem:[%s0 + $0x108] sm:$0xff]
  %v48 = vld [vmem:[%s0 + $0x110] sm:$0xff]
  %v49 = vld [vmem:[%s0 + $0x118] sm:$0xff]
  %v50 = vld [vmem:[%s0 + $0x120] sm:$0xff]
  %v51 = vld [vmem:[%s0 + $0x128] sm:$0xff]
  %v52 = vld [vmem:[%s0 + $0x130] sm:$0xff]
  %v53 = vld [vmem:[%s0 + $0x138] sm:$0xff]
  %v54 = vld [vmem:[%s0 + $0x140] sm:$0xff]
  %v55 = vld [vmem:[%s0 + $0x148] sm:$0xff]
  %v56 = vld [vmem:[%s0 + $0x150] sm:$0xff]
  %v57 = vld [vmem:[%s0 + $0x158] sm:$0xff]
  %v58 = vld [vmem:[%s0 + $0x160] sm:$0xff]
  %v59 = vld [vmem:[%s0 + $0x168] sm:$0xff]
  %v60 = vld [vmem:[%s0 + $0x170] sm:$0xff]
  %v61 = vld [vmem:[%s0 + $0x178] sm:$0xff]
  %v62 = vld [vmem:[%s0 + $0x180] sm:$0xff]
  %v63 = vld [vmem:[%s0 + $0x188] sm:$0xff]
  %v64 = vld [vmem:[%s0 + $0x190] sm:$0xff]
  %v65 = vld [vmem:[%s0 + $0x198] sm:$0xff]
  %v66 = vld [vmem:[%s0 + $0x1a0] sm:$0xff]
  %v67 = vld [vmem:[%s0 + $0x1a8] sm:$0xff]
  %v68 = vld [vmem:[%s0 + $0x1b0] sm:$0xff]
  %v69 = vld [vmem:[%s0 + $0x1b8] sm:$0xff]
  %v70 = vld [vmem:[%s0 + $0x1c0] sm:$0xff]
  %v71 = vld [vmem:[%s0 + $0x1c8] sm:$0xff]
  %v72 = vld [vmem:[%s0 + $0x1d0] sm:$0xff]
  %v73 = vld [vmem:[%s0 + $0x1d8] sm:$0xff]
  %v74 = vld [vmem:[%s0 + $0x1e0] sm:$0xff]
  %v75 = vld [vmem:[%s0 + $0x1e8] sm:$0xff]
  %v76 = vld [vmem:[%s0 + $0x1f0] sm:$0xff]
  %v77 = vld [vmem:[%s0 + $0x1f8] sm:$0xff]
  %v78 = vld [vmem:[%s0 + $0x200] sm:$0xff]
  %v79 = vld [vmem:[%s0 + $0x208] sm:$0xff]
  %v80 = vld [vmem:[%s0 + $0x210] sm:$0xff]
  %v81 = vld [vmem:[%s0 + $0x218] sm:$0xff]
  %v82 = vld [vmem:[%s0 + $0x220] sm:$0xff]
  %v83 = vld [vmem:[%s0 + $0x228] sm:$0xff]
  %v84 = vld [vmem:[%s0 + $0x230] sm:$0xff]
  %v85 = vld [vmem:[%s0 + $0x238] sm:$0xff]
  %v86 = vld [vmem:[%s0 + $0x240] sm:$0xff]
  %v87 = vld [vmem:[%s0 + $0x248] sm:$0xff]
  %v88 = vld [vmem:[%s0 + $0x250] sm:$0xff]
  %v89 = vld [vmem:[%s0 + $0x258] sm:$0xff]
  %v90 = vld [vmem:[%s0 + $0x260] sm:$0xff]
  %v91 = vld [vmem:[%s0 + $0x268] sm:$0xff]
  %v92 = vld [vmem:[%s0 + $0x270] sm:$0xff]
  %v93 = vld [vmem:[%s0 + $0x278] sm:$0xff]
  %v94 = vld [vmem:[%s0 + $0x280] sm:$0xff]
  %v95 = vld [vmem:[%s0 + $0x288] sm:$0xff]
  %v96 = vld [vmem:[%s0 + $0x290] sm:$0xff]
  %v97 = vld [vmem:[%s0 + $0x298] sm:$0xff]
  %v98 = vld [vmem:[%s0 + $0x2a0] sm:$0xff]
  %v99 = vld [vmem:[%s0 + $0x2a8] sm:$0xff]
  %v100 = vld [vmem:[%s0 + $0x2b0] sm:$0xff]
  %v101 = vld [vmem:[%s0 + $0x2b8] sm:$0xff]
  %v102 = vld [vmem:[%s0 + $0x2c0] sm:$0xff]
  %v103 = vld [vmem:[%s0 + $0x2c8] sm:$0xff]
  %v104 = vld [vmem:[%s0 + $0x2d0] sm:$0xff]
  %v105 = vld [vmem:[%s0 + $0x2d8] sm:$0xff]
  %v106 = vld [vmem:[%s0 + $0x2e0] sm:$0xff]
  %v107 = vld [vmem:[%s0 + $0x2e8] sm:$0xff]
  %v108 = vld [vmem:[%s0 + $0x2f0] sm:$0xff]
  %v109 = vld [vmem:[%s0 + $0x2f8] sm:$0xff]
  %v110 = vld [vmem:[%s0 + $0x300] sm:$0xff]
  %v111 = vld [vmem:[%s0 + $0x308] sm:$0xff]
  %v112 = vld [vmem:[%s0 + $0x310] sm:$0xff]
  %v113 = vld [vmem:[%s0 + $0x318] sm:$0xff]
  %v114 = vld [vmem:[%s0 + $0x320] sm:$0xff]
  %v115 = vld [vmem:[%s0 + $0x328] sm:$0xff]
  %v116 = vld [vmem:[%s0 + $0x330] sm:$0xff]
  %v117 = vld [vmem:[%s0 + $0x338] sm:$0xff]
  %v118 = vld [vmem:[%s0 + $0x340] sm:$0xff]
  %v119 = vld [vmem:[%s0 + $0x348] sm:$0xff]
  %v120 = vld [vmem:[%s0 + $0x350] sm:$0xff]
  %v121 = vld [vmem:[%s0 + $0x358] sm:$0xff]
  %v122 = vld [vmem:[%s0 + $0x360] sm:$0xff]
  %v123 = vld [vmem:[%s0 + $0x368] sm:$0xff]
  %v124 = vld [vmem:[%s0 + $0x370] sm:$0xff]
  %v125 = vld [vmem:[%s0 + $0x378] sm:$0xff]
  %v126 = vld [vmem:[%s0 + $0x380] sm:$0xff]
  %v127 = vld [vmem:[%s0 + $0x388] sm:$0xff]
  %v128 = vld [vmem:[%s0 + $0x390] sm:$0xff]
  %v129 = vld [vmem:[%s0 + $0x398] sm:$0xff]
  %v130 = vld [vmem:[%s0 + $0x3a0] sm:$0xff]
  %v131 = vld [vmem:[%s0 + $0x3a8] sm:$0xff]
  %v132 = vld [vmem:[%s0 + $0x3b0] sm:$0xff]
  %v133 = vld [vmem:[%s0 + $0x3b8] sm:$0xff]
  %v134 = vld [vmem:[%s0 + $0x3c0] sm:$0xff]
  %v135 = vld [vmem:[%s0 + $0x3c8] sm:$0xff]
  %v136 = vld [vmem:[%s0 + $0x3d0] sm:$0xff]
  %v137 = vld [vmem:[%s0 + $0x3d8] sm:$0xff]
  %v138 = vld [vmem:[%s0 + $0x3e0] sm:$0xff]
  %v139 = vld [vmem:[%s0 + $0x3e8] sm:$0xff]
  %v140 = vld [vmem:[%s0 + $0x3f0] sm:$0xff]
  %v141 = vld [vmem:[%s0 + $0x3f8] sm:$0xff]
  %v142 = vld [vmem:[%s0 + $0x400] sm:$0xff]
  %v143 = vld [vmem:[%s0 + $0x408] sm:$0xff]
  %v144 = vld [vmem:[%s0 + $0x410] sm:$0xff]
  %v145 = vld [vmem:[%s0 + $0x418] sm:$0xff]
  %v146 = vld [vmem:[%s0 + $0x420] sm:$0xff]
  %v147 = vld [vmem:[%s0 + $0x428] sm:$0xff]
  %v148 = vld [vmem:[%s0 + $0x430] sm:$0xff]
  %v149 = vld [vmem:[%s0 + $0x438] sm:$0xff]
  %v150 = vld [vmem:[%s0 + $0x440] sm:$0xff]
  %v151 = vld [vmem:[%s0 + $0x448] sm:$0xff]
  %v152 = vld [vmem:[%s0 + $0x450] sm:$0xff]
  %v153 = vld [vmem:[%s0 + $0x458] sm:$0xff]
  %v154 = vld [vmem:[%s0 + $0x460] sm:$0xff]
  %v155 = vld [vmem:[%s0 + $0x468] sm:$0xff]
  %v156 = vld [vmem:[%s0 + $0x470] sm:$0xff]
  %v157 = vld [vmem:[%s0 + $0x478] sm:$0xff]
  %v158 = vld [vmem:[%s0 + $0x480] sm:$0xff]
  %v159 = vld [vmem:[%s0 + $0x488] sm:$0xff]
  %v160 = vld [vmem:[%s0 + $0x490] sm:$0xff]
  %v161 = vld [vmem:[%s0 + $0x498] sm:$0xff]
  %v162 = vld [vmem:[%s0 + $0x4a0] sm:$0xff]
  %v163 = vld [vmem:[%s0 + $0x4a8] sm:$0xff]
  %v164 = vld [vmem:[%s0 + $0x4b0] sm:$0xff]
  %v165 = vld [vmem:[%s0 + $0x4b8] sm:$0xff]
  %v166 = vld [vmem:[%s0 + $0x4c0] sm:$0xff]
  %v167 = vld [vmem:[%s0 + $0x4c8] sm:$0xff]
  %v168 = vld [vmem:[%s0 + $0x4d0] sm:$0xff]
  %v169 = vld [vmem:[%s0 + $0x4d8] sm:$0xff]
  %v170 = vld [vmem:[%s0 + $0x4e0] sm:$0xff]
  %v171 = vld [vmem:[%s0 + $0x4e8] sm:$0xff]
  %v172 = vld [vmem:[%s0 + $0x4f0] sm:$0xff]
  %v173 = vld [vmem:[%s0 + $0x4f8] sm:$0xff]
  %v174 = vld [vmem:[%s0 + $0x500] sm:$0xff]
  %v175 = vld [vmem:[%s0 + $0x508] sm:$0xff]
  %v176 = vld [vmem:[%s0 + $0x510] sm:$0xff]
  %v177 = vld [vmem:[%s0 + $0x518] sm:$0xff]
  %v178 = vld [vmem:[%s0 + $0x520] sm:$0xff]
  %v179 = vld [vmem:[%s0 + $0x528] sm:$0xff]
  %v180 = vld [vmem:[%s0 + $0x530] sm:$0xff]
  %v181 = vld [vmem:[%s0 + $0x538] sm:$0xff]
  %v182 = vld [vmem:[%s0 + $0x540] sm:$0xff]
  %v183 = vld [vmem:[%s0 + $0x548] sm:$0xff]
  %v184 = vld [vmem:[%s0 + $0x550] sm:$0xff]
  %v185 = vld [vmem:[%s0 + $0x558] sm:$0xff]
  %v186 = vld [vmem:[%s0 + $0x560] sm:$0xff]
  %v187 = vld [vmem:[%s0 + $0x568] sm:$0xff]
  %v188 = vld [vmem:[%s0 + $0x570] sm:$0xff]
  %v189 = vld [vmem:[%s0 + $0x578] sm:$0xff]
  %v190 = vld [vmem:[%s0 + $0x580] sm:$0xff]
  %v191 = vld [vmem:[%s0 + $0x588] sm:$0xff]
  %v192 = vld [vmem:[%s0 + $0x590] sm:$0xff]
  %v193 = vld [vmem:[%s0 + $0x598] sm:$0xff]
  %v194 = vld [vmem:[%s0 + $0x5a0] sm:$0xff]
  %v195 = vld [vmem:[%s0 + $0x5a8] sm:$0xff]
  %v196 = vld [vmem:[%s0 + $0x5b0] sm:$0xff]
  %v197 = vld [vmem:[%s0 + $0x5b8] sm:$0xff]
  %v198 = vld [vmem:[%s0 + $0x5c0] sm:$0xff]
  %v199 = vld [vmem:[%s0 + $0x5c8] sm:$0xff]
  %v200 = vld [vmem:[%s0 + $0x5d0] sm:$0xff]
  %v201 = vld [vmem:[%s0 + $0x5d8] sm:$0xff]
  %v202 = vld [vmem:[%s0 + $0x5e0] sm:$0xff]
  %v203 = vld [vmem:[%s0 + $0x5e8] sm:$0xff]
  %v204 = vld [vmem:[%s0 + $0x5f0] sm:$0xff]
  %v205 = vld [vmem:[%s0 + $0x5f8] sm:$0xff]
  %v206 = vld [vmem:[%s0 + $0x600] sm:$0xff]
  %v207 = vld [vmem:[%s0 + $0x608] sm:$0xff]
  %v208 = vld [vmem:[%s0 + $0x610] sm:$0xff]
  %v209 = vld [vmem:[%s0 + $0x618] sm:$0xff]
  %v210 = vld [vmem:[%s0 + $0x620] sm:$0xff]
  %v211 = vld [vmem:[%s0 + $0x628] sm:$0xff]
  %v212 = vld [vmem:[%s0 + $0x630] sm:$0xff]
  %v213 = vld [vmem:[%s0 + $0x638] sm:$0xff]
  %v214 = vld [vmem:[%s0 + $0x640] sm:$0xff]
  %v215 = vld [vmem:[%s0 + $0x648] sm:$0xff]
  %v216 = vld [vmem:[%s0 + $0x650] sm:$0xff]
  %v217 = vld [vmem:[%s0 + $0x658] sm:$0xff]
  %v218 = vld [vmem:[%s0 + $0x660] sm:$0xff]
  %v219 = vld [vmem:[%s0 + $0x668] sm:$0xff]
  %v220 = vld [vmem:[%s0 + $0x670] sm:$0xff]
  %v221 = vld [vmem:[%s0 + $0x678] sm:$0xff]
  %v222 = vld [vmem:[%s0 + $0x680] sm:$0xff]
  %v223 = vld [vmem:[%s0 + $0x688] sm:$0xff]
  %v224 = vld [vmem:[%s0 + $0x690] sm:$0xff]
  %v225 = vld [vmem:[%s0 + $0x698] sm:$0xff]
  %v226 = vld [vmem:[%s0 + $0x6a0] sm:$0xff]
  %v227 = vld [vmem:[%s0 + $0x6a8] sm:$0xff]
  %v228 = vld [vmem:[%s0 + $0x6b0] sm:$0xff]
  %v229 = vld [vmem:[%s0 + $0x6b8] sm:$0xff]
  %v230 = vld [vmem:[%s0 + $0x6c0] sm:$0xff]
  %v231 = vld [vmem:[%s0 + $0x6c8] sm:$0xff]
  %v232 = vld [vmem:[%s0 + $0x6d0] sm:$0xff]
  %v233 = vld [vmem:[%s0 + $0x6d8] sm:$0xff]
  %v234 = vld [vmem:[%s0 + $0x6e0] sm:$0xff]
  %v235 = vld [vmem:[%s0 + $0x6e8] sm:$0xff]
  %v236 = vld [vmem:[%s0 + $0x6f0] sm:$0xff]
  %v237 = vld [vmem:[%s0 + $0x6f8] sm:$0xff]
  %v238 = vld [vmem:[%s0 + $0x700] sm:$0xff]
  %v239 = vld [vmem:[%s0 + $0x708] sm:$0xff]
  %v240 = vld [vmem:[%s0 + $0x710] sm:$0xff]
  %v241 = vld [vmem:[%s0 + $0x718] sm:$0xff]
  %v242 = vld [vmem:[%s0 + $0x720] sm:$0xff]
  %v243 = vld [vmem:[%s0 + $0x728] sm:$0xff]
  %v244 = vld [vmem:[%s0 + $0x730] sm:$0xff]
  %v245 = vld [vmem:[%s0 + $0x738] sm:$0xff]
  %v246 = vld [vmem:[%s0 + $0x740] sm:$0xff]
  %v247 = vld [vmem:[%s0 + $0x748] sm:$0xff]
  %v248 = vld [vmem:[%s0 + $0x750] sm:$0xff]
  %v249 = vld [vmem:[%s0 + $0x758] sm:$0xff]
  %v250 = vld [vmem:[%s0 + $0x760] sm:$0xff]
  %v251 = vld [vmem:[%s0 + $0x768] sm:$0xff]
  %v252 = vld [vmem:[%s0 + $0x770] sm:$0xff]
  %v253 = vld [vmem:[%s0 + $0x778] sm:$0xff]
  %v254 = vld [vmem:[%s0 + $0x780] sm:$0xff]
  %v255 = vld [vmem:[%s0 + $0x788] sm:$0xff]
  %v256 = vld [vmem:[%s0 + $0x790] sm:$0xff]
  %v257 = vld [vmem:[%s0 + $0x798] sm:$0xff]
  %v258 = vld [vmem:[%s0 + $0x7a0] sm:$0xff]
  %v259 = vld [vmem:[%s0 + $0x7a8] sm:$0xff]
  %v260 = vld [vmem:[%s0 + $0x7b0] sm:$0xff]
  %v261 = vld [vmem:[%s0 + $0x7b8] sm:$0xff]
  %v262 = vld [vmem:[%s0 + $0x7c0] sm:$0xff]
  %v263 = vld [vmem:[%s0 + $0x7c8] sm:$0xff]
  %v264 = vld [vmem:[%s0 + $0x7d0] sm:$0xff]
  %v265 = vld [vmem:[%s0 + $0x7d8] sm:$0xff]
  %v266 = vld [vmem:[%s0 + $0x7e0] sm:$0xff]
  %v267 = vld [vmem:[%s0 + $0x7e8] sm:$0xff]
  %v268 = vld [vmem:[%s0 + $0x7f0] sm:$0xff]
  %v269 = vld [vmem:[%s0 + $0x7f8] sm:$0xff]
  %v270 = vld [vmem:[%s0 + $0x800] sm:$0xff]
  %v271 = vld [vmem:[%s0 + $0x808] sm:$0xff]
  %v272 = vld [vmem:[%s0 + $0x810] sm:$0xff]
  %v273 = vld [vmem:[%s0 + $0x818] sm:$0xff]
  %v274 = vld [vmem:[%s0 + $0x820] sm:$0xff]
  %v275 = vld [vmem:[%s0 + $0x828] sm:$0xff]
  %v276 = vld [vmem:[%s0 + $0x830] sm:$0xff]
  %v277 = vld [vmem:[%s0 + $0x838] sm:$0xff]
  %v278 = vld [vmem:[%s0 + $0x840] sm:$0xff]
  %v279 = vld [vmem:[%s0 + $0x848] sm:$0xff]
  %v280 = vld [vmem:[%s0 + $0x850] sm:$0xff]
  %v281 = vld [vmem:[%s0 + $0x858] sm:$0xff]
  %v282 = vld [vmem:[%s0 + $0x860] sm:$0xff]
  %v283 = vld [vmem:[%s0 + $0x868] sm:$0xff]
  %v284 = vld [vmem:[%s0 + $0x870] sm:$0xff]
  %v285 = vld [vmem:[%s0 + $0x878] sm:$0xff]
  %v286 = vld [vmem:[%s0 + $0x880] sm:$0xff]
  %v287 = vld [vmem:[%s0 + $0x888] sm:$0xff]
  %v288 = vld [vmem:[%s0 + $0x890] sm:$0xff]
  %v289 = vld [vmem:[%s0 + $0x898] sm:$0xff]
  %v290 = vld [vmem:[%s0 + $0x8a0] sm:$0xff]
  %v291 = vld [vmem:[%s0 + $0x8a8] sm:$0xff]
  %v292 = vld [vmem:[%s0 + $0x8b0] sm:$0xff]
  %v293 = vld [vmem:[%s0 + $0x8b8] sm:$0xff]
  %v294 = vld [vmem:[%s0 + $0x8c0] sm:$0xff]
  %v295 = vld [vmem:[%s0 + $0x8c8] sm:$0xff]
  %v296 = vld [vmem:[%s0 + $0x8d0] sm:$0xff]
  %v297 = vld [vmem:[%s0 + $0x8d8] sm:$0xff]
  %v298 = vld [vmem:[%s0 + $0x8e0] sm:$0xff]
  %v299 = vld [vmem:[%s0 + $0x8e8] sm:$0xff]
  %v300 = vld [vmem:[%s0 + $0x8f0] sm:$0xff]
  %v301 = vld [vmem:[%s0 + $0x8f8] sm:$0xff]
  %v302 = vld [vmem:[%s0 + $0x900] sm:$0xff]
  %v303 = vld [vmem:[%s0 + $0x908] sm:$0xff]
  %v304 = vld [vmem:[%s0 + $0x910] sm:$0xff]
  %v305 = vld [vmem:[%s0 + $0x918] sm:$0xff]
  %v306 = vld [vmem:[%s0 + $0x920] sm:$0xff]
  %v307 = vld [vmem:[%s0 + $0x928] sm:$0xff]
  %v308 = vld [vmem:[%s0 + $0x930] sm:$0xff]
  %v309 = vld [vmem:[%s0 + $0x938] sm:$0xff]
  %v310 = vld [vmem:[%s0 + $0x940] sm:$0xff]
  %v311 = vld [vmem:[%s0 + $0x948] sm:$0xff]
  %v312 = vld [vmem:[%s0 + $0x950] sm:$0xff]
  %v313 = vld [vmem:[%s0 + $0x958] sm:$0xff]
  %v314 = vld [vmem:[%s1] sm:$0xff]
  %v315 = vld [vmem:[%s1 + $0x8] sm:$0xff]
  %v316 = vld [vmem:[%s1 + $0x10] sm:$0xff]
  %v317 = vld [vmem:[%s1 + $0x18] sm:$0xff]
  %v318 = vld [vmem:[%s1 + $0x20] sm:$0xff]
  %v319 = vld [vmem:[%s1 + $0x28] sm:$0xff]
  %v320 = vld [vmem:[%s1 + $0x30] sm:$0xff]
  %v321 = vld [vmem:[%s1 + $0x38] sm:$0xff]
  %v322 = vld [vmem:[%s1 + $0x40] sm:$0xff]
  %v323 = vld [vmem:[%s1 + $0x48] sm:$0xff]
  %v324 = vld [vmem:[%s1 + $0x50] sm:$0xff]
  %v325 = vld [vmem:[%s1 + $0x58] sm:$0xff]
  %v326 = vld [vmem:[%s1 + $0x60] sm:$0xff]
  %v327 = vld [vmem:[%s1 + $0x68] sm:$0xff]
  %v328 = vld [vmem:[%s1 + $0x70] sm:$0xff]
  %v329 = vld [vmem:[%s1 + $0x78] sm:$0xff]
  %v330 = vld [vmem:[%s1 + $0x80] sm:$0xff]
  %v331 = vld [vmem:[%s1 + $0x88] sm:$0xff]
  %v332 = vld [vmem:[%s1 + $0x90] sm:$0xff]
  %v333 = vld [vmem:[%s1 + $0x98] sm:$0xff]
  %v334 = vld [vmem:[%s1 + $0xa0] sm:$0xff]
  %v335 = vld [vmem:[%s1 + $0xa8] sm:$0xff]
  %v336 = vld [vmem:[%s1 + $0xb0] sm:$0xff]
  %v337 = vld [vmem:[%s1 + $0xb8] sm:$0xff]
  %v338 = vld [vmem:[%s1 + $0xc0] sm:$0xff]
  %v339 = vld [vmem:[%s1 + $0xc8] sm:$0xff]
  %v340 = vld [vmem:[%s1 + $0xd0] sm:$0xff]
  %v341 = vld [vmem:[%s1 + $0xd8] sm:$0xff]
  %v342 = vld [vmem:[%s1 + $0xe0] sm:$0xff]
  %v343 = vld [vmem:[%s1 + $0xe8] sm:$0xff]
  %v344 = vld [vmem:[%s1 + $0xf0] sm:$0xff]
  %v345 = vld [vmem:[%s1 + $0xf8] sm:$0xff]
  %v346 = vld [vmem:[%s1 + $0x100] sm:$0xff]
  %v347 = vld [vmem:[%s1 + $0x108] sm:$0xff]
  %v348 = vld [vmem:[%s1 + $0x110] sm:$0xff]
  %v349 = vld [vmem:[%s1 + $0x118] sm:$0xff]
  %v350 = vld [vmem:[%s2] sm:$0x1]
  %v352 = vlaneseq
  %v353 = vshrl.u32 %v352, 7
  %v354 = vsub.s32 0, %v353
  %v355 = vrot.slane %v350, %v354
  %vm357 = vcmask 261120
  %v359 = vsel %vm357, %v16, 0
  %v362 = vsel %vm357, %v19, 0
  %v365 = vsel %vm357, %v22, 0
  %v368 = vsel %vm357, %v25, 0
  %v371 = vsel %vm357, %v28, 0
  %v374 = vsel %vm357, %v31, 0
  %v377 = vsel %vm357, %v34, 0
  %v380 = vsel %vm357, %v37, 0
  %v383 = vsel %vm357, %v40, 0
  %v386 = vsel %vm357, %v43, 0
  %v389 = vsel %vm357, %v46, 0
  %v392 = vsel %vm357, %v49, 0
  %v395 = vsel %vm357, %v52, 0
  %v398 = vsel %vm357, %v55, 0
  %v401 = vsel %vm357, %v58, 0
  %v404 = vsel %vm357, %v61, 0
  %v407 = vsel %vm357, %v64, 0
  %v410 = vsel %vm357, %v67, 0
  %v413 = vsel %vm357, %v70, 0
  %v416 = vsel %vm357, %v73, 0
  %v419 = vsel %vm357, %v76, 0
  %v422 = vsel %vm357, %v79, 0
  %v425 = vsel %vm357, %v82, 0
  %v428 = vsel %vm357, %v85, 0
  %v431 = vsel %vm357, %v88, 0
  %v434 = vsel %vm357, %v91, 0
  %v437 = vsel %vm357, %v94, 0
  %v440 = vsel %vm357, %v97, 0
  %v443 = vsel %vm357, %v100, 0
  %v446 = vsel %vm357, %v103, 0
  %v449 = vsel %vm357, %v106, 0
  %v452 = vsel %vm357, %v109, 0
  %v455 = vsel %vm357, %v112, 0
  %v458 = vsel %vm357, %v115, 0
  %v461 = vsel %vm357, %v118, 0
  %v464 = vsel %vm357, %v121, 0
  %v467 = vsel %vm357, %v124, 0
  %v470 = vsel %vm357, %v127, 0
  %v473 = vsel %vm357, %v130, 0
  %v476 = vsel %vm357, %v133, 0
  %v479 = vsel %vm357, %v136, 0
  %v482 = vsel %vm357, %v139, 0
  %v485 = vsel %vm357, %v142, 0
  %v488 = vsel %vm357, %v145, 0
  %v491 = vsel %vm357, %v148, 0
  %v494 = vsel %vm357, %v151, 0
  %v497 = vsel %vm357, %v154, 0
  %v500 = vsel %vm357, %v157, 0
  %v503 = vsel %vm357, %v160, 0
  %v506 = vsel %vm357, %v163, 0
  %v509 = vsel %vm357, %v166, 0
  %v512 = vsel %vm357, %v169, 0
  %v515 = vsel %vm357, %v172, 0
  %v518 = vsel %vm357, %v175, 0
  %v521 = vsel %vm357, %v178, 0
  %v524 = vsel %vm357, %v181, 0
  %v527 = vsel %vm357, %v184, 0
  %v530 = vsel %vm357, %v187, 0
  %v533 = vsel %vm357, %v190, 0
  %v536 = vsel %vm357, %v193, 0
  %v539 = vsel %vm357, %v196, 0
  %v542 = vsel %vm357, %v199, 0
  %v545 = vsel %vm357, %v202, 0
  %v548 = vsel %vm357, %v205, 0
  %v551 = vsel %vm357, %v208, 0
  %v554 = vsel %vm357, %v211, 0
  %v557 = vsel %vm357, %v214, 0
  %v560 = vsel %vm357, %v217, 0
  %v563 = vsel %vm357, %v220, 0
  %v566 = vsel %vm357, %v223, 0
  %v569 = vsel %vm357, %v226, 0
  %v572 = vsel %vm357, %v229, 0
  %v575 = vsel %vm357, %v232, 0
  %v578 = vsel %vm357, %v235, 0
  %v581 = vsel %vm357, %v238, 0
  %v584 = vsel %vm357, %v241, 0
  %v587 = vsel %vm357, %v244, 0
  %v590 = vsel %vm357, %v247, 0
  %v593 = vsel %vm357, %v250, 0
  %v596 = vsel %vm357, %v253, 0
  %v599 = vsel %vm357, %v256, 0
  %v602 = vsel %vm357, %v259, 0
  %v605 = vsel %vm357, %v262, 0
  %v608 = vsel %vm357, %v265, 0
  %v611 = vsel %vm357, %v268, 0
  %v614 = vsel %vm357, %v271, 0
  %v617 = vsel %vm357, %v274, 0
  %v620 = vsel %vm357, %v277, 0
  %v623 = vsel %vm357, %v280, 0
  %v626 = vsel %vm357, %v283, 0
  %v629 = vsel %vm357, %v286, 0
  %v632 = vsel %vm357, %v289, 0
  %v635 = vsel %vm357, %v292, 0
  %v638 = vsel %vm357, %v295, 0
  %v641 = vsel %vm357, %v298, 0
  %v644 = vsel %vm357, %v301, 0
  %v647 = vsel %vm357, %v304, 0
  %v650 = vsel %vm357, %v307, 0
  %v653 = vsel %vm357, %v310, 0
  %v656 = vsel %vm357, %v313, 0
  %658 = vmatprep.subr.mxu0 0.0
  %659 = vmatpush1.msra.mxu0 %v314
  %660 = vmatprep.subr.mxu0 0.0
  %661 = vmatpush1.msra.mxu0 %v315
  %662 = vmatprep.subr.mxu0 0.0
  %663 = vmatpush1.msra.mxu0 %v316
  %664 = vmatprep.subr.mxu0 0.0
  %665 = vmatpush1.msra.mxu0 %v317
  %666 = vmatprep.subr.mxu0 0.0
  %667 = vmatpush1.msra.mxu0 %v318
  %668 = vmatprep.subr.mxu0 0.0
  %669 = vmatpush1.msra.mxu0 %v319
  %670 = vmatprep.subr.mxu0 0.0
  %671 = vmatpush1.msra.mxu0 %v320
  %672 = vmatprep.subr.mxu0 0.0
  %673 = vmatpush1.msra.mxu0 %v321
  %674 = vmatprep.subr.mxu0 0.0
  %675 = vmatpush1.msra.mxu0 %v322
  %676 = vmatprep.subr.mxu0 0.0
  %677 = vmatpush1.msra.mxu0 %v323
  %678 = vmatprep.subr.mxu0 0.0
  %679 = vmatpush1.msra.mxu0 %v324
  %680 = vmatprep.subr.mxu0 0.0
  %681 = vmatpush1.msra.mxu0 %v325
  %682 = vmatprep.subr.mxu0 0.0
  %683 = vmatpush1.msra.mxu0 %v326
  %684 = vmatprep.subr.mxu0 0.0
  %685 = vmatpush1.msra.mxu0 %v327
  %686 = vmatprep.subr.mxu0 0.0
  %687 = vmatpush1.msra.mxu0 %v328
  %688 = vmatprep.subr.mxu0 0.0
  %689 = vmatpush1.msra.mxu0 %v329
  %690 = vmatprep.subr.mxu0 0.0
  %691 = vmatpush1.msra.mxu0 %v330
  %692 = vmatprep.subr.mxu0 0.0
  %693 = vmatpush1.msra.mxu0 %v331
  %694 = vmatprep.subr.mxu0 0.0
  %695 = vmatpush1.msra.mxu0 %v332
  %696 = vmatprep.subr.mxu0 0.0
  %697 = vmatpush1.msra.mxu0 %v333
  %698 = vmatprep.subr.mxu0 0.0
  %699 = vmatpush1.msra.mxu0 %v334
  %700 = vmatprep.subr.mxu0 0.0
  %701 = vmatpush1.msra.mxu0 %v335
  %702 = vmatprep.subr.mxu0 0.0
  %703 = vmatpush1.msra.mxu0 %v336
  %704 = vmatprep.subr.mxu0 0.0
  %705 = vmatpush1.msra.mxu0 %v337
  %706 = vmatprep.subr.mxu0 0.0
  %707 = vmatpush1.msra.mxu0 %v338
  %708 = vmatprep.subr.mxu0 0.0
  %709 = vmatpush1.msra.mxu0 %v339
  %710 = vmatprep.subr.mxu0 0.0
  %711 = vmatpush1.msra.mxu0 %v340
  %712 = vmatprep.subr.mxu0 0.0
  %713 = vmatpush1.msra.mxu0 %v341
  %714 = vmatprep.subr.mxu0 0.0
  %715 = vmatpush1.msra.mxu0 %v342
  %716 = vmatprep.subr.mxu0 0.0
  %717 = vmatpush1.msra.mxu0 %v343
  %718 = vmatprep.subr.mxu0 0.0
  %719 = vmatpush1.msra.mxu0 %v344
  %720 = vmatprep.subr.mxu0 0.0
  %721 = vmatpush1.msra.mxu0 %v345
  %722 = vmatprep.mubr.f32.mxu0 %v15
  %723 = vmatmul.mubr.f32.gmra.mrb[0].mxu0 %v14
  %v724 = vpop.f32.mrb[0].mxu0
  %v725 = vadd.f32 %v355, %v724
  %v726 = vpop.f32.mrb[0].mxu0
  %727 = vmatprep.mubr.f32.mxu0 %v18
  %728 = vmatmul.mubr.f32.gmra.mrb[0].mxu0 %v17
  %v729 = vpop.f32.mrb[0].mxu0
  %v730 = vadd.f32 %v355, %v729
  %v731 = vpop.f32.mrb[0].mxu0
  %732 = vmatprep.mubr.f32.mxu0 %v21
  %733 = vmatmul.mubr.f32.gmra.mrb[0].mxu0 %v20
  %v734 = vpop.f32.mrb[0].mxu0
  %v735 = vadd.f32 %v355, %v734
  %v736 = vpop.f32.mrb[0].mxu0
  %737 = vmatprep.mubr.f32.mxu0 %v24
  %738 = vmatmul.mubr.f32.gmra.mrb[0].mxu0 %v23
  %v739 = vpop.f32.mrb[0].mxu0
  %v740 = vadd.f32 %v355, %v739
  %v741 = vpop.f32.mrb[0].mxu0
  %742 = vmatprep.mubr.f32.mxu0 %v27
  %743 = vmatmul.mubr.f32.gmra.mrb[0].mxu0 %v26
  %v744 = vpop.f32.mrb[0].mxu0
  %v745 = vadd.f32 %v355, %v744
  %v746 = vpop.f32.mrb[0].mxu0
  %747 = vmatprep.mubr.f32.mxu0 %v30
  %748 = vmatmul.mubr.f32.gmra.mrb[0].mxu0 %v29
  %v749 = vpop.f32.mrb[0].mxu0
  %v750 = vadd.f32 %v355, %v749
  %v751 = vpop.f32.mrb[0].mxu0
  %752 = vmatprep.mubr.f32.mxu0 %v33
  %753 = vmatmul.mubr.f32.gmra.mrb[0].mxu0 %v32
  %v754 = vpop.f32.mrb[0].mxu0
  %v755 = vadd.f32 %v355, %v754
  %v756 = vpop.f32.mrb[0].mxu0
  %757 = vmatprep.mubr.f32.mxu0 %v36
  %758 = vmatmul.mubr.f32.gmra.mrb[0].mxu0 %v35
  %v759 = vpop.f32.mrb[0].mxu0
  %v760 = vadd.f32 %v355, %v759
  %v761 = vpop.f32.mrb[0].mxu0
  %762 = vmatprep.mubr.f32.mxu0 %v39
  %763 = vmatmul.mubr.f32.gmra.mrb[0].mxu0 %v38
  %v764 = vpop.f32.mrb[0].mxu0
  %v765 = vadd.f32 %v355, %v764
  %v766 = vpop.f32.mrb[0].mxu0
  %767 = vmatprep.mubr.f32.mxu0 %v42
  %768 = vmatmul.mubr.f32.gmra.mrb[0].mxu0 %v41
  %v769 = vpop.f32.mrb[0].mxu0
  %v770 = vadd.f32 %v355, %v769
  %v771 = vpop.f32.mrb[0].mxu0
  %772 = vmatprep.mubr.f32.mxu0 %v45
  %773 = vmatmul.mubr.f32.gmra.mrb[0].mxu0 %v44
  %v774 = vpop.f32.mrb[0].mxu0
  %v775 = vadd.f32 %v355, %v774
  %v776 = vpop.f32.mrb[0].mxu0
  %777 = vmatprep.mubr.f32.mxu0 %v48
  %778 = vmatmul.mubr.f32.gmra.mrb[0].mxu0 %v47
  %v779 = vpop.f32.mrb[0].mxu0
  %v780 = vadd.f32 %v355, %v779
  %v781 = vpop.f32.mrb[0].mxu0
  %782 = vmatprep.mubr.f32.mxu0 %v51
  %783 = vmatmul.mubr.f32.gmra.mrb[0].mxu0 %v50
  %v784 = vpop.f32.mrb[0].mxu0
  %v785 = vadd.f32 %v355, %v784
  %v786 = vpop.f32.mrb[0].mxu0
  %787 = vmatprep.mubr.f32.mxu0 %v54
  %788 = vmatmul.mubr.f32.gmra.mrb[0].mxu0 %v53
  %v789 = vpop.f32.mrb[0].mxu0
  %v790 = vadd.f32 %v355, %v789
  %v791 = vpop.f32.mrb[0].mxu0
  %792 = vmatprep.mubr.f32.mxu0 %v57
  %793 = vmatmul.mubr.f32.gmra.mrb[0].mxu0 %v56
  %v794 = vpop.f32.mrb[0].mxu0
  %v795 = vadd.f32 %v355, %v794
  %v796 = vpop.f32.mrb[0].mxu0
  %797 = vmatprep.mubr.f32.mxu0 %v60
  %798 = vmatmul.mubr.f32.gmra.mrb[0].mxu0 %v59
  %v799 = vpop.f32.mrb[0].mxu0
  %v800 = vadd.f32 %v355, %v799
  %v801 = vpop.f32.mrb[0].mxu0
  %802 = vmatprep.mubr.f32.mxu0 %v63
  %803 = vmatmul.mubr.f32.gmra.mrb[0].mxu0 %v62
  %v804 = vpop.f32.mrb[0].mxu0
  %v805 = vadd.f32 %v355, %v804
  %v806 = vpop.f32.mrb[0].mxu0
  %807 = vmatprep.mubr.f32.mxu0 %v66
  %808 = vmatmul.mubr.f32.gmra.mrb[0].mxu0 %v65
  %v809 = vpop.f32.mrb[0].mxu0
  %v810 = vadd.f32 %v355, %v809
  %v811 = vpop.f32.mrb[0].mxu0
  %812 = vmatprep.mubr.f32.mxu0 %v69
  %813 = vmatmul.mubr.f32.gmra.mrb[0].mxu0 %v68
  %v814 = vpop.f32.mrb[0].mxu0
  %v815 = vadd.f32 %v355, %v814
  %v816 = vpop.f32.mrb[0].mxu0
  %817 = vmatprep.mubr.f32.mxu0 %v72
  %818 = vmatmul.mubr.f32.gmra.mrb[0].mxu0 %v71
  %v819 = vpop.f32.mrb[0].mxu0
  %v820 = vadd.f32 %v355, %v819
  %v821 = vpop.f32.mrb[0].mxu0
  %822 = vmatprep.mubr.f32.mxu0 %v75
  %823 = vmatmul.mubr.f32.gmra.mrb[0].mxu0 %v74
  %v824 = vpop.f32.mrb[0].mxu0
  %v825 = vadd.f32 %v355, %v824
  %v826 = vpop.f32.mrb[0].mxu0
  %827 = vmatprep.mubr.f32.mxu0 %v78
  %828 = vmatmul.mubr.f32.gmra.mrb[0].mxu0 %v77
  %v829 = vpop.f32.mrb[0].mxu0
  %v830 = vadd.f32 %v355, %v829
  %v831 = vpop.f32.mrb[0].mxu0
  %832 = vmatprep.mubr.f32.mxu0 %v81
  %833 = vmatmul.mubr.f32.gmra.mrb[0].mxu0 %v80
  %v834 = vpop.f32.mrb[0].mxu0
  %v835 = vadd.f32 %v355, %v834
  %v836 = vpop.f32.mrb[0].mxu0
  %837 = vmatprep.mubr.f32.mxu0 %v84
  %838 = vmatmul.mubr.f32.gmra.mrb[0].mxu0 %v83
  %v839 = vpop.f32.mrb[0].mxu0
  %v840 = vadd.f32 %v355, %v839
  %v841 = vpop.f32.mrb[0].mxu0
  %842 = vmatprep.mubr.f32.mxu0 %v87
  %843 = vmatmul.mubr.f32.gmra.mrb[0].mxu0 %v86
  %v844 = vpop.f32.mrb[0].mxu0
  %v845 = vadd.f32 %v355, %v844
  %v846 = vpop.f32.mrb[0].mxu0
  %847 = vmatprep.mubr.f32.mxu0 %v90
  %848 = vmatmul.mubr.f32.gmra.mrb[0].mxu0 %v89
  %v849 = vpop.f32.mrb[0].mxu0
  %v850 = vadd.f32 %v355, %v849
  %v851 = vpop.f32.mrb[0].mxu0
  %852 = vmatprep.mubr.f32.mxu0 %v93
  %853 = vmatmul.mubr.f32.gmra.mrb[0].mxu0 %v92
  %v854 = vpop.f32.mrb[0].mxu0
  %v855 = vadd.f32 %v355, %v854
  %v856 = vpop.f32.mrb[0].mxu0
  %857 = vmatprep.mubr.f32.mxu0 %v96
  %858 = vmatmul.mubr.f32.gmra.mrb[0].mxu0 %v95
  %v859 = vpop.f32.mrb[0].mxu0
  %v860 = vadd.f32 %v355, %v859
  %v861 = vpop.f32.mrb[0].mxu0
  %862 = vmatprep.mubr.f32.mxu0 %v99
  %863 = vmatmul.mubr.f32.gmra.mrb[0].mxu0 %v98
  %v864 = vpop.f32.mrb[0].mxu0
  %v865 = vadd.f32 %v355, %v864
  %v866 = vpop.f32.mrb[0].mxu0
  %867 = vmatprep.mubr.f32.mxu0 %v102
  %868 = vmatmul.mubr.f32.gmra.mrb[0].mxu0 %v101
  %v869 = vpop.f32.mrb[0].mxu0
  %v870 = vadd.f32 %v355, %v869
  %v871 = vpop.f32.mrb[0].mxu0
  %872 = vmatprep.mubr.f32.mxu0 %v105
  %873 = vmatmul.mubr.f32.gmra.mrb[0].mxu0 %v104
  %v874 = vpop.f32.mrb[0].mxu0
  %v875 = vadd.f32 %v355, %v874
  %v876 = vpop.f32.mrb[0].mxu0
  %877 = vmatprep.mubr.f32.mxu0 %v108
  %878 = vmatmul.mubr.f32.gmra.mrb[0].mxu0 %v107
  %v879 = vpop.f32.mrb[0].mxu0
  %v880 = vadd.f32 %v355, %v879
  %v881 = vpop.f32.mrb[0].mxu0
  %882 = vmatprep.mubr.f32.mxu0 %v111
  %883 = vmatmul.mubr.f32.gmra.mrb[0].mxu0 %v110
  %v884 = vpop.f32.mrb[0].mxu0
  %v885 = vadd.f32 %v355, %v884
  %v886 = vpop.f32.mrb[0].mxu0
  %887 = vmatprep.mubr.f32.mxu0 %v114
  %888 = vmatmul.mubr.f32.gmra.mrb[0].mxu0 %v113
  %v889 = vpop.f32.mrb[0].mxu0
  %v890 = vadd.f32 %v355, %v889
  %v891 = vpop.f32.mrb[0].mxu0
  %892 = vmatprep.mubr.f32.mxu0 %v117
  %893 = vmatmul.mubr.f32.gmra.mrb[0].mxu0 %v116
  %v894 = vpop.f32.mrb[0].mxu0
  %v895 = vadd.f32 %v355, %v894
  %v896 = vpop.f32.mrb[0].mxu0
  %897 = vmatprep.mubr.f32.mxu0 %v120
  %898 = vmatmul.mubr.f32.gmra.mrb[0].mxu0 %v119
  %v899 = vpop.f32.mrb[0].mxu0
  %v900 = vadd.f32 %v355, %v899
  %v901 = vpop.f32.mrb[0].mxu0
  %902 = vmatprep.mubr.f32.mxu0 %v123
  %903 = vmatmul.mubr.f32.gmra.mrb[0].mxu0 %v122
  %v904 = vpop.f32.mrb[0].mxu0
  %v905 = vadd.f32 %v355, %v904
  %v906 = vpop.f32.mrb[0].mxu0
  %907 = vmatprep.mubr.f32.mxu0 %v126
  %908 = vmatmul.mubr.f32.gmra.mrb[0].mxu0 %v125
  %v909 = vpop.f32.mrb[0].mxu0
  %v910 = vadd.f32 %v355, %v909
  %v911 = vpop.f32.mrb[0].mxu0
  %912 = vmatprep.mubr.f32.mxu0 %v129
  %913 = vmatmul.mubr.f32.gmra.mrb[0].mxu0 %v128
  %v914 = vpop.f32.mrb[0].mxu0
  %v915 = vadd.f32 %v355, %v914
  %v916 = vpop.f32.mrb[0].mxu0
  %917 = vmatprep.mubr.f32.mxu0 %v132
  %918 = vmatmul.mubr.f32.gmra.mrb[0].mxu0 %v131
  %v919 = vpop.f32.mrb[0].mxu0
  %v920 = vadd.f32 %v355, %v919
  %v921 = vpop.f32.mrb[0].mxu0
  %922 = vmatprep.mubr.f32.mxu0 %v135
  %923 = vmatmul.mubr.f32.gmra.mrb[0].mxu0 %v134
  %v924 = vpop.f32.mrb[0].mxu0
  %v925 = vadd.f32 %v355, %v924
  %v926 = vpop.f32.mrb[0].mxu0
  %927 = vmatprep.mubr.f32.mxu0 %v138
  %928 = vmatmul.mubr.f32.gmra.mrb[0].mxu0 %v137
  %v929 = vpop.f32.mrb[0].mxu0
  %v930 = vadd.f32 %v355, %v929
  %v931 = vpop.f32.mrb[0].mxu0
  %932 = vmatprep.mubr.f32.mxu0 %v141
  %933 = vmatmul.mubr.f32.gmra.mrb[0].mxu0 %v140
  %v934 = vpop.f32.mrb[0].mxu0
  %v935 = vadd.f32 %v355, %v934
  %v936 = vpop.f32.mrb[0].mxu0
  %937 = vmatprep.mubr.f32.mxu0 %v144
  %938 = vmatmul.mubr.f32.gmra.mrb[0].mxu0 %v143
  %v939 = vpop.f32.mrb[0].mxu0
  %v940 = vadd.f32 %v355, %v939
  %v941 = vpop.f32.mrb[0].mxu0
  %942 = vmatprep.mubr.f32.mxu0 %v147
  %943 = vmatmul.mubr.f32.gmra.mrb[0].mxu0 %v146
  %v944 = vpop.f32.mrb[0].mxu0
  %v945 = vadd.f32 %v355, %v944
  %v946 = vpop.f32.mrb[0].mxu0
  %947 = vmatprep.mubr.f32.mxu0 %v150
  %948 = vmatmul.mubr.f32.gmra.mrb[0].mxu0 %v149
  %v949 = vpop.f32.mrb[0].mxu0
  %v950 = vadd.f32 %v355, %v949
  %v951 = vpop.f32.mrb[0].mxu0
  %952 = vmatprep.mubr.f32.mxu0 %v153
  %953 = vmatmul.mubr.f32.gmra.mrb[0].mxu0 %v152
  %v954 = vpop.f32.mrb[0].mxu0
  %v955 = vadd.f32 %v355, %v954
  %v956 = vpop.f32.mrb[0].mxu0
  %957 = vmatprep.mubr.f32.mxu0 %v156
  %958 = vmatmul.mubr.f32.gmra.mrb[0].mxu0 %v155
  %v959 = vpop.f32.mrb[0].mxu0
  %v960 = vadd.f32 %v355, %v959
  %v961 = vpop.f32.mrb[0].mxu0
  %962 = vmatprep.mubr.f32.mxu0 %v159
  %963 = vmatmul.mubr.f32.gmra.mrb[0].mxu0 %v158
  %v964 = vpop.f32.mrb[0].mxu0
  %v965 = vadd.f32 %v355, %v964
  %v966 = vpop.f32.mrb[0].mxu0
  %967 = vmatprep.mubr.f32.mxu0 %v162
  %968 = vmatmul.mubr.f32.gmra.mrb[0].mxu0 %v161
  %v969 = vpop.f32.mrb[0].mxu0
  %v970 = vadd.f32 %v355, %v969
  %v971 = vpop.f32.mrb[0].mxu0
  %972 = vmatprep.mubr.f32.mxu0 %v165
  %973 = vmatmul.mubr.f32.gmra.mrb[0].mxu0 %v164
  %v974 = vpop.f32.mrb[0].mxu0
  %v975 = vadd.f32 %v355, %v974
  %v976 = vpop.f32.mrb[0].mxu0
  %977 = vmatprep.mubr.f32.mxu0 %v168
  %978 = vmatmul.mubr.f32.gmra.mrb[0].mxu0 %v167
  %v979 = vpop.f32.mrb[0].mxu0
  %v980 = vadd.f32 %v355, %v979
  %v981 = vpop.f32.mrb[0].mxu0
  %982 = vmatprep.mubr.f32.mxu0 %v171
  %983 = vmatmul.mubr.f32.gmra.mrb[0].mxu0 %v170
  %v984 = vpop.f32.mrb[0].mxu0
  %v985 = vadd.f32 %v355, %v984
  %v986 = vpop.f32.mrb[0].mxu0
  %987 = vmatprep.mubr.f32.mxu0 %v174
  %988 = vmatmul.mubr.f32.gmra.mrb[0].mxu0 %v173
  %v989 = vpop.f32.mrb[0].mxu0
  %v990 = vadd.f32 %v355, %v989
  %v991 = vpop.f32.mrb[0].mxu0
  %992 = vmatprep.mubr.f32.mxu0 %v177
  %993 = vmatmul.mubr.f32.gmra.mrb[0].mxu0 %v176
  %v994 = vpop.f32.mrb[0].mxu0
  %v995 = vadd.f32 %v355, %v994
  %v996 = vpop.f32.mrb[0].mxu0
  %997 = vmatprep.mubr.f32.mxu0 %v180
  %998 = vmatmul.mubr.f32.gmra.mrb[0].mxu0 %v179
  %v999 = vpop.f32.mrb[0].mxu0
  %v1000 = vadd.f32 %v355, %v999
  %v1001 = vpop.f32.mrb[0].mxu0
  %1002 = vmatprep.mubr.f32.mxu0 %v183
  %1003 = vmatmul.mubr.f32.gmra.mrb[0].mxu0 %v182
  %v1004 = vpop.f32.mrb[0].mxu0
  %v1005 = vadd.f32 %v355, %v1004
  %v1006 = vpop.f32.mrb[0].mxu0
  %1007 = vmatprep.mubr.f32.mxu0 %v186
  %1008 = vmatmul.mubr.f32.gmra.mrb[0].mxu0 %v185
  %v1009 = vpop.f32.mrb[0].mxu0
  %v1010 = vadd.f32 %v355, %v1009
  %v1011 = vpop.f32.mrb[0].mxu0
  %1012 = vmatprep.mubr.f32.mxu0 %v189
  %1013 = vmatmul.mubr.f32.gmra.mrb[0].mxu0 %v188
  %v1014 = vpop.f32.mrb[0].mxu0
  %v1015 = vadd.f32 %v355, %v1014
  %v1016 = vpop.f32.mrb[0].mxu0
  %1017 = vmatprep.mubr.f32.mxu0 %v192
  %1018 = vmatmul.mubr.f32.gmra.mrb[0].mxu0 %v191
  %v1019 = vpop.f32.mrb[0].mxu0
  %v1020 = vadd.f32 %v355, %v1019
  %v1021 = vpop.f32.mrb[0].mxu0
  %1022 = vmatprep.mubr.f32.mxu0 %v195
  %1023 = vmatmul.mubr.f32.gmra.mrb[0].mxu0 %v194
  %v1024 = vpop.f32.mrb[0].mxu0
  %v1025 = vadd.f32 %v355, %v1024
  %v1026 = vpop.f32.mrb[0].mxu0
  %1027 = vmatprep.mubr.f32.mxu0 %v198
  %1028 = vmatmul.mubr.f32.gmra.mrb[0].mxu0 %v197
  %v1029 = vpop.f32.mrb[0].mxu0
  %v1030 = vadd.f32 %v355, %v1029
  %v1031 = vpop.f32.mrb[0].mxu0
  %1032 = vmatprep.mubr.f32.mxu0 %v201
  %1033 = vmatmul.mubr.f32.gmra.mrb[0].mxu0 %v200
  %v1034 = vpop.f32.mrb[0].mxu0
  %v1035 = vadd.f32 %v355, %v1034
  %v1036 = vpop.f32.mrb[0].mxu0
  %1037 = vmatprep.mubr.f32.mxu0 %v204
  %1038 = vmatmul.mubr.f32.gmra.mrb[0].mxu0 %v203
  %v1039 = vpop.f32.mrb[0].mxu0
  %v1040 = vadd.f32 %v355, %v1039
  %v1041 = vpop.f32.mrb[0].mxu0
  %1042 = vmatprep.mubr.f32.mxu0 %v207
  %1043 = vmatmul.mubr.f32.gmra.mrb[0].mxu0 %v206
  %v1044 = vpop.f32.mrb[0].mxu0
  %v1045 = vadd.f32 %v355, %v1044
  %v1046 = vpop.f32.mrb[0].mxu0
  %1047 = vmatprep.mubr.f32.mxu0 %v210
  %1048 = vmatmul.mubr.f32.gmra.mrb[0].mxu0 %v209
  %v1049 = vpop.f32.mrb[0].mxu0
  %v1050 = vadd.f32 %v355, %v1049
  %v1051 = vpop.f32.mrb[0].mxu0
  %1052 = vmatprep.mubr.f32.mxu0 %v213
  %1053 = vmatmul.mubr.f32.gmra.mrb[0].mxu0 %v212
  %v1054 = vpop.f32.mrb[0].mxu0
  %v1055 = vadd.f32 %v355, %v1054
  %v1056 = vpop.f32.mrb[0].mxu0
  %1057 = vmatprep.mubr.f32.mxu0 %v216
  %1058 = vmatmul.mubr.f32.gmra.mrb[0].mxu0 %v215
  %v1059 = vpop.f32.mrb[0].mxu0
  %v1060 = vadd.f32 %v355, %v1059
  %v1061 = vpop.f32.mrb[0].mxu0
  %1062 = vmatprep.mubr.f32.mxu0 %v219
  %1063 = vmatmul.mubr.f32.gmra.mrb[0].mxu0 %v218
  %v1064 = vpop.f32.mrb[0].mxu0
  %v1065 = vadd.f32 %v355, %v1064
  %v1066 = vpop.f32.mrb[0].mxu0
  %1067 = vmatprep.mubr.f32.mxu0 %v222
  %1068 = vmatmul.mubr.f32.gmra.mrb[0].mxu0 %v221
  %v1069 = vpop.f32.mrb[0].mxu0
  %v1070 = vadd.f32 %v355, %v1069
  %v1071 = vpop.f32.mrb[0].mxu0
  %1072 = vmatprep.mubr.f32.mxu0 %v225
  %1073 = vmatmul.mubr.f32.gmra.mrb[0].mxu0 %v224
  %v1074 = vpop.f32.mrb[0].mxu0
  %v1075 = vadd.f32 %v355, %v1074
  %v1076 = vpop.f32.mrb[0].mxu0
  %1077 = vmatprep.mubr.f32.mxu0 %v228
  %1078 = vmatmul.mubr.f32.gmra.mrb[0].mxu0 %v227
  %v1079 = vpop.f32.mrb[0].mxu0
  %v1080 = vadd.f32 %v355, %v1079
  %v1081 = vpop.f32.mrb[0].mxu0
  %1082 = vmatprep.mubr.f32.mxu0 %v231
  %1083 = vmatmul.mubr.f32.gmra.mrb[0].mxu0 %v230
  %v1084 = vpop.f32.mrb[0].mxu0
  %v1085 = vadd.f32 %v355, %v1084
  %v1086 = vpop.f32.mrb[0].mxu0
  %1087 = vmatprep.mubr.f32.mxu0 %v234
  %1088 = vmatmul.mubr.f32.gmra.mrb[0].mxu0 %v233
  %v1089 = vpop.f32.mrb[0].mxu0
  %v1090 = vadd.f32 %v355, %v1089
  %v1091 = vpop.f32.mrb[0].mxu0
  %1092 = vmatprep.mubr.f32.mxu0 %v237
  %1093 = vmatmul.mubr.f32.gmra.mrb[0].mxu0 %v236
  %v1094 = vpop.f32.mrb[0].mxu0
  %v1095 = vadd.f32 %v355, %v1094
  %v1096 = vpop.f32.mrb[0].mxu0
  %1097 = vmatprep.mubr.f32.mxu0 %v240
  %1098 = vmatmul.mubr.f32.gmra.mrb[0].mxu0 %v239
  %v1099 = vpop.f32.mrb[0].mxu0
  %v1100 = vadd.f32 %v355, %v1099
  %v1101 = vpop.f32.mrb[0].mxu0
  %1102 = vmatprep.mubr.f32.mxu0 %v243
  %1103 = vmatmul.mubr.f32.gmra.mrb[0].mxu0 %v242
  %v1104 = vpop.f32.mrb[0].mxu0
  %v1105 = vadd.f32 %v355, %v1104
  %v1106 = vpop.f32.mrb[0].mxu0
  %1107 = vmatprep.mubr.f32.mxu0 %v246
  %1108 = vmatmul.mubr.f32.gmra.mrb[0].mxu0 %v245
  %v1109 = vpop.f32.mrb[0].mxu0
  %v1110 = vadd.f32 %v355, %v1109
  %v1111 = vpop.f32.mrb[0].mxu0
  %1112 = vmatprep.mubr.f32.mxu0 %v249
  %1113 = vmatmul.mubr.f32.gmra.mrb[0].mxu0 %v248
  %v1114 = vpop.f32.mrb[0].mxu0
  %v1115 = vadd.f32 %v355, %v1114
  %v1116 = vpop.f32.mrb[0].mxu0
  %1117 = vmatprep.mubr.f32.mxu0 %v252
  %1118 = vmatmul.mubr.f32.gmra.mrb[0].mxu0 %v251
  %v1119 = vpop.f32.mrb[0].mxu0
  %v1120 = vadd.f32 %v355, %v1119
  %v1121 = vpop.f32.mrb[0].mxu0
  %1122 = vmatprep.mubr.f32.mxu0 %v255
  %1123 = vmatmul.mubr.f32.gmra.mrb[0].mxu0 %v254
  %v1124 = vpop.f32.mrb[0].mxu0
  %v1125 = vadd.f32 %v355, %v1124
  %v1126 = vpop.f32.mrb[0].mxu0
  %1127 = vmatprep.mubr.f32.mxu0 %v258
  %1128 = vmatmul.mubr.f32.gmra.mrb[0].mxu0 %v257
  %v1129 = vpop.f32.mrb[0].mxu0
  %v1130 = vadd.f32 %v355, %v1129
  %v1131 = vpop.f32.mrb[0].mxu0
  %1132 = vmatprep.mubr.f32.mxu0 %v261
  %1133 = vmatmul.mubr.f32.gmra.mrb[0].mxu0 %v260
  %v1134 = vpop.f32.mrb[0].mxu0
  %v1135 = vadd.f32 %v355, %v1134
  %v1136 = vpop.f32.mrb[0].mxu0
  %1137 = vmatprep.mubr.f32.mxu0 %v264
  %1138 = vmatmul.mubr.f32.gmra.mrb[0].mxu0 %v263
  %v1139 = vpop.f32.mrb[0].mxu0
  %v1140 = vadd.f32 %v355, %v1139
  %v1141 = vpop.f32.mrb[0].mxu0
  %1142 = vmatprep.mubr.f32.mxu0 %v267
  %1143 = vmatmul.mubr.f32.gmra.mrb[0].mxu0 %v266
  %v1144 = vpop.f32.mrb[0].mxu0
  %v1145 = vadd.f32 %v355, %v1144
  %v1146 = vpop.f32.mrb[0].mxu0
  %1147 = vmatprep.mubr.f32.mxu0 %v270
  %1148 = vmatmul.mubr.f32.gmra.mrb[0].mxu0 %v269
  %v1149 = vpop.f32.mrb[0].mxu0
  %v1150 = vadd.f32 %v355, %v1149
  %v1151 = vpop.f32.mrb[0].mxu0
  %1152 = vmatprep.mubr.f32.mxu0 %v273
  %1153 = vmatmul.mubr.f32.gmra.mrb[0].mxu0 %v272
  %v1154 = vpop.f32.mrb[0].mxu0
  %v1155 = vadd.f32 %v355, %v1154
  %v1156 = vpop.f32.mrb[0].mxu0
  %1157 = vmatprep.mubr.f32.mxu0 %v276
  %1158 = vmatmul.mubr.f32.gmra.mrb[0].mxu0 %v275
  %v1159 = vpop.f32.mrb[0].mxu0
  %v1160 = vadd.f32 %v355, %v1159
  %v1161 = vpop.f32.mrb[0].mxu0
  %1162 = vmatprep.mubr.f32.mxu0 %v279
  %1163 = vmatmul.mubr.f32.gmra.mrb[0].mxu0 %v278
  %v1164 = vpop.f32.mrb[0].mxu0
  %v1165 = vadd.f32 %v355, %v1164
  %v1166 = vpop.f32.mrb[0].mxu0
  %1167 = vmatprep.mubr.f32.mxu0 %v282
  %1168 = vmatmul.mubr.f32.gmra.mrb[0].mxu0 %v281
  %v1169 = vpop.f32.mrb[0].mxu0
  %v1170 = vadd.f32 %v355, %v1169
  %v1171 = vpop.f32.mrb[0].mxu0
  %1172 = vmatprep.mubr.f32.mxu0 %v285
  %1173 = vmatmul.mubr.f32.gmra.mrb[0].mxu0 %v284
  %v1174 = vpop.f32.mrb[0].mxu0
  %v1175 = vadd.f32 %v355, %v1174
  %v1176 = vpop.f32.mrb[0].mxu0
  %1177 = vmatprep.mubr.f32.mxu0 %v288
  %1178 = vmatmul.mubr.f32.gmra.mrb[0].mxu0 %v287
  %v1179 = vpop.f32.mrb[0].mxu0
  %v1180 = vadd.f32 %v355, %v1179
  %v1181 = vpop.f32.mrb[0].mxu0
  %1182 = vmatprep.mubr.f32.mxu0 %v291
  %1183 = vmatmul.mubr.f32.gmra.mrb[0].mxu0 %v290
  %v1184 = vpop.f32.mrb[0].mxu0
  %v1185 = vadd.f32 %v355, %v1184
  %v1186 = vpop.f32.mrb[0].mxu0
  %1187 = vmatprep.mubr.f32.mxu0 %v294
  %1188 = vmatmul.mubr.f32.gmra.mrb[0].mxu0 %v293
  %v1189 = vpop.f32.mrb[0].mxu0
  %v1190 = vadd.f32 %v355, %v1189
  %v1191 = vpop.f32.mrb[0].mxu0
  %1192 = vmatprep.mubr.f32.mxu0 %v297
  %1193 = vmatmul.mubr.f32.gmra.mrb[0].mxu0 %v296
  %v1194 = vpop.f32.mrb[0].mxu0
  %v1195 = vadd.f32 %v355, %v1194
  %v1196 = vpop.f32.mrb[0].mxu0
  %1197 = vmatprep.mubr.f32.mxu0 %v300
  %1198 = vmatmul.mubr.f32.gmra.mrb[0].mxu0 %v299
  %v1199 = vpop.f32.mrb[0].mxu0
  %v1200 = vadd.f32 %v355, %v1199
  %v1201 = vpop.f32.mrb[0].mxu0
  %1202 = vmatprep.mubr.f32.mxu0 %v303
  %1203 = vmatmul.mubr.f32.gmra.mrb[0].mxu0 %v302
  %v1204 = vpop.f32.mrb[0].mxu0
  %v1205 = vadd.f32 %v355, %v1204
  %v1206 = vpop.f32.mrb[0].mxu0
  %1207 = vmatprep.mubr.f32.mxu0 %v306
  %1208 = vmatmul.mubr.f32.gmra.mrb[0].mxu0 %v305
  %v1209 = vpop.f32.mrb[0].mxu0
  %v1210 = vadd.f32 %v355, %v1209
  %v1211 = vpop.f32.mrb[0].mxu0
  %1212 = vmatprep.mubr.f32.mxu0 %v309
  %1213 = vmatmul.mubr.f32.gmra.mrb[0].mxu0 %v308
  %v1214 = vpop.f32.mrb[0].mxu0
  %v1215 = vadd.f32 %v355, %v1214
  %v1216 = vpop.f32.mrb[0].mxu0
  %1217 = vmatprep.mubr.f32.mxu0 %v312
  %1218 = vmatmul.mubr.f32.gmra.mrb[0].mxu0 %v311
  %v1219 = vpop.f32.mrb[0].mxu0
  %v1220 = vadd.f32 %v355, %v1219
  %v1221 = vpop.f32.mrb[0].mxu0
  %1222 = vdwg.mxu0
  %1223 = vmatprep.subr.mxu0 0.0
  %1224 = vmatpush1.msra.mxu0 %v346
  %1225 = vmatprep.subr.mxu0 0.0
  %1226 = vmatpush1.msra.mxu0 %v347
  %1227 = vmatprep.subr.mxu0 0.0
  %1228 = vmatpush1.msra.mxu0 %v348
  %1229 = vmatprep.subr.mxu0 0.0
  %1230 = vmatpush1.msra.mxu0 %v349
  %1231 = vmatprep.subr.mxu0 0.0
  %1232 = vmatpush1.msra.mxu0 0.0
  %1233 = vmatprep.subr.mxu0 0.0
  %1234 = vmatpush1.msra.mxu0 0.0
  %1235 = vmatprep.subr.mxu0 0.0
  %1236 = vmatpush1.msra.mxu0 0.0
  %1237 = vmatprep.subr.mxu0 0.0
  %1238 = vmatpush1.msra.mxu0 0.0
  %1239 = vmatprep.subr.mxu0 0.0
  %1240 = vmatpush1.msra.mxu0 0.0
  %1241 = vmatprep.subr.mxu0 0.0
  %1242 = vmatpush1.msra.mxu0 0.0
  %1243 = vmatprep.subr.mxu0 0.0
  %1244 = vmatpush1.msra.mxu0 0.0
  %1245 = vmatprep.subr.mxu0 0.0
  %1246 = vmatpush1.msra.mxu0 0.0
  %1247 = vmatprep.subr.mxu0 0.0
  %1248 = vmatpush1.msra.mxu0 0.0
  %1249 = vmatprep.subr.mxu0 0.0
  %1250 = vmatpush1.msra.mxu0 0.0
  %1251 = vmatprep.subr.mxu0 0.0
  %1252 = vmatpush1.msra.mxu0 0.0
  %1253 = vmatprep.subr.mxu0 0.0
  %1254 = vmatpush1.msra.mxu0 0.0
  %1255 = vmatprep.subr.mxu0 0.0
  %1256 = vmatpush1.msra.mxu0 0.0
  %1257 = vmatprep.subr.mxu0 0.0
  %1258 = vmatpush1.msra.mxu0 0.0
  %1259 = vmatprep.subr.mxu0 0.0
  %1260 = vmatpush1.msra.mxu0 0.0
  %1261 = vmatprep.subr.mxu0 0.0
  %1262 = vmatpush1.msra.mxu0 0.0
  %1263 = vmatprep.subr.mxu0 0.0
  %1264 = vmatpush1.msra.mxu0 0.0
  %1265 = vmatprep.subr.mxu0 0.0
  %1266 = vmatpush1.msra.mxu0 0.0
  %1267 = vmatprep.subr.mxu0 0.0
  %1268 = vmatpush1.msra.mxu0 0.0
  %1269 = vmatprep.subr.mxu0 0.0
  %1270 = vmatpush1.msra.mxu0 0.0
  %1271 = vmatprep.subr.mxu0 0.0
  %1272 = vmatpush1.msra.mxu0 0.0
  %1273 = vmatprep.subr.mxu0 0.0
  %1274 = vmatpush1.msra.mxu0 0.0
  %1275 = vmatprep.subr.mxu0 0.0
  %1276 = vmatpush1.msra.mxu0 0.0
  %1277 = vmatprep.subr.mxu0 0.0
  %1278 = vmatpush1.msra.mxu0 0.0
  %1279 = vmatprep.subr.mxu0 0.0
  %1280 = vmatpush1.msra.mxu0 0.0
  %1281 = vmatprep.subr.mxu0 0.0
  %1282 = vmatpush1.msra.mxu0 0.0
  %1283 = vmatprep.subr.mxu0 0.0
  %1284 = vmatpush1.msra.mxu0 0.0
  %1285 = vmatprep.subr.mxu0 0.0
  %1286 = vmatpush1.msra.mxu0 0.0
  %1287 = vmatprep.mubr.f32.mxu0 0.0
  %1288 = vmatmul.mubr.f32.gmra.mrb[0].mxu0 %v359
  %v1289 = vpop.f32.mrb[0].mxu0
  %v1290 = vadd.f32 %v725, %v1289
  %v1291 = vpop.f32.mrb[0].mxu0
  %1292 = vmatprep.mubr.f32.mxu0 0.0
  %1293 = vmatmul.mubr.f32.gmra.mrb[0].mxu0 %v362
  %v1294 = vpop.f32.mrb[0].mxu0
  %v1295 = vadd.f32 %v730, %v1294
  %v1296 = vpop.f32.mrb[0].mxu0
  %1297 = vmatprep.mubr.f32.mxu0 0.0
  %1298 = vmatmul.mubr.f32.gmra.mrb[0].mxu0 %v365
  %v1299 = vpop.f32.mrb[0].mxu0
  %v1300 = vadd.f32 %v735, %v1299
  %v1301 = vpop.f32.mrb[0].mxu0
  %1302 = vmatprep.mubr.f32.mxu0 0.0
  %1303 = vmatmul.mubr.f32.gmra.mrb[0].mxu0 %v368
  %v1304 = vpop.f32.mrb[0].mxu0
  %v1305 = vadd.f32 %v740, %v1304
  %v1306 = vpop.f32.mrb[0].mxu0
  %1307 = vmatprep.mubr.f32.mxu0 0.0
  %1308 = vmatmul.mubr.f32.gmra.mrb[0].mxu0 %v371
  %v1309 = vpop.f32.mrb[0].mxu0
  %v1310 = vadd.f32 %v745, %v1309
  %v1311 = vpop.f32.mrb[0].mxu0
  %1312 = vmatprep.mubr.f32.mxu0 0.0
  %1313 = vmatmul.mubr.f32.gmra.mrb[0].mxu0 %v374
  %v1314 = vpop.f32.mrb[0].mxu0
  %v1315 = vadd.f32 %v750, %v1314
  %v1316 = vpop.f32.mrb[0].mxu0
  %1317 = vmatprep.mubr.f32.mxu0 0.0
  %1318 = vmatmul.mubr.f32.gmra.mrb[0].mxu0 %v377
  %v1319 = vpop.f32.mrb[0].mxu0
  %v1320 = vadd.f32 %v755, %v1319
  %v1321 = vpop.f32.mrb[0].mxu0
  %1322 = vmatprep.mubr.f32.mxu0 0.0
  %1323 = vmatmul.mubr.f32.gmra.mrb[0].mxu0 %v380
  %v1324 = vpop.f32.mrb[0].mxu0
  %v1325 = vadd.f32 %v760, %v1324
  %v1326 = vpop.f32.mrb[0].mxu0
  %1327 = vmatprep.mubr.f32.mxu0 0.0
  %1328 = vmatmul.mubr.f32.gmra.mrb[0].mxu0 %v383
  %v1329 = vpop.f32.mrb[0].mxu0
  %v1330 = vadd.f32 %v765, %v1329
  %v1331 = vpop.f32.mrb[0].mxu0
  %1332 = vmatprep.mubr.f32.mxu0 0.0
  %1333 = vmatmul.mubr.f32.gmra.mrb[0].mxu0 %v386
  %v1334 = vpop.f32.mrb[0].mxu0
  %v1335 = vadd.f32 %v770, %v1334
  %v1336 = vpop.f32.mrb[0].mxu0
  %1337 = vmatprep.mubr.f32.mxu0 0.0
  %1338 = vmatmul.mubr.f32.gmra.mrb[0].mxu0 %v389
  %v1339 = vpop.f32.mrb[0].mxu0
  %v1340 = vadd.f32 %v775, %v1339
  %v1341 = vpop.f32.mrb[0].mxu0
  %1342 = vmatprep.mubr.f32.mxu0 0.0
  %1343 = vmatmul.mubr.f32.gmra.mrb[0].mxu0 %v392
  %v1344 = vpop.f32.mrb[0].mxu0
  %v1345 = vadd.f32 %v780, %v1344
  %v1346 = vpop.f32.mrb[0].mxu0
  %1347 = vmatprep.mubr.f32.mxu0 0.0
  %1348 = vmatmul.mubr.f32.gmra.mrb[0].mxu0 %v395
  %v1349 = vpop.f32.mrb[0].mxu0
  %v1350 = vadd.f32 %v785, %v1349
  %v1351 = vpop.f32.mrb[0].mxu0
  %1352 = vmatprep.mubr.f32.mxu0 0.0
  %1353 = vmatmul.mubr.f32.gmra.mrb[0].mxu0 %v398
  %v1354 = vpop.f32.mrb[0].mxu0
  %v1355 = vadd.f32 %v790, %v1354
  %v1356 = vpop.f32.mrb[0].mxu0
  %1357 = vmatprep.mubr.f32.mxu0 0.0
  %1358 = vmatmul.mubr.f32.gmra.mrb[0].mxu0 %v401
  %v1359 = vpop.f32.mrb[0].mxu0
  %v1360 = vadd.f32 %v795, %v1359
  %v1361 = vpop.f32.mrb[0].mxu0
  %1362 = vmatprep.mubr.f32.mxu0 0.0
  %1363 = vmatmul.mubr.f32.gmra.mrb[0].mxu0 %v404
  %v1364 = vpop.f32.mrb[0].mxu0
  %v1365 = vadd.f32 %v800, %v1364
  %v1366 = vpop.f32.mrb[0].mxu0
  %1367 = vmatprep.mubr.f32.mxu0 0.0
  %1368 = vmatmul.mubr.f32.gmra.mrb[0].mxu0 %v407
  %v1369 = vpop.f32.mrb[0].mxu0
  %v1370 = vadd.f32 %v805, %v1369
  %v1371 = vpop.f32.mrb[0].mxu0
  %1372 = vmatprep.mubr.f32.mxu0 0.0
  %1373 = vmatmul.mubr.f32.gmra.mrb[0].mxu0 %v410
  %v1374 = vpop.f32.mrb[0].mxu0
  %v1375 = vadd.f32 %v810, %v1374
  %v1376 = vpop.f32.mrb[0].mxu0
  %1377 = vmatprep.mubr.f32.mxu0 0.0
  %1378 = vmatmul.mubr.f32.gmra.mrb[0].mxu0 %v413
  %v1379 = vpop.f32.mrb[0].mxu0
  %v1380 = vadd.f32 %v815, %v1379
  %v1381 = vpop.f32.mrb[0].mxu0
  %1382 = vmatprep.mubr.f32.mxu0 0.0
  %1383 = vmatmul.mubr.f32.gmra.mrb[0].mxu0 %v416
  %v1384 = vpop.f32.mrb[0].mxu0
  %v1385 = vadd.f32 %v820, %v1384
  %v1386 = vpop.f32.mrb[0].mxu0
  %1387 = vmatprep.mubr.f32.mxu0 0.0
  %1388 = vmatmul.mubr.f32.gmra.mrb[0].mxu0 %v419
  %v1389 = vpop.f32.mrb[0].mxu0
  %v1390 = vadd.f32 %v825, %v1389
  %v1391 = vpop.f32.mrb[0].mxu0
  %1392 = vmatprep.mubr.f32.mxu0 0.0
  %1393 = vmatmul.mubr.f32.gmra.mrb[0].mxu0 %v422
  %v1394 = vpop.f32.mrb[0].mxu0
  %v1395 = vadd.f32 %v830, %v1394
  %v1396 = vpop.f32.mrb[0].mxu0
  %1397 = vmatprep.mubr.f32.mxu0 0.0
  %1398 = vmatmul.mubr.f32.gmra.mrb[0].mxu0 %v425
  %v1399 = vpop.f32.mrb[0].mxu0
  %v1400 = vadd.f32 %v835, %v1399
  %v1401 = vpop.f32.mrb[0].mxu0
  %1402 = vmatprep.mubr.f32.mxu0 0.0
  %1403 = vmatmul.mubr.f32.gmra.mrb[0].mxu0 %v428
  %v1404 = vpop.f32.mrb[0].mxu0
  %v1405 = vadd.f32 %v840, %v1404
  %v1406 = vpop.f32.mrb[0].mxu0
  %1407 = vmatprep.mubr.f32.mxu0 0.0
  %1408 = vmatmul.mubr.f32.gmra.mrb[0].mxu0 %v431
  %v1409 = vpop.f32.mrb[0].mxu0
  %v1410 = vadd.f32 %v845, %v1409
  %v1411 = vpop.f32.mrb[0].mxu0
  %1412 = vmatprep.mubr.f32.mxu0 0.0
  %1413 = vmatmul.mubr.f32.gmra.mrb[0].mxu0 %v434
  %v1414 = vpop.f32.mrb[0].mxu0
  %v1415 = vadd.f32 %v850, %v1414
  %v1416 = vpop.f32.mrb[0].mxu0
  %1417 = vmatprep.mubr.f32.mxu0 0.0
  %1418 = vmatmul.mubr.f32.gmra.mrb[0].mxu0 %v437
  %v1419 = vpop.f32.mrb[0].mxu0
  %v1420 = vadd.f32 %v855, %v1419
  %v1421 = vpop.f32.mrb[0].mxu0
  %1422 = vmatprep.mubr.f32.mxu0 0.0
  %1423 = vmatmul.mubr.f32.gmra.mrb[0].mxu0 %v440
  %v1424 = vpop.f32.mrb[0].mxu0
  %v1425 = vadd.f32 %v860, %v1424
  %v1426 = vpop.f32.mrb[0].mxu0
  %1427 = vmatprep.mubr.f32.mxu0 0.0
  %1428 = vmatmul.mubr.f32.gmra.mrb[0].mxu0 %v443
  %v1429 = vpop.f32.mrb[0].mxu0
  %v1430 = vadd.f32 %v865, %v1429
  %v1431 = vpop.f32.mrb[0].mxu0
  %1432 = vmatprep.mubr.f32.mxu0 0.0
  %1433 = vmatmul.mubr.f32.gmra.mrb[0].mxu0 %v446
  %v1434 = vpop.f32.mrb[0].mxu0
  %v1435 = vadd.f32 %v870, %v1434
  %v1436 = vpop.f32.mrb[0].mxu0
  %1437 = vmatprep.mubr.f32.mxu0 0.0
  %1438 = vmatmul.mubr.f32.gmra.mrb[0].mxu0 %v449
  %v1439 = vpop.f32.mrb[0].mxu0
  %v1440 = vadd.f32 %v875, %v1439
  %v1441 = vpop.f32.mrb[0].mxu0
  %1442 = vmatprep.mubr.f32.mxu0 0.0
  %1443 = vmatmul.mubr.f32.gmra.mrb[0].mxu0 %v452
  %v1444 = vpop.f32.mrb[0].mxu0
  %v1445 = vadd.f32 %v880, %v1444
  %v1446 = vpop.f32.mrb[0].mxu0
  %1447 = vmatprep.mubr.f32.mxu0 0.0
  %1448 = vmatmul.mubr.f32.gmra.mrb[0].mxu0 %v455
  %v1449 = vpop.f32.mrb[0].mxu0
  %v1450 = vadd.f32 %v885, %v1449
  %v1451 = vpop.f32.mrb[0].mxu0
  %1452 = vmatprep.mubr.f32.mxu0 0.0
  %1453 = vmatmul.mubr.f32.gmra.mrb[0].mxu0 %v458
  %v1454 = vpop.f32.mrb[0].mxu0
  %v1455 = vadd.f32 %v890, %v1454
  %v1456 = vpop.f32.mrb[0].mxu0
  %1457 = vmatprep.mubr.f32.mxu0 0.0
  %1458 = vmatmul.mubr.f32.gmra.mrb[0].mxu0 %v461
  %v1459 = vpop.f32.mrb[0].mxu0
  %v1460 = vadd.f32 %v895, %v1459
  %v1461 = vpop.f32.mrb[0].mxu0
  %1462 = vmatprep.mubr.f32.mxu0 0.0
  %1463 = vmatmul.mubr.f32.gmra.mrb[0].mxu0 %v464
  %v1464 = vpop.f32.mrb[0].mxu0
  %v1465 = vadd.f32 %v900, %v1464
  %v1466 = vpop.f32.mrb[0].mxu0
  %1467 = vmatprep.mubr.f32.mxu0 0.0
  %1468 = vmatmul.mubr.f32.gmra.mrb[0].mxu0 %v467
  %v1469 = vpop.f32.mrb[0].mxu0
  %v1470 = vadd.f32 %v905, %v1469
  %v1471 = vpop.f32.mrb[0].mxu0
  %1472 = vmatprep.mubr.f32.mxu0 0.0
  %1473 = vmatmul.mubr.f32.gmra.mrb[0].mxu0 %v470
  %v1474 = vpop.f32.mrb[0].mxu0
  %v1475 = vadd.f32 %v910, %v1474
  %v1476 = vpop.f32.mrb[0].mxu0
  %1477 = vmatprep.mubr.f32.mxu0 0.0
  %1478 = vmatmul.mubr.f32.gmra.mrb[0].mxu0 %v473
  %v1479 = vpop.f32.mrb[0].mxu0
  %v1480 = vadd.f32 %v915, %v1479
  %v1481 = vpop.f32.mrb[0].mxu0
  %1482 = vmatprep.mubr.f32.mxu0 0.0
  %1483 = vmatmul.mubr.f32.gmra.mrb[0].mxu0 %v476
  %v1484 = vpop.f32.mrb[0].mxu0
  %v1485 = vadd.f32 %v920, %v1484
  %v1486 = vpop.f32.mrb[0].mxu0
  %1487 = vmatprep.mubr.f32.mxu0 0.0
  %1488 = vmatmul.mubr.f32.gmra.mrb[0].mxu0 %v479
  %v1489 = vpop.f32.mrb[0].mxu0
  %v1490 = vadd.f32 %v925, %v1489
  %v1491 = vpop.f32.mrb[0].mxu0
  %1492 = vmatprep.mubr.f32.mxu0 0.0
  %1493 = vmatmul.mubr.f32.gmra.mrb[0].mxu0 %v482
  %v1494 = vpop.f32.mrb[0].mxu0
  %v1495 = vadd.f32 %v930, %v1494
  %v1496 = vpop.f32.mrb[0].mxu0
  %1497 = vmatprep.mubr.f32.mxu0 0.0
  %1498 = vmatmul.mubr.f32.gmra.mrb[0].mxu0 %v485
  %v1499 = vpop.f32.mrb[0].mxu0
  %v1500 = vadd.f32 %v935, %v1499
  %v1501 = vpop.f32.mrb[0].mxu0
  %1502 = vmatprep.mubr.f32.mxu0 0.0
  %1503 = vmatmul.mubr.f32.gmra.mrb[0].mxu0 %v488
  %v1504 = vpop.f32.mrb[0].mxu0
  %v1505 = vadd.f32 %v940, %v1504
  %v1506 = vpop.f32.mrb[0].mxu0
  %1507 = vmatprep.mubr.f32.mxu0 0.0
  %1508 = vmatmul.mubr.f32.gmra.mrb[0].mxu0 %v491
  %v1509 = vpop.f32.mrb[0].mxu0
  %v1510 = vadd.f32 %v945, %v1509
  %v1511 = vpop.f32.mrb[0].mxu0
  %1512 = vmatprep.mubr.f32.mxu0 0.0
  %1513 = vmatmul.mubr.f32.gmra.mrb[0].mxu0 %v494
  %v1514 = vpop.f32.mrb[0].mxu0
  %v1515 = vadd.f32 %v950, %v1514
  %v1516 = vpop.f32.mrb[0].mxu0
  %1517 = vmatprep.mubr.f32.mxu0 0.0
  %1518 = vmatmul.mubr.f32.gmra.mrb[0].mxu0 %v497
  %v1519 = vpop.f32.mrb[0].mxu0
  %v1520 = vadd.f32 %v955, %v1519
  %v1521 = vpop.f32.mrb[0].mxu0
  %1522 = vmatprep.mubr.f32.mxu0 0.0
  %1523 = vmatmul.mubr.f32.gmra.mrb[0].mxu0 %v500
  %v1524 = vpop.f32.mrb[0].mxu0
  %v1525 = vadd.f32 %v960, %v1524
  %v1526 = vpop.f32.mrb[0].mxu0
  %1527 = vmatprep.mubr.f32.mxu0 0.0
  %1528 = vmatmul.mubr.f32.gmra.mrb[0].mxu0 %v503
  %v1529 = vpop.f32.mrb[0].mxu0
  %v1530 = vadd.f32 %v965, %v1529
  %v1531 = vpop.f32.mrb[0].mxu0
  %1532 = vmatprep.mubr.f32.mxu0 0.0
  %1533 = vmatmul.mubr.f32.gmra.mrb[0].mxu0 %v506
  %v1534 = vpop.f32.mrb[0].mxu0
  %v1535 = vadd.f32 %v970, %v1534
  %v1536 = vpop.f32.mrb[0].mxu0
  %1537 = vmatprep.mubr.f32.mxu0 0.0
  %1538 = vmatmul.mubr.f32.gmra.mrb[0].mxu0 %v509
  %v1539 = vpop.f32.mrb[0].mxu0
  %v1540 = vadd.f32 %v975, %v1539
  %v1541 = vpop.f32.mrb[0].mxu0
  %1542 = vmatprep.mubr.f32.mxu0 0.0
  %1543 = vmatmul.mubr.f32.gmra.mrb[0].mxu0 %v512
  %v1544 = vpop.f32.mrb[0].mxu0
  %v1545 = vadd.f32 %v980, %v1544
  %v1546 = vpop.f32.mrb[0].mxu0
  %1547 = vmatprep.mubr.f32.mxu0 0.0
  %1548 = vmatmul.mubr.f32.gmra.mrb[0].mxu0 %v515
  %v1549 = vpop.f32.mrb[0].mxu0
  %v1550 = vadd.f32 %v985, %v1549
  %v1551 = vpop.f32.mrb[0].mxu0
  %1552 = vmatprep.mubr.f32.mxu0 0.0
  %1553 = vmatmul.mubr.f32.gmra.mrb[0].mxu0 %v518
  %v1554 = vpop.f32.mrb[0].mxu0
  %v1555 = vadd.f32 %v990, %v1554
  %v1556 = vpop.f32.mrb[0].mxu0
  %1557 = vmatprep.mubr.f32.mxu0 0.0
  %1558 = vmatmul.mubr.f32.gmra.mrb[0].mxu0 %v521
  %v1559 = vpop.f32.mrb[0].mxu0
  %v1560 = vadd.f32 %v995, %v1559
  %v1561 = vpop.f32.mrb[0].mxu0
  %1562 = vmatprep.mubr.f32.mxu0 0.0
  %1563 = vmatmul.mubr.f32.gmra.mrb[0].mxu0 %v524
  %v1564 = vpop.f32.mrb[0].mxu0
  %v1565 = vadd.f32 %v1000, %v1564
  %v1566 = vpop.f32.mrb[0].mxu0
  %1567 = vmatprep.mubr.f32.mxu0 0.0
  %1568 = vmatmul.mubr.f32.gmra.mrb[0].mxu0 %v527
  %v1569 = vpop.f32.mrb[0].mxu0
  %v1570 = vadd.f32 %v1005, %v1569
  %v1571 = vpop.f32.mrb[0].mxu0
  %1572 = vmatprep.mubr.f32.mxu0 0.0
  %1573 = vmatmul.mubr.f32.gmra.mrb[0].mxu0 %v530
  %v1574 = vpop.f32.mrb[0].mxu0
  %v1575 = vadd.f32 %v1010, %v1574
  %v1576 = vpop.f32.mrb[0].mxu0
  %1577 = vmatprep.mubr.f32.mxu0 0.0
  %1578 = vmatmul.mubr.f32.gmra.mrb[0].mxu0 %v533
  %v1579 = vpop.f32.mrb[0].mxu0
  %v1580 = vadd.f32 %v1015, %v1579
  %v1581 = vpop.f32.mrb[0].mxu0
  %1582 = vmatprep.mubr.f32.mxu0 0.0
  %1583 = vmatmul.mubr.f32.gmra.mrb[0].mxu0 %v536
  %v1584 = vpop.f32.mrb[0].mxu0
  %v1585 = vadd.f32 %v1020, %v1584
  %v1586 = vpop.f32.mrb[0].mxu0
  %1587 = vmatprep.mubr.f32.mxu0 0.0
  %1588 = vmatmul.mubr.f32.gmra.mrb[0].mxu0 %v539
  %v1589 = vpop.f32.mrb[0].mxu0
  %v1590 = vadd.f32 %v1025, %v1589
  %v1591 = vpop.f32.mrb[0].mxu0
  %1592 = vmatprep.mubr.f32.mxu0 0.0
  %1593 = vmatmul.mubr.f32.gmra.mrb[0].mxu0 %v542
  %v1594 = vpop.f32.mrb[0].mxu0
  %v1595 = vadd.f32 %v1030, %v1594
  %v1596 = vpop.f32.mrb[0].mxu0
  %1597 = vmatprep.mubr.f32.mxu0 0.0
  %1598 = vmatmul.mubr.f32.gmra.mrb[0].mxu0 %v545
  %v1599 = vpop.f32.mrb[0].mxu0
  %v1600 = vadd.f32 %v1035, %v1599
  %v1601 = vpop.f32.mrb[0].mxu0
  %1602 = vmatprep.mubr.f32.mxu0 0.0
  %1603 = vmatmul.mubr.f32.gmra.mrb[0].mxu0 %v548
  %v1604 = vpop.f32.mrb[0].mxu0
  %v1605 = vadd.f32 %v1040, %v1604
  %v1606 = vpop.f32.mrb[0].mxu0
  %1607 = vmatprep.mubr.f32.mxu0 0.0
  %1608 = vmatmul.mubr.f32.gmra.mrb[0].mxu0 %v551
  %v1609 = vpop.f32.mrb[0].mxu0
  %v1610 = vadd.f32 %v1045, %v1609
  %v1611 = vpop.f32.mrb[0].mxu0
  %1612 = vmatprep.mubr.f32.mxu0 0.0
  %1613 = vmatmul.mubr.f32.gmra.mrb[0].mxu0 %v554
  %v1614 = vpop.f32.mrb[0].mxu0
  %v1615 = vadd.f32 %v1050, %v1614
  %v1616 = vpop.f32.mrb[0].mxu0
  %1617 = vmatprep.mubr.f32.mxu0 0.0
  %1618 = vmatmul.mubr.f32.gmra.mrb[0].mxu0 %v557
  %v1619 = vpop.f32.mrb[0].mxu0
  %v1620 = vadd.f32 %v1055, %v1619
  %v1621 = vpop.f32.mrb[0].mxu0
  %1622 = vmatprep.mubr.f32.mxu0 0.0
  %1623 = vmatmul.mubr.f32.gmra.mrb[0].mxu0 %v560
  %v1624 = vpop.f32.mrb[0].mxu0
  %v1625 = vadd.f32 %v1060, %v1624
  %v1626 = vpop.f32.mrb[0].mxu0
  %1627 = vmatprep.mubr.f32.mxu0 0.0
  %1628 = vmatmul.mubr.f32.gmra.mrb[0].mxu0 %v563
  %v1629 = vpop.f32.mrb[0].mxu0
  %v1630 = vadd.f32 %v1065, %v1629
  %v1631 = vpop.f32.mrb[0].mxu0
  %1632 = vmatprep.mubr.f32.mxu0 0.0
  %1633 = vmatmul.mubr.f32.gmra.mrb[0].mxu0 %v566
  %v1634 = vpop.f32.mrb[0].mxu0
  %v1635 = vadd.f32 %v1070, %v1634
  %v1636 = vpop.f32.mrb[0].mxu0
  %1637 = vmatprep.mubr.f32.mxu0 0.0
  %1638 = vmatmul.mubr.f32.gmra.mrb[0].mxu0 %v569
  %v1639 = vpop.f32.mrb[0].mxu0
  %v1640 = vadd.f32 %v1075, %v1639
  %v1641 = vpop.f32.mrb[0].mxu0
  %1642 = vmatprep.mubr.f32.mxu0 0.0
  %1643 = vmatmul.mubr.f32.gmra.mrb[0].mxu0 %v572
  %v1644 = vpop.f32.mrb[0].mxu0
  %v1645 = vadd.f32 %v1080, %v1644
  %v1646 = vpop.f32.mrb[0].mxu0
  %1647 = vmatprep.mubr.f32.mxu0 0.0
  %1648 = vmatmul.mubr.f32.gmra.mrb[0].mxu0 %v575
  %v1649 = vpop.f32.mrb[0].mxu0
  %v1650 = vadd.f32 %v1085, %v1649
  %v1651 = vpop.f32.mrb[0].mxu0
  %1652 = vmatprep.mubr.f32.mxu0 0.0
  %1653 = vmatmul.mubr.f32.gmra.mrb[0].mxu0 %v578
  %v1654 = vpop.f32.mrb[0].mxu0
  %v1655 = vadd.f32 %v1090, %v1654
  %v1656 = vpop.f32.mrb[0].mxu0
  %1657 = vmatprep.mubr.f32.mxu0 0.0
  %1658 = vmatmul.mubr.f32.gmra.mrb[0].mxu0 %v581
  %v1659 = vpop.f32.mrb[0].mxu0
  %v1660 = vadd.f32 %v1095, %v1659
  %v1661 = vpop.f32.mrb[0].mxu0
  %1662 = vmatprep.mubr.f32.mxu0 0.0
  %1663 = vmatmul.mubr.f32.gmra.mrb[0].mxu0 %v584
  %v1664 = vpop.f32.mrb[0].mxu0
  %v1665 = vadd.f32 %v1100, %v1664
  %v1666 = vpop.f32.mrb[0].mxu0
  %1667 = vmatprep.mubr.f32.mxu0 0.0
  %1668 = vmatmul.mubr.f32.gmra.mrb[0].mxu0 %v587
  %v1669 = vpop.f32.mrb[0].mxu0
  %v1670 = vadd.f32 %v1105, %v1669
  %v1671 = vpop.f32.mrb[0].mxu0
  %1672 = vmatprep.mubr.f32.mxu0 0.0
  %1673 = vmatmul.mubr.f32.gmra.mrb[0].mxu0 %v590
  %v1674 = vpop.f32.mrb[0].mxu0
  %v1675 = vadd.f32 %v1110, %v1674
  %v1676 = vpop.f32.mrb[0].mxu0
  %1677 = vmatprep.mubr.f32.mxu0 0.0
  %1678 = vmatmul.mubr.f32.gmra.mrb[0].mxu0 %v593
  %v1679 = vpop.f32.mrb[0].mxu0
  %v1680 = vadd.f32 %v1115, %v1679
  %v1681 = vpop.f32.mrb[0].mxu0
  %1682 = vmatprep.mubr.f32.mxu0 0.0
  %1683 = vmatmul.mubr.f32.gmra.mrb[0].mxu0 %v596
  %v1684 = vpop.f32.mrb[0].mxu0
  %v1685 = vadd.f32 %v1120, %v1684
  %v1686 = vpop.f32.mrb[0].mxu0
  %1687 = vmatprep.mubr.f32.mxu0 0.0
  %1688 = vmatmul.mubr.f32.gmra.mrb[0].mxu0 %v599
  %v1689 = vpop.f32.mrb[0].mxu0
  %v1690 = vadd.f32 %v1125, %v1689
  %v1691 = vpop.f32.mrb[0].mxu0
  %1692 = vmatprep.mubr.f32.mxu0 0.0
  %1693 = vmatmul.mubr.f32.gmra.mrb[0].mxu0 %v602
  %v1694 = vpop.f32.mrb[0].mxu0
  %v1695 = vadd.f32 %v1130, %v1694
  %v1696 = vpop.f32.mrb[0].mxu0
  %1697 = vmatprep.mubr.f32.mxu0 0.0
  %1698 = vmatmul.mubr.f32.gmra.mrb[0].mxu0 %v605
  %v1699 = vpop.f32.mrb[0].mxu0
  %v1700 = vadd.f32 %v1135, %v1699
  %v1701 = vpop.f32.mrb[0].mxu0
  %1702 = vmatprep.mubr.f32.mxu0 0.0
  %1703 = vmatmul.mubr.f32.gmra.mrb[0].mxu0 %v608
  %v1704 = vpop.f32.mrb[0].mxu0
  %v1705 = vadd.f32 %v1140, %v1704
  %v1706 = vpop.f32.mrb[0].mxu0
  %1707 = vmatprep.mubr.f32.mxu0 0.0
  %1708 = vmatmul.mubr.f32.gmra.mrb[0].mxu0 %v611
  %v1709 = vpop.f32.mrb[0].mxu0
  %v1710 = vadd.f32 %v1145, %v1709
  %v1711 = vpop.f32.mrb[0].mxu0
  %1712 = vmatprep.mubr.f32.mxu0 0.0
  %1713 = vmatmul.mubr.f32.gmra.mrb[0].mxu0 %v614
  %v1714 = vpop.f32.mrb[0].mxu0
  %v1715 = vadd.f32 %v1150, %v1714
  %v1716 = vpop.f32.mrb[0].mxu0
  %1717 = vmatprep.mubr.f32.mxu0 0.0
  %1718 = vmatmul.mubr.f32.gmra.mrb[0].mxu0 %v617
  %v1719 = vpop.f32.mrb[0].mxu0
  %v1720 = vadd.f32 %v1155, %v1719
  %v1721 = vpop.f32.mrb[0].mxu0
  %1722 = vmatprep.mubr.f32.mxu0 0.0
  %1723 = vmatmul.mubr.f32.gmra.mrb[0].mxu0 %v620
  %v1724 = vpop.f32.mrb[0].mxu0
  %v1725 = vadd.f32 %v1160, %v1724
  %v1726 = vpop.f32.mrb[0].mxu0
  %1727 = vmatprep.mubr.f32.mxu0 0.0
  %1728 = vmatmul.mubr.f32.gmra.mrb[0].mxu0 %v623
  %v1729 = vpop.f32.mrb[0].mxu0
  %v1730 = vadd.f32 %v1165, %v1729
  %v1731 = vpop.f32.mrb[0].mxu0
  %1732 = vmatprep.mubr.f32.mxu0 0.0
  %1733 = vmatmul.mubr.f32.gmra.mrb[0].mxu0 %v626
  %v1734 = vpop.f32.mrb[0].mxu0
  %v1735 = vadd.f32 %v1170, %v1734
  %v1736 = vpop.f32.mrb[0].mxu0
  %1737 = vmatprep.mubr.f32.mxu0 0.0
  %1738 = vmatmul.mubr.f32.gmra.mrb[0].mxu0 %v629
  %v1739 = vpop.f32.mrb[0].mxu0
  %v1740 = vadd.f32 %v1175, %v1739
  %v1741 = vpop.f32.mrb[0].mxu0
  %1742 = vmatprep.mubr.f32.mxu0 0.0
  %1743 = vmatmul.mubr.f32.gmra.mrb[0].mxu0 %v632
  %v1744 = vpop.f32.mrb[0].mxu0
  %v1745 = vadd.f32 %v1180, %v1744
  %v1746 = vpop.f32.mrb[0].mxu0
  %1747 = vmatprep.mubr.f32.mxu0 0.0
  %1748 = vmatmul.mubr.f32.gmra.mrb[0].mxu0 %v635
  %v1749 = vpop.f32.mrb[0].mxu0
  %v1750 = vadd.f32 %v1185, %v1749
  %v1751 = vpop.f32.mrb[0].mxu0
  %1752 = vmatprep.mubr.f32.mxu0 0.0
  %1753 = vmatmul.mubr.f32.gmra.mrb[0].mxu0 %v638
  %v1754 = vpop.f32.mrb[0].mxu0
  %v1755 = vadd.f32 %v1190, %v1754
  %v1756 = vpop.f32.mrb[0].mxu0
  %1757 = vmatprep.mubr.f32.mxu0 0.0
  %1758 = vmatmul.mubr.f32.gmra.mrb[0].mxu0 %v641
  %v1759 = vpop.f32.mrb[0].mxu0
  %v1760 = vadd.f32 %v1195, %v1759
  %v1761 = vpop.f32.mrb[0].mxu0
  %1762 = vmatprep.mubr.f32.mxu0 0.0
  %1763 = vmatmul.mubr.f32.gmra.mrb[0].mxu0 %v644
  %v1764 = vpop.f32.mrb[0].mxu0
  %v1765 = vadd.f32 %v1200, %v1764
  %v1766 = vpop.f32.mrb[0].mxu0
  %1767 = vmatprep.mubr.f32.mxu0 0.0
  %1768 = vmatmul.mubr.f32.gmra.mrb[0].mxu0 %v647
  %v1769 = vpop.f32.mrb[0].mxu0
  %v1770 = vadd.f32 %v1205, %v1769
  %v1771 = vpop.f32.mrb[0].mxu0
  %1772 = vmatprep.mubr.f32.mxu0 0.0
  %1773 = vmatmul.mubr.f32.gmra.mrb[0].mxu0 %v650
  %v1774 = vpop.f32.mrb[0].mxu0
  %v1775 = vadd.f32 %v1210, %v1774
  %v1776 = vpop.f32.mrb[0].mxu0
  %1777 = vmatprep.mubr.f32.mxu0 0.0
  %1778 = vmatmul.mubr.f32.gmra.mrb[0].mxu0 %v653
  %v1779 = vpop.f32.mrb[0].mxu0
  %v1780 = vadd.f32 %v1215, %v1779
  %v1781 = vpop.f32.mrb[0].mxu0
  %1782 = vmatprep.mubr.f32.mxu0 0.0
  %1783 = vmatmul.mubr.f32.gmra.mrb[0].mxu0 %v656
  %v1784 = vpop.f32.mrb[0].mxu0
  %v1785 = vadd.f32 %v1220, %v1784
  %v1786 = vpop.f32.mrb[0].mxu0
  %1787 = vdwg.mxu0
  %v1788 = vmax.f32 %v1290, 0.0
  %v1789 = vmax.f32 %v1295, 0.0
  %v1790 = vmax.f32 %v1300, 0.0
  %v1791 = vmax.f32 %v1305, 0.0
  %v1792 = vmax.f32 %v1310, 0.0
  %v1793 = vmax.f32 %v1315, 0.0
  %v1794 = vmax.f32 %v1320, 0.0
  %v1795 = vmax.f32 %v1325, 0.0
  %v1796 = vmax.f32 %v1330, 0.0
  %v1797 = vmax.f32 %v1335, 0.0
  %v1798 = vmax.f32 %v1340, 0.0
  %v1799 = vmax.f32 %v1345, 0.0
  %v1800 = vmax.f32 %v1350, 0.0
  %v1801 = vmax.f32 %v1355, 0.0
  %v1802 = vmax.f32 %v1360, 0.0
  %v1803 = vmax.f32 %v1365, 0.0
  %v1804 = vmax.f32 %v1370, 0.0
  %v1805 = vmax.f32 %v1375, 0.0
  %v1806 = vmax.f32 %v1380, 0.0
  %v1807 = vmax.f32 %v1385, 0.0
  %v1808 = vmax.f32 %v1390, 0.0
  %v1809 = vmax.f32 %v1395, 0.0
  %v1810 = vmax.f32 %v1400, 0.0
  %v1811 = vmax.f32 %v1405, 0.0
  %v1812 = vmax.f32 %v1410, 0.0
  %v1813 = vmax.f32 %v1415, 0.0
  %v1814 = vmax.f32 %v1420, 0.0
  %v1815 = vmax.f32 %v1425, 0.0
  %v1816 = vmax.f32 %v1430, 0.0
  %v1817 = vmax.f32 %v1435, 0.0
  %v1818 = vmax.f32 %v1440, 0.0
  %v1819 = vmax.f32 %v1445, 0.0
  %v1820 = vmax.f32 %v1450, 0.0
  %v1821 = vmax.f32 %v1455, 0.0
  %v1822 = vmax.f32 %v1460, 0.0
  %v1823 = vmax.f32 %v1465, 0.0
  %v1824 = vmax.f32 %v1470, 0.0
  %v1825 = vmax.f32 %v1475, 0.0
  %v1826 = vmax.f32 %v1480, 0.0
  %v1827 = vmax.f32 %v1485, 0.0
  %v1828 = vmax.f32 %v1490, 0.0
  %v1829 = vmax.f32 %v1495, 0.0
  %v1830 = vmax.f32 %v1500, 0.0
  %v1831 = vmax.f32 %v1505, 0.0
  %v1832 = vmax.f32 %v1510, 0.0
  %v1833 = vmax.f32 %v1515, 0.0
  %v1834 = vmax.f32 %v1520, 0.0
  %v1835 = vmax.f32 %v1525, 0.0
  %v1836 = vmax.f32 %v1530, 0.0
  %v1837 = vmax.f32 %v1535, 0.0
  %v1838 = vmax.f32 %v1540, 0.0
  %v1839 = vmax.f32 %v1545, 0.0
  %v1840 = vmax.f32 %v1550, 0.0
  %v1841 = vmax.f32 %v1555, 0.0
  %v1842 = vmax.f32 %v1560, 0.0
  %v1843 = vmax.f32 %v1565, 0.0
  %v1844 = vmax.f32 %v1570, 0.0
  %v1845 = vmax.f32 %v1575, 0.0
  %v1846 = vmax.f32 %v1580, 0.0
  %v1847 = vmax.f32 %v1585, 0.0
  %v1848 = vmax.f32 %v1590, 0.0
  %v1849 = vmax.f32 %v1595, 0.0
  %v1850 = vmax.f32 %v1600, 0.0
  %v1851 = vmax.f32 %v1605, 0.0
  %v1852 = vmax.f32 %v1610, 0.0
  %v1853 = vmax.f32 %v1615, 0.0
  %v1854 = vmax.f32 %v1620, 0.0
  %v1855 = vmax.f32 %v1625, 0.0
  %v1856 = vmax.f32 %v1630, 0.0
  %v1857 = vmax.f32 %v1635, 0.0
  %v1858 = vmax.f32 %v1640, 0.0
  %v1859 = vmax.f32 %v1645, 0.0
  %v1860 = vmax.f32 %v1650, 0.0
  %v1861 = vmax.f32 %v1655, 0.0
  %v1862 = vmax.f32 %v1660, 0.0
  %v1863 = vmax.f32 %v1665, 0.0
  %v1864 = vmax.f32 %v1670, 0.0
  %v1865 = vmax.f32 %v1675, 0.0
  %v1866 = vmax.f32 %v1680, 0.0
  %v1867 = vmax.f32 %v1685, 0.0
  %v1868 = vmax.f32 %v1690, 0.0
  %v1869 = vmax.f32 %v1695, 0.0
  %v1870 = vmax.f32 %v1700, 0.0
  %v1871 = vmax.f32 %v1705, 0.0
  %v1872 = vmax.f32 %v1710, 0.0
  %v1873 = vmax.f32 %v1715, 0.0
  %v1874 = vmax.f32 %v1720, 0.0
  %v1875 = vmax.f32 %v1725, 0.0
  %v1876 = vmax.f32 %v1730, 0.0
  %v1877 = vmax.f32 %v1735, 0.0
  %v1878 = vmax.f32 %v1740, 0.0
  %v1879 = vmax.f32 %v1745, 0.0
  %v1880 = vmax.f32 %v1750, 0.0
  %v1881 = vmax.f32 %v1755, 0.0
  %v1882 = vmax.f32 %v1760, 0.0
  %v1883 = vmax.f32 %v1765, 0.0
  %v1884 = vmax.f32 %v1770, 0.0
  %v1885 = vmax.f32 %v1775, 0.0
  %v1886 = vmax.f32 %v1780, 0.0
  %v1887 = vmax.f32 %v1785, 0.0
  %1888 = vst.msk [vmem:[%s3] sm:$0xff] %vm357, %v1788
  %1889 = vst.msk [vmem:[%s3 + $0x8] sm:$0xff] %vm357, %v1789
  %1890 = vst.msk [vmem:[%s3 + $0x10] sm:$0xff] %vm357, %v1790
  %1891 = vst.msk [vmem:[%s3 + $0x18] sm:$0xff] %vm357, %v1791
  %1892 = vst.msk [vmem:[%s3 + $0x20] sm:$0xff] %vm357, %v1792
  %1893 = vst.msk [vmem:[%s3 + $0x28] sm:$0xff] %vm357, %v1793
  %1894 = vst.msk [vmem:[%s3 + $0x30] sm:$0xff] %vm357, %v1794
  %1895 = vst.msk [vmem:[%s3 + $0x38] sm:$0xff] %vm357, %v1795
  %1896 = vst.msk [vmem:[%s3 + $0x40] sm:$0xff] %vm357, %v1796
  %1897 = vst.msk [vmem:[%s3 + $0x48] sm:$0xff] %vm357, %v1797
  %1898 = vst.msk [vmem:[%s3 + $0x50] sm:$0xff] %vm357, %v1798
  %1899 = vst.msk [vmem:[%s3 + $0x58] sm:$0xff] %vm357, %v1799
  %1900 = vst.msk [vmem:[%s3 + $0x60] sm:$0xff] %vm357, %v1800
  %1901 = vst.msk [vmem:[%s3 + $0x68] sm:$0xff] %vm357, %v1801
  %1902 = vst.msk [vmem:[%s3 + $0x70] sm:$0xff] %vm357, %v1802
  %1903 = vst.msk [vmem:[%s3 + $0x78] sm:$0xff] %vm357, %v1803
  %1904 = vst.msk [vmem:[%s3 + $0x80] sm:$0xff] %vm357, %v1804
  %1905 = vst.msk [vmem:[%s3 + $0x88] sm:$0xff] %vm357, %v1805
  %1906 = vst.msk [vmem:[%s3 + $0x90] sm:$0xff] %vm357, %v1806
  %1907 = vst.msk [vmem:[%s3 + $0x98] sm:$0xff] %vm357, %v1807
  %1908 = vst.msk [vmem:[%s3 + $0xa0] sm:$0xff] %vm357, %v1808
  %1909 = vst.msk [vmem:[%s3 + $0xa8] sm:$0xff] %vm357, %v1809
  %1910 = vst.msk [vmem:[%s3 + $0xb0] sm:$0xff] %vm357, %v1810
  %1911 = vst.msk [vmem:[%s3 + $0xb8] sm:$0xff] %vm357, %v1811
  %1912 = vst.msk [vmem:[%s3 + $0xc0] sm:$0xff] %vm357, %v1812
  %1913 = vst.msk [vmem:[%s3 + $0xc8] sm:$0xff] %vm357, %v1813
  %1914 = vst.msk [vmem:[%s3 + $0xd0] sm:$0xff] %vm357, %v1814
  %1915 = vst.msk [vmem:[%s3 + $0xd8] sm:$0xff] %vm357, %v1815
  %1916 = vst.msk [vmem:[%s3 + $0xe0] sm:$0xff] %vm357, %v1816
  %1917 = vst.msk [vmem:[%s3 + $0xe8] sm:$0xff] %vm357, %v1817
  %1918 = vst.msk [vmem:[%s3 + $0xf0] sm:$0xff] %vm357, %v1818
  %1919 = vst.msk [vmem:[%s3 + $0xf8] sm:$0xff] %vm357, %v1819
  %1920 = vst.msk [vmem:[%s3 + $0x100] sm:$0xff] %vm357, %v1820
  %1921 = vst.msk [vmem:[%s3 + $0x108] sm:$0xff] %vm357, %v1821
  %1922 = vst.msk [vmem:[%s3 + $0x110] sm:$0xff] %vm357, %v1822
  %1923 = vst.msk [vmem:[%s3 + $0x118] sm:$0xff] %vm357, %v1823
  %1924 = vst.msk [vmem:[%s3 + $0x120] sm:$0xff] %vm357, %v1824
  %1925 = vst.msk [vmem:[%s3 + $0x128] sm:$0xff] %vm357, %v1825
  %1926 = vst.msk [vmem:[%s3 + $0x130] sm:$0xff] %vm357, %v1826
  %1927 = vst.msk [vmem:[%s3 + $0x138] sm:$0xff] %vm357, %v1827
  %1928 = vst.msk [vmem:[%s3 + $0x140] sm:$0xff] %vm357, %v1828
  %1929 = vst.msk [vmem:[%s3 + $0x148] sm:$0xff] %vm357, %v1829
  %1930 = vst.msk [vmem:[%s3 + $0x150] sm:$0xff] %vm357, %v1830
  %1931 = vst.msk [vmem:[%s3 + $0x158] sm:$0xff] %vm357, %v1831
  %1932 = vst.msk [vmem:[%s3 + $0x160] sm:$0xff] %vm357, %v1832
  %1933 = vst.msk [vmem:[%s3 + $0x168] sm:$0xff] %vm357, %v1833
  %1934 = vst.msk [vmem:[%s3 + $0x170] sm:$0xff] %vm357, %v1834
  %1935 = vst.msk [vmem:[%s3 + $0x178] sm:$0xff] %vm357, %v1835
  %1936 = vst.msk [vmem:[%s3 + $0x180] sm:$0xff] %vm357, %v1836
  %1937 = vst.msk [vmem:[%s3 + $0x188] sm:$0xff] %vm357, %v1837
  %1938 = vst.msk [vmem:[%s3 + $0x190] sm:$0xff] %vm357, %v1838
  %1939 = vst.msk [vmem:[%s3 + $0x198] sm:$0xff] %vm357, %v1839
  %1940 = vst.msk [vmem:[%s3 + $0x1a0] sm:$0xff] %vm357, %v1840
  %1941 = vst.msk [vmem:[%s3 + $0x1a8] sm:$0xff] %vm357, %v1841
  %1942 = vst.msk [vmem:[%s3 + $0x1b0] sm:$0xff] %vm357, %v1842
  %1943 = vst.msk [vmem:[%s3 + $0x1b8] sm:$0xff] %vm357, %v1843
  %1944 = vst.msk [vmem:[%s3 + $0x1c0] sm:$0xff] %vm357, %v1844
  %1945 = vst.msk [vmem:[%s3 + $0x1c8] sm:$0xff] %vm357, %v1845
  %1946 = vst.msk [vmem:[%s3 + $0x1d0] sm:$0xff] %vm357, %v1846
  %1947 = vst.msk [vmem:[%s3 + $0x1d8] sm:$0xff] %vm357, %v1847
  %1948 = vst.msk [vmem:[%s3 + $0x1e0] sm:$0xff] %vm357, %v1848
  %1949 = vst.msk [vmem:[%s3 + $0x1e8] sm:$0xff] %vm357, %v1849
  %1950 = vst.msk [vmem:[%s3 + $0x1f0] sm:$0xff] %vm357, %v1850
  %1951 = vst.msk [vmem:[%s3 + $0x1f8] sm:$0xff] %vm357, %v1851
  %1952 = vst.msk [vmem:[%s3 + $0x200] sm:$0xff] %vm357, %v1852
  %1953 = vst.msk [vmem:[%s3 + $0x208] sm:$0xff] %vm357, %v1853
  %1954 = vst.msk [vmem:[%s3 + $0x210] sm:$0xff] %vm357, %v1854
  %1955 = vst.msk [vmem:[%s3 + $0x218] sm:$0xff] %vm357, %v1855
  %1956 = vst.msk [vmem:[%s3 + $0x220] sm:$0xff] %vm357, %v1856
  %1957 = vst.msk [vmem:[%s3 + $0x228] sm:$0xff] %vm357, %v1857
  %1958 = vst.msk [vmem:[%s3 + $0x230] sm:$0xff] %vm357, %v1858
  %1959 = vst.msk [vmem:[%s3 + $0x238] sm:$0xff] %vm357, %v1859
  %1960 = vst.msk [vmem:[%s3 + $0x240] sm:$0xff] %vm357, %v1860
  %1961 = vst.msk [vmem:[%s3 + $0x248] sm:$0xff] %vm357, %v1861
  %1962 = vst.msk [vmem:[%s3 + $0x250] sm:$0xff] %vm357, %v1862
  %1963 = vst.msk [vmem:[%s3 + $0x258] sm:$0xff] %vm357, %v1863
  %1964 = vst.msk [vmem:[%s3 + $0x260] sm:$0xff] %vm357, %v1864
  %1965 = vst.msk [vmem:[%s3 + $0x268] sm:$0xff] %vm357, %v1865
  %1966 = vst.msk [vmem:[%s3 + $0x270] sm:$0xff] %vm357, %v1866
  %1967 = vst.msk [vmem:[%s3 + $0x278] sm:$0xff] %vm357, %v1867
  %1968 = vst.msk [vmem:[%s3 + $0x280] sm:$0xff] %vm357, %v1868
  %1969 = vst.msk [vmem:[%s3 + $0x288] sm:$0xff] %vm357, %v1869
  %1970 = vst.msk [vmem:[%s3 + $0x290] sm:$0xff] %vm357, %v1870
  %1971 = vst.msk [vmem:[%s3 + $0x298] sm:$0xff] %vm357, %v1871
  %1972 = vst.msk [vmem:[%s3 + $0x2a0] sm:$0xff] %vm357, %v1872
  %1973 = vst.msk [vmem:[%s3 + $0x2a8] sm:$0xff] %vm357, %v1873
  %1974 = vst.msk [vmem:[%s3 + $0x2b0] sm:$0xff] %vm357, %v1874
  %1975 = vst.msk [vmem:[%s3 + $0x2b8] sm:$0xff] %vm357, %v1875
  %1976 = vst.msk [vmem:[%s3 + $0x2c0] sm:$0xff] %vm357, %v1876
  %1977 = vst.msk [vmem:[%s3 + $0x2c8] sm:$0xff] %vm357, %v1877
  %1978 = vst.msk [vmem:[%s3 + $0x2d0] sm:$0xff] %vm357, %v1878
  %1979 = vst.msk [vmem:[%s3 + $0x2d8] sm:$0xff] %vm357, %v1879
  %1980 = vst.msk [vmem:[%s3 + $0x2e0] sm:$0xff] %vm357, %v1880
  %1981 = vst.msk [vmem:[%s3 + $0x2e8] sm:$0xff] %vm357, %v1881
  %1982 = vst.msk [vmem:[%s3 + $0x2f0] sm:$0xff] %vm357, %v1882
  %1983 = vst.msk [vmem:[%s3 + $0x2f8] sm:$0xff] %vm357, %v1883
  %1984 = vst.msk [vmem:[%s3 + $0x300] sm:$0xff] %vm357, %v1884
  %1985 = vst.msk [vmem:[%s3 + $0x308] sm:$0xff] %vm357, %v1885
  %1986 = vst.msk [vmem:[%s3 + $0x310] sm:$0xff] %vm357, %v1886
  %1987 = vst.msk [vmem:[%s3 + $0x318] sm:$0xff] %vm357, %v1887
  // Predicated region
  $region14: #{forward.10} parent=0 // pred_check
    _
  $region15: #{forward.10} parent=0 // pred_check_branch
    %1989 = sbr.rel (0) target = $region17
  $region16: #{forward.10} parent=0 // pred_region
    _
  $region17: #{forward.10} parent=0 // pred_fallthru
    _
  // Predicated region
  $region18: #{forward.10} parent=0 // pred_check
    _
  $region19: #{forward.10} parent=0 // pred_check_branch
    %1991 = sbr.rel (0) target = $region21
  $region20: #{forward.10} parent=0 // pred_region
    _
  $region21: #{forward.10} parent=0 // pred_fallthru
    _

// kernel: forward.11
$region0: #{forward.11}
  #allocation0 [shape = 'u32[]', space=smem, size = 0x4, offset = 0x4, fixed_abs, tag = 'smem constant byte address 0x4 - core index']
  #allocation1 [shape = 'u32[144,128]{1,0:T(1,128)}', space=vmem, size = 0x12000, scoped, tag = 'internal scratch']
  %s0 = inlined_call_operand.vmem [shape: f32[200,288], index: 0, kind: input, shape index: {}]
  %s1 = inlined_call_operand.vmem [shape: f32[288,16], index: 1, kind: input, shape index: {}]
  %s2 = inlined_call_operand.vmem [shape: f32[1,16], index: 2, kind: input, shape index: {}]
  %s3 = inlined_call_operand.vmem [shape: f32[200,16], index: 3, kind: output, shape index: {}]
  %s4 = sld [smem:[#allocation0]]
  $region22: #{forward.11} parent=0
    _
  %s6 = ssub.s32 1, %s4
  %s7 = scalar_select 0, %s6, %s4
  // Predicated region
  $region2: #{forward.11} parent=0 // pred_check
    _
  $region3: #{forward.11} parent=0 // pred_check_branch
    %9 = sbr.rel (0) target = $region5
  $region4: #{forward.11} parent=0 // pred_region
    _
  $region5: #{forward.11} parent=0 // pred_fallthru
    _
  // Predicated region
  $region6: #{forward.11} parent=0 // pred_check
    _
  $region7: #{forward.11} parent=0 // pred_check_branch
    %11 = sbr.rel (0) target = $region9
  $region8: #{forward.11} parent=0 // pred_region
    _
  $region9: #{forward.11} parent=0 // pred_fallthru
    _
  // Predicated region
  $region10: #{forward.11} parent=0 // pred_check
    _
  $region11: #{forward.11} parent=0 // pred_check_branch
    %13 = sbr.rel (0) target = $region13
  $region12: #{forward.11} parent=0 // pred_region
    _
  $region13: #{forward.11} parent=0 // pred_fallthru
    _
  %v14 = vld [vmem:[%s0] sm:$0xff]
  %v15 = vld [vmem:[%s0 + $0x8] sm:$0xff]
  %v16 = vld [vmem:[%s0 + $0x10] sm:$0xff]
  %v17 = vld [vmem:[%s0 + $0x18] sm:$0xff]
  %v18 = vld [vmem:[%s0 + $0x20] sm:$0xff]
  %v19 = vld [vmem:[%s0 + $0x28] sm:$0xff]
  %v20 = vld [vmem:[%s0 + $0x30] sm:$0xff]
  %v21 = vld [vmem:[%s0 + $0x38] sm:$0xff]
  %v22 = vld [vmem:[%s0 + $0x40] sm:$0xff]
  %v23 = vld [vmem:[%s0 + $0x48] sm:$0xff]
  %v24 = vld [vmem:[%s0 + $0x50] sm:$0xff]
  %v25 = vld [vmem:[%s0 + $0x58] sm:$0xff]
  %v26 = vld [vmem:[%s0 + $0x60] sm:$0xff]
  %v27 = vld [vmem:[%s0 + $0x68] sm:$0xff]
  %v28 = vld [vmem:[%s0 + $0x70] sm:$0xff]
  %v29 = vld [vmem:[%s0 + $0x78] sm:$0xff]
  %v30 = vld [vmem:[%s0 + $0x80] sm:$0xff]
  %v31 = vld [vmem:[%s0 + $0x88] sm:$0xff]
  %v32 = vld [vmem:[%s0 + $0x90] sm:$0xff]
  %v33 = vld [vmem:[%s0 + $0x98] sm:$0xff]
  %v34 = vld [vmem:[%s0 + $0xa0] sm:$0xff]
  %v35 = vld [vmem:[%s0 + $0xa8] sm:$0xff]
  %v36 = vld [vmem:[%s0 + $0xb0] sm:$0xff]
  %v37 = vld [vmem:[%s0 + $0xb8] sm:$0xff]
  %v38 = vld [vmem:[%s0 + $0xc0] sm:$0xff]
  %v39 = vld [vmem:[%s0 + $0xc8] sm:$0xff]
  %v40 = vld [vmem:[%s0 + $0xd0] sm:$0xff]
  %v41 = vld [vmem:[%s0 + $0xd8] sm:$0xff]
  %v42 = vld [vmem:[%s0 + $0xe0] sm:$0xff]
  %v43 = vld [vmem:[%s0 + $0xe8] sm:$0xff]
  %v44 = vld [vmem:[%s0 + $0xf0] sm:$0xff]
  %v45 = vld [vmem:[%s0 + $0xf8] sm:$0xff]
  %v46 = vld [vmem:[%s0 + $0x100] sm:$0xff]
  %v47 = vld [vmem:[%s0 + $0x108] sm:$0xff]
  %v48 = vld [vmem:[%s0 + $0x110] sm:$0xff]
  %v49 = vld [vmem:[%s0 + $0x118] sm:$0xff]
  %v50 = vld [vmem:[%s0 + $0x120] sm:$0xff]
  %v51 = vld [vmem:[%s0 + $0x128] sm:$0xff]
  %v52 = vld [vmem:[%s0 + $0x130] sm:$0xff]
  %v53 = vld [vmem:[%s0 + $0x138] sm:$0xff]
  %v54 = vld [vmem:[%s0 + $0x140] sm:$0xff]
  %v55 = vld [vmem:[%s0 + $0x148] sm:$0xff]
  %v56 = vld [vmem:[%s0 + $0x150] sm:$0xff]
  %v57 = vld [vmem:[%s0 + $0x158] sm:$0xff]
  %v58 = vld [vmem:[%s0 + $0x160] sm:$0xff]
  %v59 = vld [vmem:[%s0 + $0x168] sm:$0xff]
  %v60 = vld [vmem:[%s0 + $0x170] sm:$0xff]
  %v61 = vld [vmem:[%s0 + $0x178] sm:$0xff]
  %v62 = vld [vmem:[%s0 + $0x180] sm:$0xff]
  %v63 = vld [vmem:[%s0 + $0x188] sm:$0xff]
  %v64 = vld [vmem:[%s0 + $0x190] sm:$0xff]
  %v65 = vld [vmem:[%s0 + $0x198] sm:$0xff]
  %v66 = vld [vmem:[%s0 + $0x1a0] sm:$0xff]
  %v67 = vld [vmem:[%s0 + $0x1a8] sm:$0xff]
  %v68 = vld [vmem:[%s0 + $0x1b0] sm:$0xff]
  %v69 = vld [vmem:[%s0 + $0x1b8] sm:$0xff]
  %v70 = vld [vmem:[%s0 + $0x1c0] sm:$0xff]
  %v71 = vld [vmem:[%s0 + $0x1c8] sm:$0xff]
  %v72 = vld [vmem:[%s0 + $0x1d0] sm:$0xff]
  %v73 = vld [vmem:[%s0 + $0x1d8] sm:$0xff]
  %v74 = vld [vmem:[%s0 + $0x1e0] sm:$0xff]
  %v75 = vld [vmem:[%s0 + $0x1e8] sm:$0xff]
  %v76 = vld [vmem:[%s0 + $0x1f0] sm:$0xff]
  %v77 = vld [vmem:[%s0 + $0x1f8] sm:$0xff]
  %v78 = vld [vmem:[%s0 + $0x200] sm:$0xff]
  %v79 = vld [vmem:[%s0 + $0x208] sm:$0xff]
  %v80 = vld [vmem:[%s0 + $0x210] sm:$0xff]
  %v81 = vld [vmem:[%s0 + $0x218] sm:$0xff]
  %v82 = vld [vmem:[%s0 + $0x220] sm:$0xff]
  %v83 = vld [vmem:[%s0 + $0x228] sm:$0xff]
  %v84 = vld [vmem:[%s0 + $0x230] sm:$0xff]
  %v85 = vld [vmem:[%s0 + $0x238] sm:$0xff]
  %v86 = vld [vmem:[%s0 + $0x240] sm:$0xff]
  %v87 = vld [vmem:[%s0 + $0x248] sm:$0xff]
  %v88 = vld [vmem:[%s0 + $0x250] sm:$0xff]
  %v89 = vld [vmem:[%s1] sm:$0xff]
  %v90 = vld [vmem:[%s1 + $0x8] sm:$0xff]
  %v91 = vld [vmem:[%s1 + $0x10] sm:$0xff]
  %v92 = vld [vmem:[%s1 + $0x18] sm:$0xff]
  %v93 = vld [vmem:[%s1 + $0x20] sm:$0xff]
  %v94 = vld [vmem:[%s1 + $0x28] sm:$0xff]
  %v95 = vld [vmem:[%s1 + $0x30] sm:$0xff]
  %v96 = vld [vmem:[%s1 + $0x38] sm:$0xff]
  %v97 = vld [vmem:[%s1 + $0x40] sm:$0xff]
  %v98 = vld [vmem:[%s1 + $0x48] sm:$0xff]
  %v99 = vld [vmem:[%s1 + $0x50] sm:$0xff]
  %v100 = vld [vmem:[%s1 + $0x58] sm:$0xff]
  %v101 = vld [vmem:[%s1 + $0x60] sm:$0xff]
  %v102 = vld [vmem:[%s1 + $0x68] sm:$0xff]
  %v103 = vld [vmem:[%s1 + $0x70] sm:$0xff]
  %v104 = vld [vmem:[%s1 + $0x78] sm:$0xff]
  %v105 = vld [vmem:[%s1 + $0x80] sm:$0xff]
  %v106 = vld [vmem:[%s1 + $0x88] sm:$0xff]
  %v107 = vld [vmem:[%s1 + $0x90] sm:$0xff]
  %v108 = vld [vmem:[%s1 + $0x98] sm:$0xff]
  %v109 = vld [vmem:[%s1 + $0xa0] sm:$0xff]
  %v110 = vld [vmem:[%s1 + $0xa8] sm:$0xff]
  %v111 = vld [vmem:[%s1 + $0xb0] sm:$0xff]
  %v112 = vld [vmem:[%s1 + $0xb8] sm:$0xff]
  %v113 = vld [vmem:[%s1 + $0xc0] sm:$0xff]
  %v114 = vld [vmem:[%s1 + $0xc8] sm:$0xff]
  %v115 = vld [vmem:[%s1 + $0xd0] sm:$0xff]
  %v116 = vld [vmem:[%s1 + $0xd8] sm:$0xff]
  %v117 = vld [vmem:[%s1 + $0xe0] sm:$0xff]
  %v118 = vld [vmem:[%s1 + $0xe8] sm:$0xff]
  %v119 = vld [vmem:[%s1 + $0xf0] sm:$0xff]
  %v120 = vld [vmem:[%s1 + $0xf8] sm:$0xff]
  %v121 = vld [vmem:[%s1 + $0x100] sm:$0xff]
  %v122 = vld [vmem:[%s1 + $0x108] sm:$0xff]
  %v123 = vld [vmem:[%s1 + $0x110] sm:$0xff]
  %v124 = vld [vmem:[%s1 + $0x118] sm:$0xff]
  %v125 = vld [vmem:[%s2] sm:$0x1]
  %v127 = vlaneseq
  %v128 = vshrl.u32 %v127, 7
  %v129 = vsub.s32 0, %v128
  %v130 = vrot.slane %v125, %v129
  %vm132 = vcmask 261120
  %v134 = vsel %vm132, %v16, 0
  %v137 = vsel %vm132, %v19, 0
  %v140 = vsel %vm132, %v22, 0
  %v143 = vsel %vm132, %v25, 0
  %v146 = vsel %vm132, %v28, 0
  %v149 = vsel %vm132, %v31, 0
  %v152 = vsel %vm132, %v34, 0
  %v155 = vsel %vm132, %v37, 0
  %v158 = vsel %vm132, %v40, 0
  %v161 = vsel %vm132, %v43, 0
  %v164 = vsel %vm132, %v46, 0
  %v167 = vsel %vm132, %v49, 0
  %v170 = vsel %vm132, %v52, 0
  %v173 = vsel %vm132, %v55, 0
  %v176 = vsel %vm132, %v58, 0
  %v179 = vsel %vm132, %v61, 0
  %v182 = vsel %vm132, %v64, 0
  %v185 = vsel %vm132, %v67, 0
  %v188 = vsel %vm132, %v70, 0
  %v191 = vsel %vm132, %v73, 0
  %v194 = vsel %vm132, %v76, 0
  %v197 = vsel %vm132, %v79, 0
  %v200 = vsel %vm132, %v82, 0
  %v203 = vsel %vm132, %v85, 0
  %v206 = vsel %vm132, %v88, 0
  %208 = vmatprep.subr.mxu0 0.0
  %209 = vmatpush1.msra.mxu0 %v89
  %210 = vmatprep.subr.mxu0 0.0
  %211 = vmatpush1.msra.mxu0 %v90
  %212 = vmatprep.subr.mxu0 0.0
  %213 = vmatpush1.msra.mxu0 %v91
  %214 = vmatprep.subr.mxu0 0.0
  %215 = vmatpush1.msra.mxu0 %v92
  %216 = vmatprep.subr.mxu0 0.0
  %217 = vmatpush1.msra.mxu0 %v93
  %218 = vmatprep.subr.mxu0 0.0
  %219 = vmatpush1.msra.mxu0 %v94
  %220 = vmatprep.subr.mxu0 0.0
  %221 = vmatpush1.msra.mxu0 %v95
  %222 = vmatprep.subr.mxu0 0.0
  %223 = vmatpush1.msra.mxu0 %v96
  %224 = vmatprep.subr.mxu0 0.0
  %225 = vmatpush1.msra.mxu0 %v97
  %226 = vmatprep.subr.mxu0 0.0
  %227 = vmatpush1.msra.mxu0 %v98
  %228 = vmatprep.subr.mxu0 0.0
  %229 = vmatpush1.msra.mxu0 %v99
  %230 = vmatprep.subr.mxu0 0.0
  %231 = vmatpush1.msra.mxu0 %v100
  %232 = vmatprep.subr.mxu0 0.0
  %233 = vmatpush1.msra.mxu0 %v101
  %234 = vmatprep.subr.mxu0 0.0
  %235 = vmatpush1.msra.mxu0 %v102
  %236 = vmatprep.subr.mxu0 0.0
  %237 = vmatpush1.msra.mxu0 %v103
  %238 = vmatprep.subr.mxu0 0.0
  %239 = vmatpush1.msra.mxu0 %v104
  %240 = vmatprep.subr.mxu0 0.0
  %241 = vmatpush1.msra.mxu0 %v105
  %242 = vmatprep.subr.mxu0 0.0
  %243 = vmatpush1.msra.mxu0 %v106
  %244 = vmatprep.subr.mxu0 0.0
  %245 = vmatpush1.msra.mxu0 %v107
  %246 = vmatprep.subr.mxu0 0.0
  %247 = vmatpush1.msra.mxu0 %v108
  %248 = vmatprep.subr.mxu0 0.0
  %249 = vmatpush1.msra.mxu0 %v109
  %250 = vmatprep.subr.mxu0 0.0
  %251 = vmatpush1.msra.mxu0 %v110
  %252 = vmatprep.subr.mxu0 0.0
  %253 = vmatpush1.msra.mxu0 %v111
  %254 = vmatprep.subr.mxu0 0.0
  %255 = vmatpush1.msra.mxu0 %v112
  %256 = vmatprep.subr.mxu0 0.0
  %257 = vmatpush1.msra.mxu0 %v113
  %258 = vmatprep.subr.mxu0 0.0
  %259 = vmatpush1.msra.mxu0 %v114
  %260 = vmatprep.subr.mxu0 0.0
  %261 = vmatpush1.msra.mxu0 %v115
  %262 = vmatprep.subr.mxu0 0.0
  %263 = vmatpush1.msra.mxu0 %v116
  %264 = vmatprep.subr.mxu0 0.0
  %265 = vmatpush1.msra.mxu0 %v117
  %266 = vmatprep.subr.mxu0 0.0
  %267 = vmatpush1.msra.mxu0 %v118
  %268 = vmatprep.subr.mxu0 0.0
  %269 = vmatpush1.msra.mxu0 %v119
  %270 = vmatprep.subr.mxu0 0.0
  %271 = vmatpush1.msra.mxu0 %v120
  %272 = vmatprep.mubr.f32.mxu0 %v15
  %273 = vmatmul.mubr.f32.gmra.mrb[0].mxu0 %v14
  %v274 = vpop.f32.mrb[0].mxu0
  %v275 = vadd.f32 %v130, %v274
  %v276 = vpop.f32.mrb[0].mxu0
  %277 = vmatprep.mubr.f32.mxu0 %v18
  %278 = vmatmul.mubr.f32.gmra.mrb[0].mxu0 %v17
  %v279 = vpop.f32.mrb[0].mxu0
  %v280 = vadd.f32 %v130, %v279
  %v281 = vpop.f32.mrb[0].mxu0
  %282 = vmatprep.mubr.f32.mxu0 %v21
  %283 = vmatmul.mubr.f32.gmra.mrb[0].mxu0 %v20
  %v284 = vpop.f32.mrb[0].mxu0
  %v285 = vadd.f32 %v130, %v284
  %v286 = vpop.f32.mrb[0].mxu0
  %287 = vmatprep.mubr.f32.mxu0 %v24
  %288 = vmatmul.mubr.f32.gmra.mrb[0].mxu0 %v23
  %v289 = vpop.f32.mrb[0].mxu0
  %v290 = vadd.f32 %v130, %v289
  %v291 = vpop.f32.mrb[0].mxu0
  %292 = vmatprep.mubr.f32.mxu0 %v27
  %293 = vmatmul.mubr.f32.gmra.mrb[0].mxu0 %v26
  %v294 = vpop.f32.mrb[0].mxu0
  %v295 = vadd.f32 %v130, %v294
  %v296 = vpop.f32.mrb[0].mxu0
  %297 = vmatprep.mubr.f32.mxu0 %v30
  %298 = vmatmul.mubr.f32.gmra.mrb[0].mxu0 %v29
  %v299 = vpop.f32.mrb[0].mxu0
  %v300 = vadd.f32 %v130, %v299
  %v301 = vpop.f32.mrb[0].mxu0
  %302 = vmatprep.mubr.f32.mxu0 %v33
  %303 = vmatmul.mubr.f32.gmra.mrb[0].mxu0 %v32
  %v304 = vpop.f32.mrb[0].mxu0
  %v305 = vadd.f32 %v130, %v304
  %v306 = vpop.f32.mrb[0].mxu0
  %307 = vmatprep.mubr.f32.mxu0 %v36
  %308 = vmatmul.mubr.f32.gmra.mrb[0].mxu0 %v35
  %v309 = vpop.f32.mrb[0].mxu0
  %v310 = vadd.f32 %v130, %v309
  %v311 = vpop.f32.mrb[0].mxu0
  %312 = vmatprep.mubr.f32.mxu0 %v39
  %313 = vmatmul.mubr.f32.gmra.mrb[0].mxu0 %v38
  %v314 = vpop.f32.mrb[0].mxu0
  %v315 = vadd.f32 %v130, %v314
  %v316 = vpop.f32.mrb[0].mxu0
  %317 = vmatprep.mubr.f32.mxu0 %v42
  %318 = vmatmul.mubr.f32.gmra.mrb[0].mxu0 %v41
  %v319 = vpop.f32.mrb[0].mxu0
  %v320 = vadd.f32 %v130, %v319
  %v321 = vpop.f32.mrb[0].mxu0
  %322 = vmatprep.mubr.f32.mxu0 %v45
  %323 = vmatmul.mubr.f32.gmra.mrb[0].mxu0 %v44
  %v324 = vpop.f32.mrb[0].mxu0
  %v325 = vadd.f32 %v130, %v324
  %v326 = vpop.f32.mrb[0].mxu0
  %327 = vmatprep.mubr.f32.mxu0 %v48
  %328 = vmatmul.mubr.f32.gmra.mrb[0].mxu0 %v47
  %v329 = vpop.f32.mrb[0].mxu0
  %v330 = vadd.f32 %v130, %v329
  %v331 = vpop.f32.mrb[0].mxu0
  %332 = vmatprep.mubr.f32.mxu0 %v51
  %333 = vmatmul.mubr.f32.gmra.mrb[0].mxu0 %v50
  %v334 = vpop.f32.mrb[0].mxu0
  %v335 = vadd.f32 %v130, %v334
  %v336 = vpop.f32.mrb[0].mxu0
  %337 = vmatprep.mubr.f32.mxu0 %v54
  %338 = vmatmul.mubr.f32.gmra.mrb[0].mxu0 %v53
  %v339 = vpop.f32.mrb[0].mxu0
  %v340 = vadd.f32 %v130, %v339
  %v341 = vpop.f32.mrb[0].mxu0
  %342 = vmatprep.mubr.f32.mxu0 %v57
  %343 = vmatmul.mubr.f32.gmra.mrb[0].mxu0 %v56
  %v344 = vpop.f32.mrb[0].mxu0
  %v345 = vadd.f32 %v130, %v344
  %v346 = vpop.f32.mrb[0].mxu0
  %347 = vmatprep.mubr.f32.mxu0 %v60
  %348 = vmatmul.mubr.f32.gmra.mrb[0].mxu0 %v59
  %v349 = vpop.f32.mrb[0].mxu0
  %v350 = vadd.f32 %v130, %v349
  %v351 = vpop.f32.mrb[0].mxu0
  %352 = vmatprep.mubr.f32.mxu0 %v63
  %353 = vmatmul.mubr.f32.gmra.mrb[0].mxu0 %v62
  %v354 = vpop.f32.mrb[0].mxu0
  %v355 = vadd.f32 %v130, %v354
  %v356 = vpop.f32.mrb[0].mxu0
  %357 = vmatprep.mubr.f32.mxu0 %v66
  %358 = vmatmul.mubr.f32.gmra.mrb[0].mxu0 %v65
  %v359 = vpop.f32.mrb[0].mxu0
  %v360 = vadd.f32 %v130, %v359
  %v361 = vpop.f32.mrb[0].mxu0
  %362 = vmatprep.mubr.f32.mxu0 %v69
  %363 = vmatmul.mubr.f32.gmra.mrb[0].mxu0 %v68
  %v364 = vpop.f32.mrb[0].mxu0
  %v365 = vadd.f32 %v130, %v364
  %v366 = vpop.f32.mrb[0].mxu0
  %367 = vmatprep.mubr.f32.mxu0 %v72
  %368 = vmatmul.mubr.f32.gmra.mrb[0].mxu0 %v71
  %v369 = vpop.f32.mrb[0].mxu0
  %v370 = vadd.f32 %v130, %v369
  %v371 = vpop.f32.mrb[0].mxu0
  %372 = vmatprep.mubr.f32.mxu0 %v75
  %373 = vmatmul.mubr.f32.gmra.mrb[0].mxu0 %v74
  %v374 = vpop.f32.mrb[0].mxu0
  %v375 = vadd.f32 %v130, %v374
  %v376 = vpop.f32.mrb[0].mxu0
  %377 = vmatprep.mubr.f32.mxu0 %v78
  %378 = vmatmul.mubr.f32.gmra.mrb[0].mxu0 %v77
  %v379 = vpop.f32.mrb[0].mxu0
  %v380 = vadd.f32 %v130, %v379
  %v381 = vpop.f32.mrb[0].mxu0
  %382 = vmatprep.mubr.f32.mxu0 %v81
  %383 = vmatmul.mubr.f32.gmra.mrb[0].mxu0 %v80
  %v384 = vpop.f32.mrb[0].mxu0
  %v385 = vadd.f32 %v130, %v384
  %v386 = vpop.f32.mrb[0].mxu0
  %387 = vmatprep.mubr.f32.mxu0 %v84
  %388 = vmatmul.mubr.f32.gmra.mrb[0].mxu0 %v83
  %v389 = vpop.f32.mrb[0].mxu0
  %v390 = vadd.f32 %v130, %v389
  %v391 = vpop.f32.mrb[0].mxu0
  %392 = vmatprep.mubr.f32.mxu0 %v87
  %393 = vmatmul.mubr.f32.gmra.mrb[0].mxu0 %v86
  %v394 = vpop.f32.mrb[0].mxu0
  %v395 = vadd.f32 %v130, %v394
  %v396 = vpop.f32.mrb[0].mxu0
  %397 = vdwg.mxu0
  %398 = vmatprep.subr.mxu0 0.0
  %399 = vmatpush1.msra.mxu0 %v121
  %400 = vmatprep.subr.mxu0 0.0
  %401 = vmatpush1.msra.mxu0 %v122
  %402 = vmatprep.subr.mxu0 0.0
  %403 = vmatpush1.msra.mxu0 %v123
  %404 = vmatprep.subr.mxu0 0.0
  %405 = vmatpush1.msra.mxu0 %v124
  %406 = vmatprep.subr.mxu0 0.0
  %407 = vmatpush1.msra.mxu0 0.0
  %408 = vmatprep.subr.mxu0 0.0
  %409 = vmatpush1.msra.mxu0 0.0
  %410 = vmatprep.subr.mxu0 0.0
  %411 = vmatpush1.msra.mxu0 0.0
  %412 = vmatprep.subr.mxu0 0.0
  %413 = vmatpush1.msra.mxu0 0.0
  %414 = vmatprep.subr.mxu0 0.0
  %415 = vmatpush1.msra.mxu0 0.0
  %416 = vmatprep.subr.mxu0 0.0
  %417 = vmatpush1.msra.mxu0 0.0
  %418 = vmatprep.subr.mxu0 0.0
  %419 = vmatpush1.msra.mxu0 0.0
  %420 = vmatprep.subr.mxu0 0.0
  %421 = vmatpush1.msra.mxu0 0.0
  %422 = vmatprep.subr.mxu0 0.0
  %423 = vmatpush1.msra.mxu0 0.0
  %424 = vmatprep.subr.mxu0 0.0
  %425 = vmatpush1.msra.mxu0 0.0
  %426 = vmatprep.subr.mxu0 0.0
  %427 = vmatpush1.msra.mxu0 0.0
  %428 = vmatprep.subr.mxu0 0.0
  %429 = vmatpush1.msra.mxu0 0.0
  %430 = vmatprep.subr.mxu0 0.0
  %431 = vmatpush1.msra.mxu0 0.0
  %432 = vmatprep.subr.mxu0 0.0
  %433 = vmatpush1.msra.mxu0 0.0
  %434 = vmatprep.subr.mxu0 0.0
  %435 = vmatpush1.msra.mxu0 0.0
  %436 = vmatprep.subr.mxu0 0.0
  %437 = vmatpush1.msra.mxu0 0.0
  %438 = vmatprep.subr.mxu0 0.0
  %439 = vmatpush1.msra.mxu0 0.0
  %440 = vmatprep.subr.mxu0 0.0
  %441 = vmatpush1.msra.mxu0 0.0
  %442 = vmatprep.subr.mxu0 0.0
  %443 = vmatpush1.msra.mxu0 0.0
  %444 = vmatprep.subr.mxu0 0.0
  %445 = vmatpush1.msra.mxu0 0.0
  %446 = vmatprep.subr.mxu0 0.0
  %447 = vmatpush1.msra.mxu0 0.0
  %448 = vmatprep.subr.mxu0 0.0
  %449 = vmatpush1.msra.mxu0 0.0
  %450 = vmatprep.subr.mxu0 0.0
  %451 = vmatpush1.msra.mxu0 0.0
  %452 = vmatprep.subr.mxu0 0.0
  %453 = vmatpush1.msra.mxu0 0.0
  %454 = vmatprep.subr.mxu0 0.0
  %455 = vmatpush1.msra.mxu0 0.0
  %456 = vmatprep.subr.mxu0 0.0
  %457 = vmatpush1.msra.mxu0 0.0
  %458 = vmatprep.subr.mxu0 0.0
  %459 = vmatpush1.msra.mxu0 0.0
  %460 = vmatprep.subr.mxu0 0.0
  %461 = vmatpush1.msra.mxu0 0.0
  %462 = vmatprep.mubr.f32.mxu0 0.0
  %463 = vmatmul.mubr.f32.gmra.mrb[0].mxu0 %v134
  %v464 = vpop.f32.mrb[0].mxu0
  %v465 = vadd.f32 %v275, %v464
  %v466 = vpop.f32.mrb[0].mxu0
  %467 = vmatprep.mubr.f32.mxu0 0.0
  %468 = vmatmul.mubr.f32.gmra.mrb[0].mxu0 %v137
  %v469 = vpop.f32.mrb[0].mxu0
  %v470 = vadd.f32 %v280, %v469
  %v471 = vpop.f32.mrb[0].mxu0
  %472 = vmatprep.mubr.f32.mxu0 0.0
  %473 = vmatmul.mubr.f32.gmra.mrb[0].mxu0 %v140
  %v474 = vpop.f32.mrb[0].mxu0
  %v475 = vadd.f32 %v285, %v474
  %v476 = vpop.f32.mrb[0].mxu0
  %477 = vmatprep.mubr.f32.mxu0 0.0
  %478 = vmatmul.mubr.f32.gmra.mrb[0].mxu0 %v143
  %v479 = vpop.f32.mrb[0].mxu0
  %v480 = vadd.f32 %v290, %v479
  %v481 = vpop.f32.mrb[0].mxu0
  %482 = vmatprep.mubr.f32.mxu0 0.0
  %483 = vmatmul.mubr.f32.gmra.mrb[0].mxu0 %v146
  %v484 = vpop.f32.mrb[0].mxu0
  %v485 = vadd.f32 %v295, %v484
  %v486 = vpop.f32.mrb[0].mxu0
  %487 = vmatprep.mubr.f32.mxu0 0.0
  %488 = vmatmul.mubr.f32.gmra.mrb[0].mxu0 %v149
  %v489 = vpop.f32.mrb[0].mxu0
  %v490 = vadd.f32 %v300, %v489
  %v491 = vpop.f32.mrb[0].mxu0
  %492 = vmatprep.mubr.f32.mxu0 0.0
  %493 = vmatmul.mubr.f32.gmra.mrb[0].mxu0 %v152
  %v494 = vpop.f32.mrb[0].mxu0
  %v495 = vadd.f32 %v305, %v494
  %v496 = vpop.f32.mrb[0].mxu0
  %497 = vmatprep.mubr.f32.mxu0 0.0
  %498 = vmatmul.mubr.f32.gmra.mrb[0].mxu0 %v155
  %v499 = vpop.f32.mrb[0].mxu0
  %v500 = vadd.f32 %v310, %v499
  %v501 = vpop.f32.mrb[0].mxu0
  %502 = vmatprep.mubr.f32.mxu0 0.0
  %503 = vmatmul.mubr.f32.gmra.mrb[0].mxu0 %v158
  %v504 = vpop.f32.mrb[0].mxu0
  %v505 = vadd.f32 %v315, %v504
  %v506 = vpop.f32.mrb[0].mxu0
  %507 = vmatprep.mubr.f32.mxu0 0.0
  %508 = vmatmul.mubr.f32.gmra.mrb[0].mxu0 %v161
  %v509 = vpop.f32.mrb[0].mxu0
  %v510 = vadd.f32 %v320, %v509
  %v511 = vpop.f32.mrb[0].mxu0
  %512 = vmatprep.mubr.f32.mxu0 0.0
  %513 = vmatmul.mubr.f32.gmra.mrb[0].mxu0 %v164
  %v514 = vpop.f32.mrb[0].mxu0
  %v515 = vadd.f32 %v325, %v514
  %v516 = vpop.f32.mrb[0].mxu0
  %517 = vmatprep.mubr.f32.mxu0 0.0
  %518 = vmatmul.mubr.f32.gmra.mrb[0].mxu0 %v167
  %v519 = vpop.f32.mrb[0].mxu0
  %v520 = vadd.f32 %v330, %v519
  %v521 = vpop.f32.mrb[0].mxu0
  %522 = vmatprep.mubr.f32.mxu0 0.0
  %523 = vmatmul.mubr.f32.gmra.mrb[0].mxu0 %v170
  %v524 = vpop.f32.mrb[0].mxu0
  %v525 = vadd.f32 %v335, %v524
  %v526 = vpop.f32.mrb[0].mxu0
  %527 = vmatprep.mubr.f32.mxu0 0.0
  %528 = vmatmul.mubr.f32.gmra.mrb[0].mxu0 %v173
  %v529 = vpop.f32.mrb[0].mxu0
  %v530 = vadd.f32 %v340, %v529
  %v531 = vpop.f32.mrb[0].mxu0
  %532 = vmatprep.mubr.f32.mxu0 0.0
  %533 = vmatmul.mubr.f32.gmra.mrb[0].mxu0 %v176
  %v534 = vpop.f32.mrb[0].mxu0
  %v535 = vadd.f32 %v345, %v534
  %v536 = vpop.f32.mrb[0].mxu0
  %537 = vmatprep.mubr.f32.mxu0 0.0
  %538 = vmatmul.mubr.f32.gmra.mrb[0].mxu0 %v179
  %v539 = vpop.f32.mrb[0].mxu0
  %v540 = vadd.f32 %v350, %v539
  %v541 = vpop.f32.mrb[0].mxu0
  %542 = vmatprep.mubr.f32.mxu0 0.0
  %543 = vmatmul.mubr.f32.gmra.mrb[0].mxu0 %v182
  %v544 = vpop.f32.mrb[0].mxu0
  %v545 = vadd.f32 %v355, %v544
  %v546 = vpop.f32.mrb[0].mxu0
  %547 = vmatprep.mubr.f32.mxu0 0.0
  %548 = vmatmul.mubr.f32.gmra.mrb[0].mxu0 %v185
  %v549 = vpop.f32.mrb[0].mxu0
  %v550 = vadd.f32 %v360, %v549
  %v551 = vpop.f32.mrb[0].mxu0
  %552 = vmatprep.mubr.f32.mxu0 0.0
  %553 = vmatmul.mubr.f32.gmra.mrb[0].mxu0 %v188
  %v554 = vpop.f32.mrb[0].mxu0
  %v555 = vadd.f32 %v365, %v554
  %v556 = vpop.f32.mrb[0].mxu0
  %557 = vmatprep.mubr.f32.mxu0 0.0
  %558 = vmatmul.mubr.f32.gmra.mrb[0].mxu0 %v191
  %v559 = vpop.f32.mrb[0].mxu0
  %v560 = vadd.f32 %v370, %v559
  %v561 = vpop.f32.mrb[0].mxu0
  %562 = vmatprep.mubr.f32.mxu0 0.0
  %563 = vmatmul.mubr.f32.gmra.mrb[0].mxu0 %v194
  %v564 = vpop.f32.mrb[0].mxu0
  %v565 = vadd.f32 %v375, %v564
  %v566 = vpop.f32.mrb[0].mxu0
  %567 = vmatprep.mubr.f32.mxu0 0.0
  %568 = vmatmul.mubr.f32.gmra.mrb[0].mxu0 %v197
  %v569 = vpop.f32.mrb[0].mxu0
  %v570 = vadd.f32 %v380, %v569
  %v571 = vpop.f32.mrb[0].mxu0
  %572 = vmatprep.mubr.f32.mxu0 0.0
  %573 = vmatmul.mubr.f32.gmra.mrb[0].mxu0 %v200
  %v574 = vpop.f32.mrb[0].mxu0
  %v575 = vadd.f32 %v385, %v574
  %v576 = vpop.f32.mrb[0].mxu0
  %577 = vmatprep.mubr.f32.mxu0 0.0
  %578 = vmatmul.mubr.f32.gmra.mrb[0].mxu0 %v203
  %v579 = vpop.f32.mrb[0].mxu0
  %v580 = vadd.f32 %v390, %v579
  %v581 = vpop.f32.mrb[0].mxu0
  %582 = vmatprep.mubr.f32.mxu0 0.0
  %583 = vmatmul.mubr.f32.gmra.mrb[0].mxu0 %v206
  %v584 = vpop.f32.mrb[0].mxu0
  %v585 = vadd.f32 %v395, %v584
  %v586 = vpop.f32.mrb[0].mxu0
  %587 = vdwg.mxu0
  %v588 = vmax.f32 %v465, 0.0
  %v589 = vmax.f32 %v470, 0.0
  %v590 = vmax.f32 %v475, 0.0
  %v591 = vmax.f32 %v480, 0.0
  %v592 = vmax.f32 %v485, 0.0
  %v593 = vmax.f32 %v490, 0.0
  %v594 = vmax.f32 %v495, 0.0
  %v595 = vmax.f32 %v500, 0.0
  %v596 = vmax.f32 %v505, 0.0
  %v597 = vmax.f32 %v510, 0.0
  %v598 = vmax.f32 %v515, 0.0
  %v599 = vmax.f32 %v520, 0.0
  %v600 = vmax.f32 %v525, 0.0
  %v601 = vmax.f32 %v530, 0.0
  %v602 = vmax.f32 %v535, 0.0
  %v603 = vmax.f32 %v540, 0.0
  %v604 = vmax.f32 %v545, 0.0
  %v605 = vmax.f32 %v550, 0.0
  %v606 = vmax.f32 %v555, 0.0
  %v607 = vmax.f32 %v560, 0.0
  %v608 = vmax.f32 %v565, 0.0
  %v609 = vmax.f32 %v570, 0.0
  %v610 = vmax.f32 %v575, 0.0
  %v611 = vmax.f32 %v580, 0.0
  %v612 = vmax.f32 %v585, 0.0
  %vm613 = vcmask 130048
  %614 = vst.msk [vmem:[%s3] sm:$0xff] %vm613, %v588
  %615 = vst.msk [vmem:[%s3 + $0x8] sm:$0xff] %vm613, %v589
  %616 = vst.msk [vmem:[%s3 + $0x10] sm:$0xff] %vm613, %v590
  %617 = vst.msk [vmem:[%s3 + $0x18] sm:$0xff] %vm613, %v591
  %618 = vst.msk [vmem:[%s3 + $0x20] sm:$0xff] %vm613, %v592
  %619 = vst.msk [vmem:[%s3 + $0x28] sm:$0xff] %vm613, %v593
  %620 = vst.msk [vmem:[%s3 + $0x30] sm:$0xff] %vm613, %v594
  %621 = vst.msk [vmem:[%s3 + $0x38] sm:$0xff] %vm613, %v595
  %622 = vst.msk [vmem:[%s3 + $0x40] sm:$0xff] %vm613, %v596
  %623 = vst.msk [vmem:[%s3 + $0x48] sm:$0xff] %vm613, %v597
  %624 = vst.msk [vmem:[%s3 + $0x50] sm:$0xff] %vm613, %v598
  %625 = vst.msk [vmem:[%s3 + $0x58] sm:$0xff] %vm613, %v599
  %626 = vst.msk [vmem:[%s3 + $0x60] sm:$0xff] %vm613, %v600
  %627 = vst.msk [vmem:[%s3 + $0x68] sm:$0xff] %vm613, %v601
  %628 = vst.msk [vmem:[%s3 + $0x70] sm:$0xff] %vm613, %v602
  %629 = vst.msk [vmem:[%s3 + $0x78] sm:$0xff] %vm613, %v603
  %630 = vst.msk [vmem:[%s3 + $0x80] sm:$0xff] %vm613, %v604
  %631 = vst.msk [vmem:[%s3 + $0x88] sm:$0xff] %vm613, %v605
  %632 = vst.msk [vmem:[%s3 + $0x90] sm:$0xff] %vm613, %v606
  %633 = vst.msk [vmem:[%s3 + $0x98] sm:$0xff] %vm613, %v607
  %634 = vst.msk [vmem:[%s3 + $0xa0] sm:$0xff] %vm613, %v608
  %635 = vst.msk [vmem:[%s3 + $0xa8] sm:$0xff] %vm613, %v609
  %636 = vst.msk [vmem:[%s3 + $0xb0] sm:$0xff] %vm613, %v610
  %637 = vst.msk [vmem:[%s3 + $0xb8] sm:$0xff] %vm613, %v611
  %638 = vst.msk [vmem:[%s3 + $0xc0] sm:$0xff] %vm613, %v612
  // Predicated region
  $region14: #{forward.11} parent=0 // pred_check
    _
  $region15: #{forward.11} parent=0 // pred_check_branch
    %640 = sbr.rel (0) target = $region17
  $region16: #{forward.11} parent=0 // pred_region
    _
  $region17: #{forward.11} parent=0 // pred_fallthru
    _
  // Predicated region
  $region18: #{forward.11} parent=0 // pred_check
    _
  $region19: #{forward.11} parent=0 // pred_check_branch
    %642 = sbr.rel (0) target = $region21
  $region20: #{forward.11} parent=0 // pred_region
    _
  $region21: #{forward.11} parent=0 // pred_fallthru
    _

// kernel: forward.12
$region0: #{forward.12}
  #allocation0 [shape = 'u32[]', space=smem, size = 0x4, offset = 0x4, fixed_abs, tag = 'smem constant byte address 0x4 - core index']
  #allocation1 [shape = 'u32[144,128]{1,0:T(1,128)}', space=vmem, size = 0x12000, scoped, tag = 'internal scratch']
  %s0 = inlined_call_operand.vmem [shape: f32[56,144], index: 0, kind: input, shape index: {}]
  %s1 = inlined_call_operand.vmem [shape: f32[144,8], index: 1, kind: input, shape index: {}]
  %s2 = inlined_call_operand.vmem [shape: f32[1,8], index: 2, kind: input, shape index: {}]
  %s3 = inlined_call_operand.vmem [shape: f32[56,8], index: 3, kind: output, shape index: {}]
  %s4 = sld [smem:[#allocation0]]
  $region22: #{forward.12} parent=0
    _
  %s6 = ssub.s32 1, %s4
  %s7 = scalar_select 0, %s6, %s4
  // Predicated region
  $region2: #{forward.12} parent=0 // pred_check
    _
  $region3: #{forward.12} parent=0 // pred_check_branch
    %9 = sbr.rel (0) target = $region5
  $region4: #{forward.12} parent=0 // pred_region
    _
  $region5: #{forward.12} parent=0 // pred_fallthru
    _
  // Predicated region
  $region6: #{forward.12} parent=0 // pred_check
    _
  $region7: #{forward.12} parent=0 // pred_check_branch
    %11 = sbr.rel (0) target = $region9
  $region8: #{forward.12} parent=0 // pred_region
    _
  $region9: #{forward.12} parent=0 // pred_fallthru
    _
  // Predicated region
  $region10: #{forward.12} parent=0 // pred_check
    _
  $region11: #{forward.12} parent=0 // pred_check_branch
    %13 = sbr.rel (0) target = $region13
  $region12: #{forward.12} parent=0 // pred_region
    _
  $region13: #{forward.12} parent=0 // pred_fallthru
    _
  %v14 = vld [vmem:[%s0] sm:$0xff]
  %v15 = vld [vmem:[%s0 + $0x8] sm:$0xff]
  %v16 = vld [vmem:[%s0 + $0x10] sm:$0xff]
  %v17 = vld [vmem:[%s0 + $0x18] sm:$0xff]
  %v18 = vld [vmem:[%s0 + $0x20] sm:$0xff]
  %v19 = vld [vmem:[%s0 + $0x28] sm:$0xff]
  %v20 = vld [vmem:[%s0 + $0x30] sm:$0xff]
  %v21 = vld [vmem:[%s0 + $0x38] sm:$0xff]
  %v22 = vld [vmem:[%s0 + $0x40] sm:$0xff]
  %v23 = vld [vmem:[%s0 + $0x48] sm:$0xff]
  %v24 = vld [vmem:[%s0 + $0x50] sm:$0xff]
  %v25 = vld [vmem:[%s0 + $0x58] sm:$0xff]
  %v26 = vld [vmem:[%s0 + $0x60] sm:$0xff]
  %v27 = vld [vmem:[%s0 + $0x68] sm:$0xff]
  %v28 = vld [vmem:[%s1] sm:$0xff]
  %v29 = vld [vmem:[%s1 + $0x8] sm:$0xff]
  %v30 = vld [vmem:[%s1 + $0x10] sm:$0xff]
  %v31 = vld [vmem:[%s1 + $0x18] sm:$0xff]
  %v32 = vld [vmem:[%s1 + $0x20] sm:$0xff]
  %v33 = vld [vmem:[%s1 + $0x28] sm:$0xff]
  %v34 = vld [vmem:[%s1 + $0x30] sm:$0xff]
  %v35 = vld [vmem:[%s1 + $0x38] sm:$0xff]
  %v36 = vld [vmem:[%s1 + $0x40] sm:$0xff]
  %v37 = vld [vmem:[%s1 + $0x48] sm:$0xff]
  %v38 = vld [vmem:[%s1 + $0x50] sm:$0xff]
  %v39 = vld [vmem:[%s1 + $0x58] sm:$0xff]
  %v40 = vld [vmem:[%s1 + $0x60] sm:$0xff]
  %v41 = vld [vmem:[%s1 + $0x68] sm:$0xff]
  %v42 = vld [vmem:[%s1 + $0x70] sm:$0xff]
  %v43 = vld [vmem:[%s1 + $0x78] sm:$0xff]
  %v44 = vld [vmem:[%s1 + $0x80] sm:$0xff]
  %v45 = vld [vmem:[%s1 + $0x88] sm:$0xff]
  %v46 = vld [vmem:[%s2] sm:$0x1]
  %v48 = vlaneseq
  %v49 = vshrl.u32 %v48, 7
  %v50 = vsub.s32 0, %v49
  %v51 = vrot.slane %v46, %v50
  %vm53 = vcmask 130048
  %v55 = vsel %vm53, %v15, 0
  %v58 = vsel %vm53, %v17, 0
  %v61 = vsel %vm53, %v19, 0
  %v64 = vsel %vm53, %v21, 0
  %v67 = vsel %vm53, %v23, 0
  %v70 = vsel %vm53, %v25, 0
  %v73 = vsel %vm53, %v27, 0
  %75 = vmatprep.subr.mxu0 0.0
  %76 = vmatpush1.msra.mxu0 %v28
  %77 = vmatprep.subr.mxu0 0.0
  %78 = vmatpush1.msra.mxu0 %v29
  %79 = vmatprep.subr.mxu0 0.0
  %80 = vmatpush1.msra.mxu0 %v30
  %81 = vmatprep.subr.mxu0 0.0
  %82 = vmatpush1.msra.mxu0 %v31
  %83 = vmatprep.subr.mxu0 0.0
  %84 = vmatpush1.msra.mxu0 %v32
  %85 = vmatprep.subr.mxu0 0.0
  %86 = vmatpush1.msra.mxu0 %v33
  %87 = vmatprep.subr.mxu0 0.0
  %88 = vmatpush1.msra.mxu0 %v34
  %89 = vmatprep.subr.mxu0 0.0
  %90 = vmatpush1.msra.mxu0 %v35
  %91 = vmatprep.subr.mxu0 0.0
  %92 = vmatpush1.msra.mxu0 %v36
  %93 = vmatprep.subr.mxu0 0.0
  %94 = vmatpush1.msra.mxu0 %v37
  %95 = vmatprep.subr.mxu0 0.0
  %96 = vmatpush1.msra.mxu0 %v38
  %97 = vmatprep.subr.mxu0 0.0
  %98 = vmatpush1.msra.mxu0 %v39
  %99 = vmatprep.subr.mxu0 0.0
  %100 = vmatpush1.msra.mxu0 %v40
  %101 = vmatprep.subr.mxu0 0.0
  %102 = vmatpush1.msra.mxu0 %v41
  %103 = vmatprep.subr.mxu0 0.0
  %104 = vmatpush1.msra.mxu0 %v42
  %105 = vmatprep.subr.mxu0 0.0
  %106 = vmatpush1.msra.mxu0 %v43
  %107 = vmatprep.subr.mxu0 0.0
  %108 = vmatpush1.msra.mxu0 %v44
  %109 = vmatprep.subr.mxu0 0.0
  %110 = vmatpush1.msra.mxu0 %v45
  %111 = vmatprep.subr.mxu0 0.0
  %112 = vmatpush1.msra.mxu0 0.0
  %113 = vmatprep.subr.mxu0 0.0
  %114 = vmatpush1.msra.mxu0 0.0
  %115 = vmatprep.subr.mxu0 0.0
  %116 = vmatpush1.msra.mxu0 0.0
  %117 = vmatprep.subr.mxu0 0.0
  %118 = vmatpush1.msra.mxu0 0.0
  %119 = vmatprep.subr.mxu0 0.0
  %120 = vmatpush1.msra.mxu0 0.0
  %121 = vmatprep.subr.mxu0 0.0
  %122 = vmatpush1.msra.mxu0 0.0
  %123 = vmatprep.subr.mxu0 0.0
  %124 = vmatpush1.msra.mxu0 0.0
  %125 = vmatprep.subr.mxu0 0.0
  %126 = vmatpush1.msra.mxu0 0.0
  %127 = vmatprep.subr.mxu0 0.0
  %128 = vmatpush1.msra.mxu0 0.0
  %129 = vmatprep.subr.mxu0 0.0
  %130 = vmatpush1.msra.mxu0 0.0
  %131 = vmatprep.subr.mxu0 0.0
  %132 = vmatpush1.msra.mxu0 0.0
  %133 = vmatprep.subr.mxu0 0.0
  %134 = vmatpush1.msra.mxu0 0.0
  %135 = vmatprep.subr.mxu0 0.0
  %136 = vmatpush1.msra.mxu0 0.0
  %137 = vmatprep.subr.mxu0 0.0
  %138 = vmatpush1.msra.mxu0 0.0
  %139 = vmatprep.mubr.f32.mxu0 %v55
  %140 = vmatmul.mubr.f32.gmra.mrb[0].mxu0 %v14
  %v141 = vpop.f32.mrb[0].mxu0
  %v142 = vadd.f32 %v51, %v141
  %v143 = vpop.f32.mrb[0].mxu0
  %144 = vmatprep.mubr.f32.mxu0 %v58
  %145 = vmatmul.mubr.f32.gmra.mrb[0].mxu0 %v16
  %v146 = vpop.f32.mrb[0].mxu0
  %v147 = vadd.f32 %v51, %v146
  %v148 = vpop.f32.mrb[0].mxu0
  %149 = vmatprep.mubr.f32.mxu0 %v61
  %150 = vmatmul.mubr.f32.gmra.mrb[0].mxu0 %v18
  %v151 = vpop.f32.mrb[0].mxu0
  %v152 = vadd.f32 %v51, %v151
  %v153 = vpop.f32.mrb[0].mxu0
  %154 = vmatprep.mubr.f32.mxu0 %v64
  %155 = vmatmul.mubr.f32.gmra.mrb[0].mxu0 %v20
  %v156 = vpop.f32.mrb[0].mxu0
  %v157 = vadd.f32 %v51, %v156
  %v158 = vpop.f32.mrb[0].mxu0
  %159 = vmatprep.mubr.f32.mxu0 %v67
  %160 = vmatmul.mubr.f32.gmra.mrb[0].mxu0 %v22
  %v161 = vpop.f32.mrb[0].mxu0
  %v162 = vadd.f32 %v51, %v161
  %v163 = vpop.f32.mrb[0].mxu0
  %164 = vmatprep.mubr.f32.mxu0 %v70
  %165 = vmatmul.mubr.f32.gmra.mrb[0].mxu0 %v24
  %v166 = vpop.f32.mrb[0].mxu0
  %v167 = vadd.f32 %v51, %v166
  %v168 = vpop.f32.mrb[0].mxu0
  %169 = vmatprep.mubr.f32.mxu0 %v73
  %170 = vmatmul.mubr.f32.gmra.mrb[0].mxu0 %v26
  %v171 = vpop.f32.mrb[0].mxu0
  %v172 = vadd.f32 %v51, %v171
  %v173 = vpop.f32.mrb[0].mxu0
  %174 = vdwg.mxu0
  %v175 = vmax.f32 %v142, 0.0
  %v176 = vmax.f32 %v147, 0.0
  %v177 = vmax.f32 %v152, 0.0
  %v178 = vmax.f32 %v157, 0.0
  %v179 = vmax.f32 %v162, 0.0
  %v180 = vmax.f32 %v167, 0.0
  %v181 = vmax.f32 %v172, 0.0
  %v182 = vmin.f32 %v175, 6.0
  %v183 = vmin.f32 %v176, 6.0
  %v184 = vmin.f32 %v177, 6.0
  %v185 = vmin.f32 %v178, 6.0
  %v186 = vmin.f32 %v179, 6.0
  %v187 = vmin.f32 %v180, 6.0
  %v188 = vmin.f32 %v181, 6.0
  %vm189 = vcmask 64512
  %190 = vst.msk [vmem:[%s3] sm:$0xff] %vm189, %v182
  %191 = vst.msk [vmem:[%s3 + $0x8] sm:$0xff] %vm189, %v183
  %192 = vst.msk [vmem:[%s3 + $0x10] sm:$0xff] %vm189, %v184
  %193 = vst.msk [vmem:[%s3 + $0x18] sm:$0xff] %vm189, %v185
  %194 = vst.msk [vmem:[%s3 + $0x20] sm:$0xff] %vm189, %v186
  %195 = vst.msk [vmem:[%s3 + $0x28] sm:$0xff] %vm189, %v187
  %196 = vst.msk [vmem:[%s3 + $0x30] sm:$0xff] %vm189, %v188
  // Predicated region
  $region14: #{forward.12} parent=0 // pred_check
    _
  $region15: #{forward.12} parent=0 // pred_check_branch
    %198 = sbr.rel (0) target = $region17
  $region16: #{forward.12} parent=0 // pred_region
    _
  $region17: #{forward.12} parent=0 // pred_fallthru
    _
  // Predicated region
  $region18: #{forward.12} parent=0 // pred_check
    _
  $region19: #{forward.12} parent=0 // pred_check_branch
    %200 = sbr.rel (0) target = $region21
  $region20: #{forward.12} parent=0 // pred_region
    _
  $region21: #{forward.12} parent=0 // pred_fallthru
    _

// kernel: forward.13
$region0: #{forward.13}
  #allocation0 [shape = 'u32[]', space=smem, size = 0x4, offset = 0x4, fixed_abs, tag = 'smem constant byte address 0x4 - core index']
  #allocation1 [shape = 'u32[144,128]{1,0:T(1,128)}', space=vmem, size = 0x12000, scoped, tag = 'internal scratch']
  %s0 = inlined_call_operand.vmem [shape: f32[8,200], index: 0, kind: input, shape index: {}]
  %s1 = inlined_call_operand.vmem [shape: f32[200,128], index: 1, kind: input, shape index: {}]
  %s2 = inlined_call_operand.vmem [shape: f32[1,128], index: 2, kind: input, shape index: {}]
  %s3 = inlined_call_operand.vmem [shape: f32[128,16], index: 3, kind: input, shape index: {}]
  %s4 = inlined_call_operand.vmem [shape: f32[1,16], index: 4, kind: input, shape index: {}]
  %s5 = inlined_call_operand.vmem [shape: f32[16,128], index: 5, kind: input, shape index: {}]
  %s6 = inlined_call_operand.vmem [shape: f32[1,128], index: 6, kind: input, shape index: {}]
  %s7 = inlined_call_operand.vmem [shape: f32[128,200], index: 7, kind: input, shape index: {}]
  %s8 = inlined_call_operand.vmem [shape: f32[1,200], index: 8, kind: input, shape index: {}]
  %s9 = inlined_call_operand.vmem [shape: f32[8,16], index: 9, kind: output, shape index: {0}]
  %s10 = inlined_call_operand.vmem [shape: f32[8,200], index: 10, kind: output, shape index: {1}]
  %11 = xla_tuple %s9, %s10
  %s12 = sld [smem:[#allocation0]]
  $region54: #{forward.13} parent=0
    _
  %s14 = ssub.s32 1, %s12
  %s15 = scalar_select 0, %s14, %s12
  // Predicated region
  $region2: #{forward.13} parent=0 // pred_check
    _
  $region3: #{forward.13} parent=0 // pred_check_branch
    %17 = sbr.rel (0) target = $region5
  $region4: #{forward.13} parent=0 // pred_region
    _
  $region5: #{forward.13} parent=0 // pred_fallthru
    _
  // Predicated region
  $region6: #{forward.13} parent=0 // pred_check
    _
  $region7: #{forward.13} parent=0 // pred_check_branch
    %19 = sbr.rel (0) target = $region9
  $region8: #{forward.13} parent=0 // pred_region
    _
  $region9: #{forward.13} parent=0 // pred_fallthru
    _
  // Predicated region
  $region10: #{forward.13} parent=0 // pred_check
    _
  $region11: #{forward.13} parent=0 // pred_check_branch
    %21 = sbr.rel (0) target = $region13
  $region12: #{forward.13} parent=0 // pred_region
    _
  $region13: #{forward.13} parent=0 // pred_fallthru
    _
  // Predicated region
  $region14: #{forward.13} parent=0 // pred_check
    _
  $region15: #{forward.13} parent=0 // pred_check_branch
    %23 = sbr.rel (0) target = $region17
  $region16: #{forward.13} parent=0 // pred_region
    _
  $region17: #{forward.13} parent=0 // pred_fallthru
    _
  // Predicated region
  $region18: #{forward.13} parent=0 // pred_check
    _
  $region19: #{forward.13} parent=0 // pred_check_branch
    %25 = sbr.rel (0) target = $region21
  $region20: #{forward.13} parent=0 // pred_region
    _
  $region21: #{forward.13} parent=0 // pred_fallthru
    _
  // Predicated region
  $region22: #{forward.13} parent=0 // pred_check
    _
  $region23: #{forward.13} parent=0 // pred_check_branch
    %27 = sbr.rel (0) target = $region25
  $region24: #{forward.13} parent=0 // pred_region
    _
  $region25: #{forward.13} parent=0 // pred_fallthru
    _
  // Predicated region
  $region26: #{forward.13} parent=0 // pred_check
    _
  $region27: #{forward.13} parent=0 // pred_check_branch
    %29 = sbr.rel (0) target = $region29
  $region28: #{forward.13} parent=0 // pred_region
    _
  $region29: #{forward.13} parent=0 // pred_fallthru
    _
  // Predicated region
  $region30: #{forward.13} parent=0 // pred_check
    _
  $region31: #{forward.13} parent=0 // pred_check_branch
    %31 = sbr.rel (0) target = $region33
  $region32: #{forward.13} parent=0 // pred_region
    _
  $region33: #{forward.13} parent=0 // pred_fallthru
    _
  // Predicated region
  $region34: #{forward.13} parent=0 // pred_check
    _
  $region35: #{forward.13} parent=0 // pred_check_branch
    %33 = sbr.rel (0) target = $region37
  $region36: #{forward.13} parent=0 // pred_region
    _
  $region37: #{forward.13} parent=0 // pred_fallthru
    _
  %v34 = vld [vmem:[%s0] sm:$0xff]
  %v35 = vld [vmem:[%s0 + $0x8] sm:$0xff]
  %v36 = vld [vmem:[%s1] sm:$0xff]
  %v37 = vld [vmem:[%s1 + $0x8] sm:$0xff]
  %v38 = vld [vmem:[%s1 + $0x10] sm:$0xff]
  %v39 = vld [vmem:[%s1 + $0x18] sm:$0xff]
  %v40 = vld [vmem:[%s1 + $0x20] sm:$0xff]
  %v41 = vld [vmem:[%s1 + $0x28] sm:$0xff]
  %v42 = vld [vmem:[%s1 + $0x30] sm:$0xff]
  %v43 = vld [vmem:[%s1 + $0x38] sm:$0xff]
  %v44 = vld [vmem:[%s1 + $0x40] sm:$0xff]
  %v45 = vld [vmem:[%s1 + $0x48] sm:$0xff]
  %v46 = vld [vmem:[%s1 + $0x50] sm:$0xff]
  %v47 = vld [vmem:[%s1 + $0x58] sm:$0xff]
  %v48 = vld [vmem:[%s1 + $0x60] sm:$0xff]
  %v49 = vld [vmem:[%s1 + $0x68] sm:$0xff]
  %v50 = vld [vmem:[%s1 + $0x70] sm:$0xff]
  %v51 = vld [vmem:[%s1 + $0x78] sm:$0xff]
  %v52 = vld [vmem:[%s1 + $0x80] sm:$0xff]
  %v53 = vld [vmem:[%s1 + $0x88] sm:$0xff]
  %v54 = vld [vmem:[%s1 + $0x90] sm:$0xff]
  %v55 = vld [vmem:[%s1 + $0x98] sm:$0xff]
  %v56 = vld [vmem:[%s1 + $0xa0] sm:$0xff]
  %v57 = vld [vmem:[%s1 + $0xa8] sm:$0xff]
  %v58 = vld [vmem:[%s1 + $0xb0] sm:$0xff]
  %v59 = vld [vmem:[%s1 + $0xb8] sm:$0xff]
  %v60 = vld [vmem:[%s1 + $0xc0] sm:$0xff]
  %v61 = vld [vmem:[%s2] sm:$0x1]
  %v63 = vlaneseq
  %v64 = vshrl.u32 %v63, 7
  %v65 = vsub.s32 0, %v64
  %v66 = vrot.slane %v61, %v65
  %vm68 = vcmask 588800
  %v70 = vsel %vm68, %v35, 0
  %72 = vmatprep.subr.mxu0 0.0
  %73 = vmatpush1.msra.mxu0 %v36
  %74 = vmatprep.subr.mxu0 0.0
  %75 = vmatpush1.msra.mxu0 %v37
  %76 = vmatprep.subr.mxu0 0.0
  %77 = vmatpush1.msra.mxu0 %v38
  %78 = vmatprep.subr.mxu0 0.0
  %79 = vmatpush1.msra.mxu0 %v39
  %80 = vmatprep.subr.mxu0 0.0
  %81 = vmatpush1.msra.mxu0 %v40
  %82 = vmatprep.subr.mxu0 0.0
  %83 = vmatpush1.msra.mxu0 %v41
  %84 = vmatprep.subr.mxu0 0.0
  %85 = vmatpush1.msra.mxu0 %v42
  %86 = vmatprep.subr.mxu0 0.0
  %87 = vmatpush1.msra.mxu0 %v43
  %88 = vmatprep.subr.mxu0 0.0
  %89 = vmatpush1.msra.mxu0 %v44
  %90 = vmatprep.subr.mxu0 0.0
  %91 = vmatpush1.msra.mxu0 %v45
  %92 = vmatprep.subr.mxu0 0.0
  %93 = vmatpush1.msra.mxu0 %v46
  %94 = vmatprep.subr.mxu0 0.0
  %95 = vmatpush1.msra.mxu0 %v47
  %96 = vmatprep.subr.mxu0 0.0
  %97 = vmatpush1.msra.mxu0 %v48
  %98 = vmatprep.subr.mxu0 0.0
  %99 = vmatpush1.msra.mxu0 %v49
  %100 = vmatprep.subr.mxu0 0.0
  %101 = vmatpush1.msra.mxu0 %v50
  %102 = vmatprep.subr.mxu0 0.0
  %103 = vmatpush1.msra.mxu0 %v51
  %104 = vmatprep.subr.mxu0 0.0
  %105 = vmatpush1.msra.mxu0 %v52
  %106 = vmatprep.subr.mxu0 0.0
  %107 = vmatpush1.msra.mxu0 %v53
  %108 = vmatprep.subr.mxu0 0.0
  %109 = vmatpush1.msra.mxu0 %v54
  %110 = vmatprep.subr.mxu0 0.0
  %111 = vmatpush1.msra.mxu0 %v55
  %112 = vmatprep.subr.mxu0 0.0
  %113 = vmatpush1.msra.mxu0 %v56
  %114 = vmatprep.subr.mxu0 0.0
  %115 = vmatpush1.msra.mxu0 %v57
  %116 = vmatprep.subr.mxu0 0.0
  %117 = vmatpush1.msra.mxu0 %v58
  %118 = vmatprep.subr.mxu0 0.0
  %119 = vmatpush1.msra.mxu0 %v59
  %120 = vmatprep.subr.mxu0 0.0
  %121 = vmatpush1.msra.mxu0 %v60
  %122 = vmatprep.subr.mxu0 0.0
  %123 = vmatpush1.msra.mxu0 0.0
  %124 = vmatprep.subr.mxu0 0.0
  %125 = vmatpush1.msra.mxu0 0.0
  %126 = vmatprep.subr.mxu0 0.0
  %127 = vmatpush1.msra.mxu0 0.0
  %128 = vmatprep.subr.mxu0 0.0
  %129 = vmatpush1.msra.mxu0 0.0
  %130 = vmatprep.subr.mxu0 0.0
  %131 = vmatpush1.msra.mxu0 0.0
  %132 = vmatprep.subr.mxu0 0.0
  %133 = vmatpush1.msra.mxu0 0.0
  %134 = vmatprep.subr.mxu0 0.0
  %135 = vmatpush1.msra.mxu0 0.0
  %136 = vmatprep.mubr.f32.mxu0 %v70
  %137 = vmatmul.mubr.f32.gmra.mrb[0].mxu0 %v34
  %v138 = vpop.f32.mrb[0].mxu0
  %v139 = vadd.f32 %v66, %v138
  %v140 = vpop.f32.mrb[0].mxu0
  %141 = vdwg.mxu0
  %v142 = vtanh.pop %v139
  %v143 = vld [vmem:[%s3] sm:$0xff]
  %v144 = vld [vmem:[%s3 + $0x8] sm:$0xff]
  %v145 = vld [vmem:[%s3 + $0x10] sm:$0xff]
  %v146 = vld [vmem:[%s3 + $0x18] sm:$0xff]
  %v147 = vld [vmem:[%s3 + $0x20] sm:$0xff]
  %v148 = vld [vmem:[%s3 + $0x28] sm:$0xff]
  %v149 = vld [vmem:[%s3 + $0x30] sm:$0xff]
  %v150 = vld [vmem:[%s3 + $0x38] sm:$0xff]
  %v151 = vld [vmem:[%s3 + $0x40] sm:$0xff]
  %v152 = vld [vmem:[%s3 + $0x48] sm:$0xff]
  %v153 = vld [vmem:[%s3 + $0x50] sm:$0xff]
  %v154 = vld [vmem:[%s3 + $0x58] sm:$0xff]
  %v155 = vld [vmem:[%s3 + $0x60] sm:$0xff]
  %v156 = vld [vmem:[%s3 + $0x68] sm:$0xff]
  %v157 = vld [vmem:[%s3 + $0x70] sm:$0xff]
  %v158 = vld [vmem:[%s3 + $0x78] sm:$0xff]
  %v159 = vld [vmem:[%s4] sm:$0x1]
  %v161 = vlaneseq
  %v162 = vshrl.u32 %v161, 7
  %v163 = vsub.s32 0, %v162
  %v164 = vrot.slane %v159, %v163
  %166 = vmatprep.subr.mxu0 0.0
  %167 = vmatpush1.msra.mxu0 %v143
  %168 = vmatprep.subr.mxu0 0.0
  %169 = vmatpush1.msra.mxu0 %v144
  %170 = vmatprep.subr.mxu0 0.0
  %171 = vmatpush1.msra.mxu0 %v145
  %172 = vmatprep.subr.mxu0 0.0
  %173 = vmatpush1.msra.mxu0 %v146
  %174 = vmatprep.subr.mxu0 0.0
  %175 = vmatpush1.msra.mxu0 %v147
  %176 = vmatprep.subr.mxu0 0.0
  %177 = vmatpush1.msra.mxu0 %v148
  %178 = vmatprep.subr.mxu0 0.0
  %179 = vmatpush1.msra.mxu0 %v149
  %180 = vmatprep.subr.mxu0 0.0
  %181 = vmatpush1.msra.mxu0 %v150
  %182 = vmatprep.subr.mxu0 0.0
  %183 = vmatpush1.msra.mxu0 %v151
  %184 = vmatprep.subr.mxu0 0.0
  %185 = vmatpush1.msra.mxu0 %v152
  %186 = vmatprep.subr.mxu0 0.0
  %187 = vmatpush1.msra.mxu0 %v153
  %188 = vmatprep.subr.mxu0 0.0
  %189 = vmatpush1.msra.mxu0 %v154
  %190 = vmatprep.subr.mxu0 0.0
  %191 = vmatpush1.msra.mxu0 %v155
  %192 = vmatprep.subr.mxu0 0.0
  %193 = vmatpush1.msra.mxu0 %v156
  %194 = vmatprep.subr.mxu0 0.0
  %195 = vmatpush1.msra.mxu0 %v157
  %196 = vmatprep.subr.mxu0 0.0
  %197 = vmatpush1.msra.mxu0 %v158
  %198 = vmatprep.subr.mxu0 0.0
  %199 = vmatpush1.msra.mxu0 0.0
  %200 = vmatprep.subr.mxu0 0.0
  %201 = vmatpush1.msra.mxu0 0.0
  %202 = vmatprep.subr.mxu0 0.0
  %203 = vmatpush1.msra.mxu0 0.0
  %204 = vmatprep.subr.mxu0 0.0
  %205 = vmatpush1.msra.mxu0 0.0
  %206 = vmatprep.subr.mxu0 0.0
  %207 = vmatpush1.msra.mxu0 0.0
  %208 = vmatprep.subr.mxu0 0.0
  %209 = vmatpush1.msra.mxu0 0.0
  %210 = vmatprep.subr.mxu0 0.0
  %211 = vmatpush1.msra.mxu0 0.0
  %212 = vmatprep.subr.mxu0 0.0
  %213 = vmatpush1.msra.mxu0 0.0
  %214 = vmatprep.subr.mxu0 0.0
  %215 = vmatpush1.msra.mxu0 0.0
  %216 = vmatprep.subr.mxu0 0.0
  %217 = vmatpush1.msra.mxu0 0.0
  %218 = vmatprep.subr.mxu0 0.0
  %219 = vmatpush1.msra.mxu0 0.0
  %220 = vmatprep.subr.mxu0 0.0
  %221 = vmatpush1.msra.mxu0 0.0
  %222 = vmatprep.subr.mxu0 0.0
  %223 = vmatpush1.msra.mxu0 0.0
  %224 = vmatprep.subr.mxu0 0.0
  %225 = vmatpush1.msra.mxu0 0.0
  %226 = vmatprep.subr.mxu0 0.0
  %227 = vmatpush1.msra.mxu0 0.0
  %228 = vmatprep.subr.mxu0 0.0
  %229 = vmatpush1.msra.mxu0 0.0
  %230 = vmatprep.mubr.f32.mxu0 0.0
  %231 = vmatmul.mubr.f32.gmra.mrb[0].mxu0 %v142
  %v232 = vpop.f32.mrb[0].mxu0
  %v233 = vadd.f32 %v164, %v232
  %v234 = vpop.f32.mrb[0].mxu0
  %235 = vdwg.mxu0
  %v236 = vtanh.pop %v233
  %v237 = vmul.f32 %v236, 1.5
  %v238 = vmul.f32 %v233, -3.0
  %v239 = vtanh.pop %v238
  %v240 = vmul.f32 %v239, 0.5
  %v241 = vadd.f32 %v237, %v240
  %vm242 = vcmask 130048
  %243 = vst.msk [vmem:[%s9] sm:$0xff] %vm242, %v241
  %v244 = vld [vmem:[%s5] sm:$0xff]
  %v245 = vld [vmem:[%s5 + $0x8] sm:$0xff]
  %v246 = vld [vmem:[%s6] sm:$0x1]
  %v248 = vlaneseq
  %v249 = vshrl.u32 %v248, 7
  %v250 = vsub.s32 0, %v249
  %v251 = vrot.slane %v246, %v250
  %v254 = vsel %vm242, %v241, 0
  %256 = vmatprep.subr.mxu0 0.0
  %257 = vmatpush1.msra.mxu0 %v244
  %258 = vmatprep.subr.mxu0 0.0
  %259 = vmatpush1.msra.mxu0 %v245
  %260 = vmatprep.subr.mxu0 0.0
  %261 = vmatpush1.msra.mxu0 0.0
  %262 = vmatprep.subr.mxu0 0.0
  %263 = vmatpush1.msra.mxu0 0.0
  %264 = vmatprep.subr.mxu0 0.0
  %265 = vmatpush1.msra.mxu0 0.0
  %266 = vmatprep.subr.mxu0 0.0
  %267 = vmatpush1.msra.mxu0 0.0
  %268 = vmatprep.subr.mxu0 0.0
  %269 = vmatpush1.msra.mxu0 0.0
  %270 = vmatprep.subr.mxu0 0.0
  %271 = vmatpush1.msra.mxu0 0.0
  %272 = vmatprep.subr.mxu0 0.0
  %273 = vmatpush1.msra.mxu0 0.0
  %274 = vmatprep.subr.mxu0 0.0
  %275 = vmatpush1.msra.mxu0 0.0
  %276 = vmatprep.subr.mxu0 0.0
  %277 = vmatpush1.msra.mxu0 0.0
  %278 = vmatprep.subr.mxu0 0.0
  %279 = vmatpush1.msra.mxu0 0.0
  %280 = vmatprep.subr.mxu0 0.0
  %281 = vmatpush1.msra.mxu0 0.0
  %282 = vmatprep.subr.mxu0 0.0
  %283 = vmatpush1.msra.mxu0 0.0
  %284 = vmatprep.subr.mxu0 0.0
  %285 = vmatpush1.msra.mxu0 0.0
  %286 = vmatprep.subr.mxu0 0.0
  %287 = vmatpush1.msra.mxu0 0.0
  %288 = vmatprep.subr.mxu0 0.0
  %289 = vmatpush1.msra.mxu0 0.0
  %290 = vmatprep.subr.mxu0 0.0
  %291 = vmatpush1.msra.mxu0 0.0
  %292 = vmatprep.subr.mxu0 0.0
  %293 = vmatpush1.msra.mxu0 0.0
  %294 = vmatprep.subr.mxu0 0.0
  %295 = vmatpush1.msra.mxu0 0.0
  %296 = vmatprep.subr.mxu0 0.0
  %297 = vmatpush1.msra.mxu0 0.0
  %298 = vmatprep.subr.mxu0 0.0
  %299 = vmatpush1.msra.mxu0 0.0
  %300 = vmatprep.subr.mxu0 0.0
  %301 = vmatpush1.msra.mxu0 0.0
  %302 = vmatprep.subr.mxu0 0.0
  %303 = vmatpush1.msra.mxu0 0.0
  %304 = vmatprep.subr.mxu0 0.0
  %305 = vmatpush1.msra.mxu0 0.0
  %306 = vmatprep.subr.mxu0 0.0
  %307 = vmatpush1.msra.mxu0 0.0
  %308 = vmatprep.subr.mxu0 0.0
  %309 = vmatpush1.msra.mxu0 0.0
  %310 = vmatprep.subr.mxu0 0.0
  %311 = vmatpush1.msra.mxu0 0.0
  %312 = vmatprep.subr.mxu0 0.0
  %313 = vmatpush1.msra.mxu0 0.0
  %314 = vmatprep.subr.mxu0 0.0
  %315 = vmatpush1.msra.mxu0 0.0
  %316 = vmatprep.subr.mxu0 0.0
  %317 = vmatpush1.msra.mxu0 0.0
  %318 = vmatprep.subr.mxu0 0.0
  %319 = vmatpush1.msra.mxu0 0.0
  %320 = vmatprep.mubr.f32.mxu0 0.0
  %321 = vmatmul.mubr.f32.gmra.mrb[0].mxu0 %v254
  %v322 = vpop.f32.mrb[0].mxu0
  %v323 = vadd.f32 %v251, %v322
  %v324 = vpop.f32.mrb[0].mxu0
  %325 = vdwg.mxu0
  %v326 = vtanh.pop %v323
  %v327 = vld [vmem:[%s7] sm:$0xff]
  %v328 = vld [vmem:[%s7 + $0x8] sm:$0xff]
  %v329 = vld [vmem:[%s7 + $0x10] sm:$0xff]
  %v330 = vld [vmem:[%s7 + $0x18] sm:$0xff]
  %v331 = vld [vmem:[%s7 + $0x20] sm:$0xff]
  %v332 = vld [vmem:[%s7 + $0x28] sm:$0xff]
  %v333 = vld [vmem:[%s7 + $0x30] sm:$0xff]
  %v334 = vld [vmem:[%s7 + $0x38] sm:$0xff]
  %v335 = vld [vmem:[%s7 + $0x40] sm:$0xff]
  %v336 = vld [vmem:[%s7 + $0x48] sm:$0xff]
  %v337 = vld [vmem:[%s7 + $0x50] sm:$0xff]
  %v338 = vld [vmem:[%s7 + $0x58] sm:$0xff]
  %v339 = vld [vmem:[%s7 + $0x60] sm:$0xff]
  %v340 = vld [vmem:[%s7 + $0x68] sm:$0xff]
  %v341 = vld [vmem:[%s7 + $0x70] sm:$0xff]
  %v342 = vld [vmem:[%s7 + $0x78] sm:$0xff]
  %v343 = vld [vmem:[%s7 + $0x80] sm:$0xff]
  %v344 = vld [vmem:[%s7 + $0x88] sm:$0xff]
  %v345 = vld [vmem:[%s7 + $0x90] sm:$0xff]
  %v346 = vld [vmem:[%s7 + $0x98] sm:$0xff]
  %v347 = vld [vmem:[%s7 + $0xa0] sm:$0xff]
  %v348 = vld [vmem:[%s7 + $0xa8] sm:$0xff]
  %v349 = vld [vmem:[%s7 + $0xb0] sm:$0xff]
  %v350 = vld [vmem:[%s7 + $0xb8] sm:$0xff]
  %v351 = vld [vmem:[%s7 + $0xc0] sm:$0xff]
  %v352 = vld [vmem:[%s7 + $0xc8] sm:$0xff]
  %v353 = vld [vmem:[%s7 + $0xd0] sm:$0xff]
  %v354 = vld [vmem:[%s7 + $0xd8] sm:$0xff]
  %v355 = vld [vmem:[%s7 + $0xe0] sm:$0xff]
  %v356 = vld [vmem:[%s7 + $0xe8] sm:$0xff]
  %v357 = vld [vmem:[%s7 + $0xf0] sm:$0xff]
  %v358 = vld [vmem:[%s7 + $0xf8] sm:$0xff]
  %v359 = vld [vmem:[%s8] sm:$0x3]
  %v361 = vlaneseq
  %v362 = vshrl.u32 %v361, 7
  %v363 = vsub.s32 0, %v362
  %v364 = vrot.slane %v359, %v363
  %v365 = vlaneseq
  %v366 = vshrl.u32 %v365, 7
  %v367 = vsub.s32 1, %v366
  %v368 = vrot.slane %v359, %v367
  %371 = vmatprep.subr.mxu0 %v328
  %372 = vmatpush1.msra.mxu0 %v327
  %373 = vmatprep.subr.mxu0 %v330
  %374 = vmatpush1.msra.mxu0 %v329
  %375 = vmatprep.subr.mxu0 %v332
  %376 = vmatpush1.msra.mxu0 %v331
  %377 = vmatprep.subr.mxu0 %v334
  %378 = vmatpush1.msra.mxu0 %v333
  %379 = vmatprep.subr.mxu0 %v336
  %380 = vmatpush1.msra.mxu0 %v335
  %381 = vmatprep.subr.mxu0 %v338
  %382 = vmatpush1.msra.mxu0 %v337
  %383 = vmatprep.subr.mxu0 %v340
  %384 = vmatpush1.msra.mxu0 %v339
  %385 = vmatprep.subr.mxu0 %v342
  %386 = vmatpush1.msra.mxu0 %v341
  %387 = vmatprep.subr.mxu0 %v344
  %388 = vmatpush1.msra.mxu0 %v343
  %389 = vmatprep.subr.mxu0 %v346
  %390 = vmatpush1.msra.mxu0 %v345
  %391 = vmatprep.subr.mxu0 %v348
  %392 = vmatpush1.msra.mxu0 %v347
  %393 = vmatprep.subr.mxu0 %v350
  %394 = vmatpush1.msra.mxu0 %v349
  %395 = vmatprep.subr.mxu0 %v352
  %396 = vmatpush1.msra.mxu0 %v351
  %397 = vmatprep.subr.mxu0 %v354
  %398 = vmatpush1.msra.mxu0 %v353
  %399 = vmatprep.subr.mxu0 %v356
  %400 = vmatpush1.msra.mxu0 %v355
  %401 = vmatprep.subr.mxu0 %v358
  %402 = vmatpush1.msra.mxu0 %v357
  %403 = vmatprep.subr.mxu0 0.0
  %404 = vmatpush1.msra.mxu0 0.0
  %405 = vmatprep.subr.mxu0 0.0
  %406 = vmatpush1.msra.mxu0 0.0
  %407 = vmatprep.subr.mxu0 0.0
  %408 = vmatpush1.msra.mxu0 0.0
  %409 = vmatprep.subr.mxu0 0.0
  %410 = vmatpush1.msra.mxu0 0.0
  %411 = vmatprep.subr.mxu0 0.0
  %412 = vmatpush1.msra.mxu0 0.0
  %413 = vmatprep.subr.mxu0 0.0
  %414 = vmatpush1.msra.mxu0 0.0
  %415 = vmatprep.subr.mxu0 0.0
  %416 = vmatpush1.msra.mxu0 0.0
  %417 = vmatprep.subr.mxu0 0.0
  %418 = vmatpush1.msra.mxu0 0.0
  %419 = vmatprep.subr.mxu0 0.0
  %420 = vmatpush1.msra.mxu0 0.0
  %421 = vmatprep.subr.mxu0 0.0
  %422 = vmatpush1.msra.mxu0 0.0
  %423 = vmatprep.subr.mxu0 0.0
  %424 = vmatpush1.msra.mxu0 0.0
  %425 = vmatprep.subr.mxu0 0.0
  %426 = vmatpush1.msra.mxu0 0.0
  %427 = vmatprep.subr.mxu0 0.0
  %428 = vmatpush1.msra.mxu0 0.0
  %429 = vmatprep.subr.mxu0 0.0
  %430 = vmatpush1.msra.mxu0 0.0
  %431 = vmatprep.subr.mxu0 0.0
  %432 = vmatpush1.msra.mxu0 0.0
  %433 = vmatprep.subr.mxu0 0.0
  %434 = vmatpush1.msra.mxu0 0.0
  %435 = vmatprep.mubr.f32.mxu0 0.0
  %436 = vmatmul.mubr.f32.gmra.mrb[0].mxu0 %v326
  %v437 = vpop.f32.mrb[0].mxu0
  %v438 = vadd.f32 %v364, %v437
  %v439 = vpop.f32.mrb[0].mxu0
  %v440 = vadd.f32 %v368, %v439
  %441 = vdwg.mxu0
  %v442 = vmax.f32 %v438, 0.0
  %v443 = vmax.f32 %v440, 0.0
  %v444 = vmin.f32 %v442, 6.0
  %v445 = vmin.f32 %v443, 6.0
  %446 = vst [vmem:[%s10] sm:$0xff] %v444
  %447 = vst.msk [vmem:[%s10 + $0x8] sm:$0xff] %vm68, %v445
  // Predicated region
  $region38: #{forward.13} parent=0 // pred_check
    _
  $region39: #{forward.13} parent=0 // pred_check_branch
    %449 = sbr.rel (0) target = $region41
  $region40: #{forward.13} parent=0 // pred_region
    _
  $region41: #{forward.13} parent=0 // pred_fallthru
    _
  // Predicated region
  $region42: #{forward.13} parent=0 // pred_check
    _
  $region43: #{forward.13} parent=0 // pred_check_branch
    %451 = sbr.rel (0) target = $region45
  $region44: #{forward.13} parent=0 // pred_region
    _
  $region45: #{forward.13} parent=0 // pred_fallthru
    _
  // Predicated region
  $region46: #{forward.13} parent=0 // pred_check
    _
  $region47: #{forward.13} parent=0 // pred_check_branch
    %453 = sbr.rel (0) target = $region49
  $region48: #{forward.13} parent=0 // pred_region
    _
  $region49: #{forward.13} parent=0 // pred_fallthru
    _
  // Predicated region
  $region50: #{forward.13} parent=0 // pred_check
    _
  $region51: #{forward.13} parent=0 // pred_check_branch
    %455 = sbr.rel (0) target = $region53
  $region52: #{forward.13} parent=0 // pred_region
    _
  $region53: #{forward.13} parent=0 // pred_fallthru
    _

// kernel: tile.23
$region0: #{tile.23}
  #allocation0 [shape = 's32[1]{0}', space=sflag, size = 0x4, scoped, tag = 'scoped memory for tile.23']
  %s0 = inlined_call_operand.vmem [shape: f32[16], index: 0, kind: input, shape index: {}]
  %s1 = inlined_call_operand.vmem [shape: f32[4,16], index: 1, kind: output, shape index: {}]
  // Predicated region
  $region2: #{tile.23} parent=0 // pred_check
    _
  $region3: #{tile.23} parent=0 // pred_check_branch
    %3 = sbr.rel (0) target = $region5
  $region4: #{tile.23} parent=0 // pred_region
    _
  $region5: #{tile.23} parent=0 // pred_fallthru
    _
  %v4 = vld [vmem:[%s0] ss:$0 sm:$0xff]
  %5 = vst [vmem:[%s1] sm:$0xf] %v4

// kernel: tile.24
$region0: #{tile.24}
  %s0 = inlined_call_operand.vmem [shape: f32[4,16], index: 0, kind: input, shape index: {}]
  %s1 = inlined_call_operand.vmem [shape: f32[1,64], index: 1, kind: output, shape index: {}]
  $region1: #{tile.24} parent=0
    #allocation0 [shape = 'u8[4096]{0}', space=vmem, size = 0x1000, scoped, tag = 'scoped mem for output reshape']
    #allocation1 [shape = 'u8[4096]{0}', space=vmem, size = 0x1000, scoped, tag = 'scoped mem for input reshape']
    %s3 = sshllo.u32 0, 4
    %v4 = vld [vmem:[%s0] sm:%s3]
    %5 = vst [vmem:[#allocation1] sm:%s3] %v4
    %v6 = vld [vmem:[#allocation1] sm:$0x1]
    %vm7 = vcmask 130048
    %8 = vst.msk [vmem:[#allocation0] sm:$0x1] %vm7, %v6
    %s9 = scalar_lea.vmem [#allocation1], 3
    %v10 = vld [vmem:[%s9] sm:$0x1]
    %11 = vrot.lane.b32.xlu0 %v10, 48
    %v12 = vpop.permute.xlu0 %11
    %vm13 = vcmask 523648
    %14 = vst.msk [vmem:[#allocation0] sm:$0x1] %vm13, %v12
    %s15 = scalar_lea.vmem [#allocation1], 2
    %v16 = vld [vmem:[%s15] sm:$0x1]
    %17 = vrot.lane.b32.xlu0 %v16, 32
    %v18 = vpop.permute.xlu0 %17
    %vm19 = vcmask 392448
    %20 = vst.msk [vmem:[#allocation0] sm:$0x1] %vm19, %v18
    %s21 = scalar_lea.vmem [#allocation1], 1
    %v22 = vld [vmem:[%s21] sm:$0x1]
    %23 = vrot.lane.b32.xlu0 %v22, 16
    %v24 = vpop.permute.xlu0 %23
    %vm25 = vcmask 261248
    %26 = vst.msk [vmem:[#allocation0] sm:$0x1] %vm25, %v24
    %s28 = sshllo.u32 0, 1
    %v30 = vld [vmem:[#allocation0] sm:%s28]
    %s31 = sshllo.u32 0, 1
    %32 = vst [vmem:[%s1] sm:%s31] %v30

// kernel: forward.14
$region0: #{forward.14}
  #allocation0 [shape = 'u32[]', space=smem, size = 0x4, offset = 0x4, fixed_abs, tag = 'smem constant byte address 0x4 - core index']
  #allocation1 [shape = 'u32[144,128]{1,0:T(1,128)}', space=vmem, size = 0x12000, scoped, tag = 'internal scratch']
  %s0 = inlined_call_operand.vmem [shape: f32[56,32], index: 0, kind: input, shape index: {}]
  %s1 = inlined_call_operand.vmem [shape: f32[32,64], index: 1, kind: input, shape index: {}]
  %s2 = inlined_call_operand.vmem [shape: f32[1,64], index: 2, kind: input, shape index: {}]
  %s3 = inlined_call_operand.vmem [shape: f32[56,64], index: 3, kind: output, shape index: {}]
  %s4 = sld [smem:[#allocation0]]
  $region22: #{forward.14} parent=0
    _
  %s6 = ssub.s32 1, %s4
  %s7 = scalar_select 0, %s6, %s4
  // Predicated region
  $region2: #{forward.14} parent=0 // pred_check
    _
  $region3: #{forward.14} parent=0 // pred_check_branch
    %9 = sbr.rel (0) target = $region5
  $region4: #{forward.14} parent=0 // pred_region
    _
  $region5: #{forward.14} parent=0 // pred_fallthru
    _
  // Predicated region
  $region6: #{forward.14} parent=0 // pred_check
    _
  $region7: #{forward.14} parent=0 // pred_check_branch
    %11 = sbr.rel (0) target = $region9
  $region8: #{forward.14} parent=0 // pred_region
    _
  $region9: #{forward.14} parent=0 // pred_fallthru
    _
  // Predicated region
  $region10: #{forward.14} parent=0 // pred_check
    _
  $region11: #{forward.14} parent=0 // pred_check_branch
    %13 = sbr.rel (0) target = $region13
  $region12: #{forward.14} parent=0 // pred_region
    _
  $region13: #{forward.14} parent=0 // pred_fallthru
    _
  %v14 = vld [vmem:[%s0] sm:$0xff]
  %v15 = vld [vmem:[%s0 + $0x8] sm:$0xff]
  %v16 = vld [vmem:[%s0 + $0x10] sm:$0xff]
  %v17 = vld [vmem:[%s0 + $0x18] sm:$0xff]
  %v18 = vld [vmem:[%s0 + $0x20] sm:$0xff]
  %v19 = vld [vmem:[%s0 + $0x28] sm:$0xff]
  %v20 = vld [vmem:[%s0 + $0x30] sm:$0xff]
  %v21 = vld [vmem:[%s1] sm:$0xff]
  %v22 = vld [vmem:[%s1 + $0x8] sm:$0xff]
  %v23 = vld [vmem:[%s1 + $0x10] sm:$0xff]
  %v24 = vld [vmem:[%s1 + $0x18] sm:$0xff]
  %v25 = vld [vmem:[%s2] sm:$0x1]
  %v27 = vlaneseq
  %v28 = vshrl.u32 %v27, 7
  %v29 = vsub.s32 0, %v28
  %v30 = vrot.slane %v25, %v29
  %vm32 = vcmask 261120
  %v34 = vsel %vm32, %v14, 0
  %v37 = vsel %vm32, %v15, 0
  %v40 = vsel %vm32, %v16, 0
  %v43 = vsel %vm32, %v17, 0
  %v46 = vsel %vm32, %v18, 0
  %v49 = vsel %vm32, %v19, 0
  %v52 = vsel %vm32, %v20, 0
  %54 = vmatprep.subr.mxu0 0.0
  %55 = vmatpush1.msra.mxu0 %v21
  %56 = vmatprep.subr.mxu0 0.0
  %57 = vmatpush1.msra.mxu0 %v22
  %58 = vmatprep.subr.mxu0 0.0
  %59 = vmatpush1.msra.mxu0 %v23
  %60 = vmatprep.subr.mxu0 0.0
  %61 = vmatpush1.msra.mxu0 %v24
  %62 = vmatprep.subr.mxu0 0.0
  %63 = vmatpush1.msra.mxu0 0.0
  %64 = vmatprep.subr.mxu0 0.0
  %65 = vmatpush1.msra.mxu0 0.0
  %66 = vmatprep.subr.mxu0 0.0
  %67 = vmatpush1.msra.mxu0 0.0
  %68 = vmatprep.subr.mxu0 0.0
  %69 = vmatpush1.msra.mxu0 0.0
  %70 = vmatprep.subr.mxu0 0.0
  %71 = vmatpush1.msra.mxu0 0.0
  %72 = vmatprep.subr.mxu0 0.0
  %73 = vmatpush1.msra.mxu0 0.0
  %74 = vmatprep.subr.mxu0 0.0
  %75 = vmatpush1.msra.mxu0 0.0
  %76 = vmatprep.subr.mxu0 0.0
  %77 = vmatpush1.msra.mxu0 0.0
  %78 = vmatprep.subr.mxu0 0.0
  %79 = vmatpush1.msra.mxu0 0.0
  %80 = vmatprep.subr.mxu0 0.0
  %81 = vmatpush1.msra.mxu0 0.0
  %82 = vmatprep.subr.mxu0 0.0
  %83 = vmatpush1.msra.mxu0 0.0
  %84 = vmatprep.subr.mxu0 0.0
  %85 = vmatpush1.msra.mxu0 0.0
  %86 = vmatprep.subr.mxu0 0.0
  %87 = vmatpush1.msra.mxu0 0.0
  %88 = vmatprep.subr.mxu0 0.0
  %89 = vmatpush1.msra.mxu0 0.0
  %90 = vmatprep.subr.mxu0 0.0
  %91 = vmatpush1.msra.mxu0 0.0
  %92 = vmatprep.subr.mxu0 0.0
  %93 = vmatpush1.msra.mxu0 0.0
  %94 = vmatprep.subr.mxu0 0.0
  %95 = vmatpush1.msra.mxu0 0.0
  %96 = vmatprep.subr.mxu0 0.0
  %97 = vmatpush1.msra.mxu0 0.0
  %98 = vmatprep.subr.mxu0 0.0
  %99 = vmatpush1.msra.mxu0 0.0
  %100 = vmatprep.subr.mxu0 0.0
  %101 = vmatpush1.msra.mxu0 0.0
  %102 = vmatprep.subr.mxu0 0.0
  %103 = vmatpush1.msra.mxu0 0.0
  %104 = vmatprep.subr.mxu0 0.0
  %105 = vmatpush1.msra.mxu0 0.0
  %106 = vmatprep.subr.mxu0 0.0
  %107 = vmatpush1.msra.mxu0 0.0
  %108 = vmatprep.subr.mxu0 0.0
  %109 = vmatpush1.msra.mxu0 0.0
  %110 = vmatprep.subr.mxu0 0.0
  %111 = vmatpush1.msra.mxu0 0.0
  %112 = vmatprep.subr.mxu0 0.0
  %113 = vmatpush1.msra.mxu0 0.0
  %114 = vmatprep.subr.mxu0 0.0
  %115 = vmatpush1.msra.mxu0 0.0
  %116 = vmatprep.subr.mxu0 0.0
  %117 = vmatpush1.msra.mxu0 0.0
  %118 = vmatprep.mubr.f32.mxu0 0.0
  %119 = vmatmul.mubr.f32.gmra.mrb[0].mxu0 %v34
  %v120 = vpop.f32.mrb[0].mxu0
  %v121 = vadd.f32 %v30, %v120
  %v122 = vpop.f32.mrb[0].mxu0
  %123 = vmatprep.mubr.f32.mxu0 0.0
  %124 = vmatmul.mubr.f32.gmra.mrb[0].mxu0 %v37
  %v125 = vpop.f32.mrb[0].mxu0
  %v126 = vadd.f32 %v30, %v125
  %v127 = vpop.f32.mrb[0].mxu0
  %128 = vmatprep.mubr.f32.mxu0 0.0
  %129 = vmatmul.mubr.f32.gmra.mrb[0].mxu0 %v40
  %v130 = vpop.f32.mrb[0].mxu0
  %v131 = vadd.f32 %v30, %v130
  %v132 = vpop.f32.mrb[0].mxu0
  %133 = vmatprep.mubr.f32.mxu0 0.0
  %134 = vmatmul.mubr.f32.gmra.mrb[0].mxu0 %v43
  %v135 = vpop.f32.mrb[0].mxu0
  %v136 = vadd.f32 %v30, %v135
  %v137 = vpop.f32.mrb[0].mxu0
  %138 = vmatprep.mubr.f32.mxu0 0.0
  %139 = vmatmul.mubr.f32.gmra.mrb[0].mxu0 %v46
  %v140 = vpop.f32.mrb[0].mxu0
  %v141 = vadd.f32 %v30, %v140
  %v142 = vpop.f32.mrb[0].mxu0
  %143 = vmatprep.mubr.f32.mxu0 0.0
  %144 = vmatmul.mubr.f32.gmra.mrb[0].mxu0 %v49
  %v145 = vpop.f32.mrb[0].mxu0
  %v146 = vadd.f32 %v30, %v145
  %v147 = vpop.f32.mrb[0].mxu0
  %148 = vmatprep.mubr.f32.mxu0 0.0
  %149 = vmatmul.mubr.f32.gmra.mrb[0].mxu0 %v52
  %v150 = vpop.f32.mrb[0].mxu0
  %v151 = vadd.f32 %v30, %v150
  %v152 = vpop.f32.mrb[0].mxu0
  %153 = vdwg.mxu0
  %v154 = vmax.f32 %v121, 0.0
  %v155 = vmax.f32 %v126, 0.0
  %v156 = vmax.f32 %v131, 0.0
  %v157 = vmax.f32 %v136, 0.0
  %v158 = vmax.f32 %v141, 0.0
  %v159 = vmax.f32 %v146, 0.0
  %v160 = vmax.f32 %v151, 0.0
  %vm161 = vcmask 523264
  %162 = vst.msk [vmem:[%s3] sm:$0xff] %vm161, %v154
  %163 = vst.msk [vmem:[%s3 + $0x8] sm:$0xff] %vm161, %v155
  %164 = vst.msk [vmem:[%s3 + $0x10] sm:$0xff] %vm161, %v156
  %165 = vst.msk [vmem:[%s3 + $0x18] sm:$0xff] %vm161, %v157
  %166 = vst.msk [vmem:[%s3 + $0x20] sm:$0xff] %vm161, %v158
  %167 = vst.msk [vmem:[%s3 + $0x28] sm:$0xff] %vm161, %v159
  %168 = vst.msk [vmem:[%s3 + $0x30] sm:$0xff] %vm161, %v160
  // Predicated region
  $region14: #{forward.14} parent=0 // pred_check
    _
  $region15: #{forward.14} parent=0 // pred_check_branch
    %170 = sbr.rel (0) target = $region17
  $region16: #{forward.14} parent=0 // pred_region
    _
  $region17: #{forward.14} parent=0 // pred_fallthru
    _
  // Predicated region
  $region18: #{forward.14} parent=0 // pred_check
    _
  $region19: #{forward.14} parent=0 // pred_check_branch
    %172 = sbr.rel (0) target = $region21
  $region20: #{forward.14} parent=0 // pred_region
    _
  $region21: #{forward.14} parent=0 // pred_fallthru
    _

// kernel: tile.28
$region0: #{tile.28}
  #allocation0 [shape = 's32[1]{0}', space=sflag, size = 0x4, scoped, tag = 'scoped memory for tile.28']
  %s0 = inlined_call_operand.vmem [shape: f32[32], index: 0, kind: input, shape index: {}]
  %s1 = inlined_call_operand.vmem [shape: f32[4,32], index: 1, kind: output, shape index: {}]
  // Predicated region
  $region2: #{tile.28} parent=0 // pred_check
    _
  $region3: #{tile.28} parent=0 // pred_check_branch
    %3 = sbr.rel (0) target = $region5
  $region4: #{tile.28} parent=0 // pred_region
    _
  $region5: #{tile.28} parent=0 // pred_fallthru
    _
  %v4 = vld [vmem:[%s0] ss:$0 sm:$0xff]
  %5 = vst [vmem:[%s1] sm:$0xf] %v4

// kernel: tile.29
$region0: #{tile.29}
  %s0 = inlined_call_operand.vmem [shape: f32[4,32], index: 0, kind: input, shape index: {}]
  %s1 = inlined_call_operand.vmem [shape: f32[1,128], index: 1, kind: output, shape index: {}]
  $region1: #{tile.29} parent=0
    #allocation0 [shape = 'u8[4096]{0}', space=vmem, size = 0x1000, scoped, tag = 'scoped mem for output reshape']
    #allocation1 [shape = 'u8[4096]{0}', space=vmem, size = 0x1000, scoped, tag = 'scoped mem for input reshape']
    %s3 = sshllo.u32 0, 4
    %v4 = vld [vmem:[%s0] sm:%s3]
    %5 = vst [vmem:[#allocation1] sm:%s3] %v4
    %v6 = vld [vmem:[#allocation1] sm:$0x1]
    %vm7 = vcmask 261120
    %8 = vst.msk [vmem:[#allocation0] sm:$0x1] %vm7, %v6
    %s9 = scalar_lea.vmem [#allocation1], 3
    %v10 = vld [vmem:[%s9] sm:$0x1]
    %11 = vrot.lane.b32.xlu0 %v10, 96
    %v12 = vpop.permute.xlu0 %11
    %vm13 = vcmask 1048320
    %14 = vst.msk [vmem:[#allocation0] sm:$0x1] %vm13, %v12
    %s15 = scalar_lea.vmem [#allocation1], 2
    %v16 = vld [vmem:[%s15] sm:$0x1]
    %17 = vrot.lane.b32.xlu0 %v16, 64
    %v18 = vpop.permute.xlu0 %17
    %vm19 = vcmask 785920
    %20 = vst.msk [vmem:[#allocation0] sm:$0x1] %vm19, %v18
    %s21 = scalar_lea.vmem [#allocation1], 1
    %v22 = vld [vmem:[%s21] sm:$0x1]
    %23 = vrot.lane.b32.xlu0 %v22, 32
    %v24 = vpop.permute.xlu0 %23
    %vm25 = vcmask 523520
    %26 = vst.msk [vmem:[#allocation0] sm:$0x1] %vm25, %v24
    %s28 = sshllo.u32 0, 1
    %v30 = vld [vmem:[#allocation0] sm:%s28]
    %s31 = sshllo.u32 0, 1
    %32 = vst [vmem:[%s1] sm:%s31] %v30

// kernel: forward.15
$region0: #{forward.15}
  #allocation0 [shape = 'u32[]', space=smem, size = 0x4, offset = 0x4, fixed_abs, tag = 'smem constant byte address 0x4 - core index']
  #allocation1 [shape = 'u32[144,128]{1,0:T(1,128)}', space=vmem, size = 0x12000, scoped, tag = 'internal scratch']
  %s0 = inlined_call_operand.vmem [shape: f32[200,64], index: 0, kind: input, shape index: {}]
  %s1 = inlined_call_operand.vmem [shape: f32[64,128], index: 1, kind: input, shape index: {}]
  %s2 = inlined_call_operand.vmem [shape: f32[1,128], index: 2, kind: input, shape index: {}]
  %s3 = inlined_call_operand.vmem [shape: f32[200,128], index: 3, kind: output, shape index: {}]
  %s4 = sld [smem:[#allocation0]]
  $region22: #{forward.15} parent=0
    _
  %s6 = ssub.s32 1, %s4
  %s7 = scalar_select 0, %s6, %s4
  // Predicated region
  $region2: #{forward.15} parent=0 // pred_check
    _
  $region3: #{forward.15} parent=0 // pred_check_branch
    %9 = sbr.rel (0) target = $region5
  $region4: #{forward.15} parent=0 // pred_region
    _
  $region5: #{forward.15} parent=0 // pred_fallthru
    _
  // Predicated region
  $region6: #{forward.15} parent=0 // pred_check
    _
  $region7: #{forward.15} parent=0 // pred_check_branch
    %11 = sbr.rel (0) target = $region9
  $region8: #{forward.15} parent=0 // pred_region
    _
  $region9: #{forward.15} parent=0 // pred_fallthru
    _
  // Predicated region
  $region10: #{forward.15} parent=0 // pred_check
    _
  $region11: #{forward.15} parent=0 // pred_check_branch
    %13 = sbr.rel (0) target = $region13
  $region12: #{forward.15} parent=0 // pred_region
    _
  $region13: #{forward.15} parent=0 // pred_fallthru
    _
  %v14 = vld [vmem:[%s0] sm:$0xff]
  %v15 = vld [vmem:[%s0 + $0x8] sm:$0xff]
  %v16 = vld [vmem:[%s0 + $0x10] sm:$0xff]
  %v17 = vld [vmem:[%s0 + $0x18] sm:$0xff]
  %v18 = vld [vmem:[%s0 + $0x20] sm:$0xff]
  %v19 = vld [vmem:[%s0 + $0x28] sm:$0xff]
  %v20 = vld [vmem:[%s0 + $0x30] sm:$0xff]
  %v21 = vld [vmem:[%s0 + $0x38] sm:$0xff]
  %v22 = vld [vmem:[%s0 + $0x40] sm:$0xff]
  %v23 = vld [vmem:[%s0 + $0x48] sm:$0xff]
  %v24 = vld [vmem:[%s0 + $0x50] sm:$0xff]
  %v25 = vld [vmem:[%s0 + $0x58] sm:$0xff]
  %v26 = vld [vmem:[%s0 + $0x60] sm:$0xff]
  %v27 = vld [vmem:[%s0 + $0x68] sm:$0xff]
  %v28 = vld [vmem:[%s0 + $0x70] sm:$0xff]
  %v29 = vld [vmem:[%s0 + $0x78] sm:$0xff]
  %v30 = vld [vmem:[%s0 + $0x80] sm:$0xff]
  %v31 = vld [vmem:[%s0 + $0x88] sm:$0xff]
  %v32 = vld [vmem:[%s0 + $0x90] sm:$0xff]
  %v33 = vld [vmem:[%s0 + $0x98] sm:$0xff]
  %v34 = vld [vmem:[%s0 + $0xa0] sm:$0xff]
  %v35 = vld [vmem:[%s0 + $0xa8] sm:$0xff]
  %v36 = vld [vmem:[%s0 + $0xb0] sm:$0xff]
  %v37 = vld [vmem:[%s0 + $0xb8] sm:$0xff]
  %v38 = vld [vmem:[%s0 + $0xc0] sm:$0xff]
  %v39 = vld [vmem:[%s1] sm:$0xff]
  %v40 = vld [vmem:[%s1 + $0x8] sm:$0xff]
  %v41 = vld [vmem:[%s1 + $0x10] sm:$0xff]
  %v42 = vld [vmem:[%s1 + $0x18] sm:$0xff]
  %v43 = vld [vmem:[%s1 + $0x20] sm:$0xff]
  %v44 = vld [vmem:[%s1 + $0x28] sm:$0xff]
  %v45 = vld [vmem:[%s1 + $0x30] sm:$0xff]
  %v46 = vld [vmem:[%s1 + $0x38] sm:$0xff]
  %v47 = vld [vmem:[%s2] sm:$0x1]
  %v49 = vlaneseq
  %v50 = vshrl.u32 %v49, 7
  %v51 = vsub.s32 0, %v50
  %v52 = vrot.slane %v47, %v51
  %vm54 = vcmask 523264
  %v56 = vsel %vm54, %v14, 0
  %v59 = vsel %vm54, %v15, 0
  %v62 = vsel %vm54, %v16, 0
  %v65 = vsel %vm54, %v17, 0
  %v68 = vsel %vm54, %v18, 0
  %v71 = vsel %vm54, %v19, 0
  %v74 = vsel %vm54, %v20, 0
  %v77 = vsel %vm54, %v21, 0
  %v80 = vsel %vm54, %v22, 0
  %v83 = vsel %vm54, %v23, 0
  %v86 = vsel %vm54, %v24, 0
  %v89 = vsel %vm54, %v25, 0
  %v92 = vsel %vm54, %v26, 0
  %v95 = vsel %vm54, %v27, 0
  %v98 = vsel %vm54, %v28, 0
  %v101 = vsel %vm54, %v29, 0
  %v104 = vsel %vm54, %v30, 0
  %v107 = vsel %vm54, %v31, 0
  %v110 = vsel %vm54, %v32, 0
  %v113 = vsel %vm54, %v33, 0
  %v116 = vsel %vm54, %v34, 0
  %v119 = vsel %vm54, %v35, 0
  %v122 = vsel %vm54, %v36, 0
  %v125 = vsel %vm54, %v37, 0
  %v128 = vsel %vm54, %v38, 0
  %130 = vmatprep.subr.mxu0 0.0
  %131 = vmatpush1.msra.mxu0 %v39
  %132 = vmatprep.subr.mxu0 0.0
  %133 = vmatpush1.msra.mxu0 %v40
  %134 = vmatprep.subr.mxu0 0.0
  %135 = vmatpush1.msra.mxu0 %v41
  %136 = vmatprep.subr.mxu0 0.0
  %137 = vmatpush1.msra.mxu0 %v42
  %138 = vmatprep.subr.mxu0 0.0
  %139 = vmatpush1.msra.mxu0 %v43
  %140 = vmatprep.subr.mxu0 0.0
  %141 = vmatpush1.msra.mxu0 %v44
  %142 = vmatprep.subr.mxu0 0.0
  %143 = vmatpush1.msra.mxu0 %v45
  %144 = vmatprep.subr.mxu0 0.0
  %145 = vmatpush1.msra.mxu0 %v46
  %146 = vmatprep.subr.mxu0 0.0
  %147 = vmatpush1.msra.mxu0 0.0
  %148 = vmatprep.subr.mxu0 0.0
  %149 = vmatpush1.msra.mxu0 0.0
  %150 = vmatprep.subr.mxu0 0.0
  %151 = vmatpush1.msra.mxu0 0.0
  %152 = vmatprep.subr.mxu0 0.0
  %153 = vmatpush1.msra.mxu0 0.0
  %154 = vmatprep.subr.mxu0 0.0
  %155 = vmatpush1.msra.mxu0 0.0
  %156 = vmatprep.subr.mxu0 0.0
  %157 = vmatpush1.msra.mxu0 0.0
  %158 = vmatprep.subr.mxu0 0.0
  %159 = vmatpush1.msra.mxu0 0.0
  %160 = vmatprep.subr.mxu0 0.0
  %161 = vmatpush1.msra.mxu0 0.0
  %162 = vmatprep.subr.mxu0 0.0
  %163 = vmatpush1.msra.mxu0 0.0
  %164 = vmatprep.subr.mxu0 0.0
  %165 = vmatpush1.msra.mxu0 0.0
  %166 = vmatprep.subr.mxu0 0.0
  %167 = vmatpush1.msra.mxu0 0.0
  %168 = vmatprep.subr.mxu0 0.0
  %169 = vmatpush1.msra.mxu0 0.0
  %170 = vmatprep.subr.mxu0 0.0
  %171 = vmatpush1.msra.mxu0 0.0
  %172 = vmatprep.subr.mxu0 0.0
  %173 = vmatpush1.msra.mxu0 0.0
  %174 = vmatprep.subr.mxu0 0.0
  %175 = vmatpush1.msra.mxu0 0.0
  %176 = vmatprep.subr.mxu0 0.0
  %177 = vmatpush1.msra.mxu0 0.0
  %178 = vmatprep.subr.mxu0 0.0
  %179 = vmatpush1.msra.mxu0 0.0
  %180 = vmatprep.subr.mxu0 0.0
  %181 = vmatpush1.msra.mxu0 0.0
  %182 = vmatprep.subr.mxu0 0.0
  %183 = vmatpush1.msra.mxu0 0.0
  %184 = vmatprep.subr.mxu0 0.0
  %185 = vmatpush1.msra.mxu0 0.0
  %186 = vmatprep.subr.mxu0 0.0
  %187 = vmatpush1.msra.mxu0 0.0
  %188 = vmatprep.subr.mxu0 0.0
  %189 = vmatpush1.msra.mxu0 0.0
  %190 = vmatprep.subr.mxu0 0.0
  %191 = vmatpush1.msra.mxu0 0.0
  %192 = vmatprep.subr.mxu0 0.0
  %193 = vmatpush1.msra.mxu0 0.0
  %194 = vmatprep.mubr.f32.mxu0 0.0
  %195 = vmatmul.mubr.f32.gmra.mrb[0].mxu0 %v56
  %v196 = vpop.f32.mrb[0].mxu0
  %v197 = vadd.f32 %v52, %v196
  %v198 = vpop.f32.mrb[0].mxu0
  %199 = vmatprep.mubr.f32.mxu0 0.0
  %200 = vmatmul.mubr.f32.gmra.mrb[0].mxu0 %v59
  %v201 = vpop.f32.mrb[0].mxu0
  %v202 = vadd.f32 %v52, %v201
  %v203 = vpop.f32.mrb[0].mxu0
  %204 = vmatprep.mubr.f32.mxu0 0.0
  %205 = vmatmul.mubr.f32.gmra.mrb[0].mxu0 %v62
  %v206 = vpop.f32.mrb[0].mxu0
  %v207 = vadd.f32 %v52, %v206
  %v208 = vpop.f32.mrb[0].mxu0
  %209 = vmatprep.mubr.f32.mxu0 0.0
  %210 = vmatmul.mubr.f32.gmra.mrb[0].mxu0 %v65
  %v211 = vpop.f32.mrb[0].mxu0
  %v212 = vadd.f32 %v52, %v211
  %v213 = vpop.f32.mrb[0].mxu0
  %214 = vmatprep.mubr.f32.mxu0 0.0
  %215 = vmatmul.mubr.f32.gmra.mrb[0].mxu0 %v68
  %v216 = vpop.f32.mrb[0].mxu0
  %v217 = vadd.f32 %v52, %v216
  %v218 = vpop.f32.mrb[0].mxu0
  %219 = vmatprep.mubr.f32.mxu0 0.0
  %220 = vmatmul.mubr.f32.gmra.mrb[0].mxu0 %v71
  %v221 = vpop.f32.mrb[0].mxu0
  %v222 = vadd.f32 %v52, %v221
  %v223 = vpop.f32.mrb[0].mxu0
  %224 = vmatprep.mubr.f32.mxu0 0.0
  %225 = vmatmul.mubr.f32.gmra.mrb[0].mxu0 %v74
  %v226 = vpop.f32.mrb[0].mxu0
  %v227 = vadd.f32 %v52, %v226
  %v228 = vpop.f32.mrb[0].mxu0
  %229 = vmatprep.mubr.f32.mxu0 0.0
  %230 = vmatmul.mubr.f32.gmra.mrb[0].mxu0 %v77
  %v231 = vpop.f32.mrb[0].mxu0
  %v232 = vadd.f32 %v52, %v231
  %v233 = vpop.f32.mrb[0].mxu0
  %234 = vmatprep.mubr.f32.mxu0 0.0
  %235 = vmatmul.mubr.f32.gmra.mrb[0].mxu0 %v80
  %v236 = vpop.f32.mrb[0].mxu0
  %v237 = vadd.f32 %v52, %v236
  %v238 = vpop.f32.mrb[0].mxu0
  %239 = vmatprep.mubr.f32.mxu0 0.0
  %240 = vmatmul.mubr.f32.gmra.mrb[0].mxu0 %v83
  %v241 = vpop.f32.mrb[0].mxu0
  %v242 = vadd.f32 %v52, %v241
  %v243 = vpop.f32.mrb[0].mxu0
  %244 = vmatprep.mubr.f32.mxu0 0.0
  %245 = vmatmul.mubr.f32.gmra.mrb[0].mxu0 %v86
  %v246 = vpop.f32.mrb[0].mxu0
  %v247 = vadd.f32 %v52, %v246
  %v248 = vpop.f32.mrb[0].mxu0
  %249 = vmatprep.mubr.f32.mxu0 0.0
  %250 = vmatmul.mubr.f32.gmra.mrb[0].mxu0 %v89
  %v251 = vpop.f32.mrb[0].mxu0
  %v252 = vadd.f32 %v52, %v251
  %v253 = vpop.f32.mrb[0].mxu0
  %254 = vmatprep.mubr.f32.mxu0 0.0
  %255 = vmatmul.mubr.f32.gmra.mrb[0].mxu0 %v92
  %v256 = vpop.f32.mrb[0].mxu0
  %v257 = vadd.f32 %v52, %v256
  %v258 = vpop.f32.mrb[0].mxu0
  %259 = vmatprep.mubr.f32.mxu0 0.0
  %260 = vmatmul.mubr.f32.gmra.mrb[0].mxu0 %v95
  %v261 = vpop.f32.mrb[0].mxu0
  %v262 = vadd.f32 %v52, %v261
  %v263 = vpop.f32.mrb[0].mxu0
  %264 = vmatprep.mubr.f32.mxu0 0.0
  %265 = vmatmul.mubr.f32.gmra.mrb[0].mxu0 %v98
  %v266 = vpop.f32.mrb[0].mxu0
  %v267 = vadd.f32 %v52, %v266
  %v268 = vpop.f32.mrb[0].mxu0
  %269 = vmatprep.mubr.f32.mxu0 0.0
  %270 = vmatmul.mubr.f32.gmra.mrb[0].mxu0 %v101
  %v271 = vpop.f32.mrb[0].mxu0
  %v272 = vadd.f32 %v52, %v271
  %v273 = vpop.f32.mrb[0].mxu0
  %274 = vmatprep.mubr.f32.mxu0 0.0
  %275 = vmatmul.mubr.f32.gmra.mrb[0].mxu0 %v104
  %v276 = vpop.f32.mrb[0].mxu0
  %v277 = vadd.f32 %v52, %v276
  %v278 = vpop.f32.mrb[0].mxu0
  %279 = vmatprep.mubr.f32.mxu0 0.0
  %280 = vmatmul.mubr.f32.gmra.mrb[0].mxu0 %v107
  %v281 = vpop.f32.mrb[0].mxu0
  %v282 = vadd.f32 %v52, %v281
  %v283 = vpop.f32.mrb[0].mxu0
  %284 = vmatprep.mubr.f32.mxu0 0.0
  %285 = vmatmul.mubr.f32.gmra.mrb[0].mxu0 %v110
  %v286 = vpop.f32.mrb[0].mxu0
  %v287 = vadd.f32 %v52, %v286
  %v288 = vpop.f32.mrb[0].mxu0
  %289 = vmatprep.mubr.f32.mxu0 0.0
  %290 = vmatmul.mubr.f32.gmra.mrb[0].mxu0 %v113
  %v291 = vpop.f32.mrb[0].mxu0
  %v292 = vadd.f32 %v52, %v291
  %v293 = vpop.f32.mrb[0].mxu0
  %294 = vmatprep.mubr.f32.mxu0 0.0
  %295 = vmatmul.mubr.f32.gmra.mrb[0].mxu0 %v116
  %v296 = vpop.f32.mrb[0].mxu0
  %v297 = vadd.f32 %v52, %v296
  %v298 = vpop.f32.mrb[0].mxu0
  %299 = vmatprep.mubr.f32.mxu0 0.0
  %300 = vmatmul.mubr.f32.gmra.mrb[0].mxu0 %v119
  %v301 = vpop.f32.mrb[0].mxu0
  %v302 = vadd.f32 %v52, %v301
  %v303 = vpop.f32.mrb[0].mxu0
  %304 = vmatprep.mubr.f32.mxu0 0.0
  %305 = vmatmul.mubr.f32.gmra.mrb[0].mxu0 %v122
  %v306 = vpop.f32.mrb[0].mxu0
  %v307 = vadd.f32 %v52, %v306
  %v308 = vpop.f32.mrb[0].mxu0
  %309 = vmatprep.mubr.f32.mxu0 0.0
  %310 = vmatmul.mubr.f32.gmra.mrb[0].mxu0 %v125
  %v311 = vpop.f32.mrb[0].mxu0
  %v312 = vadd.f32 %v52, %v311
  %v313 = vpop.f32.mrb[0].mxu0
  %314 = vmatprep.mubr.f32.mxu0 0.0
  %315 = vmatmul.mubr.f32.gmra.mrb[0].mxu0 %v128
  %v316 = vpop.f32.mrb[0].mxu0
  %v317 = vadd.f32 %v52, %v316
  %v318 = vpop.f32.mrb[0].mxu0
  %319 = vdwg.mxu0
  %v320 = vmax.f32 %v197, 0.0
  %v321 = vmax.f32 %v202, 0.0
  %v322 = vmax.f32 %v207, 0.0
  %v323 = vmax.f32 %v212, 0.0
  %v324 = vmax.f32 %v217, 0.0
  %v325 = vmax.f32 %v222, 0.0
  %v326 = vmax.f32 %v227, 0.0
  %v327 = vmax.f32 %v232, 0.0
  %v328 = vmax.f32 %v237, 0.0
  %v329 = vmax.f32 %v242, 0.0
  %v330 = vmax.f32 %v247, 0.0
  %v331 = vmax.f32 %v252, 0.0
  %v332 = vmax.f32 %v257, 0.0
  %v333 = vmax.f32 %v262, 0.0
  %v334 = vmax.f32 %v267, 0.0
  %v335 = vmax.f32 %v272, 0.0
  %v336 = vmax.f32 %v277, 0.0
  %v337 = vmax.f32 %v282, 0.0
  %v338 = vmax.f32 %v287, 0.0
  %v339 = vmax.f32 %v292, 0.0
  %v340 = vmax.f32 %v297, 0.0
  %v341 = vmax.f32 %v302, 0.0
  %v342 = vmax.f32 %v307, 0.0
  %v343 = vmax.f32 %v312, 0.0
  %v344 = vmax.f32 %v317, 0.0
  %345 = vst [vmem:[%s3] sm:$0xff] %v320
  %346 = vst [vmem:[%s3 + $0x8] sm:$0xff] %v321
  %347 = vst [vmem:[%s3 + $0x10] sm:$0xff] %v322
  %348 = vst [vmem:[%s3 + $0x18] sm:$0xff] %v323
  %349 = vst [vmem:[%s3 + $0x20] sm:$0xff] %v324
  %350 = vst [vmem:[%s3 + $0x28] sm:$0xff] %v325
  %351 = vst [vmem:[%s3 + $0x30] sm:$0xff] %v326
  %352 = vst [vmem:[%s3 + $0x38] sm:$0xff] %v327
  %353 = vst [vmem:[%s3 + $0x40] sm:$0xff] %v328
  %354 = vst [vmem:[%s3 + $0x48] sm:$0xff] %v329
  %355 = vst [vmem:[%s3 + $0x50] sm:$0xff] %v330
  %356 = vst [vmem:[%s3 + $0x58] sm:$0xff] %v331
  %357 = vst [vmem:[%s3 + $0x60] sm:$0xff] %v332
  %358 = vst [vmem:[%s3 + $0x68] sm:$0xff] %v333
  %359 = vst [vmem:[%s3 + $0x70] sm:$0xff] %v334
  %360 = vst [vmem:[%s3 + $0x78] sm:$0xff] %v335
  %361 = vst [vmem:[%s3 + $0x80] sm:$0xff] %v336
  %362 = vst [vmem:[%s3 + $0x88] sm:$0xff] %v337
  %363 = vst [vmem:[%s3 + $0x90] sm:$0xff] %v338
  %364 = vst [vmem:[%s3 + $0x98] sm:$0xff] %v339
  %365 = vst [vmem:[%s3 + $0xa0] sm:$0xff] %v340
  %366 = vst [vmem:[%s3 + $0xa8] sm:$0xff] %v341
  %367 = vst [vmem:[%s3 + $0xb0] sm:$0xff] %v342
  %368 = vst [vmem:[%s3 + $0xb8] sm:$0xff] %v343
  %369 = vst [vmem:[%s3 + $0xc0] sm:$0xff] %v344
  // Predicated region
  $region14: #{forward.15} parent=0 // pred_check
    _
  $region15: #{forward.15} parent=0 // pred_check_branch
    %371 = sbr.rel (0) target = $region17
  $region16: #{forward.15} parent=0 // pred_region
    _
  $region17: #{forward.15} parent=0 // pred_fallthru
    _
  // Predicated region
  $region18: #{forward.15} parent=0 // pred_check
    _
  $region19: #{forward.15} parent=0 // pred_check_branch
    %373 = sbr.rel (0) target = $region21
  $region20: #{forward.15} parent=0 // pred_region
    _
  $region21: #{forward.15} parent=0 // pred_fallthru
    _

// kernel: forward.16
$region0: #{forward.16}
  #allocation0 [shape = 'u32[]', space=smem, size = 0x4, offset = 0x4, fixed_abs, tag = 'smem constant byte address 0x4 - core index']
  #allocation1 [shape = 'u32[144,128]{1,0:T(1,128)}', space=vmem, size = 0x12000, scoped, tag = 'internal scratch']
  %s0 = inlined_call_operand.vmem [shape: f32[800,128], index: 0, kind: input, shape index: {}]
  %s1 = inlined_call_operand.vmem [shape: f32[128,128], index: 1, kind: input, shape index: {}]
  %s2 = inlined_call_operand.vmem [shape: f32[1,128], index: 2, kind: input, shape index: {}]
  %s3 = inlined_call_operand.vmem [shape: f32[800,128], index: 3, kind: output, shape index: {}]
  %s4 = sld [smem:[#allocation0]]
  $region22: #{forward.16} parent=0
    _
  %s6 = ssub.s32 1, %s4
  %s7 = scalar_select 0, %s6, %s4
  // Predicated region
  $region2: #{forward.16} parent=0 // pred_check
    _
  $region3: #{forward.16} parent=0 // pred_check_branch
    %9 = sbr.rel (0) target = $region5
  $region4: #{forward.16} parent=0 // pred_region
    _
  $region5: #{forward.16} parent=0 // pred_fallthru
    _
  // Predicated region
  $region6: #{forward.16} parent=0 // pred_check
    _
  $region7: #{forward.16} parent=0 // pred_check_branch
    %11 = sbr.rel (0) target = $region9
  $region8: #{forward.16} parent=0 // pred_region
    _
  $region9: #{forward.16} parent=0 // pred_fallthru
    _
  // Predicated region
  $region10: #{forward.16} parent=0 // pred_check
    _
  $region11: #{forward.16} parent=0 // pred_check_branch
    %13 = sbr.rel (0) target = $region13
  $region12: #{forward.16} parent=0 // pred_region
    _
  $region13: #{forward.16} parent=0 // pred_fallthru
    _
  %v14 = vld [vmem:[%s0] sm:$0xff]
  %v15 = vld [vmem:[%s0 + $0x8] sm:$0xff]
  %v16 = vld [vmem:[%s0 + $0x10] sm:$0xff]
  %v17 = vld [vmem:[%s0 + $0x18] sm:$0xff]
  %v18 = vld [vmem:[%s0 + $0x20] sm:$0xff]
  %v19 = vld [vmem:[%s0 + $0x28] sm:$0xff]
  %v20 = vld [vmem:[%s0 + $0x30] sm:$0xff]
  %v21 = vld [vmem:[%s0 + $0x38] sm:$0xff]
  %v22 = vld [vmem:[%s0 + $0x40] sm:$0xff]
  %v23 = vld [vmem:[%s0 + $0x48] sm:$0xff]
  %v24 = vld [vmem:[%s0 + $0x50] sm:$0xff]
  %v25 = vld [vmem:[%s0 + $0x58] sm:$0xff]
  %v26 = vld [vmem:[%s0 + $0x60] sm:$0xff]
  %v27 = vld [vmem:[%s0 + $0x68] sm:$0xff]
  %v28 = vld [vmem:[%s0 + $0x70] sm:$0xff]
  %v29 = vld [vmem:[%s0 + $0x78] sm:$0xff]
  %v30 = vld [vmem:[%s0 + $0x80] sm:$0xff]
  %v31 = vld [vmem:[%s0 + $0x88] sm:$0xff]
  %v32 = vld [vmem:[%s0 + $0x90] sm:$0xff]
  %v33 = vld [vmem:[%s0 + $0x98] sm:$0xff]
  %v34 = vld [vmem:[%s0 + $0xa0] sm:$0xff]
  %v35 = vld [vmem:[%s0 + $0xa8] sm:$0xff]
  %v36 = vld [vmem:[%s0 + $0xb0] sm:$0xff]
  %v37 = vld [vmem:[%s0 + $0xb8] sm:$0xff]
  %v38 = vld [vmem:[%s0 + $0xc0] sm:$0xff]
  %v39 = vld [vmem:[%s0 + $0xc8] sm:$0xff]
  %v40 = vld [vmem:[%s0 + $0xd0] sm:$0xff]
  %v41 = vld [vmem:[%s0 + $0xd8] sm:$0xff]
  %v42 = vld [vmem:[%s0 + $0xe0] sm:$0xff]
  %v43 = vld [vmem:[%s0 + $0xe8] sm:$0xff]
  %v44 = vld [vmem:[%s0 + $0xf0] sm:$0xff]
  %v45 = vld [vmem:[%s0 + $0xf8] sm:$0xff]
  %v46 = vld [vmem:[%s0 + $0x100] sm:$0xff]
  %v47 = vld [vmem:[%s0 + $0x108] sm:$0xff]
  %v48 = vld [vmem:[%s0 + $0x110] sm:$0xff]
  %v49 = vld [vmem:[%s0 + $0x118] sm:$0xff]
  %v50 = vld [vmem:[%s0 + $0x120] sm:$0xff]
  %v51 = vld [vmem:[%s0 + $0x128] sm:$0xff]
  %v52 = vld [vmem:[%s0 + $0x130] sm:$0xff]
  %v53 = vld [vmem:[%s0 + $0x138] sm:$0xff]
  %v54 = vld [vmem:[%s0 + $0x140] sm:$0xff]
  %v55 = vld [vmem:[%s0 + $0x148] sm:$0xff]
  %v56 = vld [vmem:[%s0 + $0x150] sm:$0xff]
  %v57 = vld [vmem:[%s0 + $0x158] sm:$0xff]
  %v58 = vld [vmem:[%s0 + $0x160] sm:$0xff]
  %v59 = vld [vmem:[%s0 + $0x168] sm:$0xff]
  %v60 = vld [vmem:[%s0 + $0x170] sm:$0xff]
  %v61 = vld [vmem:[%s0 + $0x178] sm:$0xff]
  %v62 = vld [vmem:[%s0 + $0x180] sm:$0xff]
  %v63 = vld [vmem:[%s0 + $0x188] sm:$0xff]
  %v64 = vld [vmem:[%s0 + $0x190] sm:$0xff]
  %v65 = vld [vmem:[%s0 + $0x198] sm:$0xff]
  %v66 = vld [vmem:[%s0 + $0x1a0] sm:$0xff]
  %v67 = vld [vmem:[%s0 + $0x1a8] sm:$0xff]
  %v68 = vld [vmem:[%s0 + $0x1b0] sm:$0xff]
  %v69 = vld [vmem:[%s0 + $0x1b8] sm:$0xff]
  %v70 = vld [vmem:[%s0 + $0x1c0] sm:$0xff]
  %v71 = vld [vmem:[%s0 + $0x1c8] sm:$0xff]
  %v72 = vld [vmem:[%s0 + $0x1d0] sm:$0xff]
  %v73 = vld [vmem:[%s0 + $0x1d8] sm:$0xff]
  %v74 = vld [vmem:[%s0 + $0x1e0] sm:$0xff]
  %v75 = vld [vmem:[%s0 + $0x1e8] sm:$0xff]
  %v76 = vld [vmem:[%s0 + $0x1f0] sm:$0xff]
  %v77 = vld [vmem:[%s0 + $0x1f8] sm:$0xff]
  %v78 = vld [vmem:[%s0 + $0x200] sm:$0xff]
  %v79 = vld [vmem:[%s0 + $0x208] sm:$0xff]
  %v80 = vld [vmem:[%s0 + $0x210] sm:$0xff]
  %v81 = vld [vmem:[%s0 + $0x218] sm:$0xff]
  %v82 = vld [vmem:[%s0 + $0x220] sm:$0xff]
  %v83 = vld [vmem:[%s0 + $0x228] sm:$0xff]
  %v84 = vld [vmem:[%s0 + $0x230] sm:$0xff]
  %v85 = vld [vmem:[%s0 + $0x238] sm:$0xff]
  %v86 = vld [vmem:[%s0 + $0x240] sm:$0xff]
  %v87 = vld [vmem:[%s0 + $0x248] sm:$0xff]
  %v88 = vld [vmem:[%s0 + $0x250] sm:$0xff]
  %v89 = vld [vmem:[%s0 + $0x258] sm:$0xff]
  %v90 = vld [vmem:[%s0 + $0x260] sm:$0xff]
  %v91 = vld [vmem:[%s0 + $0x268] sm:$0xff]
  %v92 = vld [vmem:[%s0 + $0x270] sm:$0xff]
  %v93 = vld [vmem:[%s0 + $0x278] sm:$0xff]
  %v94 = vld [vmem:[%s0 + $0x280] sm:$0xff]
  %v95 = vld [vmem:[%s0 + $0x288] sm:$0xff]
  %v96 = vld [vmem:[%s0 + $0x290] sm:$0xff]
  %v97 = vld [vmem:[%s0 + $0x298] sm:$0xff]
  %v98 = vld [vmem:[%s0 + $0x2a0] sm:$0xff]
  %v99 = vld [vmem:[%s0 + $0x2a8] sm:$0xff]
  %v100 = vld [vmem:[%s0 + $0x2b0] sm:$0xff]
  %v101 = vld [vmem:[%s0 + $0x2b8] sm:$0xff]
  %v102 = vld [vmem:[%s0 + $0x2c0] sm:$0xff]
  %v103 = vld [vmem:[%s0 + $0x2c8] sm:$0xff]
  %v104 = vld [vmem:[%s0 + $0x2d0] sm:$0xff]
  %v105 = vld [vmem:[%s0 + $0x2d8] sm:$0xff]
  %v106 = vld [vmem:[%s0 + $0x2e0] sm:$0xff]
  %v107 = vld [vmem:[%s0 + $0x2e8] sm:$0xff]
  %v108 = vld [vmem:[%s0 + $0x2f0] sm:$0xff]
  %v109 = vld [vmem:[%s0 + $0x2f8] sm:$0xff]
  %v110 = vld [vmem:[%s0 + $0x300] sm:$0xff]
  %v111 = vld [vmem:[%s0 + $0x308] sm:$0xff]
  %v112 = vld [vmem:[%s0 + $0x310] sm:$0xff]
  %v113 = vld [vmem:[%s0 + $0x318] sm:$0xff]
  %v114 = vld [vmem:[%s1] sm:$0xff]
  %v115 = vld [vmem:[%s1 + $0x8] sm:$0xff]
  %v116 = vld [vmem:[%s1 + $0x10] sm:$0xff]
  %v117 = vld [vmem:[%s1 + $0x18] sm:$0xff]
  %v118 = vld [vmem:[%s1 + $0x20] sm:$0xff]
  %v119 = vld [vmem:[%s1 + $0x28] sm:$0xff]
  %v120 = vld [vmem:[%s1 + $0x30] sm:$0xff]
  %v121 = vld [vmem:[%s1 + $0x38] sm:$0xff]
  %v122 = vld [vmem:[%s1 + $0x40] sm:$0xff]
  %v123 = vld [vmem:[%s1 + $0x48] sm:$0xff]
  %v124 = vld [vmem:[%s1 + $0x50] sm:$0xff]
  %v125 = vld [vmem:[%s1 + $0x58] sm:$0xff]
  %v126 = vld [vmem:[%s1 + $0x60] sm:$0xff]
  %v127 = vld [vmem:[%s1 + $0x68] sm:$0xff]
  %v128 = vld [vmem:[%s1 + $0x70] sm:$0xff]
  %v129 = vld [vmem:[%s1 + $0x78] sm:$0xff]
  %v130 = vld [vmem:[%s2] sm:$0x1]
  %v132 = vlaneseq
  %v133 = vshrl.u32 %v132, 7
  %v134 = vsub.s32 0, %v133
  %v135 = vrot.slane %v130, %v134
  %137 = vmatprep.subr.mxu0 0.0
  %138 = vmatpush1.msra.mxu0 %v114
  %139 = vmatprep.subr.mxu0 0.0
  %140 = vmatpush1.msra.mxu0 %v115
  %141 = vmatprep.subr.mxu0 0.0
  %142 = vmatpush1.msra.mxu0 %v116
  %143 = vmatprep.subr.mxu0 0.0
  %144 = vmatpush1.msra.mxu0 %v117
  %145 = vmatprep.subr.mxu0 0.0
  %146 = vmatpush1.msra.mxu0 %v118
  %147 = vmatprep.subr.mxu0 0.0
  %148 = vmatpush1.msra.mxu0 %v119
  %149 = vmatprep.subr.mxu0 0.0
  %150 = vmatpush1.msra.mxu0 %v120
  %151 = vmatprep.subr.mxu0 0.0
  %152 = vmatpush1.msra.mxu0 %v121
  %153 = vmatprep.subr.mxu0 0.0
  %154 = vmatpush1.msra.mxu0 %v122
  %155 = vmatprep.subr.mxu0 0.0
  %156 = vmatpush1.msra.mxu0 %v123
  %157 = vmatprep.subr.mxu0 0.0
  %158 = vmatpush1.msra.mxu0 %v124
  %159 = vmatprep.subr.mxu0 0.0
  %160 = vmatpush1.msra.mxu0 %v125
  %161 = vmatprep.subr.mxu0 0.0
  %162 = vmatpush1.msra.mxu0 %v126
  %163 = vmatprep.subr.mxu0 0.0
  %164 = vmatpush1.msra.mxu0 %v127
  %165 = vmatprep.subr.mxu0 0.0
  %166 = vmatpush1.msra.mxu0 %v128
  %167 = vmatprep.subr.mxu0 0.0
  %168 = vmatpush1.msra.mxu0 %v129
  %169 = vmatprep.subr.mxu0 0.0
  %170 = vmatpush1.msra.mxu0 0.0
  %171 = vmatprep.subr.mxu0 0.0
  %172 = vmatpush1.msra.mxu0 0.0
  %173 = vmatprep.subr.mxu0 0.0
  %174 = vmatpush1.msra.mxu0 0.0
  %175 = vmatprep.subr.mxu0 0.0
  %176 = vmatpush1.msra.mxu0 0.0
  %177 = vmatprep.subr.mxu0 0.0
  %178 = vmatpush1.msra.mxu0 0.0
  %179 = vmatprep.subr.mxu0 0.0
  %180 = vmatpush1.msra.mxu0 0.0
  %181 = vmatprep.subr.mxu0 0.0
  %182 = vmatpush1.msra.mxu0 0.0
  %183 = vmatprep.subr.mxu0 0.0
  %184 = vmatpush1.msra.mxu0 0.0
  %185 = vmatprep.subr.mxu0 0.0
  %186 = vmatpush1.msra.mxu0 0.0
  %187 = vmatprep.subr.mxu0 0.0
  %188 = vmatpush1.msra.mxu0 0.0
  %189 = vmatprep.subr.mxu0 0.0
  %190 = vmatpush1.msra.mxu0 0.0
  %191 = vmatprep.subr.mxu0 0.0
  %192 = vmatpush1.msra.mxu0 0.0
  %193 = vmatprep.subr.mxu0 0.0
  %194 = vmatpush1.msra.mxu0 0.0
  %195 = vmatprep.subr.mxu0 0.0
  %196 = vmatpush1.msra.mxu0 0.0
  %197 = vmatprep.subr.mxu0 0.0
  %198 = vmatpush1.msra.mxu0 0.0
  %199 = vmatprep.subr.mxu0 0.0
  %200 = vmatpush1.msra.mxu0 0.0
  %201 = vmatprep.mubr.f32.mxu0 0.0
  %202 = vmatmul.mubr.f32.gmra.mrb[0].mxu0 %v14
  %v203 = vpop.f32.mrb[0].mxu0
  %v204 = vadd.f32 %v135, %v203
  %v205 = vpop.f32.mrb[0].mxu0
  %206 = vmatprep.mubr.f32.mxu0 0.0
  %207 = vmatmul.mubr.f32.gmra.mrb[0].mxu0 %v15
  %v208 = vpop.f32.mrb[0].mxu0
  %v209 = vadd.f32 %v135, %v208
  %v210 = vpop.f32.mrb[0].mxu0
  %211 = vmatprep.mubr.f32.mxu0 0.0
  %212 = vmatmul.mubr.f32.gmra.mrb[0].mxu0 %v16
  %v213 = vpop.f32.mrb[0].mxu0
  %v214 = vadd.f32 %v135, %v213
  %v215 = vpop.f32.mrb[0].mxu0
  %216 = vmatprep.mubr.f32.mxu0 0.0
  %217 = vmatmul.mubr.f32.gmra.mrb[0].mxu0 %v17
  %v218 = vpop.f32.mrb[0].mxu0
  %v219 = vadd.f32 %v135, %v218
  %v220 = vpop.f32.mrb[0].mxu0
  %221 = vmatprep.mubr.f32.mxu0 0.0
  %222 = vmatmul.mubr.f32.gmra.mrb[0].mxu0 %v18
  %v223 = vpop.f32.mrb[0].mxu0
  %v224 = vadd.f32 %v135, %v223
  %v225 = vpop.f32.mrb[0].mxu0
  %226 = vmatprep.mubr.f32.mxu0 0.0
  %227 = vmatmul.mubr.f32.gmra.mrb[0].mxu0 %v19
  %v228 = vpop.f32.mrb[0].mxu0
  %v229 = vadd.f32 %v135, %v228
  %v230 = vpop.f32.mrb[0].mxu0
  %231 = vmatprep.mubr.f32.mxu0 0.0
  %232 = vmatmul.mubr.f32.gmra.mrb[0].mxu0 %v20
  %v233 = vpop.f32.mrb[0].mxu0
  %v234 = vadd.f32 %v135, %v233
  %v235 = vpop.f32.mrb[0].mxu0
  %236 = vmatprep.mubr.f32.mxu0 0.0
  %237 = vmatmul.mubr.f32.gmra.mrb[0].mxu0 %v21
  %v238 = vpop.f32.mrb[0].mxu0
  %v239 = vadd.f32 %v135, %v238
  %v240 = vpop.f32.mrb[0].mxu0
  %241 = vmatprep.mubr.f32.mxu0 0.0
  %242 = vmatmul.mubr.f32.gmra.mrb[0].mxu0 %v22
  %v243 = vpop.f32.mrb[0].mxu0
  %v244 = vadd.f32 %v135, %v243
  %v245 = vpop.f32.mrb[0].mxu0
  %246 = vmatprep.mubr.f32.mxu0 0.0
  %247 = vmatmul.mubr.f32.gmra.mrb[0].mxu0 %v23
  %v248 = vpop.f32.mrb[0].mxu0
  %v249 = vadd.f32 %v135, %v248
  %v250 = vpop.f32.mrb[0].mxu0
  %251 = vmatprep.mubr.f32.mxu0 0.0
  %252 = vmatmul.mubr.f32.gmra.mrb[0].mxu0 %v24
  %v253 = vpop.f32.mrb[0].mxu0
  %v254 = vadd.f32 %v135, %v253
  %v255 = vpop.f32.mrb[0].mxu0
  %256 = vmatprep.mubr.f32.mxu0 0.0
  %257 = vmatmul.mubr.f32.gmra.mrb[0].mxu0 %v25
  %v258 = vpop.f32.mrb[0].mxu0
  %v259 = vadd.f32 %v135, %v258
  %v260 = vpop.f32.mrb[0].mxu0
  %261 = vmatprep.mubr.f32.mxu0 0.0
  %262 = vmatmul.mubr.f32.gmra.mrb[0].mxu0 %v26
  %v263 = vpop.f32.mrb[0].mxu0
  %v264 = vadd.f32 %v135, %v263
  %v265 = vpop.f32.mrb[0].mxu0
  %266 = vmatprep.mubr.f32.mxu0 0.0
  %267 = vmatmul.mubr.f32.gmra.mrb[0].mxu0 %v27
  %v268 = vpop.f32.mrb[0].mxu0
  %v269 = vadd.f32 %v135, %v268
  %v270 = vpop.f32.mrb[0].mxu0
  %271 = vmatprep.mubr.f32.mxu0 0.0
  %272 = vmatmul.mubr.f32.gmra.mrb[0].mxu0 %v28
  %v273 = vpop.f32.mrb[0].mxu0
  %v274 = vadd.f32 %v135, %v273
  %v275 = vpop.f32.mrb[0].mxu0
  %276 = vmatprep.mubr.f32.mxu0 0.0
  %277 = vmatmul.mubr.f32.gmra.mrb[0].mxu0 %v29
  %v278 = vpop.f32.mrb[0].mxu0
  %v279 = vadd.f32 %v135, %v278
  %v280 = vpop.f32.mrb[0].mxu0
  %281 = vmatprep.mubr.f32.mxu0 0.0
  %282 = vmatmul.mubr.f32.gmra.mrb[0].mxu0 %v30
  %v283 = vpop.f32.mrb[0].mxu0
  %v284 = vadd.f32 %v135, %v283
  %v285 = vpop.f32.mrb[0].mxu0
  %286 = vmatprep.mubr.f32.mxu0 0.0
  %287 = vmatmul.mubr.f32.gmra.mrb[0].mxu0 %v31
  %v288 = vpop.f32.mrb[0].mxu0
  %v289 = vadd.f32 %v135, %v288
  %v290 = vpop.f32.mrb[0].mxu0
  %291 = vmatprep.mubr.f32.mxu0 0.0
  %292 = vmatmul.mubr.f32.gmra.mrb[0].mxu0 %v32
  %v293 = vpop.f32.mrb[0].mxu0
  %v294 = vadd.f32 %v135, %v293
  %v295 = vpop.f32.mrb[0].mxu0
  %296 = vmatprep.mubr.f32.mxu0 0.0
  %297 = vmatmul.mubr.f32.gmra.mrb[0].mxu0 %v33
  %v298 = vpop.f32.mrb[0].mxu0
  %v299 = vadd.f32 %v135, %v298
  %v300 = vpop.f32.mrb[0].mxu0
  %301 = vmatprep.mubr.f32.mxu0 0.0
  %302 = vmatmul.mubr.f32.gmra.mrb[0].mxu0 %v34
  %v303 = vpop.f32.mrb[0].mxu0
  %v304 = vadd.f32 %v135, %v303
  %v305 = vpop.f32.mrb[0].mxu0
  %306 = vmatprep.mubr.f32.mxu0 0.0
  %307 = vmatmul.mubr.f32.gmra.mrb[0].mxu0 %v35
  %v308 = vpop.f32.mrb[0].mxu0
  %v309 = vadd.f32 %v135, %v308
  %v310 = vpop.f32.mrb[0].mxu0
  %311 = vmatprep.mubr.f32.mxu0 0.0
  %312 = vmatmul.mubr.f32.gmra.mrb[0].mxu0 %v36
  %v313 = vpop.f32.mrb[0].mxu0
  %v314 = vadd.f32 %v135, %v313
  %v315 = vpop.f32.mrb[0].mxu0
  %316 = vmatprep.mubr.f32.mxu0 0.0
  %317 = vmatmul.mubr.f32.gmra.mrb[0].mxu0 %v37
  %v318 = vpop.f32.mrb[0].mxu0
  %v319 = vadd.f32 %v135, %v318
  %v320 = vpop.f32.mrb[0].mxu0
  %321 = vmatprep.mubr.f32.mxu0 0.0
  %322 = vmatmul.mubr.f32.gmra.mrb[0].mxu0 %v38
  %v323 = vpop.f32.mrb[0].mxu0
  %v324 = vadd.f32 %v135, %v323
  %v325 = vpop.f32.mrb[0].mxu0
  %326 = vmatprep.mubr.f32.mxu0 0.0
  %327 = vmatmul.mubr.f32.gmra.mrb[0].mxu0 %v39
  %v328 = vpop.f32.mrb[0].mxu0
  %v329 = vadd.f32 %v135, %v328
  %v330 = vpop.f32.mrb[0].mxu0
  %331 = vmatprep.mubr.f32.mxu0 0.0
  %332 = vmatmul.mubr.f32.gmra.mrb[0].mxu0 %v40
  %v333 = vpop.f32.mrb[0].mxu0
  %v334 = vadd.f32 %v135, %v333
  %v335 = vpop.f32.mrb[0].mxu0
  %336 = vmatprep.mubr.f32.mxu0 0.0
  %337 = vmatmul.mubr.f32.gmra.mrb[0].mxu0 %v41
  %v338 = vpop.f32.mrb[0].mxu0
  %v339 = vadd.f32 %v135, %v338
  %v340 = vpop.f32.mrb[0].mxu0
  %341 = vmatprep.mubr.f32.mxu0 0.0
  %342 = vmatmul.mubr.f32.gmra.mrb[0].mxu0 %v42
  %v343 = vpop.f32.mrb[0].mxu0
  %v344 = vadd.f32 %v135, %v343
  %v345 = vpop.f32.mrb[0].mxu0
  %346 = vmatprep.mubr.f32.mxu0 0.0
  %347 = vmatmul.mubr.f32.gmra.mrb[0].mxu0 %v43
  %v348 = vpop.f32.mrb[0].mxu0
  %v349 = vadd.f32 %v135, %v348
  %v350 = vpop.f32.mrb[0].mxu0
  %351 = vmatprep.mubr.f32.mxu0 0.0
  %352 = vmatmul.mubr.f32.gmra.mrb[0].mxu0 %v44
  %v353 = vpop.f32.mrb[0].mxu0
  %v354 = vadd.f32 %v135, %v353
  %v355 = vpop.f32.mrb[0].mxu0
  %356 = vmatprep.mubr.f32.mxu0 0.0
  %357 = vmatmul.mubr.f32.gmra.mrb[0].mxu0 %v45
  %v358 = vpop.f32.mrb[0].mxu0
  %v359 = vadd.f32 %v135, %v358
  %v360 = vpop.f32.mrb[0].mxu0
  %361 = vmatprep.mubr.f32.mxu0 0.0
  %362 = vmatmul.mubr.f32.gmra.mrb[0].mxu0 %v46
  %v363 = vpop.f32.mrb[0].mxu0
  %v364 = vadd.f32 %v135, %v363
  %v365 = vpop.f32.mrb[0].mxu0
  %366 = vmatprep.mubr.f32.mxu0 0.0
  %367 = vmatmul.mubr.f32.gmra.mrb[0].mxu0 %v47
  %v368 = vpop.f32.mrb[0].mxu0
  %v369 = vadd.f32 %v135, %v368
  %v370 = vpop.f32.mrb[0].mxu0
  %371 = vmatprep.mubr.f32.mxu0 0.0
  %372 = vmatmul.mubr.f32.gmra.mrb[0].mxu0 %v48
  %v373 = vpop.f32.mrb[0].mxu0
  %v374 = vadd.f32 %v135, %v373
  %v375 = vpop.f32.mrb[0].mxu0
  %376 = vmatprep.mubr.f32.mxu0 0.0
  %377 = vmatmul.mubr.f32.gmra.mrb[0].mxu0 %v49
  %v378 = vpop.f32.mrb[0].mxu0
  %v379 = vadd.f32 %v135, %v378
  %v380 = vpop.f32.mrb[0].mxu0
  %381 = vmatprep.mubr.f32.mxu0 0.0
  %382 = vmatmul.mubr.f32.gmra.mrb[0].mxu0 %v50
  %v383 = vpop.f32.mrb[0].mxu0
  %v384 = vadd.f32 %v135, %v383
  %v385 = vpop.f32.mrb[0].mxu0
  %386 = vmatprep.mubr.f32.mxu0 0.0
  %387 = vmatmul.mubr.f32.gmra.mrb[0].mxu0 %v51
  %v388 = vpop.f32.mrb[0].mxu0
  %v389 = vadd.f32 %v135, %v388
  %v390 = vpop.f32.mrb[0].mxu0
  %391 = vmatprep.mubr.f32.mxu0 0.0
  %392 = vmatmul.mubr.f32.gmra.mrb[0].mxu0 %v52
  %v393 = vpop.f32.mrb[0].mxu0
  %v394 = vadd.f32 %v135, %v393
  %v395 = vpop.f32.mrb[0].mxu0
  %396 = vmatprep.mubr.f32.mxu0 0.0
  %397 = vmatmul.mubr.f32.gmra.mrb[0].mxu0 %v53
  %v398 = vpop.f32.mrb[0].mxu0
  %v399 = vadd.f32 %v135, %v398
  %v400 = vpop.f32.mrb[0].mxu0
  %401 = vmatprep.mubr.f32.mxu0 0.0
  %402 = vmatmul.mubr.f32.gmra.mrb[0].mxu0 %v54
  %v403 = vpop.f32.mrb[0].mxu0
  %v404 = vadd.f32 %v135, %v403
  %v405 = vpop.f32.mrb[0].mxu0
  %406 = vmatprep.mubr.f32.mxu0 0.0
  %407 = vmatmul.mubr.f32.gmra.mrb[0].mxu0 %v55
  %v408 = vpop.f32.mrb[0].mxu0
  %v409 = vadd.f32 %v135, %v408
  %v410 = vpop.f32.mrb[0].mxu0
  %411 = vmatprep.mubr.f32.mxu0 0.0
  %412 = vmatmul.mubr.f32.gmra.mrb[0].mxu0 %v56
  %v413 = vpop.f32.mrb[0].mxu0
  %v414 = vadd.f32 %v135, %v413
  %v415 = vpop.f32.mrb[0].mxu0
  %416 = vmatprep.mubr.f32.mxu0 0.0
  %417 = vmatmul.mubr.f32.gmra.mrb[0].mxu0 %v57
  %v418 = vpop.f32.mrb[0].mxu0
  %v419 = vadd.f32 %v135, %v418
  %v420 = vpop.f32.mrb[0].mxu0
  %421 = vmatprep.mubr.f32.mxu0 0.0
  %422 = vmatmul.mubr.f32.gmra.mrb[0].mxu0 %v58
  %v423 = vpop.f32.mrb[0].mxu0
  %v424 = vadd.f32 %v135, %v423
  %v425 = vpop.f32.mrb[0].mxu0
  %426 = vmatprep.mubr.f32.mxu0 0.0
  %427 = vmatmul.mubr.f32.gmra.mrb[0].mxu0 %v59
  %v428 = vpop.f32.mrb[0].mxu0
  %v429 = vadd.f32 %v135, %v428
  %v430 = vpop.f32.mrb[0].mxu0
  %431 = vmatprep.mubr.f32.mxu0 0.0
  %432 = vmatmul.mubr.f32.gmra.mrb[0].mxu0 %v60
  %v433 = vpop.f32.mrb[0].mxu0
  %v434 = vadd.f32 %v135, %v433
  %v435 = vpop.f32.mrb[0].mxu0
  %436 = vmatprep.mubr.f32.mxu0 0.0
  %437 = vmatmul.mubr.f32.gmra.mrb[0].mxu0 %v61
  %v438 = vpop.f32.mrb[0].mxu0
  %v439 = vadd.f32 %v135, %v438
  %v440 = vpop.f32.mrb[0].mxu0
  %441 = vmatprep.mubr.f32.mxu0 0.0
  %442 = vmatmul.mubr.f32.gmra.mrb[0].mxu0 %v62
  %v443 = vpop.f32.mrb[0].mxu0
  %v444 = vadd.f32 %v135, %v443
  %v445 = vpop.f32.mrb[0].mxu0
  %446 = vmatprep.mubr.f32.mxu0 0.0
  %447 = vmatmul.mubr.f32.gmra.mrb[0].mxu0 %v63
  %v448 = vpop.f32.mrb[0].mxu0
  %v449 = vadd.f32 %v135, %v448
  %v450 = vpop.f32.mrb[0].mxu0
  %451 = vmatprep.mubr.f32.mxu0 0.0
  %452 = vmatmul.mubr.f32.gmra.mrb[0].mxu0 %v64
  %v453 = vpop.f32.mrb[0].mxu0
  %v454 = vadd.f32 %v135, %v453
  %v455 = vpop.f32.mrb[0].mxu0
  %456 = vmatprep.mubr.f32.mxu0 0.0
  %457 = vmatmul.mubr.f32.gmra.mrb[0].mxu0 %v65
  %v458 = vpop.f32.mrb[0].mxu0
  %v459 = vadd.f32 %v135, %v458
  %v460 = vpop.f32.mrb[0].mxu0
  %461 = vmatprep.mubr.f32.mxu0 0.0
  %462 = vmatmul.mubr.f32.gmra.mrb[0].mxu0 %v66
  %v463 = vpop.f32.mrb[0].mxu0
  %v464 = vadd.f32 %v135, %v463
  %v465 = vpop.f32.mrb[0].mxu0
  %466 = vmatprep.mubr.f32.mxu0 0.0
  %467 = vmatmul.mubr.f32.gmra.mrb[0].mxu0 %v67
  %v468 = vpop.f32.mrb[0].mxu0
  %v469 = vadd.f32 %v135, %v468
  %v470 = vpop.f32.mrb[0].mxu0
  %471 = vmatprep.mubr.f32.mxu0 0.0
  %472 = vmatmul.mubr.f32.gmra.mrb[0].mxu0 %v68
  %v473 = vpop.f32.mrb[0].mxu0
  %v474 = vadd.f32 %v135, %v473
  %v475 = vpop.f32.mrb[0].mxu0
  %476 = vmatprep.mubr.f32.mxu0 0.0
  %477 = vmatmul.mubr.f32.gmra.mrb[0].mxu0 %v69
  %v478 = vpop.f32.mrb[0].mxu0
  %v479 = vadd.f32 %v135, %v478
  %v480 = vpop.f32.mrb[0].mxu0
  %481 = vmatprep.mubr.f32.mxu0 0.0
  %482 = vmatmul.mubr.f32.gmra.mrb[0].mxu0 %v70
  %v483 = vpop.f32.mrb[0].mxu0
  %v484 = vadd.f32 %v135, %v483
  %v485 = vpop.f32.mrb[0].mxu0
  %486 = vmatprep.mubr.f32.mxu0 0.0
  %487 = vmatmul.mubr.f32.gmra.mrb[0].mxu0 %v71
  %v488 = vpop.f32.mrb[0].mxu0
  %v489 = vadd.f32 %v135, %v488
  %v490 = vpop.f32.mrb[0].mxu0
  %491 = vmatprep.mubr.f32.mxu0 0.0
  %492 = vmatmul.mubr.f32.gmra.mrb[0].mxu0 %v72
  %v493 = vpop.f32.mrb[0].mxu0
  %v494 = vadd.f32 %v135, %v493
  %v495 = vpop.f32.mrb[0].mxu0
  %496 = vmatprep.mubr.f32.mxu0 0.0
  %497 = vmatmul.mubr.f32.gmra.mrb[0].mxu0 %v73
  %v498 = vpop.f32.mrb[0].mxu0
  %v499 = vadd.f32 %v135, %v498
  %v500 = vpop.f32.mrb[0].mxu0
  %501 = vmatprep.mubr.f32.mxu0 0.0
  %502 = vmatmul.mubr.f32.gmra.mrb[0].mxu0 %v74
  %v503 = vpop.f32.mrb[0].mxu0
  %v504 = vadd.f32 %v135, %v503
  %v505 = vpop.f32.mrb[0].mxu0
  %506 = vmatprep.mubr.f32.mxu0 0.0
  %507 = vmatmul.mubr.f32.gmra.mrb[0].mxu0 %v75
  %v508 = vpop.f32.mrb[0].mxu0
  %v509 = vadd.f32 %v135, %v508
  %v510 = vpop.f32.mrb[0].mxu0
  %511 = vmatprep.mubr.f32.mxu0 0.0
  %512 = vmatmul.mubr.f32.gmra.mrb[0].mxu0 %v76
  %v513 = vpop.f32.mrb[0].mxu0
  %v514 = vadd.f32 %v135, %v513
  %v515 = vpop.f32.mrb[0].mxu0
  %516 = vmatprep.mubr.f32.mxu0 0.0
  %517 = vmatmul.mubr.f32.gmra.mrb[0].mxu0 %v77
  %v518 = vpop.f32.mrb[0].mxu0
  %v519 = vadd.f32 %v135, %v518
  %v520 = vpop.f32.mrb[0].mxu0
  %521 = vmatprep.mubr.f32.mxu0 0.0
  %522 = vmatmul.mubr.f32.gmra.mrb[0].mxu0 %v78
  %v523 = vpop.f32.mrb[0].mxu0
  %v524 = vadd.f32 %v135, %v523
  %v525 = vpop.f32.mrb[0].mxu0
  %526 = vmatprep.mubr.f32.mxu0 0.0
  %527 = vmatmul.mubr.f32.gmra.mrb[0].mxu0 %v79
  %v528 = vpop.f32.mrb[0].mxu0
  %v529 = vadd.f32 %v135, %v528
  %v530 = vpop.f32.mrb[0].mxu0
  %531 = vmatprep.mubr.f32.mxu0 0.0
  %532 = vmatmul.mubr.f32.gmra.mrb[0].mxu0 %v80
  %v533 = vpop.f32.mrb[0].mxu0
  %v534 = vadd.f32 %v135, %v533
  %v535 = vpop.f32.mrb[0].mxu0
  %536 = vmatprep.mubr.f32.mxu0 0.0
  %537 = vmatmul.mubr.f32.gmra.mrb[0].mxu0 %v81
  %v538 = vpop.f32.mrb[0].mxu0
  %v539 = vadd.f32 %v135, %v538
  %v540 = vpop.f32.mrb[0].mxu0
  %541 = vmatprep.mubr.f32.mxu0 0.0
  %542 = vmatmul.mubr.f32.gmra.mrb[0].mxu0 %v82
  %v543 = vpop.f32.mrb[0].mxu0
  %v544 = vadd.f32 %v135, %v543
  %v545 = vpop.f32.mrb[0].mxu0
  %546 = vmatprep.mubr.f32.mxu0 0.0
  %547 = vmatmul.mubr.f32.gmra.mrb[0].mxu0 %v83
  %v548 = vpop.f32.mrb[0].mxu0
  %v549 = vadd.f32 %v135, %v548
  %v550 = vpop.f32.mrb[0].mxu0
  %551 = vmatprep.mubr.f32.mxu0 0.0
  %552 = vmatmul.mubr.f32.gmra.mrb[0].mxu0 %v84
  %v553 = vpop.f32.mrb[0].mxu0
  %v554 = vadd.f32 %v135, %v553
  %v555 = vpop.f32.mrb[0].mxu0
  %556 = vmatprep.mubr.f32.mxu0 0.0
  %557 = vmatmul.mubr.f32.gmra.mrb[0].mxu0 %v85
  %v558 = vpop.f32.mrb[0].mxu0
  %v559 = vadd.f32 %v135, %v558
  %v560 = vpop.f32.mrb[0].mxu0
  %561 = vmatprep.mubr.f32.mxu0 0.0
  %562 = vmatmul.mubr.f32.gmra.mrb[0].mxu0 %v86
  %v563 = vpop.f32.mrb[0].mxu0
  %v564 = vadd.f32 %v135, %v563
  %v565 = vpop.f32.mrb[0].mxu0
  %566 = vmatprep.mubr.f32.mxu0 0.0
  %567 = vmatmul.mubr.f32.gmra.mrb[0].mxu0 %v87
  %v568 = vpop.f32.mrb[0].mxu0
  %v569 = vadd.f32 %v135, %v568
  %v570 = vpop.f32.mrb[0].mxu0
  %571 = vmatprep.mubr.f32.mxu0 0.0
  %572 = vmatmul.mubr.f32.gmra.mrb[0].mxu0 %v88
  %v573 = vpop.f32.mrb[0].mxu0
  %v574 = vadd.f32 %v135, %v573
  %v575 = vpop.f32.mrb[0].mxu0
  %576 = vmatprep.mubr.f32.mxu0 0.0
  %577 = vmatmul.mubr.f32.gmra.mrb[0].mxu0 %v89
  %v578 = vpop.f32.mrb[0].mxu0
  %v579 = vadd.f32 %v135, %v578
  %v580 = vpop.f32.mrb[0].mxu0
  %581 = vmatprep.mubr.f32.mxu0 0.0
  %582 = vmatmul.mubr.f32.gmra.mrb[0].mxu0 %v90
  %v583 = vpop.f32.mrb[0].mxu0
  %v584 = vadd.f32 %v135, %v583
  %v585 = vpop.f32.mrb[0].mxu0
  %586 = vmatprep.mubr.f32.mxu0 0.0
  %587 = vmatmul.mubr.f32.gmra.mrb[0].mxu0 %v91
  %v588 = vpop.f32.mrb[0].mxu0
  %v589 = vadd.f32 %v135, %v588
  %v590 = vpop.f32.mrb[0].mxu0
  %591 = vmatprep.mubr.f32.mxu0 0.0
  %592 = vmatmul.mubr.f32.gmra.mrb[0].mxu0 %v92
  %v593 = vpop.f32.mrb[0].mxu0
  %v594 = vadd.f32 %v135, %v593
  %v595 = vpop.f32.mrb[0].mxu0
  %596 = vmatprep.mubr.f32.mxu0 0.0
  %597 = vmatmul.mubr.f32.gmra.mrb[0].mxu0 %v93
  %v598 = vpop.f32.mrb[0].mxu0
  %v599 = vadd.f32 %v135, %v598
  %v600 = vpop.f32.mrb[0].mxu0
  %601 = vmatprep.mubr.f32.mxu0 0.0
  %602 = vmatmul.mubr.f32.gmra.mrb[0].mxu0 %v94
  %v603 = vpop.f32.mrb[0].mxu0
  %v604 = vadd.f32 %v135, %v603
  %v605 = vpop.f32.mrb[0].mxu0
  %606 = vmatprep.mubr.f32.mxu0 0.0
  %607 = vmatmul.mubr.f32.gmra.mrb[0].mxu0 %v95
  %v608 = vpop.f32.mrb[0].mxu0
  %v609 = vadd.f32 %v135, %v608
  %v610 = vpop.f32.mrb[0].mxu0
  %611 = vmatprep.mubr.f32.mxu0 0.0
  %612 = vmatmul.mubr.f32.gmra.mrb[0].mxu0 %v96
  %v613 = vpop.f32.mrb[0].mxu0
  %v614 = vadd.f32 %v135, %v613
  %v615 = vpop.f32.mrb[0].mxu0
  %616 = vmatprep.mubr.f32.mxu0 0.0
  %617 = vmatmul.mubr.f32.gmra.mrb[0].mxu0 %v97
  %v618 = vpop.f32.mrb[0].mxu0
  %v619 = vadd.f32 %v135, %v618
  %v620 = vpop.f32.mrb[0].mxu0
  %621 = vmatprep.mubr.f32.mxu0 0.0
  %622 = vmatmul.mubr.f32.gmra.mrb[0].mxu0 %v98
  %v623 = vpop.f32.mrb[0].mxu0
  %v624 = vadd.f32 %v135, %v623
  %v625 = vpop.f32.mrb[0].mxu0
  %626 = vmatprep.mubr.f32.mxu0 0.0
  %627 = vmatmul.mubr.f32.gmra.mrb[0].mxu0 %v99
  %v628 = vpop.f32.mrb[0].mxu0
  %v629 = vadd.f32 %v135, %v628
  %v630 = vpop.f32.mrb[0].mxu0
  %631 = vmatprep.mubr.f32.mxu0 0.0
  %632 = vmatmul.mubr.f32.gmra.mrb[0].mxu0 %v100
  %v633 = vpop.f32.mrb[0].mxu0
  %v634 = vadd.f32 %v135, %v633
  %v635 = vpop.f32.mrb[0].mxu0
  %636 = vmatprep.mubr.f32.mxu0 0.0
  %637 = vmatmul.mubr.f32.gmra.mrb[0].mxu0 %v101
  %v638 = vpop.f32.mrb[0].mxu0
  %v639 = vadd.f32 %v135, %v638
  %v640 = vpop.f32.mrb[0].mxu0
  %641 = vmatprep.mubr.f32.mxu0 0.0
  %642 = vmatmul.mubr.f32.gmra.mrb[0].mxu0 %v102
  %v643 = vpop.f32.mrb[0].mxu0
  %v644 = vadd.f32 %v135, %v643
  %v645 = vpop.f32.mrb[0].mxu0
  %646 = vmatprep.mubr.f32.mxu0 0.0
  %647 = vmatmul.mubr.f32.gmra.mrb[0].mxu0 %v103
  %v648 = vpop.f32.mrb[0].mxu0
  %v649 = vadd.f32 %v135, %v648
  %v650 = vpop.f32.mrb[0].mxu0
  %651 = vmatprep.mubr.f32.mxu0 0.0
  %652 = vmatmul.mubr.f32.gmra.mrb[0].mxu0 %v104
  %v653 = vpop.f32.mrb[0].mxu0
  %v654 = vadd.f32 %v135, %v653
  %v655 = vpop.f32.mrb[0].mxu0
  %656 = vmatprep.mubr.f32.mxu0 0.0
  %657 = vmatmul.mubr.f32.gmra.mrb[0].mxu0 %v105
  %v658 = vpop.f32.mrb[0].mxu0
  %v659 = vadd.f32 %v135, %v658
  %v660 = vpop.f32.mrb[0].mxu0
  %661 = vmatprep.mubr.f32.mxu0 0.0
  %662 = vmatmul.mubr.f32.gmra.mrb[0].mxu0 %v106
  %v663 = vpop.f32.mrb[0].mxu0
  %v664 = vadd.f32 %v135, %v663
  %v665 = vpop.f32.mrb[0].mxu0
  %666 = vmatprep.mubr.f32.mxu0 0.0
  %667 = vmatmul.mubr.f32.gmra.mrb[0].mxu0 %v107
  %v668 = vpop.f32.mrb[0].mxu0
  %v669 = vadd.f32 %v135, %v668
  %v670 = vpop.f32.mrb[0].mxu0
  %671 = vmatprep.mubr.f32.mxu0 0.0
  %672 = vmatmul.mubr.f32.gmra.mrb[0].mxu0 %v108
  %v673 = vpop.f32.mrb[0].mxu0
  %v674 = vadd.f32 %v135, %v673
  %v675 = vpop.f32.mrb[0].mxu0
  %676 = vmatprep.mubr.f32.mxu0 0.0
  %677 = vmatmul.mubr.f32.gmra.mrb[0].mxu0 %v109
  %v678 = vpop.f32.mrb[0].mxu0
  %v679 = vadd.f32 %v135, %v678
  %v680 = vpop.f32.mrb[0].mxu0
  %681 = vmatprep.mubr.f32.mxu0 0.0
  %682 = vmatmul.mubr.f32.gmra.mrb[0].mxu0 %v110
  %v683 = vpop.f32.mrb[0].mxu0
  %v684 = vadd.f32 %v135, %v683
  %v685 = vpop.f32.mrb[0].mxu0
  %686 = vmatprep.mubr.f32.mxu0 0.0
  %687 = vmatmul.mubr.f32.gmra.mrb[0].mxu0 %v111
  %v688 = vpop.f32.mrb[0].mxu0
  %v689 = vadd.f32 %v135, %v688
  %v690 = vpop.f32.mrb[0].mxu0
  %691 = vmatprep.mubr.f32.mxu0 0.0
  %692 = vmatmul.mubr.f32.gmra.mrb[0].mxu0 %v112
  %v693 = vpop.f32.mrb[0].mxu0
  %v694 = vadd.f32 %v135, %v693
  %v695 = vpop.f32.mrb[0].mxu0
  %696 = vmatprep.mubr.f32.mxu0 0.0
  %697 = vmatmul.mubr.f32.gmra.mrb[0].mxu0 %v113
  %v698 = vpop.f32.mrb[0].mxu0
  %v699 = vadd.f32 %v135, %v698
  %v700 = vpop.f32.mrb[0].mxu0
  %701 = vdwg.mxu0
  %v702 = vmax.f32 %v204, 0.0
  %v703 = vmax.f32 %v209, 0.0
  %v704 = vmax.f32 %v214, 0.0
  %v705 = vmax.f32 %v219, 0.0
  %v706 = vmax.f32 %v224, 0.0
  %v707 = vmax.f32 %v229, 0.0
  %v708 = vmax.f32 %v234, 0.0
  %v709 = vmax.f32 %v239, 0.0
  %v710 = vmax.f32 %v244, 0.0
  %v711 = vmax.f32 %v249, 0.0
  %v712 = vmax.f32 %v254, 0.0
  %v713 = vmax.f32 %v259, 0.0
  %v714 = vmax.f32 %v264, 0.0
  %v715 = vmax.f32 %v269, 0.0
  %v716 = vmax.f32 %v274, 0.0
  %v717 = vmax.f32 %v279, 0.0
  %v718 = vmax.f32 %v284, 0.0
  %v719 = vmax.f32 %v289, 0.0
  %v720 = vmax.f32 %v294, 0.0
  %v721 = vmax.f32 %v299, 0.0
  %v722 = vmax.f32 %v304, 0.0
  %v723 = vmax.f32 %v309, 0.0
  %v724 = vmax.f32 %v314, 0.0
  %v725 = vmax.f32 %v319, 0.0
  %v726 = vmax.f32 %v324, 0.0
  %v727 = vmax.f32 %v329, 0.0
  %v728 = vmax.f32 %v334, 0.0
  %v729 = vmax.f32 %v339, 0.0
  %v730 = vmax.f32 %v344, 0.0
  %v731 = vmax.f32 %v349, 0.0
  %v732 = vmax.f32 %v354, 0.0
  %v733 = vmax.f32 %v359, 0.0
  %v734 = vmax.f32 %v364, 0.0
  %v735 = vmax.f32 %v369, 0.0
  %v736 = vmax.f32 %v374, 0.0
  %v737 = vmax.f32 %v379, 0.0
  %v738 = vmax.f32 %v384, 0.0
  %v739 = vmax.f32 %v389, 0.0
  %v740 = vmax.f32 %v394, 0.0
  %v741 = vmax.f32 %v399, 0.0
  %v742 = vmax.f32 %v404, 0.0
  %v743 = vmax.f32 %v409, 0.0
  %v744 = vmax.f32 %v414, 0.0
  %v745 = vmax.f32 %v419, 0.0
  %v746 = vmax.f32 %v424, 0.0
  %v747 = vmax.f32 %v429, 0.0
  %v748 = vmax.f32 %v434, 0.0
  %v749 = vmax.f32 %v439, 0.0
  %v750 = vmax.f32 %v444, 0.0
  %v751 = vmax.f32 %v449, 0.0
  %v752 = vmax.f32 %v454, 0.0
  %v753 = vmax.f32 %v459, 0.0
  %v754 = vmax.f32 %v464, 0.0
  %v755 = vmax.f32 %v469, 0.0
  %v756 = vmax.f32 %v474, 0.0
  %v757 = vmax.f32 %v479, 0.0
  %v758 = vmax.f32 %v484, 0.0
  %v759 = vmax.f32 %v489, 0.0
  %v760 = vmax.f32 %v494, 0.0
  %v761 = vmax.f32 %v499, 0.0
  %v762 = vmax.f32 %v504, 0.0
  %v763 = vmax.f32 %v509, 0.0
  %v764 = vmax.f32 %v514, 0.0
  %v765 = vmax.f32 %v519, 0.0
  %v766 = vmax.f32 %v524, 0.0
  %v767 = vmax.f32 %v529, 0.0
  %v768 = vmax.f32 %v534, 0.0
  %v769 = vmax.f32 %v539, 0.0
  %v770 = vmax.f32 %v544, 0.0
  %v771 = vmax.f32 %v549, 0.0
  %v772 = vmax.f32 %v554, 0.0
  %v773 = vmax.f32 %v559, 0.0
  %v774 = vmax.f32 %v564, 0.0
  %v775 = vmax.f32 %v569, 0.0
  %v776 = vmax.f32 %v574, 0.0
  %v777 = vmax.f32 %v579, 0.0
  %v778 = vmax.f32 %v584, 0.0
  %v779 = vmax.f32 %v589, 0.0
  %v780 = vmax.f32 %v594, 0.0
  %v781 = vmax.f32 %v599, 0.0
  %v782 = vmax.f32 %v604, 0.0
  %v783 = vmax.f32 %v609, 0.0
  %v784 = vmax.f32 %v614, 0.0
  %v785 = vmax.f32 %v619, 0.0
  %v786 = vmax.f32 %v624, 0.0
  %v787 = vmax.f32 %v629, 0.0
  %v788 = vmax.f32 %v634, 0.0
  %v789 = vmax.f32 %v639, 0.0
  %v790 = vmax.f32 %v644, 0.0
  %v791 = vmax.f32 %v649, 0.0
  %v792 = vmax.f32 %v654, 0.0
  %v793 = vmax.f32 %v659, 0.0
  %v794 = vmax.f32 %v664, 0.0
  %v795 = vmax.f32 %v669, 0.0
  %v796 = vmax.f32 %v674, 0.0
  %v797 = vmax.f32 %v679, 0.0
  %v798 = vmax.f32 %v684, 0.0
  %v799 = vmax.f32 %v689, 0.0
  %v800 = vmax.f32 %v694, 0.0
  %v801 = vmax.f32 %v699, 0.0
  %802 = vst [vmem:[%s3] sm:$0xff] %v702
  %803 = vst [vmem:[%s3 + $0x8] sm:$0xff] %v703
  %804 = vst [vmem:[%s3 + $0x10] sm:$0xff] %v704
  %805 = vst [vmem:[%s3 + $0x18] sm:$0xff] %v705
  %806 = vst [vmem:[%s3 + $0x20] sm:$0xff] %v706
  %807 = vst [vmem:[%s3 + $0x28] sm:$0xff] %v707
  %808 = vst [vmem:[%s3 + $0x30] sm:$0xff] %v708
  %809 = vst [vmem:[%s3 + $0x38] sm:$0xff] %v709
  %810 = vst [vmem:[%s3 + $0x40] sm:$0xff] %v710
  %811 = vst [vmem:[%s3 + $0x48] sm:$0xff] %v711
  %812 = vst [vmem:[%s3 + $0x50] sm:$0xff] %v712
  %813 = vst [vmem:[%s3 + $0x58] sm:$0xff] %v713
  %814 = vst [vmem:[%s3 + $0x60] sm:$0xff] %v714
  %815 = vst [vmem:[%s3 + $0x68] sm:$0xff] %v715
  %816 = vst [vmem:[%s3 + $0x70] sm:$0xff] %v716
  %817 = vst [vmem:[%s3 + $0x78] sm:$0xff] %v717
  %818 = vst [vmem:[%s3 + $0x80] sm:$0xff] %v718
  %819 = vst [vmem:[%s3 + $0x88] sm:$0xff] %v719
  %820 = vst [vmem:[%s3 + $0x90] sm:$0xff] %v720
  %821 = vst [vmem:[%s3 + $0x98] sm:$0xff] %v721
  %822 = vst [vmem:[%s3 + $0xa0] sm:$0xff] %v722
  %823 = vst [vmem:[%s3 + $0xa8] sm:$0xff] %v723
  %824 = vst [vmem:[%s3 + $0xb0] sm:$0xff] %v724
  %825 = vst [vmem:[%s3 + $0xb8] sm:$0xff] %v725
  %826 = vst [vmem:[%s3 + $0xc0] sm:$0xff] %v726
  %827 = vst [vmem:[%s3 + $0xc8] sm:$0xff] %v727
  %828 = vst [vmem:[%s3 + $0xd0] sm:$0xff] %v728
  %829 = vst [vmem:[%s3 + $0xd8] sm:$0xff] %v729
  %830 = vst [vmem:[%s3 + $0xe0] sm:$0xff] %v730
  %831 = vst [vmem:[%s3 + $0xe8] sm:$0xff] %v731
  %832 = vst [vmem:[%s3 + $0xf0] sm:$0xff] %v732
  %833 = vst [vmem:[%s3 + $0xf8] sm:$0xff] %v733
  %834 = vst [vmem:[%s3 + $0x100] sm:$0xff] %v734
  %835 = vst [vmem:[%s3 + $0x108] sm:$0xff] %v735
  %836 = vst [vmem:[%s3 + $0x110] sm:$0xff] %v736
  %837 = vst [vmem:[%s3 + $0x118] sm:$0xff] %v737
  %838 = vst [vmem:[%s3 + $0x120] sm:$0xff] %v738
  %839 = vst [vmem:[%s3 + $0x128] sm:$0xff] %v739
  %840 = vst [vmem:[%s3 + $0x130] sm:$0xff] %v740
  %841 = vst [vmem:[%s3 + $0x138] sm:$0xff] %v741
  %842 = vst [vmem:[%s3 + $0x140] sm:$0xff] %v742
  %843 = vst [vmem:[%s3 + $0x148] sm:$0xff] %v743
  %844 = vst [vmem:[%s3 + $0x150] sm:$0xff] %v744
  %845 = vst [vmem:[%s3 + $0x158] sm:$0xff] %v745
  %846 = vst [vmem:[%s3 + $0x160] sm:$0xff] %v746
  %847 = vst [vmem:[%s3 + $0x168] sm:$0xff] %v747
  %848 = vst [vmem:[%s3 + $0x170] sm:$0xff] %v748
  %849 = vst [vmem:[%s3 + $0x178] sm:$0xff] %v749
  %850 = vst [vmem:[%s3 + $0x180] sm:$0xff] %v750
  %851 = vst [vmem:[%s3 + $0x188] sm:$0xff] %v751
  %852 = vst [vmem:[%s3 + $0x190] sm:$0xff] %v752
  %853 = vst [vmem:[%s3 + $0x198] sm:$0xff] %v753
  %854 = vst [vmem:[%s3 + $0x1a0] sm:$0xff] %v754
  %855 = vst [vmem:[%s3 + $0x1a8] sm:$0xff] %v755
  %856 = vst [vmem:[%s3 + $0x1b0] sm:$0xff] %v756
  %857 = vst [vmem:[%s3 + $0x1b8] sm:$0xff] %v757
  %858 = vst [vmem:[%s3 + $0x1c0] sm:$0xff] %v758
  %859 = vst [vmem:[%s3 + $0x1c8] sm:$0xff] %v759
  %860 = vst [vmem:[%s3 + $0x1d0] sm:$0xff] %v760
  %861 = vst [vmem:[%s3 + $0x1d8] sm:$0xff] %v761
  %862 = vst [vmem:[%s3 + $0x1e0] sm:$0xff] %v762
  %863 = vst [vmem:[%s3 + $0x1e8] sm:$0xff] %v763
  %864 = vst [vmem:[%s3 + $0x1f0] sm:$0xff] %v764
  %865 = vst [vmem:[%s3 + $0x1f8] sm:$0xff] %v765
  %866 = vst [vmem:[%s3 + $0x200] sm:$0xff] %v766
  %867 = vst [vmem:[%s3 + $0x208] sm:$0xff] %v767
  %868 = vst [vmem:[%s3 + $0x210] sm:$0xff] %v768
  %869 = vst [vmem:[%s3 + $0x218] sm:$0xff] %v769
  %870 = vst [vmem:[%s3 + $0x220] sm:$0xff] %v770
  %871 = vst [vmem:[%s3 + $0x228] sm:$0xff] %v771
  %872 = vst [vmem:[%s3 + $0x230] sm:$0xff] %v772
  %873 = vst [vmem:[%s3 + $0x238] sm:$0xff] %v773
  %874 = vst [vmem:[%s3 + $0x240] sm:$0xff] %v774
  %875 = vst [vmem:[%s3 + $0x248] sm:$0xff] %v775
  %876 = vst [vmem:[%s3 + $0x250] sm:$0xff] %v776
  %877 = vst [vmem:[%s3 + $0x258] sm:$0xff] %v777
  %878 = vst [vmem:[%s3 + $0x260] sm:$0xff] %v778
  %879 = vst [vmem:[%s3 + $0x268] sm:$0xff] %v779
  %880 = vst [vmem:[%s3 + $0x270] sm:$0xff] %v780
  %881 = vst [vmem:[%s3 + $0x278] sm:$0xff] %v781
  %882 = vst [vmem:[%s3 + $0x280] sm:$0xff] %v782
  %883 = vst [vmem:[%s3 + $0x288] sm:$0xff] %v783
  %884 = vst [vmem:[%s3 + $0x290] sm:$0xff] %v784
  %885 = vst [vmem:[%s3 + $0x298] sm:$0xff] %v785
  %886 = vst [vmem:[%s3 + $0x2a0] sm:$0xff] %v786
  %887 = vst [vmem:[%s3 + $0x2a8] sm:$0xff] %v787
  %888 = vst [vmem:[%s3 + $0x2b0] sm:$0xff] %v788
  %889 = vst [vmem:[%s3 + $0x2b8] sm:$0xff] %v789
  %890 = vst [vmem:[%s3 + $0x2c0] sm:$0xff] %v790
  %891 = vst [vmem:[%s3 + $0x2c8] sm:$0xff] %v791
  %892 = vst [vmem:[%s3 + $0x2d0] sm:$0xff] %v792
  %893 = vst [vmem:[%s3 + $0x2d8] sm:$0xff] %v793
  %894 = vst [vmem:[%s3 + $0x2e0] sm:$0xff] %v794
  %895 = vst [vmem:[%s3 + $0x2e8] sm:$0xff] %v795
  %896 = vst [vmem:[%s3 + $0x2f0] sm:$0xff] %v796
  %897 = vst [vmem:[%s3 + $0x2f8] sm:$0xff] %v797
  %898 = vst [vmem:[%s3 + $0x300] sm:$0xff] %v798
  %899 = vst [vmem:[%s3 + $0x308] sm:$0xff] %v799
  %900 = vst [vmem:[%s3 + $0x310] sm:$0xff] %v800
  %901 = vst [vmem:[%s3 + $0x318] sm:$0xff] %v801
  // Predicated region
  $region14: #{forward.16} parent=0 // pred_check
    _
  $region15: #{forward.16} parent=0 // pred_check_branch
    %903 = sbr.rel (0) target = $region17
  $region16: #{forward.16} parent=0 // pred_region
    _
  $region17: #{forward.16} parent=0 // pred_fallthru
    _
  // Predicated region
  $region18: #{forward.16} parent=0 // pred_check
    _
  $region19: #{forward.16} parent=0 // pred_check_branch
    %905 = sbr.rel (0) target = $region21
  $region20: #{forward.16} parent=0 // pred_region
    _
  $region21: #{forward.16} parent=0 // pred_fallthru
    _

// kernel: tile.38
$region0: #{tile.38}
  #allocation0 [shape = 's32[1]{0}', space=sflag, size = 0x4, scoped, tag = 'scoped memory for tile.38']
  %s0 = inlined_call_operand.vmem [shape: f32[4], index: 0, kind: input, shape index: {}]
  %s1 = inlined_call_operand.vmem [shape: f32[4,4], index: 1, kind: output, shape index: {}]
  // Predicated region
  $region2: #{tile.38} parent=0 // pred_check
    _
  $region3: #{tile.38} parent=0 // pred_check_branch
    %3 = sbr.rel (0) target = $region5
  $region4: #{tile.38} parent=0 // pred_region
    _
  $region5: #{tile.38} parent=0 // pred_fallthru
    _
  %v4 = vld [vmem:[%s0] ss:$0 sm:$0xff]
  %5 = vst [vmem:[%s1] sm:$0xf] %v4

// kernel: tile.39
$region0: #{tile.39}
  %s0 = inlined_call_operand.vmem [shape: f32[4,4], index: 0, kind: input, shape index: {}]
  %s1 = inlined_call_operand.vmem [shape: f32[1,16], index: 1, kind: output, shape index: {}]
  $region1: #{tile.39} parent=0
    #allocation0 [shape = 'u8[4096]{0}', space=vmem, size = 0x1000, scoped, tag = 'scoped mem for output reshape']
    #allocation1 [shape = 'u8[4096]{0}', space=vmem, size = 0x1000, scoped, tag = 'scoped mem for input reshape']
    %s3 = sshllo.u32 0, 4
    %v4 = vld [vmem:[%s0] sm:%s3]
    %5 = vst [vmem:[#allocation1] sm:%s3] %v4
    %v6 = vld [vmem:[#allocation1] sm:$0x1]
    %vm7 = vcmask 31744
    %8 = vst.msk [vmem:[#allocation0] sm:$0x1] %vm7, %v6
    %s9 = scalar_lea.vmem [#allocation1], 3
    %v10 = vld [vmem:[%s9] sm:$0x1]
    %11 = vrot.lane.b32.xlu0 %v10, 12
    %v12 = vpop.permute.xlu0 %11
    %vm13 = vcmask 130144
    %14 = vst.msk [vmem:[#allocation0] sm:$0x1] %vm13, %v12
    %s15 = scalar_lea.vmem [#allocation1], 2
    %v16 = vld [vmem:[%s15] sm:$0x1]
    %17 = vrot.lane.b32.xlu0 %v16, 8
    %v18 = vpop.permute.xlu0 %17
    %vm19 = vcmask 97344
    %20 = vst.msk [vmem:[#allocation0] sm:$0x1] %vm19, %v18
    %s21 = scalar_lea.vmem [#allocation1], 1
    %v22 = vld [vmem:[%s21] sm:$0x1]
    %23 = vrot.lane.b32.xlu0 %v22, 4
    %v24 = vpop.permute.xlu0 %23
    %vm25 = vcmask 64544
    %26 = vst.msk [vmem:[#allocation0] sm:$0x1] %vm25, %v24
    %s28 = sshllo.u32 0, 1
    %v30 = vld [vmem:[#allocation0] sm:%s28]
    %s31 = sshllo.u32 0, 1
    %32 = vst [vmem:[%s1] sm:%s31] %v30

// kernel: forward.17
$region0: #{forward.17}
  #allocation0 [shape = 'u32[]', space=smem, size = 0x4, offset = 0x4, fixed_abs, tag = 'smem constant byte address 0x4 - core index']
  #allocation1 [shape = 'u32[144,128]{1,0:T(1,128)}', space=vmem, size = 0x12000, scoped, tag = 'internal scratch']
  %s0 = inlined_call_operand.vmem [shape: f32[3200,128], index: 0, kind: input, shape index: {}]
  %s1 = inlined_call_operand.vmem [shape: f32[128,16], index: 1, kind: input, shape index: {}]
  %s2 = inlined_call_operand.vmem [shape: f32[1,16], index: 2, kind: input, shape index: {}]
  %s3 = inlined_call_operand.vmem [shape: f32[3200,16], index: 3, kind: output, shape index: {}]
  %s4 = sld [smem:[#allocation0]]
  $region45: #{forward.17} parent=0
    _
  %s6 = ssub.s32 1, %s4
  %s7 = scalar_select 0, %s6, %s4
  loop: start=0, step=1, limit=4
  $region2: #{forward.17} parent=0 // loop_pre_header
    _
  $region3: #{forward.17} parent=0 // loop_header
    %s9 = sphi 0, %s13
    %p10 = scmp.ge.s32.totalorder %s9, 4
    %s19 = sphi 0, %s21
    %s22 = sphi 0, %s19
    %s23 = sphi 0, %s22
    %s39 = sphi 0, %s23
    %s43 = sphi 0, %s43
    %s45 = sphi 0, %s43
    %s46 = sphi 0, %s45
    %s60 = sphi 0, %s46
    %s64 = sphi 0, %s64
    %s66 = sphi 0, %s64
    %s67 = sphi 0, %s66
    %s81 = sphi 0, %s67
    %s87 = sphi 0, %s89
    %s90 = sphi 0, %s87
    %s91 = sphi 0, %s90
    %s107 = sphi 0, %s91
  $region4: #{forward.17} parent=0 // loop_header_branch
    %12 = sbr.rel (%p10) target = $region8
  $region5: #{forward.17} parent=0 // loop_body
    %s14 = ssub.s32 %s9, 1
    %s15 = ssub.s32 %s9, 2
    %s16 = sadd.s32 %s9, 1
    %s17 = ssub.s32 %s9, %s16
    %p18 = scmp.eq.s32.totalorder %s17, 0
    %s20 = sadd.s32 %s19, 1
    %s21 = scalar_select %p18, %s19, %s20
    %p24 = pneg %p18
    %p25 = scmp.eq.s32.totalorder %s9, 1
    %p26 = por %p24, %p25
    %p27 = scmp.ne.s32.totalorder %s19, %s22
    %p28 = scmp.eq.s32.totalorder %s9, 0
    %p29 = por %p27, %p28
    %p30 = scmp.ne.s32.totalorder %s19, %s22
    %p31 = scmp.eq.s32.totalorder %s14, 1
    %p32 = por %p30, %p31
    %p33 = scmp.ne.s32.totalorder %s22, %s23
    %p34 = scmp.eq.s32.totalorder %s14, 0
    %p35 = por %p33, %p34
    %p36 = scmp.ne.s32.totalorder %s22, %s23
    %p37 = scmp.eq.s32.totalorder %s15, 1
    %p38 = por %p36, %p37
    %p40 = scmp.ne.s32.totalorder %s23, %s39
    %p41 = scmp.eq.s32.totalorder %s15, 0
    %p42 = por %p40, %p41
    %s44 = sadd.s32 %s43, 1
    %p47 = scmp.eq.s32.totalorder %s9, 1
    %p48 = scmp.ne.s32.totalorder %s43, %s45
    %p49 = scmp.eq.s32.totalorder %s9, 0
    %p50 = por %p48, %p49
    %p51 = scmp.ne.s32.totalorder %s43, %s45
    %p52 = scmp.eq.s32.totalorder %s14, 1
    %p53 = por %p51, %p52
    %p54 = scmp.ne.s32.totalorder %s45, %s46
    %p55 = scmp.eq.s32.totalorder %s14, 0
    %p56 = por %p54, %p55
    %p57 = scmp.ne.s32.totalorder %s45, %s46
    %p58 = scmp.eq.s32.totalorder %s15, 1
    %p59 = por %p57, %p58
    %p61 = scmp.ne.s32.totalorder %s46, %s60
    %p62 = scmp.eq.s32.totalorder %s15, 0
    %p63 = por %p61, %p62
    %s65 = sadd.s32 %s64, 1
    %p68 = scmp.eq.s32.totalorder %s9, 1
    %p69 = scmp.ne.s32.totalorder %s64, %s66
    %p70 = scmp.eq.s32.totalorder %s9, 0
    %p71 = por %p69, %p70
    %p72 = scmp.ne.s32.totalorder %s64, %s66
    %p73 = scmp.eq.s32.totalorder %s14, 1
    %p74 = por %p72, %p73
    %p75 = scmp.ne.s32.totalorder %s66, %s67
    %p76 = scmp.eq.s32.totalorder %s14, 0
    %p77 = por %p75, %p76
    %p78 = scmp.ne.s32.totalorder %s66, %s67
    %p79 = scmp.eq.s32.totalorder %s15, 1
    %p80 = por %p78, %p79
    %p82 = scmp.ne.s32.totalorder %s67, %s81
    %p83 = scmp.eq.s32.totalorder %s15, 0
    %p84 = por %p82, %p83
    %s85 = ssub.s32 %s9, %s16
    %p86 = scmp.eq.s32.totalorder %s85, 0
    %s88 = sadd.s32 %s87, 1
    %s89 = scalar_select %p86, %s87, %s88
    %p92 = pneg %p86
    %p93 = scmp.eq.s32.totalorder %s9, 1
    %p94 = por %p92, %p93
    %p95 = scmp.ne.s32.totalorder %s87, %s90
    %p96 = scmp.eq.s32.totalorder %s9, 0
    %p97 = por %p95, %p96
    %p98 = scmp.ne.s32.totalorder %s87, %s90
    %p99 = scmp.eq.s32.totalorder %s14, 1
    %p100 = por %p98, %p99
    %p101 = scmp.ne.s32.totalorder %s90, %s91
    %p102 = scmp.eq.s32.totalorder %s14, 0
    %p103 = por %p101, %p102
    %p104 = scmp.ne.s32.totalorder %s90, %s91
    %p105 = scmp.eq.s32.totalorder %s15, 1
    %p106 = por %p104, %p105
    %p108 = scmp.ne.s32.totalorder %s91, %s107
    %p109 = scmp.eq.s32.totalorder %s15, 0
    %p110 = por %p108, %p109
    %p111 = scmp.le.s32.totalorder 1, %s9
    %p112 = scmp.lt.s32.totalorder %s9, 3
    %p113 = pnand %p111, %p112
    %p114 = pneg %p113
    // Predicated region
    $region9: #{forward.17} parent=5 // pred_check
      _
    $region10: #{forward.17} parent=5 // pred_check_branch
      %116 = sbr.rel (%p113) target = $region12
    $region11: #{forward.17} parent=5 // pred_region
      %s117 = ssub.s32 %s9, 1
      // Predicated region
      $region13: #{forward.17} parent=11 // pred_check
        %p118 = pneg %p56
      $region14: #{forward.17} parent=11 // pred_check_branch
        %120 = sbr.rel (%p118) target = $region16
      $region15: #{forward.17} parent=11 // pred_region
        _
      $region16: #{forward.17} parent=11 // pred_fallthru
        _
      // Predicated region
      $region17: #{forward.17} parent=11 // pred_check
        %p121 = pneg %p77
      $region18: #{forward.17} parent=11 // pred_check_branch
        %123 = sbr.rel (%p121) target = $region20
      $region19: #{forward.17} parent=11 // pred_region
        _
      $region20: #{forward.17} parent=11 // pred_fallthru
        _
    $region12: #{forward.17} parent=5 // pred_fallthru
      _
    %p124 = scmp.lt.s32.totalorder %s9, 2
    // Predicated region
    $region21: #{forward.17} parent=5 // pred_check
      %p125 = pneg %p124
    $region22: #{forward.17} parent=5 // pred_check_branch
      %127 = sbr.rel (%p125) target = $region24
    $region23: #{forward.17} parent=5 // pred_region
      // Predicated region
      $region25: #{forward.17} parent=23 // pred_check
        %p128 = pneg %p29
      $region26: #{forward.17} parent=23 // pred_check_branch
        %130 = sbr.rel (%p128) target = $region28
      $region27: #{forward.17} parent=23 // pred_region
        %s131 = smul.u32 200, %s9
        %p132 = scmp.lt.s32.totalorder %s131, 399
        %s133 = scalar_select %p132, %s131, 399
        %s134 = smul.addr %s133, 8
        %s135 = scalar_lea.vmem %s0, %s134
        %s136 = smul.u32 200, %s9
      $region28: #{forward.17} parent=23 // pred_fallthru
        _
    $region24: #{forward.17} parent=5 // pred_fallthru
      _
    %p137 = scmp.le.s32.totalorder 1, %s9
    %p138 = scmp.lt.s32.totalorder %s9, 3
    %p139 = pnand %p137, %p138
    %p140 = pneg %p139
    // Predicated region
    $region29: #{forward.17} parent=5 // pred_check
      _
    $region30: #{forward.17} parent=5 // pred_check_branch
      %142 = sbr.rel (%p139) target = $region32
    $region31: #{forward.17} parent=5 // pred_region
      %s143 = ssub.s32 %s9, 1
      %s144 = smul.u32 200, %s14
      %p145 = scmp.lt.s32.totalorder %s144, 399
      %s146 = scalar_select %p145, %s144, 399
      %s147 = smul.addr %s146, 8
      %s148 = scalar_lea.vmem %s0, %s147
      %p149 = pneg %p35
      %p150 = pneg %p32
      %p151 = pneg %p56
      %p152 = pneg %p53
      %p153 = pneg %p77
      %p154 = pneg %p74
      %p155 = pneg %p103
      %p156 = pneg %p100
      %s157 = smul.u32 200, %s14
      %p158 = scmp.lt.s32.totalorder %s157, 399
      %s159 = scalar_select %p158, %s157, 399
      %s160 = smul.addr %s159, 8
      %s161 = scalar_lea.vmem %s3, %s160
      %s162 = smul.u32 200, %s14
      %p163 = scmp.lt.s32.totalorder %s162, 399
      %s164 = scalar_select %p163, %s162, 399
      %s165 = smul.addr %s164, 8
      %s166 = scalar_lea.vmem %s0, %s165
      %s167 = smul.u32 200, %s14
      %s168 = smul.u32 200, %s14
      %p169 = scmp.lt.s32.totalorder %s168, 399
      %s170 = scalar_select %p169, %s168, 399
      %s171 = smul.addr %s170, 8
      %s172 = scalar_lea.vmem %s3, %s171
      %s173 = smul.u32 200, %s14
      %v174 = vld [vmem:[%s166] sm:$0xff]
      %v175 = vld [vmem:[%s166 + $0x8] sm:$0xff]
      %v176 = vld [vmem:[%s166 + $0x10] sm:$0xff]
      %v177 = vld [vmem:[%s166 + $0x18] sm:$0xff]
      %v178 = vld [vmem:[%s166 + $0x20] sm:$0xff]
      %v179 = vld [vmem:[%s166 + $0x28] sm:$0xff]
      %v180 = vld [vmem:[%s166 + $0x30] sm:$0xff]
      %v181 = vld [vmem:[%s166 + $0x38] sm:$0xff]
      %v182 = vld [vmem:[%s166 + $0x40] sm:$0xff]
      %v183 = vld [vmem:[%s166 + $0x48] sm:$0xff]
      %v184 = vld [vmem:[%s166 + $0x50] sm:$0xff]
      %v185 = vld [vmem:[%s166 + $0x58] sm:$0xff]
      %v186 = vld [vmem:[%s166 + $0x60] sm:$0xff]
      %v187 = vld [vmem:[%s166 + $0x68] sm:$0xff]
      %v188 = vld [vmem:[%s166 + $0x70] sm:$0xff]
      %v189 = vld [vmem:[%s166 + $0x78] sm:$0xff]
      %v190 = vld [vmem:[%s166 + $0x80] sm:$0xff]
      %v191 = vld [vmem:[%s166 + $0x88] sm:$0xff]
      %v192 = vld [vmem:[%s166 + $0x90] sm:$0xff]
      %v193 = vld [vmem:[%s166 + $0x98] sm:$0xff]
      %v194 = vld [vmem:[%s166 + $0xa0] sm:$0xff]
      %v195 = vld [vmem:[%s166 + $0xa8] sm:$0xff]
      %v196 = vld [vmem:[%s166 + $0xb0] sm:$0xff]
      %v197 = vld [vmem:[%s166 + $0xb8] sm:$0xff]
      %v198 = vld [vmem:[%s166 + $0xc0] sm:$0xff]
      %v199 = vld [vmem:[%s166 + $0xc8] sm:$0xff]
      %v200 = vld [vmem:[%s166 + $0xd0] sm:$0xff]
      %v201 = vld [vmem:[%s166 + $0xd8] sm:$0xff]
      %v202 = vld [vmem:[%s166 + $0xe0] sm:$0xff]
      %v203 = vld [vmem:[%s166 + $0xe8] sm:$0xff]
      %v204 = vld [vmem:[%s166 + $0xf0] sm:$0xff]
      %v205 = vld [vmem:[%s166 + $0xf8] sm:$0xff]
      %v206 = vld [vmem:[%s166 + $0x100] sm:$0xff]
      %v207 = vld [vmem:[%s166 + $0x108] sm:$0xff]
      %v208 = vld [vmem:[%s166 + $0x110] sm:$0xff]
      %v209 = vld [vmem:[%s166 + $0x118] sm:$0xff]
      %v210 = vld [vmem:[%s166 + $0x120] sm:$0xff]
      %v211 = vld [vmem:[%s166 + $0x128] sm:$0xff]
      %v212 = vld [vmem:[%s166 + $0x130] sm:$0xff]
      %v213 = vld [vmem:[%s166 + $0x138] sm:$0xff]
      %v214 = vld [vmem:[%s166 + $0x140] sm:$0xff]
      %v215 = vld [vmem:[%s166 + $0x148] sm:$0xff]
      %v216 = vld [vmem:[%s166 + $0x150] sm:$0xff]
      %v217 = vld [vmem:[%s166 + $0x158] sm:$0xff]
      %v218 = vld [vmem:[%s166 + $0x160] sm:$0xff]
      %v219 = vld [vmem:[%s166 + $0x168] sm:$0xff]
      %v220 = vld [vmem:[%s166 + $0x170] sm:$0xff]
      %v221 = vld [vmem:[%s166 + $0x178] sm:$0xff]
      %v222 = vld [vmem:[%s166 + $0x180] sm:$0xff]
      %v223 = vld [vmem:[%s166 + $0x188] sm:$0xff]
      %v224 = vld [vmem:[%s166 + $0x190] sm:$0xff]
      %v225 = vld [vmem:[%s166 + $0x198] sm:$0xff]
      %v226 = vld [vmem:[%s166 + $0x1a0] sm:$0xff]
      %v227 = vld [vmem:[%s166 + $0x1a8] sm:$0xff]
      %v228 = vld [vmem:[%s166 + $0x1b0] sm:$0xff]
      %v229 = vld [vmem:[%s166 + $0x1b8] sm:$0xff]
      %v230 = vld [vmem:[%s166 + $0x1c0] sm:$0xff]
      %v231 = vld [vmem:[%s166 + $0x1c8] sm:$0xff]
      %v232 = vld [vmem:[%s166 + $0x1d0] sm:$0xff]
      %v233 = vld [vmem:[%s166 + $0x1d8] sm:$0xff]
      %v234 = vld [vmem:[%s166 + $0x1e0] sm:$0xff]
      %v235 = vld [vmem:[%s166 + $0x1e8] sm:$0xff]
      %v236 = vld [vmem:[%s166 + $0x1f0] sm:$0xff]
      %v237 = vld [vmem:[%s166 + $0x1f8] sm:$0xff]
      %v238 = vld [vmem:[%s166 + $0x200] sm:$0xff]
      %v239 = vld [vmem:[%s166 + $0x208] sm:$0xff]
      %v240 = vld [vmem:[%s166 + $0x210] sm:$0xff]
      %v241 = vld [vmem:[%s166 + $0x218] sm:$0xff]
      %v242 = vld [vmem:[%s166 + $0x220] sm:$0xff]
      %v243 = vld [vmem:[%s166 + $0x228] sm:$0xff]
      %v244 = vld [vmem:[%s166 + $0x230] sm:$0xff]
      %v245 = vld [vmem:[%s166 + $0x238] sm:$0xff]
      %v246 = vld [vmem:[%s166 + $0x240] sm:$0xff]
      %v247 = vld [vmem:[%s166 + $0x248] sm:$0xff]
      %v248 = vld [vmem:[%s166 + $0x250] sm:$0xff]
      %v249 = vld [vmem:[%s166 + $0x258] sm:$0xff]
      %v250 = vld [vmem:[%s166 + $0x260] sm:$0xff]
      %v251 = vld [vmem:[%s166 + $0x268] sm:$0xff]
      %v252 = vld [vmem:[%s166 + $0x270] sm:$0xff]
      %v253 = vld [vmem:[%s166 + $0x278] sm:$0xff]
      %v254 = vld [vmem:[%s166 + $0x280] sm:$0xff]
      %v255 = vld [vmem:[%s166 + $0x288] sm:$0xff]
      %v256 = vld [vmem:[%s166 + $0x290] sm:$0xff]
      %v257 = vld [vmem:[%s166 + $0x298] sm:$0xff]
      %v258 = vld [vmem:[%s166 + $0x2a0] sm:$0xff]
      %v259 = vld [vmem:[%s166 + $0x2a8] sm:$0xff]
      %v260 = vld [vmem:[%s166 + $0x2b0] sm:$0xff]
      %v261 = vld [vmem:[%s166 + $0x2b8] sm:$0xff]
      %v262 = vld [vmem:[%s166 + $0x2c0] sm:$0xff]
      %v263 = vld [vmem:[%s166 + $0x2c8] sm:$0xff]
      %v264 = vld [vmem:[%s166 + $0x2d0] sm:$0xff]
      %v265 = vld [vmem:[%s166 + $0x2d8] sm:$0xff]
      %v266 = vld [vmem:[%s166 + $0x2e0] sm:$0xff]
      %v267 = vld [vmem:[%s166 + $0x2e8] sm:$0xff]
      %v268 = vld [vmem:[%s166 + $0x2f0] sm:$0xff]
      %v269 = vld [vmem:[%s166 + $0x2f8] sm:$0xff]
      %v270 = vld [vmem:[%s166 + $0x300] sm:$0xff]
      %v271 = vld [vmem:[%s166 + $0x308] sm:$0xff]
      %v272 = vld [vmem:[%s166 + $0x310] sm:$0xff]
      %v273 = vld [vmem:[%s166 + $0x318] sm:$0xff]
      %v274 = vld [vmem:[%s166 + $0x320] sm:$0xff]
      %v275 = vld [vmem:[%s166 + $0x328] sm:$0xff]
      %v276 = vld [vmem:[%s166 + $0x330] sm:$0xff]
      %v277 = vld [vmem:[%s166 + $0x338] sm:$0xff]
      %v278 = vld [vmem:[%s166 + $0x340] sm:$0xff]
      %v279 = vld [vmem:[%s166 + $0x348] sm:$0xff]
      %v280 = vld [vmem:[%s166 + $0x350] sm:$0xff]
      %v281 = vld [vmem:[%s166 + $0x358] sm:$0xff]
      %v282 = vld [vmem:[%s166 + $0x360] sm:$0xff]
      %v283 = vld [vmem:[%s166 + $0x368] sm:$0xff]
      %v284 = vld [vmem:[%s166 + $0x370] sm:$0xff]
      %v285 = vld [vmem:[%s166 + $0x378] sm:$0xff]
      %v286 = vld [vmem:[%s166 + $0x380] sm:$0xff]
      %v287 = vld [vmem:[%s166 + $0x388] sm:$0xff]
      %v288 = vld [vmem:[%s166 + $0x390] sm:$0xff]
      %v289 = vld [vmem:[%s166 + $0x398] sm:$0xff]
      %v290 = vld [vmem:[%s166 + $0x3a0] sm:$0xff]
      %v291 = vld [vmem:[%s166 + $0x3a8] sm:$0xff]
      %v292 = vld [vmem:[%s166 + $0x3b0] sm:$0xff]
      %v293 = vld [vmem:[%s166 + $0x3b8] sm:$0xff]
      %v294 = vld [vmem:[%s166 + $0x3c0] sm:$0xff]
      %v295 = vld [vmem:[%s166 + $0x3c8] sm:$0xff]
      %v296 = vld [vmem:[%s166 + $0x3d0] sm:$0xff]
      %v297 = vld [vmem:[%s166 + $0x3d8] sm:$0xff]
      %v298 = vld [vmem:[%s166 + $0x3e0] sm:$0xff]
      %v299 = vld [vmem:[%s166 + $0x3e8] sm:$0xff]
      %v300 = vld [vmem:[%s166 + $0x3f0] sm:$0xff]
      %v301 = vld [vmem:[%s166 + $0x3f8] sm:$0xff]
      %v302 = vld [vmem:[%s166 + $0x400] sm:$0xff]
      %v303 = vld [vmem:[%s166 + $0x408] sm:$0xff]
      %v304 = vld [vmem:[%s166 + $0x410] sm:$0xff]
      %v305 = vld [vmem:[%s166 + $0x418] sm:$0xff]
      %v306 = vld [vmem:[%s166 + $0x420] sm:$0xff]
      %v307 = vld [vmem:[%s166 + $0x428] sm:$0xff]
      %v308 = vld [vmem:[%s166 + $0x430] sm:$0xff]
      %v309 = vld [vmem:[%s166 + $0x438] sm:$0xff]
      %v310 = vld [vmem:[%s166 + $0x440] sm:$0xff]
      %v311 = vld [vmem:[%s166 + $0x448] sm:$0xff]
      %v312 = vld [vmem:[%s166 + $0x450] sm:$0xff]
      %v313 = vld [vmem:[%s166 + $0x458] sm:$0xff]
      %v314 = vld [vmem:[%s166 + $0x460] sm:$0xff]
      %v315 = vld [vmem:[%s166 + $0x468] sm:$0xff]
      %v316 = vld [vmem:[%s166 + $0x470] sm:$0xff]
      %v317 = vld [vmem:[%s166 + $0x478] sm:$0xff]
      %v318 = vld [vmem:[%s166 + $0x480] sm:$0xff]
      %v319 = vld [vmem:[%s166 + $0x488] sm:$0xff]
      %v320 = vld [vmem:[%s166 + $0x490] sm:$0xff]
      %v321 = vld [vmem:[%s166 + $0x498] sm:$0xff]
      %v322 = vld [vmem:[%s166 + $0x4a0] sm:$0xff]
      %v323 = vld [vmem:[%s166 + $0x4a8] sm:$0xff]
      %v324 = vld [vmem:[%s166 + $0x4b0] sm:$0xff]
      %v325 = vld [vmem:[%s166 + $0x4b8] sm:$0xff]
      %v326 = vld [vmem:[%s166 + $0x4c0] sm:$0xff]
      %v327 = vld [vmem:[%s166 + $0x4c8] sm:$0xff]
      %v328 = vld [vmem:[%s166 + $0x4d0] sm:$0xff]
      %v329 = vld [vmem:[%s166 + $0x4d8] sm:$0xff]
      %v330 = vld [vmem:[%s166 + $0x4e0] sm:$0xff]
      %v331 = vld [vmem:[%s166 + $0x4e8] sm:$0xff]
      %v332 = vld [vmem:[%s166 + $0x4f0] sm:$0xff]
      %v333 = vld [vmem:[%s166 + $0x4f8] sm:$0xff]
      %v334 = vld [vmem:[%s166 + $0x500] sm:$0xff]
      %v335 = vld [vmem:[%s166 + $0x508] sm:$0xff]
      %v336 = vld [vmem:[%s166 + $0x510] sm:$0xff]
      %v337 = vld [vmem:[%s166 + $0x518] sm:$0xff]
      %v338 = vld [vmem:[%s166 + $0x520] sm:$0xff]
      %v339 = vld [vmem:[%s166 + $0x528] sm:$0xff]
      %v340 = vld [vmem:[%s166 + $0x530] sm:$0xff]
      %v341 = vld [vmem:[%s166 + $0x538] sm:$0xff]
      %v342 = vld [vmem:[%s166 + $0x540] sm:$0xff]
      %v343 = vld [vmem:[%s166 + $0x548] sm:$0xff]
      %v344 = vld [vmem:[%s166 + $0x550] sm:$0xff]
      %v345 = vld [vmem:[%s166 + $0x558] sm:$0xff]
      %v346 = vld [vmem:[%s166 + $0x560] sm:$0xff]
      %v347 = vld [vmem:[%s166 + $0x568] sm:$0xff]
      %v348 = vld [vmem:[%s166 + $0x570] sm:$0xff]
      %v349 = vld [vmem:[%s166 + $0x578] sm:$0xff]
      %v350 = vld [vmem:[%s166 + $0x580] sm:$0xff]
      %v351 = vld [vmem:[%s166 + $0x588] sm:$0xff]
      %v352 = vld [vmem:[%s166 + $0x590] sm:$0xff]
      %v353 = vld [vmem:[%s166 + $0x598] sm:$0xff]
      %v354 = vld [vmem:[%s166 + $0x5a0] sm:$0xff]
      %v355 = vld [vmem:[%s166 + $0x5a8] sm:$0xff]
      %v356 = vld [vmem:[%s166 + $0x5b0] sm:$0xff]
      %v357 = vld [vmem:[%s166 + $0x5b8] sm:$0xff]
      %v358 = vld [vmem:[%s166 + $0x5c0] sm:$0xff]
      %v359 = vld [vmem:[%s166 + $0x5c8] sm:$0xff]
      %v360 = vld [vmem:[%s166 + $0x5d0] sm:$0xff]
      %v361 = vld [vmem:[%s166 + $0x5d8] sm:$0xff]
      %v362 = vld [vmem:[%s166 + $0x5e0] sm:$0xff]
      %v363 = vld [vmem:[%s166 + $0x5e8] sm:$0xff]
      %v364 = vld [vmem:[%s166 + $0x5f0] sm:$0xff]
      %v365 = vld [vmem:[%s166 + $0x5f8] sm:$0xff]
      %v366 = vld [vmem:[%s166 + $0x600] sm:$0xff]
      %v367 = vld [vmem:[%s166 + $0x608] sm:$0xff]
      %v368 = vld [vmem:[%s166 + $0x610] sm:$0xff]
      %v369 = vld [vmem:[%s166 + $0x618] sm:$0xff]
      %v370 = vld [vmem:[%s166 + $0x620] sm:$0xff]
      %v371 = vld [vmem:[%s166 + $0x628] sm:$0xff]
      %v372 = vld [vmem:[%s166 + $0x630] sm:$0xff]
      %v373 = vld [vmem:[%s166 + $0x638] sm:$0xff]
      %v374 = vld [vmem:[%s1] sm:$0xff]
      %v375 = vld [vmem:[%s1 + $0x8] sm:$0xff]
      %v376 = vld [vmem:[%s1 + $0x10] sm:$0xff]
      %v377 = vld [vmem:[%s1 + $0x18] sm:$0xff]
      %v378 = vld [vmem:[%s1 + $0x20] sm:$0xff]
      %v379 = vld [vmem:[%s1 + $0x28] sm:$0xff]
      %v380 = vld [vmem:[%s1 + $0x30] sm:$0xff]
      %v381 = vld [vmem:[%s1 + $0x38] sm:$0xff]
      %v382 = vld [vmem:[%s1 + $0x40] sm:$0xff]
      %v383 = vld [vmem:[%s1 + $0x48] sm:$0xff]
      %v384 = vld [vmem:[%s1 + $0x50] sm:$0xff]
      %v385 = vld [vmem:[%s1 + $0x58] sm:$0xff]
      %v386 = vld [vmem:[%s1 + $0x60] sm:$0xff]
      %v387 = vld [vmem:[%s1 + $0x68] sm:$0xff]
      %v388 = vld [vmem:[%s1 + $0x70] sm:$0xff]
      %v389 = vld [vmem:[%s1 + $0x78] sm:$0xff]
      %v390 = vld [vmem:[%s2] sm:$0x1]
      %v392 = vlaneseq
      %v393 = vshrl.u32 %v392, 7
      %v394 = vsub.s32 0, %v393
      %v395 = vrot.slane %v390, %v394
      %397 = vmatprep.subr.mxu0 0.0
      %398 = vmatpush1.msra.mxu0 %v374
      %399 = vmatprep.subr.mxu0 0.0
      %400 = vmatpush1.msra.mxu0 %v375
      %401 = vmatprep.subr.mxu0 0.0
      %402 = vmatpush1.msra.mxu0 %v376
      %403 = vmatprep.subr.mxu0 0.0
      %404 = vmatpush1.msra.mxu0 %v377
      %405 = vmatprep.subr.mxu0 0.0
      %406 = vmatpush1.msra.mxu0 %v378
      %407 = vmatprep.subr.mxu0 0.0
      %408 = vmatpush1.msra.mxu0 %v379
      %409 = vmatprep.subr.mxu0 0.0
      %410 = vmatpush1.msra.mxu0 %v380
      %411 = vmatprep.subr.mxu0 0.0
      %412 = vmatpush1.msra.mxu0 %v381
      %413 = vmatprep.subr.mxu0 0.0
      %414 = vmatpush1.msra.mxu0 %v382
      %415 = vmatprep.subr.mxu0 0.0
      %416 = vmatpush1.msra.mxu0 %v383
      %417 = vmatprep.subr.mxu0 0.0
      %418 = vmatpush1.msra.mxu0 %v384
      %419 = vmatprep.subr.mxu0 0.0
      %420 = vmatpush1.msra.mxu0 %v385
      %421 = vmatprep.subr.mxu0 0.0
      %422 = vmatpush1.msra.mxu0 %v386
      %423 = vmatprep.subr.mxu0 0.0
      %424 = vmatpush1.msra.mxu0 %v387
      %425 = vmatprep.subr.mxu0 0.0
      %426 = vmatpush1.msra.mxu0 %v388
      %427 = vmatprep.subr.mxu0 0.0
      %428 = vmatpush1.msra.mxu0 %v389
      %429 = vmatprep.subr.mxu0 0.0
      %430 = vmatpush1.msra.mxu0 0.0
      %431 = vmatprep.subr.mxu0 0.0
      %432 = vmatpush1.msra.mxu0 0.0
      %433 = vmatprep.subr.mxu0 0.0
      %434 = vmatpush1.msra.mxu0 0.0
      %435 = vmatprep.subr.mxu0 0.0
      %436 = vmatpush1.msra.mxu0 0.0
      %437 = vmatprep.subr.mxu0 0.0
      %438 = vmatpush1.msra.mxu0 0.0
      %439 = vmatprep.subr.mxu0 0.0
      %440 = vmatpush1.msra.mxu0 0.0
      %441 = vmatprep.subr.mxu0 0.0
      %442 = vmatpush1.msra.mxu0 0.0
      %443 = vmatprep.subr.mxu0 0.0
      %444 = vmatpush1.msra.mxu0 0.0
      %445 = vmatprep.subr.mxu0 0.0
      %446 = vmatpush1.msra.mxu0 0.0
      %447 = vmatprep.subr.mxu0 0.0
      %448 = vmatpush1.msra.mxu0 0.0
      %449 = vmatprep.subr.mxu0 0.0
      %450 = vmatpush1.msra.mxu0 0.0
      %451 = vmatprep.subr.mxu0 0.0
      %452 = vmatpush1.msra.mxu0 0.0
      %453 = vmatprep.subr.mxu0 0.0
      %454 = vmatpush1.msra.mxu0 0.0
      %455 = vmatprep.subr.mxu0 0.0
      %456 = vmatpush1.msra.mxu0 0.0
      %457 = vmatprep.subr.mxu0 0.0
      %458 = vmatpush1.msra.mxu0 0.0
      %459 = vmatprep.subr.mxu0 0.0
      %460 = vmatpush1.msra.mxu0 0.0
      %461 = vmatprep.mubr.f32.mxu0 0.0
      %462 = vmatmul.mubr.f32.gmra.mrb[0].mxu0 %v174
      %v463 = vpop.f32.mrb[0].mxu0
      %v464 = vadd.f32 %v395, %v463
      %v465 = vpop.f32.mrb[0].mxu0
      %466 = vmatprep.mubr.f32.mxu0 0.0
      %467 = vmatmul.mubr.f32.gmra.mrb[0].mxu0 %v175
      %v468 = vpop.f32.mrb[0].mxu0
      %v469 = vadd.f32 %v395, %v468
      %v470 = vpop.f32.mrb[0].mxu0
      %471 = vmatprep.mubr.f32.mxu0 0.0
      %472 = vmatmul.mubr.f32.gmra.mrb[0].mxu0 %v176
      %v473 = vpop.f32.mrb[0].mxu0
      %v474 = vadd.f32 %v395, %v473
      %v475 = vpop.f32.mrb[0].mxu0
      %476 = vmatprep.mubr.f32.mxu0 0.0
      %477 = vmatmul.mubr.f32.gmra.mrb[0].mxu0 %v177
      %v478 = vpop.f32.mrb[0].mxu0
      %v479 = vadd.f32 %v395, %v478
      %v480 = vpop.f32.mrb[0].mxu0
      %481 = vmatprep.mubr.f32.mxu0 0.0
      %482 = vmatmul.mubr.f32.gmra.mrb[0].mxu0 %v178
      %v483 = vpop.f32.mrb[0].mxu0
      %v484 = vadd.f32 %v395, %v483
      %v485 = vpop.f32.mrb[0].mxu0
      %486 = vmatprep.mubr.f32.mxu0 0.0
      %487 = vmatmul.mubr.f32.gmra.mrb[0].mxu0 %v179
      %v488 = vpop.f32.mrb[0].mxu0
      %v489 = vadd.f32 %v395, %v488
      %v490 = vpop.f32.mrb[0].mxu0
      %491 = vmatprep.mubr.f32.mxu0 0.0
      %492 = vmatmul.mubr.f32.gmra.mrb[0].mxu0 %v180
      %v493 = vpop.f32.mrb[0].mxu0
      %v494 = vadd.f32 %v395, %v493
      %v495 = vpop.f32.mrb[0].mxu0
      %496 = vmatprep.mubr.f32.mxu0 0.0
      %497 = vmatmul.mubr.f32.gmra.mrb[0].mxu0 %v181
      %v498 = vpop.f32.mrb[0].mxu0
      %v499 = vadd.f32 %v395, %v498
      %v500 = vpop.f32.mrb[0].mxu0
      %501 = vmatprep.mubr.f32.mxu0 0.0
      %502 = vmatmul.mubr.f32.gmra.mrb[0].mxu0 %v182
      %v503 = vpop.f32.mrb[0].mxu0
      %v504 = vadd.f32 %v395, %v503
      %v505 = vpop.f32.mrb[0].mxu0
      %506 = vmatprep.mubr.f32.mxu0 0.0
      %507 = vmatmul.mubr.f32.gmra.mrb[0].mxu0 %v183
      %v508 = vpop.f32.mrb[0].mxu0
      %v509 = vadd.f32 %v395, %v508
      %v510 = vpop.f32.mrb[0].mxu0
      %511 = vmatprep.mubr.f32.mxu0 0.0
      %512 = vmatmul.mubr.f32.gmra.mrb[0].mxu0 %v184
      %v513 = vpop.f32.mrb[0].mxu0
      %v514 = vadd.f32 %v395, %v513
      %v515 = vpop.f32.mrb[0].mxu0
      %516 = vmatprep.mubr.f32.mxu0 0.0
      %517 = vmatmul.mubr.f32.gmra.mrb[0].mxu0 %v185
      %v518 = vpop.f32.mrb[0].mxu0
      %v519 = vadd.f32 %v395, %v518
      %v520 = vpop.f32.mrb[0].mxu0
      %521 = vmatprep.mubr.f32.mxu0 0.0
      %522 = vmatmul.mubr.f32.gmra.mrb[0].mxu0 %v186
      %v523 = vpop.f32.mrb[0].mxu0
      %v524 = vadd.f32 %v395, %v523
      %v525 = vpop.f32.mrb[0].mxu0
      %526 = vmatprep.mubr.f32.mxu0 0.0
      %527 = vmatmul.mubr.f32.gmra.mrb[0].mxu0 %v187
      %v528 = vpop.f32.mrb[0].mxu0
      %v529 = vadd.f32 %v395, %v528
      %v530 = vpop.f32.mrb[0].mxu0
      %531 = vmatprep.mubr.f32.mxu0 0.0
      %532 = vmatmul.mubr.f32.gmra.mrb[0].mxu0 %v188
      %v533 = vpop.f32.mrb[0].mxu0
      %v534 = vadd.f32 %v395, %v533
      %v535 = vpop.f32.mrb[0].mxu0
      %536 = vmatprep.mubr.f32.mxu0 0.0
      %537 = vmatmul.mubr.f32.gmra.mrb[0].mxu0 %v189
      %v538 = vpop.f32.mrb[0].mxu0
      %v539 = vadd.f32 %v395, %v538
      %v540 = vpop.f32.mrb[0].mxu0
      %541 = vmatprep.mubr.f32.mxu0 0.0
      %542 = vmatmul.mubr.f32.gmra.mrb[0].mxu0 %v190
      %v543 = vpop.f32.mrb[0].mxu0
      %v544 = vadd.f32 %v395, %v543
      %v545 = vpop.f32.mrb[0].mxu0
      %546 = vmatprep.mubr.f32.mxu0 0.0
      %547 = vmatmul.mubr.f32.gmra.mrb[0].mxu0 %v191
      %v548 = vpop.f32.mrb[0].mxu0
      %v549 = vadd.f32 %v395, %v548
      %v550 = vpop.f32.mrb[0].mxu0
      %551 = vmatprep.mubr.f32.mxu0 0.0
      %552 = vmatmul.mubr.f32.gmra.mrb[0].mxu0 %v192
      %v553 = vpop.f32.mrb[0].mxu0
      %v554 = vadd.f32 %v395, %v553
      %v555 = vpop.f32.mrb[0].mxu0
      %556 = vmatprep.mubr.f32.mxu0 0.0
      %557 = vmatmul.mubr.f32.gmra.mrb[0].mxu0 %v193
      %v558 = vpop.f32.mrb[0].mxu0
      %v559 = vadd.f32 %v395, %v558
      %v560 = vpop.f32.mrb[0].mxu0
      %561 = vmatprep.mubr.f32.mxu0 0.0
      %562 = vmatmul.mubr.f32.gmra.mrb[0].mxu0 %v194
      %v563 = vpop.f32.mrb[0].mxu0
      %v564 = vadd.f32 %v395, %v563
      %v565 = vpop.f32.mrb[0].mxu0
      %566 = vmatprep.mubr.f32.mxu0 0.0
      %567 = vmatmul.mubr.f32.gmra.mrb[0].mxu0 %v195
      %v568 = vpop.f32.mrb[0].mxu0
      %v569 = vadd.f32 %v395, %v568
      %v570 = vpop.f32.mrb[0].mxu0
      %571 = vmatprep.mubr.f32.mxu0 0.0
      %572 = vmatmul.mubr.f32.gmra.mrb[0].mxu0 %v196
      %v573 = vpop.f32.mrb[0].mxu0
      %v574 = vadd.f32 %v395, %v573
      %v575 = vpop.f32.mrb[0].mxu0
      %576 = vmatprep.mubr.f32.mxu0 0.0
      %577 = vmatmul.mubr.f32.gmra.mrb[0].mxu0 %v197
      %v578 = vpop.f32.mrb[0].mxu0
      %v579 = vadd.f32 %v395, %v578
      %v580 = vpop.f32.mrb[0].mxu0
      %581 = vmatprep.mubr.f32.mxu0 0.0
      %582 = vmatmul.mubr.f32.gmra.mrb[0].mxu0 %v198
      %v583 = vpop.f32.mrb[0].mxu0
      %v584 = vadd.f32 %v395, %v583
      %v585 = vpop.f32.mrb[0].mxu0
      %586 = vmatprep.mubr.f32.mxu0 0.0
      %587 = vmatmul.mubr.f32.gmra.mrb[0].mxu0 %v199
      %v588 = vpop.f32.mrb[0].mxu0
      %v589 = vadd.f32 %v395, %v588
      %v590 = vpop.f32.mrb[0].mxu0
      %591 = vmatprep.mubr.f32.mxu0 0.0
      %592 = vmatmul.mubr.f32.gmra.mrb[0].mxu0 %v200
      %v593 = vpop.f32.mrb[0].mxu0
      %v594 = vadd.f32 %v395, %v593
      %v595 = vpop.f32.mrb[0].mxu0
      %596 = vmatprep.mubr.f32.mxu0 0.0
      %597 = vmatmul.mubr.f32.gmra.mrb[0].mxu0 %v201
      %v598 = vpop.f32.mrb[0].mxu0
      %v599 = vadd.f32 %v395, %v598
      %v600 = vpop.f32.mrb[0].mxu0
      %601 = vmatprep.mubr.f32.mxu0 0.0
      %602 = vmatmul.mubr.f32.gmra.mrb[0].mxu0 %v202
      %v603 = vpop.f32.mrb[0].mxu0
      %v604 = vadd.f32 %v395, %v603
      %v605 = vpop.f32.mrb[0].mxu0
      %606 = vmatprep.mubr.f32.mxu0 0.0
      %607 = vmatmul.mubr.f32.gmra.mrb[0].mxu0 %v203
      %v608 = vpop.f32.mrb[0].mxu0
      %v609 = vadd.f32 %v395, %v608
      %v610 = vpop.f32.mrb[0].mxu0
      %611 = vmatprep.mubr.f32.mxu0 0.0
      %612 = vmatmul.mubr.f32.gmra.mrb[0].mxu0 %v204
      %v613 = vpop.f32.mrb[0].mxu0
      %v614 = vadd.f32 %v395, %v613
      %v615 = vpop.f32.mrb[0].mxu0
      %616 = vmatprep.mubr.f32.mxu0 0.0
      %617 = vmatmul.mubr.f32.gmra.mrb[0].mxu0 %v205
      %v618 = vpop.f32.mrb[0].mxu0
      %v619 = vadd.f32 %v395, %v618
      %v620 = vpop.f32.mrb[0].mxu0
      %621 = vmatprep.mubr.f32.mxu0 0.0
      %622 = vmatmul.mubr.f32.gmra.mrb[0].mxu0 %v206
      %v623 = vpop.f32.mrb[0].mxu0
      %v624 = vadd.f32 %v395, %v623
      %v625 = vpop.f32.mrb[0].mxu0
      %626 = vmatprep.mubr.f32.mxu0 0.0
      %627 = vmatmul.mubr.f32.gmra.mrb[0].mxu0 %v207
      %v628 = vpop.f32.mrb[0].mxu0
      %v629 = vadd.f32 %v395, %v628
      %v630 = vpop.f32.mrb[0].mxu0
      %631 = vmatprep.mubr.f32.mxu0 0.0
      %632 = vmatmul.mubr.f32.gmra.mrb[0].mxu0 %v208
      %v633 = vpop.f32.mrb[0].mxu0
      %v634 = vadd.f32 %v395, %v633
      %v635 = vpop.f32.mrb[0].mxu0
      %636 = vmatprep.mubr.f32.mxu0 0.0
      %637 = vmatmul.mubr.f32.gmra.mrb[0].mxu0 %v209
      %v638 = vpop.f32.mrb[0].mxu0
      %v639 = vadd.f32 %v395, %v638
      %v640 = vpop.f32.mrb[0].mxu0
      %641 = vmatprep.mubr.f32.mxu0 0.0
      %642 = vmatmul.mubr.f32.gmra.mrb[0].mxu0 %v210
      %v643 = vpop.f32.mrb[0].mxu0
      %v644 = vadd.f32 %v395, %v643
      %v645 = vpop.f32.mrb[0].mxu0
      %646 = vmatprep.mubr.f32.mxu0 0.0
      %647 = vmatmul.mubr.f32.gmra.mrb[0].mxu0 %v211
      %v648 = vpop.f32.mrb[0].mxu0
      %v649 = vadd.f32 %v395, %v648
      %v650 = vpop.f32.mrb[0].mxu0
      %651 = vmatprep.mubr.f32.mxu0 0.0
      %652 = vmatmul.mubr.f32.gmra.mrb[0].mxu0 %v212
      %v653 = vpop.f32.mrb[0].mxu0
      %v654 = vadd.f32 %v395, %v653
      %v655 = vpop.f32.mrb[0].mxu0
      %656 = vmatprep.mubr.f32.mxu0 0.0
      %657 = vmatmul.mubr.f32.gmra.mrb[0].mxu0 %v213
      %v658 = vpop.f32.mrb[0].mxu0
      %v659 = vadd.f32 %v395, %v658
      %v660 = vpop.f32.mrb[0].mxu0
      %661 = vmatprep.mubr.f32.mxu0 0.0
      %662 = vmatmul.mubr.f32.gmra.mrb[0].mxu0 %v214
      %v663 = vpop.f32.mrb[0].mxu0
      %v664 = vadd.f32 %v395, %v663
      %v665 = vpop.f32.mrb[0].mxu0
      %666 = vmatprep.mubr.f32.mxu0 0.0
      %667 = vmatmul.mubr.f32.gmra.mrb[0].mxu0 %v215
      %v668 = vpop.f32.mrb[0].mxu0
      %v669 = vadd.f32 %v395, %v668
      %v670 = vpop.f32.mrb[0].mxu0
      %671 = vmatprep.mubr.f32.mxu0 0.0
      %672 = vmatmul.mubr.f32.gmra.mrb[0].mxu0 %v216
      %v673 = vpop.f32.mrb[0].mxu0
      %v674 = vadd.f32 %v395, %v673
      %v675 = vpop.f32.mrb[0].mxu0
      %676 = vmatprep.mubr.f32.mxu0 0.0
      %677 = vmatmul.mubr.f32.gmra.mrb[0].mxu0 %v217
      %v678 = vpop.f32.mrb[0].mxu0
      %v679 = vadd.f32 %v395, %v678
      %v680 = vpop.f32.mrb[0].mxu0
      %681 = vmatprep.mubr.f32.mxu0 0.0
      %682 = vmatmul.mubr.f32.gmra.mrb[0].mxu0 %v218
      %v683 = vpop.f32.mrb[0].mxu0
      %v684 = vadd.f32 %v395, %v683
      %v685 = vpop.f32.mrb[0].mxu0
      %686 = vmatprep.mubr.f32.mxu0 0.0
      %687 = vmatmul.mubr.f32.gmra.mrb[0].mxu0 %v219
      %v688 = vpop.f32.mrb[0].mxu0
      %v689 = vadd.f32 %v395, %v688
      %v690 = vpop.f32.mrb[0].mxu0
      %691 = vmatprep.mubr.f32.mxu0 0.0
      %692 = vmatmul.mubr.f32.gmra.mrb[0].mxu0 %v220
      %v693 = vpop.f32.mrb[0].mxu0
      %v694 = vadd.f32 %v395, %v693
      %v695 = vpop.f32.mrb[0].mxu0
      %696 = vmatprep.mubr.f32.mxu0 0.0
      %697 = vmatmul.mubr.f32.gmra.mrb[0].mxu0 %v221
      %v698 = vpop.f32.mrb[0].mxu0
      %v699 = vadd.f32 %v395, %v698
      %v700 = vpop.f32.mrb[0].mxu0
      %701 = vmatprep.mubr.f32.mxu0 0.0
      %702 = vmatmul.mubr.f32.gmra.mrb[0].mxu0 %v222
      %v703 = vpop.f32.mrb[0].mxu0
      %v704 = vadd.f32 %v395, %v703
      %v705 = vpop.f32.mrb[0].mxu0
      %706 = vmatprep.mubr.f32.mxu0 0.0
      %707 = vmatmul.mubr.f32.gmra.mrb[0].mxu0 %v223
      %v708 = vpop.f32.mrb[0].mxu0
      %v709 = vadd.f32 %v395, %v708
      %v710 = vpop.f32.mrb[0].mxu0
      %711 = vmatprep.mubr.f32.mxu0 0.0
      %712 = vmatmul.mubr.f32.gmra.mrb[0].mxu0 %v224
      %v713 = vpop.f32.mrb[0].mxu0
      %v714 = vadd.f32 %v395, %v713
      %v715 = vpop.f32.mrb[0].mxu0
      %716 = vmatprep.mubr.f32.mxu0 0.0
      %717 = vmatmul.mubr.f32.gmra.mrb[0].mxu0 %v225
      %v718 = vpop.f32.mrb[0].mxu0
      %v719 = vadd.f32 %v395, %v718
      %v720 = vpop.f32.mrb[0].mxu0
      %721 = vmatprep.mubr.f32.mxu0 0.0
      %722 = vmatmul.mubr.f32.gmra.mrb[0].mxu0 %v226
      %v723 = vpop.f32.mrb[0].mxu0
      %v724 = vadd.f32 %v395, %v723
      %v725 = vpop.f32.mrb[0].mxu0
      %726 = vmatprep.mubr.f32.mxu0 0.0
      %727 = vmatmul.mubr.f32.gmra.mrb[0].mxu0 %v227
      %v728 = vpop.f32.mrb[0].mxu0
      %v729 = vadd.f32 %v395, %v728
      %v730 = vpop.f32.mrb[0].mxu0
      %731 = vmatprep.mubr.f32.mxu0 0.0
      %732 = vmatmul.mubr.f32.gmra.mrb[0].mxu0 %v228
      %v733 = vpop.f32.mrb[0].mxu0
      %v734 = vadd.f32 %v395, %v733
      %v735 = vpop.f32.mrb[0].mxu0
      %736 = vmatprep.mubr.f32.mxu0 0.0
      %737 = vmatmul.mubr.f32.gmra.mrb[0].mxu0 %v229
      %v738 = vpop.f32.mrb[0].mxu0
      %v739 = vadd.f32 %v395, %v738
      %v740 = vpop.f32.mrb[0].mxu0
      %741 = vmatprep.mubr.f32.mxu0 0.0
      %742 = vmatmul.mubr.f32.gmra.mrb[0].mxu0 %v230
      %v743 = vpop.f32.mrb[0].mxu0
      %v744 = vadd.f32 %v395, %v743
      %v745 = vpop.f32.mrb[0].mxu0
      %746 = vmatprep.mubr.f32.mxu0 0.0
      %747 = vmatmul.mubr.f32.gmra.mrb[0].mxu0 %v231
      %v748 = vpop.f32.mrb[0].mxu0
      %v749 = vadd.f32 %v395, %v748
      %v750 = vpop.f32.mrb[0].mxu0
      %751 = vmatprep.mubr.f32.mxu0 0.0
      %752 = vmatmul.mubr.f32.gmra.mrb[0].mxu0 %v232
      %v753 = vpop.f32.mrb[0].mxu0
      %v754 = vadd.f32 %v395, %v753
      %v755 = vpop.f32.mrb[0].mxu0
      %756 = vmatprep.mubr.f32.mxu0 0.0
      %757 = vmatmul.mubr.f32.gmra.mrb[0].mxu0 %v233
      %v758 = vpop.f32.mrb[0].mxu0
      %v759 = vadd.f32 %v395, %v758
      %v760 = vpop.f32.mrb[0].mxu0
      %761 = vmatprep.mubr.f32.mxu0 0.0
      %762 = vmatmul.mubr.f32.gmra.mrb[0].mxu0 %v234
      %v763 = vpop.f32.mrb[0].mxu0
      %v764 = vadd.f32 %v395, %v763
      %v765 = vpop.f32.mrb[0].mxu0
      %766 = vmatprep.mubr.f32.mxu0 0.0
      %767 = vmatmul.mubr.f32.gmra.mrb[0].mxu0 %v235
      %v768 = vpop.f32.mrb[0].mxu0
      %v769 = vadd.f32 %v395, %v768
      %v770 = vpop.f32.mrb[0].mxu0
      %771 = vmatprep.mubr.f32.mxu0 0.0
      %772 = vmatmul.mubr.f32.gmra.mrb[0].mxu0 %v236
      %v773 = vpop.f32.mrb[0].mxu0
      %v774 = vadd.f32 %v395, %v773
      %v775 = vpop.f32.mrb[0].mxu0
      %776 = vmatprep.mubr.f32.mxu0 0.0
      %777 = vmatmul.mubr.f32.gmra.mrb[0].mxu0 %v237
      %v778 = vpop.f32.mrb[0].mxu0
      %v779 = vadd.f32 %v395, %v778
      %v780 = vpop.f32.mrb[0].mxu0
      %781 = vmatprep.mubr.f32.mxu0 0.0
      %782 = vmatmul.mubr.f32.gmra.mrb[0].mxu0 %v238
      %v783 = vpop.f32.mrb[0].mxu0
      %v784 = vadd.f32 %v395, %v783
      %v785 = vpop.f32.mrb[0].mxu0
      %786 = vmatprep.mubr.f32.mxu0 0.0
      %787 = vmatmul.mubr.f32.gmra.mrb[0].mxu0 %v239
      %v788 = vpop.f32.mrb[0].mxu0
      %v789 = vadd.f32 %v395, %v788
      %v790 = vpop.f32.mrb[0].mxu0
      %791 = vmatprep.mubr.f32.mxu0 0.0
      %792 = vmatmul.mubr.f32.gmra.mrb[0].mxu0 %v240
      %v793 = vpop.f32.mrb[0].mxu0
      %v794 = vadd.f32 %v395, %v793
      %v795 = vpop.f32.mrb[0].mxu0
      %796 = vmatprep.mubr.f32.mxu0 0.0
      %797 = vmatmul.mubr.f32.gmra.mrb[0].mxu0 %v241
      %v798 = vpop.f32.mrb[0].mxu0
      %v799 = vadd.f32 %v395, %v798
      %v800 = vpop.f32.mrb[0].mxu0
      %801 = vmatprep.mubr.f32.mxu0 0.0
      %802 = vmatmul.mubr.f32.gmra.mrb[0].mxu0 %v242
      %v803 = vpop.f32.mrb[0].mxu0
      %v804 = vadd.f32 %v395, %v803
      %v805 = vpop.f32.mrb[0].mxu0
      %806 = vmatprep.mubr.f32.mxu0 0.0
      %807 = vmatmul.mubr.f32.gmra.mrb[0].mxu0 %v243
      %v808 = vpop.f32.mrb[0].mxu0
      %v809 = vadd.f32 %v395, %v808
      %v810 = vpop.f32.mrb[0].mxu0
      %811 = vmatprep.mubr.f32.mxu0 0.0
      %812 = vmatmul.mubr.f32.gmra.mrb[0].mxu0 %v244
      %v813 = vpop.f32.mrb[0].mxu0
      %v814 = vadd.f32 %v395, %v813
      %v815 = vpop.f32.mrb[0].mxu0
      %816 = vmatprep.mubr.f32.mxu0 0.0
      %817 = vmatmul.mubr.f32.gmra.mrb[0].mxu0 %v245
      %v818 = vpop.f32.mrb[0].mxu0
      %v819 = vadd.f32 %v395, %v818
      %v820 = vpop.f32.mrb[0].mxu0
      %821 = vmatprep.mubr.f32.mxu0 0.0
      %822 = vmatmul.mubr.f32.gmra.mrb[0].mxu0 %v246
      %v823 = vpop.f32.mrb[0].mxu0
      %v824 = vadd.f32 %v395, %v823
      %v825 = vpop.f32.mrb[0].mxu0
      %826 = vmatprep.mubr.f32.mxu0 0.0
      %827 = vmatmul.mubr.f32.gmra.mrb[0].mxu0 %v247
      %v828 = vpop.f32.mrb[0].mxu0
      %v829 = vadd.f32 %v395, %v828
      %v830 = vpop.f32.mrb[0].mxu0
      %831 = vmatprep.mubr.f32.mxu0 0.0
      %832 = vmatmul.mubr.f32.gmra.mrb[0].mxu0 %v248
      %v833 = vpop.f32.mrb[0].mxu0
      %v834 = vadd.f32 %v395, %v833
      %v835 = vpop.f32.mrb[0].mxu0
      %836 = vmatprep.mubr.f32.mxu0 0.0
      %837 = vmatmul.mubr.f32.gmra.mrb[0].mxu0 %v249
      %v838 = vpop.f32.mrb[0].mxu0
      %v839 = vadd.f32 %v395, %v838
      %v840 = vpop.f32.mrb[0].mxu0
      %841 = vmatprep.mubr.f32.mxu0 0.0
      %842 = vmatmul.mubr.f32.gmra.mrb[0].mxu0 %v250
      %v843 = vpop.f32.mrb[0].mxu0
      %v844 = vadd.f32 %v395, %v843
      %v845 = vpop.f32.mrb[0].mxu0
      %846 = vmatprep.mubr.f32.mxu0 0.0
      %847 = vmatmul.mubr.f32.gmra.mrb[0].mxu0 %v251
      %v848 = vpop.f32.mrb[0].mxu0
      %v849 = vadd.f32 %v395, %v848
      %v850 = vpop.f32.mrb[0].mxu0
      %851 = vmatprep.mubr.f32.mxu0 0.0
      %852 = vmatmul.mubr.f32.gmra.mrb[0].mxu0 %v252
      %v853 = vpop.f32.mrb[0].mxu0
      %v854 = vadd.f32 %v395, %v853
      %v855 = vpop.f32.mrb[0].mxu0
      %856 = vmatprep.mubr.f32.mxu0 0.0
      %857 = vmatmul.mubr.f32.gmra.mrb[0].mxu0 %v253
      %v858 = vpop.f32.mrb[0].mxu0
      %v859 = vadd.f32 %v395, %v858
      %v860 = vpop.f32.mrb[0].mxu0
      %861 = vmatprep.mubr.f32.mxu0 0.0
      %862 = vmatmul.mubr.f32.gmra.mrb[0].mxu0 %v254
      %v863 = vpop.f32.mrb[0].mxu0
      %v864 = vadd.f32 %v395, %v863
      %v865 = vpop.f32.mrb[0].mxu0
      %866 = vmatprep.mubr.f32.mxu0 0.0
      %867 = vmatmul.mubr.f32.gmra.mrb[0].mxu0 %v255
      %v868 = vpop.f32.mrb[0].mxu0
      %v869 = vadd.f32 %v395, %v868
      %v870 = vpop.f32.mrb[0].mxu0
      %871 = vmatprep.mubr.f32.mxu0 0.0
      %872 = vmatmul.mubr.f32.gmra.mrb[0].mxu0 %v256
      %v873 = vpop.f32.mrb[0].mxu0
      %v874 = vadd.f32 %v395, %v873
      %v875 = vpop.f32.mrb[0].mxu0
      %876 = vmatprep.mubr.f32.mxu0 0.0
      %877 = vmatmul.mubr.f32.gmra.mrb[0].mxu0 %v257
      %v878 = vpop.f32.mrb[0].mxu0
      %v879 = vadd.f32 %v395, %v878
      %v880 = vpop.f32.mrb[0].mxu0
      %881 = vmatprep.mubr.f32.mxu0 0.0
      %882 = vmatmul.mubr.f32.gmra.mrb[0].mxu0 %v258
      %v883 = vpop.f32.mrb[0].mxu0
      %v884 = vadd.f32 %v395, %v883
      %v885 = vpop.f32.mrb[0].mxu0
      %886 = vmatprep.mubr.f32.mxu0 0.0
      %887 = vmatmul.mubr.f32.gmra.mrb[0].mxu0 %v259
      %v888 = vpop.f32.mrb[0].mxu0
      %v889 = vadd.f32 %v395, %v888
      %v890 = vpop.f32.mrb[0].mxu0
      %891 = vmatprep.mubr.f32.mxu0 0.0
      %892 = vmatmul.mubr.f32.gmra.mrb[0].mxu0 %v260
      %v893 = vpop.f32.mrb[0].mxu0
      %v894 = vadd.f32 %v395, %v893
      %v895 = vpop.f32.mrb[0].mxu0
      %896 = vmatprep.mubr.f32.mxu0 0.0
      %897 = vmatmul.mubr.f32.gmra.mrb[0].mxu0 %v261
      %v898 = vpop.f32.mrb[0].mxu0
      %v899 = vadd.f32 %v395, %v898
      %v900 = vpop.f32.mrb[0].mxu0
      %901 = vmatprep.mubr.f32.mxu0 0.0
      %902 = vmatmul.mubr.f32.gmra.mrb[0].mxu0 %v262
      %v903 = vpop.f32.mrb[0].mxu0
      %v904 = vadd.f32 %v395, %v903
      %v905 = vpop.f32.mrb[0].mxu0
      %906 = vmatprep.mubr.f32.mxu0 0.0
      %907 = vmatmul.mubr.f32.gmra.mrb[0].mxu0 %v263
      %v908 = vpop.f32.mrb[0].mxu0
      %v909 = vadd.f32 %v395, %v908
      %v910 = vpop.f32.mrb[0].mxu0
      %911 = vmatprep.mubr.f32.mxu0 0.0
      %912 = vmatmul.mubr.f32.gmra.mrb[0].mxu0 %v264
      %v913 = vpop.f32.mrb[0].mxu0
      %v914 = vadd.f32 %v395, %v913
      %v915 = vpop.f32.mrb[0].mxu0
      %916 = vmatprep.mubr.f32.mxu0 0.0
      %917 = vmatmul.mubr.f32.gmra.mrb[0].mxu0 %v265
      %v918 = vpop.f32.mrb[0].mxu0
      %v919 = vadd.f32 %v395, %v918
      %v920 = vpop.f32.mrb[0].mxu0
      %921 = vmatprep.mubr.f32.mxu0 0.0
      %922 = vmatmul.mubr.f32.gmra.mrb[0].mxu0 %v266
      %v923 = vpop.f32.mrb[0].mxu0
      %v924 = vadd.f32 %v395, %v923
      %v925 = vpop.f32.mrb[0].mxu0
      %926 = vmatprep.mubr.f32.mxu0 0.0
      %927 = vmatmul.mubr.f32.gmra.mrb[0].mxu0 %v267
      %v928 = vpop.f32.mrb[0].mxu0
      %v929 = vadd.f32 %v395, %v928
      %v930 = vpop.f32.mrb[0].mxu0
      %931 = vmatprep.mubr.f32.mxu0 0.0
      %932 = vmatmul.mubr.f32.gmra.mrb[0].mxu0 %v268
      %v933 = vpop.f32.mrb[0].mxu0
      %v934 = vadd.f32 %v395, %v933
      %v935 = vpop.f32.mrb[0].mxu0
      %936 = vmatprep.mubr.f32.mxu0 0.0
      %937 = vmatmul.mubr.f32.gmra.mrb[0].mxu0 %v269
      %v938 = vpop.f32.mrb[0].mxu0
      %v939 = vadd.f32 %v395, %v938
      %v940 = vpop.f32.mrb[0].mxu0
      %941 = vmatprep.mubr.f32.mxu0 0.0
      %942 = vmatmul.mubr.f32.gmra.mrb[0].mxu0 %v270
      %v943 = vpop.f32.mrb[0].mxu0
      %v944 = vadd.f32 %v395, %v943
      %v945 = vpop.f32.mrb[0].mxu0
      %946 = vmatprep.mubr.f32.mxu0 0.0
      %947 = vmatmul.mubr.f32.gmra.mrb[0].mxu0 %v271
      %v948 = vpop.f32.mrb[0].mxu0
      %v949 = vadd.f32 %v395, %v948
      %v950 = vpop.f32.mrb[0].mxu0
      %951 = vmatprep.mubr.f32.mxu0 0.0
      %952 = vmatmul.mubr.f32.gmra.mrb[0].mxu0 %v272
      %v953 = vpop.f32.mrb[0].mxu0
      %v954 = vadd.f32 %v395, %v953
      %v955 = vpop.f32.mrb[0].mxu0
      %956 = vmatprep.mubr.f32.mxu0 0.0
      %957 = vmatmul.mubr.f32.gmra.mrb[0].mxu0 %v273
      %v958 = vpop.f32.mrb[0].mxu0
      %v959 = vadd.f32 %v395, %v958
      %v960 = vpop.f32.mrb[0].mxu0
      %961 = vmatprep.mubr.f32.mxu0 0.0
      %962 = vmatmul.mubr.f32.gmra.mrb[0].mxu0 %v274
      %v963 = vpop.f32.mrb[0].mxu0
      %v964 = vadd.f32 %v395, %v963
      %v965 = vpop.f32.mrb[0].mxu0
      %966 = vmatprep.mubr.f32.mxu0 0.0
      %967 = vmatmul.mubr.f32.gmra.mrb[0].mxu0 %v275
      %v968 = vpop.f32.mrb[0].mxu0
      %v969 = vadd.f32 %v395, %v968
      %v970 = vpop.f32.mrb[0].mxu0
      %971 = vmatprep.mubr.f32.mxu0 0.0
      %972 = vmatmul.mubr.f32.gmra.mrb[0].mxu0 %v276
      %v973 = vpop.f32.mrb[0].mxu0
      %v974 = vadd.f32 %v395, %v973
      %v975 = vpop.f32.mrb[0].mxu0
      %976 = vmatprep.mubr.f32.mxu0 0.0
      %977 = vmatmul.mubr.f32.gmra.mrb[0].mxu0 %v277
      %v978 = vpop.f32.mrb[0].mxu0
      %v979 = vadd.f32 %v395, %v978
      %v980 = vpop.f32.mrb[0].mxu0
      %981 = vmatprep.mubr.f32.mxu0 0.0
      %982 = vmatmul.mubr.f32.gmra.mrb[0].mxu0 %v278
      %v983 = vpop.f32.mrb[0].mxu0
      %v984 = vadd.f32 %v395, %v983
      %v985 = vpop.f32.mrb[0].mxu0
      %986 = vmatprep.mubr.f32.mxu0 0.0
      %987 = vmatmul.mubr.f32.gmra.mrb[0].mxu0 %v279
      %v988 = vpop.f32.mrb[0].mxu0
      %v989 = vadd.f32 %v395, %v988
      %v990 = vpop.f32.mrb[0].mxu0
      %991 = vmatprep.mubr.f32.mxu0 0.0
      %992 = vmatmul.mubr.f32.gmra.mrb[0].mxu0 %v280
      %v993 = vpop.f32.mrb[0].mxu0
      %v994 = vadd.f32 %v395, %v993
      %v995 = vpop.f32.mrb[0].mxu0
      %996 = vmatprep.mubr.f32.mxu0 0.0
      %997 = vmatmul.mubr.f32.gmra.mrb[0].mxu0 %v281
      %v998 = vpop.f32.mrb[0].mxu0
      %v999 = vadd.f32 %v395, %v998
      %v1000 = vpop.f32.mrb[0].mxu0
      %1001 = vmatprep.mubr.f32.mxu0 0.0
      %1002 = vmatmul.mubr.f32.gmra.mrb[0].mxu0 %v282
      %v1003 = vpop.f32.mrb[0].mxu0
      %v1004 = vadd.f32 %v395, %v1003
      %v1005 = vpop.f32.mrb[0].mxu0
      %1006 = vmatprep.mubr.f32.mxu0 0.0
      %1007 = vmatmul.mubr.f32.gmra.mrb[0].mxu0 %v283
      %v1008 = vpop.f32.mrb[0].mxu0
      %v1009 = vadd.f32 %v395, %v1008
      %v1010 = vpop.f32.mrb[0].mxu0
      %1011 = vmatprep.mubr.f32.mxu0 0.0
      %1012 = vmatmul.mubr.f32.gmra.mrb[0].mxu0 %v284
      %v1013 = vpop.f32.mrb[0].mxu0
      %v1014 = vadd.f32 %v395, %v1013
      %v1015 = vpop.f32.mrb[0].mxu0
      %1016 = vmatprep.mubr.f32.mxu0 0.0
      %1017 = vmatmul.mubr.f32.gmra.mrb[0].mxu0 %v285
      %v1018 = vpop.f32.mrb[0].mxu0
      %v1019 = vadd.f32 %v395, %v1018
      %v1020 = vpop.f32.mrb[0].mxu0
      %1021 = vmatprep.mubr.f32.mxu0 0.0
      %1022 = vmatmul.mubr.f32.gmra.mrb[0].mxu0 %v286
      %v1023 = vpop.f32.mrb[0].mxu0
      %v1024 = vadd.f32 %v395, %v1023
      %v1025 = vpop.f32.mrb[0].mxu0
      %1026 = vmatprep.mubr.f32.mxu0 0.0
      %1027 = vmatmul.mubr.f32.gmra.mrb[0].mxu0 %v287
      %v1028 = vpop.f32.mrb[0].mxu0
      %v1029 = vadd.f32 %v395, %v1028
      %v1030 = vpop.f32.mrb[0].mxu0
      %1031 = vmatprep.mubr.f32.mxu0 0.0
      %1032 = vmatmul.mubr.f32.gmra.mrb[0].mxu0 %v288
      %v1033 = vpop.f32.mrb[0].mxu0
      %v1034 = vadd.f32 %v395, %v1033
      %v1035 = vpop.f32.mrb[0].mxu0
      %1036 = vmatprep.mubr.f32.mxu0 0.0
      %1037 = vmatmul.mubr.f32.gmra.mrb[0].mxu0 %v289
      %v1038 = vpop.f32.mrb[0].mxu0
      %v1039 = vadd.f32 %v395, %v1038
      %v1040 = vpop.f32.mrb[0].mxu0
      %1041 = vmatprep.mubr.f32.mxu0 0.0
      %1042 = vmatmul.mubr.f32.gmra.mrb[0].mxu0 %v290
      %v1043 = vpop.f32.mrb[0].mxu0
      %v1044 = vadd.f32 %v395, %v1043
      %v1045 = vpop.f32.mrb[0].mxu0
      %1046 = vmatprep.mubr.f32.mxu0 0.0
      %1047 = vmatmul.mubr.f32.gmra.mrb[0].mxu0 %v291
      %v1048 = vpop.f32.mrb[0].mxu0
      %v1049 = vadd.f32 %v395, %v1048
      %v1050 = vpop.f32.mrb[0].mxu0
      %1051 = vmatprep.mubr.f32.mxu0 0.0
      %1052 = vmatmul.mubr.f32.gmra.mrb[0].mxu0 %v292
      %v1053 = vpop.f32.mrb[0].mxu0
      %v1054 = vadd.f32 %v395, %v1053
      %v1055 = vpop.f32.mrb[0].mxu0
      %1056 = vmatprep.mubr.f32.mxu0 0.0
      %1057 = vmatmul.mubr.f32.gmra.mrb[0].mxu0 %v293
      %v1058 = vpop.f32.mrb[0].mxu0
      %v1059 = vadd.f32 %v395, %v1058
      %v1060 = vpop.f32.mrb[0].mxu0
      %1061 = vmatprep.mubr.f32.mxu0 0.0
      %1062 = vmatmul.mubr.f32.gmra.mrb[0].mxu0 %v294
      %v1063 = vpop.f32.mrb[0].mxu0
      %v1064 = vadd.f32 %v395, %v1063
      %v1065 = vpop.f32.mrb[0].mxu0
      %1066 = vmatprep.mubr.f32.mxu0 0.0
      %1067 = vmatmul.mubr.f32.gmra.mrb[0].mxu0 %v295
      %v1068 = vpop.f32.mrb[0].mxu0
      %v1069 = vadd.f32 %v395, %v1068
      %v1070 = vpop.f32.mrb[0].mxu0
      %1071 = vmatprep.mubr.f32.mxu0 0.0
      %1072 = vmatmul.mubr.f32.gmra.mrb[0].mxu0 %v296
      %v1073 = vpop.f32.mrb[0].mxu0
      %v1074 = vadd.f32 %v395, %v1073
      %v1075 = vpop.f32.mrb[0].mxu0
      %1076 = vmatprep.mubr.f32.mxu0 0.0
      %1077 = vmatmul.mubr.f32.gmra.mrb[0].mxu0 %v297
      %v1078 = vpop.f32.mrb[0].mxu0
      %v1079 = vadd.f32 %v395, %v1078
      %v1080 = vpop.f32.mrb[0].mxu0
      %1081 = vmatprep.mubr.f32.mxu0 0.0
      %1082 = vmatmul.mubr.f32.gmra.mrb[0].mxu0 %v298
      %v1083 = vpop.f32.mrb[0].mxu0
      %v1084 = vadd.f32 %v395, %v1083
      %v1085 = vpop.f32.mrb[0].mxu0
      %1086 = vmatprep.mubr.f32.mxu0 0.0
      %1087 = vmatmul.mubr.f32.gmra.mrb[0].mxu0 %v299
      %v1088 = vpop.f32.mrb[0].mxu0
      %v1089 = vadd.f32 %v395, %v1088
      %v1090 = vpop.f32.mrb[0].mxu0
      %1091 = vmatprep.mubr.f32.mxu0 0.0
      %1092 = vmatmul.mubr.f32.gmra.mrb[0].mxu0 %v300
      %v1093 = vpop.f32.mrb[0].mxu0
      %v1094 = vadd.f32 %v395, %v1093
      %v1095 = vpop.f32.mrb[0].mxu0
      %1096 = vmatprep.mubr.f32.mxu0 0.0
      %1097 = vmatmul.mubr.f32.gmra.mrb[0].mxu0 %v301
      %v1098 = vpop.f32.mrb[0].mxu0
      %v1099 = vadd.f32 %v395, %v1098
      %v1100 = vpop.f32.mrb[0].mxu0
      %1101 = vmatprep.mubr.f32.mxu0 0.0
      %1102 = vmatmul.mubr.f32.gmra.mrb[0].mxu0 %v302
      %v1103 = vpop.f32.mrb[0].mxu0
      %v1104 = vadd.f32 %v395, %v1103
      %v1105 = vpop.f32.mrb[0].mxu0
      %1106 = vmatprep.mubr.f32.mxu0 0.0
      %1107 = vmatmul.mubr.f32.gmra.mrb[0].mxu0 %v303
      %v1108 = vpop.f32.mrb[0].mxu0
      %v1109 = vadd.f32 %v395, %v1108
      %v1110 = vpop.f32.mrb[0].mxu0
      %1111 = vmatprep.mubr.f32.mxu0 0.0
      %1112 = vmatmul.mubr.f32.gmra.mrb[0].mxu0 %v304
      %v1113 = vpop.f32.mrb[0].mxu0
      %v1114 = vadd.f32 %v395, %v1113
      %v1115 = vpop.f32.mrb[0].mxu0
      %1116 = vmatprep.mubr.f32.mxu0 0.0
      %1117 = vmatmul.mubr.f32.gmra.mrb[0].mxu0 %v305
      %v1118 = vpop.f32.mrb[0].mxu0
      %v1119 = vadd.f32 %v395, %v1118
      %v1120 = vpop.f32.mrb[0].mxu0
      %1121 = vmatprep.mubr.f32.mxu0 0.0
      %1122 = vmatmul.mubr.f32.gmra.mrb[0].mxu0 %v306
      %v1123 = vpop.f32.mrb[0].mxu0
      %v1124 = vadd.f32 %v395, %v1123
      %v1125 = vpop.f32.mrb[0].mxu0
      %1126 = vmatprep.mubr.f32.mxu0 0.0
      %1127 = vmatmul.mubr.f32.gmra.mrb[0].mxu0 %v307
      %v1128 = vpop.f32.mrb[0].mxu0
      %v1129 = vadd.f32 %v395, %v1128
      %v1130 = vpop.f32.mrb[0].mxu0
      %1131 = vmatprep.mubr.f32.mxu0 0.0
      %1132 = vmatmul.mubr.f32.gmra.mrb[0].mxu0 %v308
      %v1133 = vpop.f32.mrb[0].mxu0
      %v1134 = vadd.f32 %v395, %v1133
      %v1135 = vpop.f32.mrb[0].mxu0
      %1136 = vmatprep.mubr.f32.mxu0 0.0
      %1137 = vmatmul.mubr.f32.gmra.mrb[0].mxu0 %v309
      %v1138 = vpop.f32.mrb[0].mxu0
      %v1139 = vadd.f32 %v395, %v1138
      %v1140 = vpop.f32.mrb[0].mxu0
      %1141 = vmatprep.mubr.f32.mxu0 0.0
      %1142 = vmatmul.mubr.f32.gmra.mrb[0].mxu0 %v310
      %v1143 = vpop.f32.mrb[0].mxu0
      %v1144 = vadd.f32 %v395, %v1143
      %v1145 = vpop.f32.mrb[0].mxu0
      %1146 = vmatprep.mubr.f32.mxu0 0.0
      %1147 = vmatmul.mubr.f32.gmra.mrb[0].mxu0 %v311
      %v1148 = vpop.f32.mrb[0].mxu0
      %v1149 = vadd.f32 %v395, %v1148
      %v1150 = vpop.f32.mrb[0].mxu0
      %1151 = vmatprep.mubr.f32.mxu0 0.0
      %1152 = vmatmul.mubr.f32.gmra.mrb[0].mxu0 %v312
      %v1153 = vpop.f32.mrb[0].mxu0
      %v1154 = vadd.f32 %v395, %v1153
      %v1155 = vpop.f32.mrb[0].mxu0
      %1156 = vmatprep.mubr.f32.mxu0 0.0
      %1157 = vmatmul.mubr.f32.gmra.mrb[0].mxu0 %v313
      %v1158 = vpop.f32.mrb[0].mxu0
      %v1159 = vadd.f32 %v395, %v1158
      %v1160 = vpop.f32.mrb[0].mxu0
      %1161 = vmatprep.mubr.f32.mxu0 0.0
      %1162 = vmatmul.mubr.f32.gmra.mrb[0].mxu0 %v314
      %v1163 = vpop.f32.mrb[0].mxu0
      %v1164 = vadd.f32 %v395, %v1163
      %v1165 = vpop.f32.mrb[0].mxu0
      %1166 = vmatprep.mubr.f32.mxu0 0.0
      %1167 = vmatmul.mubr.f32.gmra.mrb[0].mxu0 %v315
      %v1168 = vpop.f32.mrb[0].mxu0
      %v1169 = vadd.f32 %v395, %v1168
      %v1170 = vpop.f32.mrb[0].mxu0
      %1171 = vmatprep.mubr.f32.mxu0 0.0
      %1172 = vmatmul.mubr.f32.gmra.mrb[0].mxu0 %v316
      %v1173 = vpop.f32.mrb[0].mxu0
      %v1174 = vadd.f32 %v395, %v1173
      %v1175 = vpop.f32.mrb[0].mxu0
      %1176 = vmatprep.mubr.f32.mxu0 0.0
      %1177 = vmatmul.mubr.f32.gmra.mrb[0].mxu0 %v317
      %v1178 = vpop.f32.mrb[0].mxu0
      %v1179 = vadd.f32 %v395, %v1178
      %v1180 = vpop.f32.mrb[0].mxu0
      %1181 = vmatprep.mubr.f32.mxu0 0.0
      %1182 = vmatmul.mubr.f32.gmra.mrb[0].mxu0 %v318
      %v1183 = vpop.f32.mrb[0].mxu0
      %v1184 = vadd.f32 %v395, %v1183
      %v1185 = vpop.f32.mrb[0].mxu0
      %1186 = vmatprep.mubr.f32.mxu0 0.0
      %1187 = vmatmul.mubr.f32.gmra.mrb[0].mxu0 %v319
      %v1188 = vpop.f32.mrb[0].mxu0
      %v1189 = vadd.f32 %v395, %v1188
      %v1190 = vpop.f32.mrb[0].mxu0
      %1191 = vmatprep.mubr.f32.mxu0 0.0
      %1192 = vmatmul.mubr.f32.gmra.mrb[0].mxu0 %v320
      %v1193 = vpop.f32.mrb[0].mxu0
      %v1194 = vadd.f32 %v395, %v1193
      %v1195 = vpop.f32.mrb[0].mxu0
      %1196 = vmatprep.mubr.f32.mxu0 0.0
      %1197 = vmatmul.mubr.f32.gmra.mrb[0].mxu0 %v321
      %v1198 = vpop.f32.mrb[0].mxu0
      %v1199 = vadd.f32 %v395, %v1198
      %v1200 = vpop.f32.mrb[0].mxu0
      %1201 = vmatprep.mubr.f32.mxu0 0.0
      %1202 = vmatmul.mubr.f32.gmra.mrb[0].mxu0 %v322
      %v1203 = vpop.f32.mrb[0].mxu0
      %v1204 = vadd.f32 %v395, %v1203
      %v1205 = vpop.f32.mrb[0].mxu0
      %1206 = vmatprep.mubr.f32.mxu0 0.0
      %1207 = vmatmul.mubr.f32.gmra.mrb[0].mxu0 %v323
      %v1208 = vpop.f32.mrb[0].mxu0
      %v1209 = vadd.f32 %v395, %v1208
      %v1210 = vpop.f32.mrb[0].mxu0
      %1211 = vmatprep.mubr.f32.mxu0 0.0
      %1212 = vmatmul.mubr.f32.gmra.mrb[0].mxu0 %v324
      %v1213 = vpop.f32.mrb[0].mxu0
      %v1214 = vadd.f32 %v395, %v1213
      %v1215 = vpop.f32.mrb[0].mxu0
      %1216 = vmatprep.mubr.f32.mxu0 0.0
      %1217 = vmatmul.mubr.f32.gmra.mrb[0].mxu0 %v325
      %v1218 = vpop.f32.mrb[0].mxu0
      %v1219 = vadd.f32 %v395, %v1218
      %v1220 = vpop.f32.mrb[0].mxu0
      %1221 = vmatprep.mubr.f32.mxu0 0.0
      %1222 = vmatmul.mubr.f32.gmra.mrb[0].mxu0 %v326
      %v1223 = vpop.f32.mrb[0].mxu0
      %v1224 = vadd.f32 %v395, %v1223
      %v1225 = vpop.f32.mrb[0].mxu0
      %1226 = vmatprep.mubr.f32.mxu0 0.0
      %1227 = vmatmul.mubr.f32.gmra.mrb[0].mxu0 %v327
      %v1228 = vpop.f32.mrb[0].mxu0
      %v1229 = vadd.f32 %v395, %v1228
      %v1230 = vpop.f32.mrb[0].mxu0
      %1231 = vmatprep.mubr.f32.mxu0 0.0
      %1232 = vmatmul.mubr.f32.gmra.mrb[0].mxu0 %v328
      %v1233 = vpop.f32.mrb[0].mxu0
      %v1234 = vadd.f32 %v395, %v1233
      %v1235 = vpop.f32.mrb[0].mxu0
      %1236 = vmatprep.mubr.f32.mxu0 0.0
      %1237 = vmatmul.mubr.f32.gmra.mrb[0].mxu0 %v329
      %v1238 = vpop.f32.mrb[0].mxu0
      %v1239 = vadd.f32 %v395, %v1238
      %v1240 = vpop.f32.mrb[0].mxu0
      %1241 = vmatprep.mubr.f32.mxu0 0.0
      %1242 = vmatmul.mubr.f32.gmra.mrb[0].mxu0 %v330
      %v1243 = vpop.f32.mrb[0].mxu0
      %v1244 = vadd.f32 %v395, %v1243
      %v1245 = vpop.f32.mrb[0].mxu0
      %1246 = vmatprep.mubr.f32.mxu0 0.0
      %1247 = vmatmul.mubr.f32.gmra.mrb[0].mxu0 %v331
      %v1248 = vpop.f32.mrb[0].mxu0
      %v1249 = vadd.f32 %v395, %v1248
      %v1250 = vpop.f32.mrb[0].mxu0
      %1251 = vmatprep.mubr.f32.mxu0 0.0
      %1252 = vmatmul.mubr.f32.gmra.mrb[0].mxu0 %v332
      %v1253 = vpop.f32.mrb[0].mxu0
      %v1254 = vadd.f32 %v395, %v1253
      %v1255 = vpop.f32.mrb[0].mxu0
      %1256 = vmatprep.mubr.f32.mxu0 0.0
      %1257 = vmatmul.mubr.f32.gmra.mrb[0].mxu0 %v333
      %v1258 = vpop.f32.mrb[0].mxu0
      %v1259 = vadd.f32 %v395, %v1258
      %v1260 = vpop.f32.mrb[0].mxu0
      %1261 = vmatprep.mubr.f32.mxu0 0.0
      %1262 = vmatmul.mubr.f32.gmra.mrb[0].mxu0 %v334
      %v1263 = vpop.f32.mrb[0].mxu0
      %v1264 = vadd.f32 %v395, %v1263
      %v1265 = vpop.f32.mrb[0].mxu0
      %1266 = vmatprep.mubr.f32.mxu0 0.0
      %1267 = vmatmul.mubr.f32.gmra.mrb[0].mxu0 %v335
      %v1268 = vpop.f32.mrb[0].mxu0
      %v1269 = vadd.f32 %v395, %v1268
      %v1270 = vpop.f32.mrb[0].mxu0
      %1271 = vmatprep.mubr.f32.mxu0 0.0
      %1272 = vmatmul.mubr.f32.gmra.mrb[0].mxu0 %v336
      %v1273 = vpop.f32.mrb[0].mxu0
      %v1274 = vadd.f32 %v395, %v1273
      %v1275 = vpop.f32.mrb[0].mxu0
      %1276 = vmatprep.mubr.f32.mxu0 0.0
      %1277 = vmatmul.mubr.f32.gmra.mrb[0].mxu0 %v337
      %v1278 = vpop.f32.mrb[0].mxu0
      %v1279 = vadd.f32 %v395, %v1278
      %v1280 = vpop.f32.mrb[0].mxu0
      %1281 = vmatprep.mubr.f32.mxu0 0.0
      %1282 = vmatmul.mubr.f32.gmra.mrb[0].mxu0 %v338
      %v1283 = vpop.f32.mrb[0].mxu0
      %v1284 = vadd.f32 %v395, %v1283
      %v1285 = vpop.f32.mrb[0].mxu0
      %1286 = vmatprep.mubr.f32.mxu0 0.0
      %1287 = vmatmul.mubr.f32.gmra.mrb[0].mxu0 %v339
      %v1288 = vpop.f32.mrb[0].mxu0
      %v1289 = vadd.f32 %v395, %v1288
      %v1290 = vpop.f32.mrb[0].mxu0
      %1291 = vmatprep.mubr.f32.mxu0 0.0
      %1292 = vmatmul.mubr.f32.gmra.mrb[0].mxu0 %v340
      %v1293 = vpop.f32.mrb[0].mxu0
      %v1294 = vadd.f32 %v395, %v1293
      %v1295 = vpop.f32.mrb[0].mxu0
      %1296 = vmatprep.mubr.f32.mxu0 0.0
      %1297 = vmatmul.mubr.f32.gmra.mrb[0].mxu0 %v341
      %v1298 = vpop.f32.mrb[0].mxu0
      %v1299 = vadd.f32 %v395, %v1298
      %v1300 = vpop.f32.mrb[0].mxu0
      %1301 = vmatprep.mubr.f32.mxu0 0.0
      %1302 = vmatmul.mubr.f32.gmra.mrb[0].mxu0 %v342
      %v1303 = vpop.f32.mrb[0].mxu0
      %v1304 = vadd.f32 %v395, %v1303
      %v1305 = vpop.f32.mrb[0].mxu0
      %1306 = vmatprep.mubr.f32.mxu0 0.0
      %1307 = vmatmul.mubr.f32.gmra.mrb[0].mxu0 %v343
      %v1308 = vpop.f32.mrb[0].mxu0
      %v1309 = vadd.f32 %v395, %v1308
      %v1310 = vpop.f32.mrb[0].mxu0
      %1311 = vmatprep.mubr.f32.mxu0 0.0
      %1312 = vmatmul.mubr.f32.gmra.mrb[0].mxu0 %v344
      %v1313 = vpop.f32.mrb[0].mxu0
      %v1314 = vadd.f32 %v395, %v1313
      %v1315 = vpop.f32.mrb[0].mxu0
      %1316 = vmatprep.mubr.f32.mxu0 0.0
      %1317 = vmatmul.mubr.f32.gmra.mrb[0].mxu0 %v345
      %v1318 = vpop.f32.mrb[0].mxu0
      %v1319 = vadd.f32 %v395, %v1318
      %v1320 = vpop.f32.mrb[0].mxu0
      %1321 = vmatprep.mubr.f32.mxu0 0.0
      %1322 = vmatmul.mubr.f32.gmra.mrb[0].mxu0 %v346
      %v1323 = vpop.f32.mrb[0].mxu0
      %v1324 = vadd.f32 %v395, %v1323
      %v1325 = vpop.f32.mrb[0].mxu0
      %1326 = vmatprep.mubr.f32.mxu0 0.0
      %1327 = vmatmul.mubr.f32.gmra.mrb[0].mxu0 %v347
      %v1328 = vpop.f32.mrb[0].mxu0
      %v1329 = vadd.f32 %v395, %v1328
      %v1330 = vpop.f32.mrb[0].mxu0
      %1331 = vmatprep.mubr.f32.mxu0 0.0
      %1332 = vmatmul.mubr.f32.gmra.mrb[0].mxu0 %v348
      %v1333 = vpop.f32.mrb[0].mxu0
      %v1334 = vadd.f32 %v395, %v1333
      %v1335 = vpop.f32.mrb[0].mxu0
      %1336 = vmatprep.mubr.f32.mxu0 0.0
      %1337 = vmatmul.mubr.f32.gmra.mrb[0].mxu0 %v349
      %v1338 = vpop.f32.mrb[0].mxu0
      %v1339 = vadd.f32 %v395, %v1338
      %v1340 = vpop.f32.mrb[0].mxu0
      %1341 = vmatprep.mubr.f32.mxu0 0.0
      %1342 = vmatmul.mubr.f32.gmra.mrb[0].mxu0 %v350
      %v1343 = vpop.f32.mrb[0].mxu0
      %v1344 = vadd.f32 %v395, %v1343
      %v1345 = vpop.f32.mrb[0].mxu0
      %1346 = vmatprep.mubr.f32.mxu0 0.0
      %1347 = vmatmul.mubr.f32.gmra.mrb[0].mxu0 %v351
      %v1348 = vpop.f32.mrb[0].mxu0
      %v1349 = vadd.f32 %v395, %v1348
      %v1350 = vpop.f32.mrb[0].mxu0
      %1351 = vmatprep.mubr.f32.mxu0 0.0
      %1352 = vmatmul.mubr.f32.gmra.mrb[0].mxu0 %v352
      %v1353 = vpop.f32.mrb[0].mxu0
      %v1354 = vadd.f32 %v395, %v1353
      %v1355 = vpop.f32.mrb[0].mxu0
      %1356 = vmatprep.mubr.f32.mxu0 0.0
      %1357 = vmatmul.mubr.f32.gmra.mrb[0].mxu0 %v353
      %v1358 = vpop.f32.mrb[0].mxu0
      %v1359 = vadd.f32 %v395, %v1358
      %v1360 = vpop.f32.mrb[0].mxu0
      %1361 = vmatprep.mubr.f32.mxu0 0.0
      %1362 = vmatmul.mubr.f32.gmra.mrb[0].mxu0 %v354
      %v1363 = vpop.f32.mrb[0].mxu0
      %v1364 = vadd.f32 %v395, %v1363
      %v1365 = vpop.f32.mrb[0].mxu0
      %1366 = vmatprep.mubr.f32.mxu0 0.0
      %1367 = vmatmul.mubr.f32.gmra.mrb[0].mxu0 %v355
      %v1368 = vpop.f32.mrb[0].mxu0
      %v1369 = vadd.f32 %v395, %v1368
      %v1370 = vpop.f32.mrb[0].mxu0
      %1371 = vmatprep.mubr.f32.mxu0 0.0
      %1372 = vmatmul.mubr.f32.gmra.mrb[0].mxu0 %v356
      %v1373 = vpop.f32.mrb[0].mxu0
      %v1374 = vadd.f32 %v395, %v1373
      %v1375 = vpop.f32.mrb[0].mxu0
      %1376 = vmatprep.mubr.f32.mxu0 0.0
      %1377 = vmatmul.mubr.f32.gmra.mrb[0].mxu0 %v357
      %v1378 = vpop.f32.mrb[0].mxu0
      %v1379 = vadd.f32 %v395, %v1378
      %v1380 = vpop.f32.mrb[0].mxu0
      %1381 = vmatprep.mubr.f32.mxu0 0.0
      %1382 = vmatmul.mubr.f32.gmra.mrb[0].mxu0 %v358
      %v1383 = vpop.f32.mrb[0].mxu0
      %v1384 = vadd.f32 %v395, %v1383
      %v1385 = vpop.f32.mrb[0].mxu0
      %1386 = vmatprep.mubr.f32.mxu0 0.0
      %1387 = vmatmul.mubr.f32.gmra.mrb[0].mxu0 %v359
      %v1388 = vpop.f32.mrb[0].mxu0
      %v1389 = vadd.f32 %v395, %v1388
      %v1390 = vpop.f32.mrb[0].mxu0
      %1391 = vmatprep.mubr.f32.mxu0 0.0
      %1392 = vmatmul.mubr.f32.gmra.mrb[0].mxu0 %v360
      %v1393 = vpop.f32.mrb[0].mxu0
      %v1394 = vadd.f32 %v395, %v1393
      %v1395 = vpop.f32.mrb[0].mxu0
      %1396 = vmatprep.mubr.f32.mxu0 0.0
      %1397 = vmatmul.mubr.f32.gmra.mrb[0].mxu0 %v361
      %v1398 = vpop.f32.mrb[0].mxu0
      %v1399 = vadd.f32 %v395, %v1398
      %v1400 = vpop.f32.mrb[0].mxu0
      %1401 = vmatprep.mubr.f32.mxu0 0.0
      %1402 = vmatmul.mubr.f32.gmra.mrb[0].mxu0 %v362
      %v1403 = vpop.f32.mrb[0].mxu0
      %v1404 = vadd.f32 %v395, %v1403
      %v1405 = vpop.f32.mrb[0].mxu0
      %1406 = vmatprep.mubr.f32.mxu0 0.0
      %1407 = vmatmul.mubr.f32.gmra.mrb[0].mxu0 %v363
      %v1408 = vpop.f32.mrb[0].mxu0
      %v1409 = vadd.f32 %v395, %v1408
      %v1410 = vpop.f32.mrb[0].mxu0
      %1411 = vmatprep.mubr.f32.mxu0 0.0
      %1412 = vmatmul.mubr.f32.gmra.mrb[0].mxu0 %v364
      %v1413 = vpop.f32.mrb[0].mxu0
      %v1414 = vadd.f32 %v395, %v1413
      %v1415 = vpop.f32.mrb[0].mxu0
      %1416 = vmatprep.mubr.f32.mxu0 0.0
      %1417 = vmatmul.mubr.f32.gmra.mrb[0].mxu0 %v365
      %v1418 = vpop.f32.mrb[0].mxu0
      %v1419 = vadd.f32 %v395, %v1418
      %v1420 = vpop.f32.mrb[0].mxu0
      %1421 = vmatprep.mubr.f32.mxu0 0.0
      %1422 = vmatmul.mubr.f32.gmra.mrb[0].mxu0 %v366
      %v1423 = vpop.f32.mrb[0].mxu0
      %v1424 = vadd.f32 %v395, %v1423
      %v1425 = vpop.f32.mrb[0].mxu0
      %1426 = vmatprep.mubr.f32.mxu0 0.0
      %1427 = vmatmul.mubr.f32.gmra.mrb[0].mxu0 %v367
      %v1428 = vpop.f32.mrb[0].mxu0
      %v1429 = vadd.f32 %v395, %v1428
      %v1430 = vpop.f32.mrb[0].mxu0
      %1431 = vmatprep.mubr.f32.mxu0 0.0
      %1432 = vmatmul.mubr.f32.gmra.mrb[0].mxu0 %v368
      %v1433 = vpop.f32.mrb[0].mxu0
      %v1434 = vadd.f32 %v395, %v1433
      %v1435 = vpop.f32.mrb[0].mxu0
      %1436 = vmatprep.mubr.f32.mxu0 0.0
      %1437 = vmatmul.mubr.f32.gmra.mrb[0].mxu0 %v369
      %v1438 = vpop.f32.mrb[0].mxu0
      %v1439 = vadd.f32 %v395, %v1438
      %v1440 = vpop.f32.mrb[0].mxu0
      %1441 = vmatprep.mubr.f32.mxu0 0.0
      %1442 = vmatmul.mubr.f32.gmra.mrb[0].mxu0 %v370
      %v1443 = vpop.f32.mrb[0].mxu0
      %v1444 = vadd.f32 %v395, %v1443
      %v1445 = vpop.f32.mrb[0].mxu0
      %1446 = vmatprep.mubr.f32.mxu0 0.0
      %1447 = vmatmul.mubr.f32.gmra.mrb[0].mxu0 %v371
      %v1448 = vpop.f32.mrb[0].mxu0
      %v1449 = vadd.f32 %v395, %v1448
      %v1450 = vpop.f32.mrb[0].mxu0
      %1451 = vmatprep.mubr.f32.mxu0 0.0
      %1452 = vmatmul.mubr.f32.gmra.mrb[0].mxu0 %v372
      %v1453 = vpop.f32.mrb[0].mxu0
      %v1454 = vadd.f32 %v395, %v1453
      %v1455 = vpop.f32.mrb[0].mxu0
      %1456 = vmatprep.mubr.f32.mxu0 0.0
      %1457 = vmatmul.mubr.f32.gmra.mrb[0].mxu0 %v373
      %v1458 = vpop.f32.mrb[0].mxu0
      %v1459 = vadd.f32 %v395, %v1458
      %v1460 = vpop.f32.mrb[0].mxu0
      %1461 = vdwg.mxu0
      %v1462 = vxor.u32 %v464, 2147483648
      %v1463 = vxor.u32 %v469, 2147483648
      %v1464 = vxor.u32 %v474, 2147483648
      %v1465 = vxor.u32 %v479, 2147483648
      %v1466 = vxor.u32 %v484, 2147483648
      %v1467 = vxor.u32 %v489, 2147483648
      %v1468 = vxor.u32 %v494, 2147483648
      %v1469 = vxor.u32 %v499, 2147483648
      %v1470 = vxor.u32 %v504, 2147483648
      %v1471 = vxor.u32 %v509, 2147483648
      %v1472 = vxor.u32 %v514, 2147483648
      %v1473 = vxor.u32 %v519, 2147483648
      %v1474 = vxor.u32 %v524, 2147483648
      %v1475 = vxor.u32 %v529, 2147483648
      %v1476 = vxor.u32 %v534, 2147483648
      %v1477 = vxor.u32 %v539, 2147483648
      %v1478 = vxor.u32 %v544, 2147483648
      %v1479 = vxor.u32 %v549, 2147483648
      %v1480 = vxor.u32 %v554, 2147483648
      %v1481 = vxor.u32 %v559, 2147483648
      %v1482 = vxor.u32 %v564, 2147483648
      %v1483 = vxor.u32 %v569, 2147483648
      %v1484 = vxor.u32 %v574, 2147483648
      %v1485 = vxor.u32 %v579, 2147483648
      %v1486 = vxor.u32 %v584, 2147483648
      %v1487 = vxor.u32 %v589, 2147483648
      %v1488 = vxor.u32 %v594, 2147483648
      %v1489 = vxor.u32 %v599, 2147483648
      %v1490 = vxor.u32 %v604, 2147483648
      %v1491 = vxor.u32 %v609, 2147483648
      %v1492 = vxor.u32 %v614, 2147483648
      %v1493 = vxor.u32 %v619, 2147483648
      %v1494 = vxor.u32 %v624, 2147483648
      %v1495 = vxor.u32 %v629, 2147483648
      %v1496 = vxor.u32 %v634, 2147483648
      %v1497 = vxor.u32 %v639, 2147483648
      %v1498 = vxor.u32 %v644, 2147483648
      %v1499 = vxor.u32 %v649, 2147483648
      %v1500 = vxor.u32 %v654, 2147483648
      %v1501 = vxor.u32 %v659, 2147483648
      %v1502 = vxor.u32 %v664, 2147483648
      %v1503 = vxor.u32 %v669, 2147483648
      %v1504 = vxor.u32 %v674, 2147483648
      %v1505 = vxor.u32 %v679, 2147483648
      %v1506 = vxor.u32 %v684, 2147483648
      %v1507 = vxor.u32 %v689, 2147483648
      %v1508 = vxor.u32 %v694, 2147483648
      %v1509 = vxor.u32 %v699, 2147483648
      %v1510 = vxor.u32 %v704, 2147483648
      %v1511 = vxor.u32 %v709, 2147483648
      %v1512 = vxor.u32 %v714, 2147483648
      %v1513 = vxor.u32 %v719, 2147483648
      %v1514 = vxor.u32 %v724, 2147483648
      %v1515 = vxor.u32 %v729, 2147483648
      %v1516 = vxor.u32 %v734, 2147483648
      %v1517 = vxor.u32 %v739, 2147483648
      %v1518 = vxor.u32 %v744, 2147483648
      %v1519 = vxor.u32 %v749, 2147483648
      %v1520 = vxor.u32 %v754, 2147483648
      %v1521 = vxor.u32 %v759, 2147483648
      %v1522 = vxor.u32 %v764, 2147483648
      %v1523 = vxor.u32 %v769, 2147483648
      %v1524 = vxor.u32 %v774, 2147483648
      %v1525 = vxor.u32 %v779, 2147483648
      %v1526 = vxor.u32 %v784, 2147483648
      %v1527 = vxor.u32 %v789, 2147483648
      %v1528 = vxor.u32 %v794, 2147483648
      %v1529 = vxor.u32 %v799, 2147483648
      %v1530 = vxor.u32 %v804, 2147483648
      %v1531 = vxor.u32 %v809, 2147483648
      %v1532 = vxor.u32 %v814, 2147483648
      %v1533 = vxor.u32 %v819, 2147483648
      %v1534 = vxor.u32 %v824, 2147483648
      %v1535 = vxor.u32 %v829, 2147483648
      %v1536 = vxor.u32 %v834, 2147483648
      %v1537 = vxor.u32 %v839, 2147483648
      %v1538 = vxor.u32 %v844, 2147483648
      %v1539 = vxor.u32 %v849, 2147483648
      %v1540 = vxor.u32 %v854, 2147483648
      %v1541 = vxor.u32 %v859, 2147483648
      %v1542 = vxor.u32 %v864, 2147483648
      %v1543 = vxor.u32 %v869, 2147483648
      %v1544 = vxor.u32 %v874, 2147483648
      %v1545 = vxor.u32 %v879, 2147483648
      %v1546 = vxor.u32 %v884, 2147483648
      %v1547 = vxor.u32 %v889, 2147483648
      %v1548 = vxor.u32 %v894, 2147483648
      %v1549 = vxor.u32 %v899, 2147483648
      %v1550 = vxor.u32 %v904, 2147483648
      %v1551 = vxor.u32 %v909, 2147483648
      %v1552 = vxor.u32 %v914, 2147483648
      %v1553 = vxor.u32 %v919, 2147483648
      %v1554 = vxor.u32 %v924, 2147483648
      %v1555 = vxor.u32 %v929, 2147483648
      %v1556 = vxor.u32 %v934, 2147483648
      %v1557 = vxor.u32 %v939, 2147483648
      %v1558 = vxor.u32 %v944, 2147483648
      %v1559 = vxor.u32 %v949, 2147483648
      %v1560 = vxor.u32 %v954, 2147483648
      %v1561 = vxor.u32 %v959, 2147483648
      %v1562 = vxor.u32 %v964, 2147483648
      %v1563 = vxor.u32 %v969, 2147483648
      %v1564 = vxor.u32 %v974, 2147483648
      %v1565 = vxor.u32 %v979, 2147483648
      %v1566 = vxor.u32 %v984, 2147483648
      %v1567 = vxor.u32 %v989, 2147483648
      %v1568 = vxor.u32 %v994, 2147483648
      %v1569 = vxor.u32 %v999, 2147483648
      %v1570 = vxor.u32 %v1004, 2147483648
      %v1571 = vxor.u32 %v1009, 2147483648
      %v1572 = vxor.u32 %v1014, 2147483648
      %v1573 = vxor.u32 %v1019, 2147483648
      %v1574 = vxor.u32 %v1024, 2147483648
      %v1575 = vxor.u32 %v1029, 2147483648
      %v1576 = vxor.u32 %v1034, 2147483648
      %v1577 = vxor.u32 %v1039, 2147483648
      %v1578 = vxor.u32 %v1044, 2147483648
      %v1579 = vxor.u32 %v1049, 2147483648
      %v1580 = vxor.u32 %v1054, 2147483648
      %v1581 = vxor.u32 %v1059, 2147483648
      %v1582 = vxor.u32 %v1064, 2147483648
      %v1583 = vxor.u32 %v1069, 2147483648
      %v1584 = vxor.u32 %v1074, 2147483648
      %v1585 = vxor.u32 %v1079, 2147483648
      %v1586 = vxor.u32 %v1084, 2147483648
      %v1587 = vxor.u32 %v1089, 2147483648
      %v1588 = vxor.u32 %v1094, 2147483648
      %v1589 = vxor.u32 %v1099, 2147483648
      %v1590 = vxor.u32 %v1104, 2147483648
      %v1591 = vxor.u32 %v1109, 2147483648
      %v1592 = vxor.u32 %v1114, 2147483648
      %v1593 = vxor.u32 %v1119, 2147483648
      %v1594 = vxor.u32 %v1124, 2147483648
      %v1595 = vxor.u32 %v1129, 2147483648
      %v1596 = vxor.u32 %v1134, 2147483648
      %v1597 = vxor.u32 %v1139, 2147483648
      %v1598 = vxor.u32 %v1144, 2147483648
      %v1599 = vxor.u32 %v1149, 2147483648
      %v1600 = vxor.u32 %v1154, 2147483648
      %v1601 = vxor.u32 %v1159, 2147483648
      %v1602 = vxor.u32 %v1164, 2147483648
      %v1603 = vxor.u32 %v1169, 2147483648
      %v1604 = vxor.u32 %v1174, 2147483648
      %v1605 = vxor.u32 %v1179, 2147483648
      %v1606 = vxor.u32 %v1184, 2147483648
      %v1607 = vxor.u32 %v1189, 2147483648
      %v1608 = vxor.u32 %v1194, 2147483648
      %v1609 = vxor.u32 %v1199, 2147483648
      %v1610 = vxor.u32 %v1204, 2147483648
      %v1611 = vxor.u32 %v1209, 2147483648
      %v1612 = vxor.u32 %v1214, 2147483648
      %v1613 = vxor.u32 %v1219, 2147483648
      %v1614 = vxor.u32 %v1224, 2147483648
      %v1615 = vxor.u32 %v1229, 2147483648
      %v1616 = vxor.u32 %v1234, 2147483648
      %v1617 = vxor.u32 %v1239, 2147483648
      %v1618 = vxor.u32 %v1244, 2147483648
      %v1619 = vxor.u32 %v1249, 2147483648
      %v1620 = vxor.u32 %v1254, 2147483648
      %v1621 = vxor.u32 %v1259, 2147483648
      %v1622 = vxor.u32 %v1264, 2147483648
      %v1623 = vxor.u32 %v1269, 2147483648
      %v1624 = vxor.u32 %v1274, 2147483648
      %v1625 = vxor.u32 %v1279, 2147483648
      %v1626 = vxor.u32 %v1284, 2147483648
      %v1627 = vxor.u32 %v1289, 2147483648
      %v1628 = vxor.u32 %v1294, 2147483648
      %v1629 = vxor.u32 %v1299, 2147483648
      %v1630 = vxor.u32 %v1304, 2147483648
      %v1631 = vxor.u32 %v1309, 2147483648
      %v1632 = vxor.u32 %v1314, 2147483648
      %v1633 = vxor.u32 %v1319, 2147483648
      %v1634 = vxor.u32 %v1324, 2147483648
      %v1635 = vxor.u32 %v1329, 2147483648
      %v1636 = vxor.u32 %v1334, 2147483648
      %v1637 = vxor.u32 %v1339, 2147483648
      %v1638 = vxor.u32 %v1344, 2147483648
      %v1639 = vxor.u32 %v1349, 2147483648
      %v1640 = vxor.u32 %v1354, 2147483648
      %v1641 = vxor.u32 %v1359, 2147483648
      %v1642 = vxor.u32 %v1364, 2147483648
      %v1643 = vxor.u32 %v1369, 2147483648
      %v1644 = vxor.u32 %v1374, 2147483648
      %v1645 = vxor.u32 %v1379, 2147483648
      %v1646 = vxor.u32 %v1384, 2147483648
      %v1647 = vxor.u32 %v1389, 2147483648
      %v1648 = vxor.u32 %v1394, 2147483648
      %v1649 = vxor.u32 %v1399, 2147483648
      %v1650 = vxor.u32 %v1404, 2147483648
      %v1651 = vxor.u32 %v1409, 2147483648
      %v1652 = vxor.u32 %v1414, 2147483648
      %v1653 = vxor.u32 %v1419, 2147483648
      %v1654 = vxor.u32 %v1424, 2147483648
      %v1655 = vxor.u32 %v1429, 2147483648
      %v1656 = vxor.u32 %v1434, 2147483648
      %v1657 = vxor.u32 %v1439, 2147483648
      %v1658 = vxor.u32 %v1444, 2147483648
      %v1659 = vxor.u32 %v1449, 2147483648
      %v1660 = vxor.u32 %v1454, 2147483648
      %v1661 = vxor.u32 %v1459, 2147483648
      %v1662 = vmul.f32 %v1462, 1.442695
      %v1663 = vpow.pop %v1662
      %v1664 = vmul.f32 %v1463, 1.442695
      %v1665 = vpow.pop %v1664
      %v1666 = vmul.f32 %v1464, 1.442695
      %v1667 = vpow.pop %v1666
      %v1668 = vmul.f32 %v1465, 1.442695
      %v1669 = vpow.pop %v1668
      %v1670 = vmul.f32 %v1466, 1.442695
      %v1671 = vpow.pop %v1670
      %v1672 = vmul.f32 %v1467, 1.442695
      %v1673 = vpow.pop %v1672
      %v1674 = vmul.f32 %v1468, 1.442695
      %v1675 = vpow.pop %v1674
      %v1676 = vmul.f32 %v1469, 1.442695
      %v1677 = vpow.pop %v1676
      %v1678 = vmul.f32 %v1470, 1.442695
      %v1679 = vpow.pop %v1678
      %v1680 = vmul.f32 %v1471, 1.442695
      %v1681 = vpow.pop %v1680
      %v1682 = vmul.f32 %v1472, 1.442695
      %v1683 = vpow.pop %v1682
      %v1684 = vmul.f32 %v1473, 1.442695
      %v1685 = vpow.pop %v1684
      %v1686 = vmul.f32 %v1474, 1.442695
      %v1687 = vpow.pop %v1686
      %v1688 = vmul.f32 %v1475, 1.442695
      %v1689 = vpow.pop %v1688
      %v1690 = vmul.f32 %v1476, 1.442695
      %v1691 = vpow.pop %v1690
      %v1692 = vmul.f32 %v1477, 1.442695
      %v1693 = vpow.pop %v1692
      %v1694 = vmul.f32 %v1478, 1.442695
      %v1695 = vpow.pop %v1694
      %v1696 = vmul.f32 %v1479, 1.442695
      %v1697 = vpow.pop %v1696
      %v1698 = vmul.f32 %v1480, 1.442695
      %v1699 = vpow.pop %v1698
      %v1700 = vmul.f32 %v1481, 1.442695
      %v1701 = vpow.pop %v1700
      %v1702 = vmul.f32 %v1482, 1.442695
      %v1703 = vpow.pop %v1702
      %v1704 = vmul.f32 %v1483, 1.442695
      %v1705 = vpow.pop %v1704
      %v1706 = vmul.f32 %v1484, 1.442695
      %v1707 = vpow.pop %v1706
      %v1708 = vmul.f32 %v1485, 1.442695
      %v1709 = vpow.pop %v1708
      %v1710 = vmul.f32 %v1486, 1.442695
      %v1711 = vpow.pop %v1710
      %v1712 = vmul.f32 %v1487, 1.442695
      %v1713 = vpow.pop %v1712
      %v1714 = vmul.f32 %v1488, 1.442695
      %v1715 = vpow.pop %v1714
      %v1716 = vmul.f32 %v1489, 1.442695
      %v1717 = vpow.pop %v1716
      %v1718 = vmul.f32 %v1490, 1.442695
      %v1719 = vpow.pop %v1718
      %v1720 = vmul.f32 %v1491, 1.442695
      %v1721 = vpow.pop %v1720
      %v1722 = vmul.f32 %v1492, 1.442695
      %v1723 = vpow.pop %v1722
      %v1724 = vmul.f32 %v1493, 1.442695
      %v1725 = vpow.pop %v1724
      %v1726 = vmul.f32 %v1494, 1.442695
      %v1727 = vpow.pop %v1726
      %v1728 = vmul.f32 %v1495, 1.442695
      %v1729 = vpow.pop %v1728
      %v1730 = vmul.f32 %v1496, 1.442695
      %v1731 = vpow.pop %v1730
      %v1732 = vmul.f32 %v1497, 1.442695
      %v1733 = vpow.pop %v1732
      %v1734 = vmul.f32 %v1498, 1.442695
      %v1735 = vpow.pop %v1734
      %v1736 = vmul.f32 %v1499, 1.442695
      %v1737 = vpow.pop %v1736
      %v1738 = vmul.f32 %v1500, 1.442695
      %v1739 = vpow.pop %v1738
      %v1740 = vmul.f32 %v1501, 1.442695
      %v1741 = vpow.pop %v1740
      %v1742 = vmul.f32 %v1502, 1.442695
      %v1743 = vpow.pop %v1742
      %v1744 = vmul.f32 %v1503, 1.442695
      %v1745 = vpow.pop %v1744
      %v1746 = vmul.f32 %v1504, 1.442695
      %v1747 = vpow.pop %v1746
      %v1748 = vmul.f32 %v1505, 1.442695
      %v1749 = vpow.pop %v1748
      %v1750 = vmul.f32 %v1506, 1.442695
      %v1751 = vpow.pop %v1750
      %v1752 = vmul.f32 %v1507, 1.442695
      %v1753 = vpow.pop %v1752
      %v1754 = vmul.f32 %v1508, 1.442695
      %v1755 = vpow.pop %v1754
      %v1756 = vmul.f32 %v1509, 1.442695
      %v1757 = vpow.pop %v1756
      %v1758 = vmul.f32 %v1510, 1.442695
      %v1759 = vpow.pop %v1758
      %v1760 = vmul.f32 %v1511, 1.442695
      %v1761 = vpow.pop %v1760
      %v1762 = vmul.f32 %v1512, 1.442695
      %v1763 = vpow.pop %v1762
      %v1764 = vmul.f32 %v1513, 1.442695
      %v1765 = vpow.pop %v1764
      %v1766 = vmul.f32 %v1514, 1.442695
      %v1767 = vpow.pop %v1766
      %v1768 = vmul.f32 %v1515, 1.442695
      %v1769 = vpow.pop %v1768
      %v1770 = vmul.f32 %v1516, 1.442695
      %v1771 = vpow.pop %v1770
      %v1772 = vmul.f32 %v1517, 1.442695
      %v1773 = vpow.pop %v1772
      %v1774 = vmul.f32 %v1518, 1.442695
      %v1775 = vpow.pop %v1774
      %v1776 = vmul.f32 %v1519, 1.442695
      %v1777 = vpow.pop %v1776
      %v1778 = vmul.f32 %v1520, 1.442695
      %v1779 = vpow.pop %v1778
      %v1780 = vmul.f32 %v1521, 1.442695
      %v1781 = vpow.pop %v1780
      %v1782 = vmul.f32 %v1522, 1.442695
      %v1783 = vpow.pop %v1782
      %v1784 = vmul.f32 %v1523, 1.442695
      %v1785 = vpow.pop %v1784
      %v1786 = vmul.f32 %v1524, 1.442695
      %v1787 = vpow.pop %v1786
      %v1788 = vmul.f32 %v1525, 1.442695
      %v1789 = vpow.pop %v1788
      %v1790 = vmul.f32 %v1526, 1.442695
      %v1791 = vpow.pop %v1790
      %v1792 = vmul.f32 %v1527, 1.442695
      %v1793 = vpow.pop %v1792
      %v1794 = vmul.f32 %v1528, 1.442695
      %v1795 = vpow.pop %v1794
      %v1796 = vmul.f32 %v1529, 1.442695
      %v1797 = vpow.pop %v1796
      %v1798 = vmul.f32 %v1530, 1.442695
      %v1799 = vpow.pop %v1798
      %v1800 = vmul.f32 %v1531, 1.442695
      %v1801 = vpow.pop %v1800
      %v1802 = vmul.f32 %v1532, 1.442695
      %v1803 = vpow.pop %v1802
      %v1804 = vmul.f32 %v1533, 1.442695
      %v1805 = vpow.pop %v1804
      %v1806 = vmul.f32 %v1534, 1.442695
      %v1807 = vpow.pop %v1806
      %v1808 = vmul.f32 %v1535, 1.442695
      %v1809 = vpow.pop %v1808
      %v1810 = vmul.f32 %v1536, 1.442695
      %v1811 = vpow.pop %v1810
      %v1812 = vmul.f32 %v1537, 1.442695
      %v1813 = vpow.pop %v1812
      %v1814 = vmul.f32 %v1538, 1.442695
      %v1815 = vpow.pop %v1814
      %v1816 = vmul.f32 %v1539, 1.442695
      %v1817 = vpow.pop %v1816
      %v1818 = vmul.f32 %v1540, 1.442695
      %v1819 = vpow.pop %v1818
      %v1820 = vmul.f32 %v1541, 1.442695
      %v1821 = vpow.pop %v1820
      %v1822 = vmul.f32 %v1542, 1.442695
      %v1823 = vpow.pop %v1822
      %v1824 = vmul.f32 %v1543, 1.442695
      %v1825 = vpow.pop %v1824
      %v1826 = vmul.f32 %v1544, 1.442695
      %v1827 = vpow.pop %v1826
      %v1828 = vmul.f32 %v1545, 1.442695
      %v1829 = vpow.pop %v1828
      %v1830 = vmul.f32 %v1546, 1.442695
      %v1831 = vpow.pop %v1830
      %v1832 = vmul.f32 %v1547, 1.442695
      %v1833 = vpow.pop %v1832
      %v1834 = vmul.f32 %v1548, 1.442695
      %v1835 = vpow.pop %v1834
      %v1836 = vmul.f32 %v1549, 1.442695
      %v1837 = vpow.pop %v1836
      %v1838 = vmul.f32 %v1550, 1.442695
      %v1839 = vpow.pop %v1838
      %v1840 = vmul.f32 %v1551, 1.442695
      %v1841 = vpow.pop %v1840
      %v1842 = vmul.f32 %v1552, 1.442695
      %v1843 = vpow.pop %v1842
      %v1844 = vmul.f32 %v1553, 1.442695
      %v1845 = vpow.pop %v1844
      %v1846 = vmul.f32 %v1554, 1.442695
      %v1847 = vpow.pop %v1846
      %v1848 = vmul.f32 %v1555, 1.442695
      %v1849 = vpow.pop %v1848
      %v1850 = vmul.f32 %v1556, 1.442695
      %v1851 = vpow.pop %v1850
      %v1852 = vmul.f32 %v1557, 1.442695
      %v1853 = vpow.pop %v1852
      %v1854 = vmul.f32 %v1558, 1.442695
      %v1855 = vpow.pop %v1854
      %v1856 = vmul.f32 %v1559, 1.442695
      %v1857 = vpow.pop %v1856
      %v1858 = vmul.f32 %v1560, 1.442695
      %v1859 = vpow.pop %v1858
      %v1860 = vmul.f32 %v1561, 1.442695
      %v1861 = vpow.pop %v1860
      %v1862 = vmul.f32 %v1562, 1.442695
      %v1863 = vpow.pop %v1862
      %v1864 = vmul.f32 %v1563, 1.442695
      %v1865 = vpow.pop %v1864
      %v1866 = vmul.f32 %v1564, 1.442695
      %v1867 = vpow.pop %v1866
      %v1868 = vmul.f32 %v1565, 1.442695
      %v1869 = vpow.pop %v1868
      %v1870 = vmul.f32 %v1566, 1.442695
      %v1871 = vpow.pop %v1870
      %v1872 = vmul.f32 %v1567, 1.442695
      %v1873 = vpow.pop %v1872
      %v1874 = vmul.f32 %v1568, 1.442695
      %v1875 = vpow.pop %v1874
      %v1876 = vmul.f32 %v1569, 1.442695
      %v1877 = vpow.pop %v1876
      %v1878 = vmul.f32 %v1570, 1.442695
      %v1879 = vpow.pop %v1878
      %v1880 = vmul.f32 %v1571, 1.442695
      %v1881 = vpow.pop %v1880
      %v1882 = vmul.f32 %v1572, 1.442695
      %v1883 = vpow.pop %v1882
      %v1884 = vmul.f32 %v1573, 1.442695
      %v1885 = vpow.pop %v1884
      %v1886 = vmul.f32 %v1574, 1.442695
      %v1887 = vpow.pop %v1886
      %v1888 = vmul.f32 %v1575, 1.442695
      %v1889 = vpow.pop %v1888
      %v1890 = vmul.f32 %v1576, 1.442695
      %v1891 = vpow.pop %v1890
      %v1892 = vmul.f32 %v1577, 1.442695
      %v1893 = vpow.pop %v1892
      %v1894 = vmul.f32 %v1578, 1.442695
      %v1895 = vpow.pop %v1894
      %v1896 = vmul.f32 %v1579, 1.442695
      %v1897 = vpow.pop %v1896
      %v1898 = vmul.f32 %v1580, 1.442695
      %v1899 = vpow.pop %v1898
      %v1900 = vmul.f32 %v1581, 1.442695
      %v1901 = vpow.pop %v1900
      %v1902 = vmul.f32 %v1582, 1.442695
      %v1903 = vpow.pop %v1902
      %v1904 = vmul.f32 %v1583, 1.442695
      %v1905 = vpow.pop %v1904
      %v1906 = vmul.f32 %v1584, 1.442695
      %v1907 = vpow.pop %v1906
      %v1908 = vmul.f32 %v1585, 1.442695
      %v1909 = vpow.pop %v1908
      %v1910 = vmul.f32 %v1586, 1.442695
      %v1911 = vpow.pop %v1910
      %v1912 = vmul.f32 %v1587, 1.442695
      %v1913 = vpow.pop %v1912
      %v1914 = vmul.f32 %v1588, 1.442695
      %v1915 = vpow.pop %v1914
      %v1916 = vmul.f32 %v1589, 1.442695
      %v1917 = vpow.pop %v1916
      %v1918 = vmul.f32 %v1590, 1.442695
      %v1919 = vpow.pop %v1918
      %v1920 = vmul.f32 %v1591, 1.442695
      %v1921 = vpow.pop %v1920
      %v1922 = vmul.f32 %v1592, 1.442695
      %v1923 = vpow.pop %v1922
      %v1924 = vmul.f32 %v1593, 1.442695
      %v1925 = vpow.pop %v1924
      %v1926 = vmul.f32 %v1594, 1.442695
      %v1927 = vpow.pop %v1926
      %v1928 = vmul.f32 %v1595, 1.442695
      %v1929 = vpow.pop %v1928
      %v1930 = vmul.f32 %v1596, 1.442695
      %v1931 = vpow.pop %v1930
      %v1932 = vmul.f32 %v1597, 1.442695
      %v1933 = vpow.pop %v1932
      %v1934 = vmul.f32 %v1598, 1.442695
      %v1935 = vpow.pop %v1934
      %v1936 = vmul.f32 %v1599, 1.442695
      %v1937 = vpow.pop %v1936
      %v1938 = vmul.f32 %v1600, 1.442695
      %v1939 = vpow.pop %v1938
      %v1940 = vmul.f32 %v1601, 1.442695
      %v1941 = vpow.pop %v1940
      %v1942 = vmul.f32 %v1602, 1.442695
      %v1943 = vpow.pop %v1942
      %v1944 = vmul.f32 %v1603, 1.442695
      %v1945 = vpow.pop %v1944
      %v1946 = vmul.f32 %v1604, 1.442695
      %v1947 = vpow.pop %v1946
      %v1948 = vmul.f32 %v1605, 1.442695
      %v1949 = vpow.pop %v1948
      %v1950 = vmul.f32 %v1606, 1.442695
      %v1951 = vpow.pop %v1950
      %v1952 = vmul.f32 %v1607, 1.442695
      %v1953 = vpow.pop %v1952
      %v1954 = vmul.f32 %v1608, 1.442695
      %v1955 = vpow.pop %v1954
      %v1956 = vmul.f32 %v1609, 1.442695
      %v1957 = vpow.pop %v1956
      %v1958 = vmul.f32 %v1610, 1.442695
      %v1959 = vpow.pop %v1958
      %v1960 = vmul.f32 %v1611, 1.442695
      %v1961 = vpow.pop %v1960
      %v1962 = vmul.f32 %v1612, 1.442695
      %v1963 = vpow.pop %v1962
      %v1964 = vmul.f32 %v1613, 1.442695
      %v1965 = vpow.pop %v1964
      %v1966 = vmul.f32 %v1614, 1.442695
      %v1967 = vpow.pop %v1966
      %v1968 = vmul.f32 %v1615, 1.442695
      %v1969 = vpow.pop %v1968
      %v1970 = vmul.f32 %v1616, 1.442695
      %v1971 = vpow.pop %v1970
      %v1972 = vmul.f32 %v1617, 1.442695
      %v1973 = vpow.pop %v1972
      %v1974 = vmul.f32 %v1618, 1.442695
      %v1975 = vpow.pop %v1974
      %v1976 = vmul.f32 %v1619, 1.442695
      %v1977 = vpow.pop %v1976
      %v1978 = vmul.f32 %v1620, 1.442695
      %v1979 = vpow.pop %v1978
      %v1980 = vmul.f32 %v1621, 1.442695
      %v1981 = vpow.pop %v1980
      %v1982 = vmul.f32 %v1622, 1.442695
      %v1983 = vpow.pop %v1982
      %v1984 = vmul.f32 %v1623, 1.442695
      %v1985 = vpow.pop %v1984
      %v1986 = vmul.f32 %v1624, 1.442695
      %v1987 = vpow.pop %v1986
      %v1988 = vmul.f32 %v1625, 1.442695
      %v1989 = vpow.pop %v1988
      %v1990 = vmul.f32 %v1626, 1.442695
      %v1991 = vpow.pop %v1990
      %v1992 = vmul.f32 %v1627, 1.442695
      %v1993 = vpow.pop %v1992
      %v1994 = vmul.f32 %v1628, 1.442695
      %v1995 = vpow.pop %v1994
      %v1996 = vmul.f32 %v1629, 1.442695
      %v1997 = vpow.pop %v1996
      %v1998 = vmul.f32 %v1630, 1.442695
      %v1999 = vpow.pop %v1998
      %v2000 = vmul.f32 %v1631, 1.442695
      %v2001 = vpow.pop %v2000
      %v2002 = vmul.f32 %v1632, 1.442695
      %v2003 = vpow.pop %v2002
      %v2004 = vmul.f32 %v1633, 1.442695
      %v2005 = vpow.pop %v2004
      %v2006 = vmul.f32 %v1634, 1.442695
      %v2007 = vpow.pop %v2006
      %v2008 = vmul.f32 %v1635, 1.442695
      %v2009 = vpow.pop %v2008
      %v2010 = vmul.f32 %v1636, 1.442695
      %v2011 = vpow.pop %v2010
      %v2012 = vmul.f32 %v1637, 1.442695
      %v2013 = vpow.pop %v2012
      %v2014 = vmul.f32 %v1638, 1.442695
      %v2015 = vpow.pop %v2014
      %v2016 = vmul.f32 %v1639, 1.442695
      %v2017 = vpow.pop %v2016
      %v2018 = vmul.f32 %v1640, 1.442695
      %v2019 = vpow.pop %v2018
      %v2020 = vmul.f32 %v1641, 1.442695
      %v2021 = vpow.pop %v2020
      %v2022 = vmul.f32 %v1642, 1.442695
      %v2023 = vpow.pop %v2022
      %v2024 = vmul.f32 %v1643, 1.442695
      %v2025 = vpow.pop %v2024
      %v2026 = vmul.f32 %v1644, 1.442695
      %v2027 = vpow.pop %v2026
      %v2028 = vmul.f32 %v1645, 1.442695
      %v2029 = vpow.pop %v2028
      %v2030 = vmul.f32 %v1646, 1.442695
      %v2031 = vpow.pop %v2030
      %v2032 = vmul.f32 %v1647, 1.442695
      %v2033 = vpow.pop %v2032
      %v2034 = vmul.f32 %v1648, 1.442695
      %v2035 = vpow.pop %v2034
      %v2036 = vmul.f32 %v1649, 1.442695
      %v2037 = vpow.pop %v2036
      %v2038 = vmul.f32 %v1650, 1.442695
      %v2039 = vpow.pop %v2038
      %v2040 = vmul.f32 %v1651, 1.442695
      %v2041 = vpow.pop %v2040
      %v2042 = vmul.f32 %v1652, 1.442695
      %v2043 = vpow.pop %v2042
      %v2044 = vmul.f32 %v1653, 1.442695
      %v2045 = vpow.pop %v2044
      %v2046 = vmul.f32 %v1654, 1.442695
      %v2047 = vpow.pop %v2046
      %v2048 = vmul.f32 %v1655, 1.442695
      %v2049 = vpow.pop %v2048
      %v2050 = vmul.f32 %v1656, 1.442695
      %v2051 = vpow.pop %v2050
      %v2052 = vmul.f32 %v1657, 1.442695
      %v2053 = vpow.pop %v2052
      %v2054 = vmul.f32 %v1658, 1.442695
      %v2055 = vpow.pop %v2054
      %v2056 = vmul.f32 %v1659, 1.442695
      %v2057 = vpow.pop %v2056
      %v2058 = vmul.f32 %v1660, 1.442695
      %v2059 = vpow.pop %v2058
      %v2060 = vmul.f32 %v1661, 1.442695
      %v2061 = vpow.pop %v2060
      %v2062 = vadd.f32 %v1663, 1.0
      %v2063 = vadd.f32 %v1665, 1.0
      %v2064 = vadd.f32 %v1667, 1.0
      %v2065 = vadd.f32 %v1669, 1.0
      %v2066 = vadd.f32 %v1671, 1.0
      %v2067 = vadd.f32 %v1673, 1.0
      %v2068 = vadd.f32 %v1675, 1.0
      %v2069 = vadd.f32 %v1677, 1.0
      %v2070 = vadd.f32 %v1679, 1.0
      %v2071 = vadd.f32 %v1681, 1.0
      %v2072 = vadd.f32 %v1683, 1.0
      %v2073 = vadd.f32 %v1685, 1.0
      %v2074 = vadd.f32 %v1687, 1.0
      %v2075 = vadd.f32 %v1689, 1.0
      %v2076 = vadd.f32 %v1691, 1.0
      %v2077 = vadd.f32 %v1693, 1.0
      %v2078 = vadd.f32 %v1695, 1.0
      %v2079 = vadd.f32 %v1697, 1.0
      %v2080 = vadd.f32 %v1699, 1.0
      %v2081 = vadd.f32 %v1701, 1.0
      %v2082 = vadd.f32 %v1703, 1.0
      %v2083 = vadd.f32 %v1705, 1.0
      %v2084 = vadd.f32 %v1707, 1.0
      %v2085 = vadd.f32 %v1709, 1.0
      %v2086 = vadd.f32 %v1711, 1.0
      %v2087 = vadd.f32 %v1713, 1.0
      %v2088 = vadd.f32 %v1715, 1.0
      %v2089 = vadd.f32 %v1717, 1.0
      %v2090 = vadd.f32 %v1719, 1.0
      %v2091 = vadd.f32 %v1721, 1.0
      %v2092 = vadd.f32 %v1723, 1.0
      %v2093 = vadd.f32 %v1725, 1.0
      %v2094 = vadd.f32 %v1727, 1.0
      %v2095 = vadd.f32 %v1729, 1.0
      %v2096 = vadd.f32 %v1731, 1.0
      %v2097 = vadd.f32 %v1733, 1.0
      %v2098 = vadd.f32 %v1735, 1.0
      %v2099 = vadd.f32 %v1737, 1.0
      %v2100 = vadd.f32 %v1739, 1.0
      %v2101 = vadd.f32 %v1741, 1.0
      %v2102 = vadd.f32 %v1743, 1.0
      %v2103 = vadd.f32 %v1745, 1.0
      %v2104 = vadd.f32 %v1747, 1.0
      %v2105 = vadd.f32 %v1749, 1.0
      %v2106 = vadd.f32 %v1751, 1.0
      %v2107 = vadd.f32 %v1753, 1.0
      %v2108 = vadd.f32 %v1755, 1.0
      %v2109 = vadd.f32 %v1757, 1.0
      %v2110 = vadd.f32 %v1759, 1.0
      %v2111 = vadd.f32 %v1761, 1.0
      %v2112 = vadd.f32 %v1763, 1.0
      %v2113 = vadd.f32 %v1765, 1.0
      %v2114 = vadd.f32 %v1767, 1.0
      %v2115 = vadd.f32 %v1769, 1.0
      %v2116 = vadd.f32 %v1771, 1.0
      %v2117 = vadd.f32 %v1773, 1.0
      %v2118 = vadd.f32 %v1775, 1.0
      %v2119 = vadd.f32 %v1777, 1.0
      %v2120 = vadd.f32 %v1779, 1.0
      %v2121 = vadd.f32 %v1781, 1.0
      %v2122 = vadd.f32 %v1783, 1.0
      %v2123 = vadd.f32 %v1785, 1.0
      %v2124 = vadd.f32 %v1787, 1.0
      %v2125 = vadd.f32 %v1789, 1.0
      %v2126 = vadd.f32 %v1791, 1.0
      %v2127 = vadd.f32 %v1793, 1.0
      %v2128 = vadd.f32 %v1795, 1.0
      %v2129 = vadd.f32 %v1797, 1.0
      %v2130 = vadd.f32 %v1799, 1.0
      %v2131 = vadd.f32 %v1801, 1.0
      %v2132 = vadd.f32 %v1803, 1.0
      %v2133 = vadd.f32 %v1805, 1.0
      %v2134 = vadd.f32 %v1807, 1.0
      %v2135 = vadd.f32 %v1809, 1.0
      %v2136 = vadd.f32 %v1811, 1.0
      %v2137 = vadd.f32 %v1813, 1.0
      %v2138 = vadd.f32 %v1815, 1.0
      %v2139 = vadd.f32 %v1817, 1.0
      %v2140 = vadd.f32 %v1819, 1.0
      %v2141 = vadd.f32 %v1821, 1.0
      %v2142 = vadd.f32 %v1823, 1.0
      %v2143 = vadd.f32 %v1825, 1.0
      %v2144 = vadd.f32 %v1827, 1.0
      %v2145 = vadd.f32 %v1829, 1.0
      %v2146 = vadd.f32 %v1831, 1.0
      %v2147 = vadd.f32 %v1833, 1.0
      %v2148 = vadd.f32 %v1835, 1.0
      %v2149 = vadd.f32 %v1837, 1.0
      %v2150 = vadd.f32 %v1839, 1.0
      %v2151 = vadd.f32 %v1841, 1.0
      %v2152 = vadd.f32 %v1843, 1.0
      %v2153 = vadd.f32 %v1845, 1.0
      %v2154 = vadd.f32 %v1847, 1.0
      %v2155 = vadd.f32 %v1849, 1.0
      %v2156 = vadd.f32 %v1851, 1.0
      %v2157 = vadd.f32 %v1853, 1.0
      %v2158 = vadd.f32 %v1855, 1.0
      %v2159 = vadd.f32 %v1857, 1.0
      %v2160 = vadd.f32 %v1859, 1.0
      %v2161 = vadd.f32 %v1861, 1.0
      %v2162 = vadd.f32 %v1863, 1.0
      %v2163 = vadd.f32 %v1865, 1.0
      %v2164 = vadd.f32 %v1867, 1.0
      %v2165 = vadd.f32 %v1869, 1.0
      %v2166 = vadd.f32 %v1871, 1.0
      %v2167 = vadd.f32 %v1873, 1.0
      %v2168 = vadd.f32 %v1875, 1.0
      %v2169 = vadd.f32 %v1877, 1.0
      %v2170 = vadd.f32 %v1879, 1.0
      %v2171 = vadd.f32 %v1881, 1.0
      %v2172 = vadd.f32 %v1883, 1.0
      %v2173 = vadd.f32 %v1885, 1.0
      %v2174 = vadd.f32 %v1887, 1.0
      %v2175 = vadd.f32 %v1889, 1.0
      %v2176 = vadd.f32 %v1891, 1.0
      %v2177 = vadd.f32 %v1893, 1.0
      %v2178 = vadd.f32 %v1895, 1.0
      %v2179 = vadd.f32 %v1897, 1.0
      %v2180 = vadd.f32 %v1899, 1.0
      %v2181 = vadd.f32 %v1901, 1.0
      %v2182 = vadd.f32 %v1903, 1.0
      %v2183 = vadd.f32 %v1905, 1.0
      %v2184 = vadd.f32 %v1907, 1.0
      %v2185 = vadd.f32 %v1909, 1.0
      %v2186 = vadd.f32 %v1911, 1.0
      %v2187 = vadd.f32 %v1913, 1.0
      %v2188 = vadd.f32 %v1915, 1.0
      %v2189 = vadd.f32 %v1917, 1.0
      %v2190 = vadd.f32 %v1919, 1.0
      %v2191 = vadd.f32 %v1921, 1.0
      %v2192 = vadd.f32 %v1923, 1.0
      %v2193 = vadd.f32 %v1925, 1.0
      %v2194 = vadd.f32 %v1927, 1.0
      %v2195 = vadd.f32 %v1929, 1.0
      %v2196 = vadd.f32 %v1931, 1.0
      %v2197 = vadd.f32 %v1933, 1.0
      %v2198 = vadd.f32 %v1935, 1.0
      %v2199 = vadd.f32 %v1937, 1.0
      %v2200 = vadd.f32 %v1939, 1.0
      %v2201 = vadd.f32 %v1941, 1.0
      %v2202 = vadd.f32 %v1943, 1.0
      %v2203 = vadd.f32 %v1945, 1.0
      %v2204 = vadd.f32 %v1947, 1.0
      %v2205 = vadd.f32 %v1949, 1.0
      %v2206 = vadd.f32 %v1951, 1.0
      %v2207 = vadd.f32 %v1953, 1.0
      %v2208 = vadd.f32 %v1955, 1.0
      %v2209 = vadd.f32 %v1957, 1.0
      %v2210 = vadd.f32 %v1959, 1.0
      %v2211 = vadd.f32 %v1961, 1.0
      %v2212 = vadd.f32 %v1963, 1.0
      %v2213 = vadd.f32 %v1965, 1.0
      %v2214 = vadd.f32 %v1967, 1.0
      %v2215 = vadd.f32 %v1969, 1.0
      %v2216 = vadd.f32 %v1971, 1.0
      %v2217 = vadd.f32 %v1973, 1.0
      %v2218 = vadd.f32 %v1975, 1.0
      %v2219 = vadd.f32 %v1977, 1.0
      %v2220 = vadd.f32 %v1979, 1.0
      %v2221 = vadd.f32 %v1981, 1.0
      %v2222 = vadd.f32 %v1983, 1.0
      %v2223 = vadd.f32 %v1985, 1.0
      %v2224 = vadd.f32 %v1987, 1.0
      %v2225 = vadd.f32 %v1989, 1.0
      %v2226 = vadd.f32 %v1991, 1.0
      %v2227 = vadd.f32 %v1993, 1.0
      %v2228 = vadd.f32 %v1995, 1.0
      %v2229 = vadd.f32 %v1997, 1.0
      %v2230 = vadd.f32 %v1999, 1.0
      %v2231 = vadd.f32 %v2001, 1.0
      %v2232 = vadd.f32 %v2003, 1.0
      %v2233 = vadd.f32 %v2005, 1.0
      %v2234 = vadd.f32 %v2007, 1.0
      %v2235 = vadd.f32 %v2009, 1.0
      %v2236 = vadd.f32 %v2011, 1.0
      %v2237 = vadd.f32 %v2013, 1.0
      %v2238 = vadd.f32 %v2015, 1.0
      %v2239 = vadd.f32 %v2017, 1.0
      %v2240 = vadd.f32 %v2019, 1.0
      %v2241 = vadd.f32 %v2021, 1.0
      %v2242 = vadd.f32 %v2023, 1.0
      %v2243 = vadd.f32 %v2025, 1.0
      %v2244 = vadd.f32 %v2027, 1.0
      %v2245 = vadd.f32 %v2029, 1.0
      %v2246 = vadd.f32 %v2031, 1.0
      %v2247 = vadd.f32 %v2033, 1.0
      %v2248 = vadd.f32 %v2035, 1.0
      %v2249 = vadd.f32 %v2037, 1.0
      %v2250 = vadd.f32 %v2039, 1.0
      %v2251 = vadd.f32 %v2041, 1.0
      %v2252 = vadd.f32 %v2043, 1.0
      %v2253 = vadd.f32 %v2045, 1.0
      %v2254 = vadd.f32 %v2047, 1.0
      %v2255 = vadd.f32 %v2049, 1.0
      %v2256 = vadd.f32 %v2051, 1.0
      %v2257 = vadd.f32 %v2053, 1.0
      %v2258 = vadd.f32 %v2055, 1.0
      %v2259 = vadd.f32 %v2057, 1.0
      %v2260 = vadd.f32 %v2059, 1.0
      %v2261 = vadd.f32 %v2061, 1.0
      %v2262 = vrcp.pop %v2062
      %v2263 = vmul.f32 1.0, %v2262
      %v2264 = vrcp.pop %v2063
      %v2265 = vmul.f32 1.0, %v2264
      %v2266 = vrcp.pop %v2064
      %v2267 = vmul.f32 1.0, %v2266
      %v2268 = vrcp.pop %v2065
      %v2269 = vmul.f32 1.0, %v2268
      %v2270 = vrcp.pop %v2066
      %v2271 = vmul.f32 1.0, %v2270
      %v2272 = vrcp.pop %v2067
      %v2273 = vmul.f32 1.0, %v2272
      %v2274 = vrcp.pop %v2068
      %v2275 = vmul.f32 1.0, %v2274
      %v2276 = vrcp.pop %v2069
      %v2277 = vmul.f32 1.0, %v2276
      %v2278 = vrcp.pop %v2070
      %v2279 = vmul.f32 1.0, %v2278
      %v2280 = vrcp.pop %v2071
      %v2281 = vmul.f32 1.0, %v2280
      %v2282 = vrcp.pop %v2072
      %v2283 = vmul.f32 1.0, %v2282
      %v2284 = vrcp.pop %v2073
      %v2285 = vmul.f32 1.0, %v2284
      %v2286 = vrcp.pop %v2074
      %v2287 = vmul.f32 1.0, %v2286
      %v2288 = vrcp.pop %v2075
      %v2289 = vmul.f32 1.0, %v2288
      %v2290 = vrcp.pop %v2076
      %v2291 = vmul.f32 1.0, %v2290
      %v2292 = vrcp.pop %v2077
      %v2293 = vmul.f32 1.0, %v2292
      %v2294 = vrcp.pop %v2078
      %v2295 = vmul.f32 1.0, %v2294
      %v2296 = vrcp.pop %v2079
      %v2297 = vmul.f32 1.0, %v2296
      %v2298 = vrcp.pop %v2080
      %v2299 = vmul.f32 1.0, %v2298
      %v2300 = vrcp.pop %v2081
      %v2301 = vmul.f32 1.0, %v2300
      %v2302 = vrcp.pop %v2082
      %v2303 = vmul.f32 1.0, %v2302
      %v2304 = vrcp.pop %v2083
      %v2305 = vmul.f32 1.0, %v2304
      %v2306 = vrcp.pop %v2084
      %v2307 = vmul.f32 1.0, %v2306
      %v2308 = vrcp.pop %v2085
      %v2309 = vmul.f32 1.0, %v2308
      %v2310 = vrcp.pop %v2086
      %v2311 = vmul.f32 1.0, %v2310
      %v2312 = vrcp.pop %v2087
      %v2313 = vmul.f32 1.0, %v2312
      %v2314 = vrcp.pop %v2088
      %v2315 = vmul.f32 1.0, %v2314
      %v2316 = vrcp.pop %v2089
      %v2317 = vmul.f32 1.0, %v2316
      %v2318 = vrcp.pop %v2090
      %v2319 = vmul.f32 1.0, %v2318
      %v2320 = vrcp.pop %v2091
      %v2321 = vmul.f32 1.0, %v2320
      %v2322 = vrcp.pop %v2092
      %v2323 = vmul.f32 1.0, %v2322
      %v2324 = vrcp.pop %v2093
      %v2325 = vmul.f32 1.0, %v2324
      %v2326 = vrcp.pop %v2094
      %v2327 = vmul.f32 1.0, %v2326
      %v2328 = vrcp.pop %v2095
      %v2329 = vmul.f32 1.0, %v2328
      %v2330 = vrcp.pop %v2096
      %v2331 = vmul.f32 1.0, %v2330
      %v2332 = vrcp.pop %v2097
      %v2333 = vmul.f32 1.0, %v2332
      %v2334 = vrcp.pop %v2098
      %v2335 = vmul.f32 1.0, %v2334
      %v2336 = vrcp.pop %v2099
      %v2337 = vmul.f32 1.0, %v2336
      %v2338 = vrcp.pop %v2100
      %v2339 = vmul.f32 1.0, %v2338
      %v2340 = vrcp.pop %v2101
      %v2341 = vmul.f32 1.0, %v2340
      %v2342 = vrcp.pop %v2102
      %v2343 = vmul.f32 1.0, %v2342
      %v2344 = vrcp.pop %v2103
      %v2345 = vmul.f32 1.0, %v2344
      %v2346 = vrcp.pop %v2104
      %v2347 = vmul.f32 1.0, %v2346
      %v2348 = vrcp.pop %v2105
      %v2349 = vmul.f32 1.0, %v2348
      %v2350 = vrcp.pop %v2106
      %v2351 = vmul.f32 1.0, %v2350
      %v2352 = vrcp.pop %v2107
      %v2353 = vmul.f32 1.0, %v2352
      %v2354 = vrcp.pop %v2108
      %v2355 = vmul.f32 1.0, %v2354
      %v2356 = vrcp.pop %v2109
      %v2357 = vmul.f32 1.0, %v2356
      %v2358 = vrcp.pop %v2110
      %v2359 = vmul.f32 1.0, %v2358
      %v2360 = vrcp.pop %v2111
      %v2361 = vmul.f32 1.0, %v2360
      %v2362 = vrcp.pop %v2112
      %v2363 = vmul.f32 1.0, %v2362
      %v2364 = vrcp.pop %v2113
      %v2365 = vmul.f32 1.0, %v2364
      %v2366 = vrcp.pop %v2114
      %v2367 = vmul.f32 1.0, %v2366
      %v2368 = vrcp.pop %v2115
      %v2369 = vmul.f32 1.0, %v2368
      %v2370 = vrcp.pop %v2116
      %v2371 = vmul.f32 1.0, %v2370
      %v2372 = vrcp.pop %v2117
      %v2373 = vmul.f32 1.0, %v2372
      %v2374 = vrcp.pop %v2118
      %v2375 = vmul.f32 1.0, %v2374
      %v2376 = vrcp.pop %v2119
      %v2377 = vmul.f32 1.0, %v2376
      %v2378 = vrcp.pop %v2120
      %v2379 = vmul.f32 1.0, %v2378
      %v2380 = vrcp.pop %v2121
      %v2381 = vmul.f32 1.0, %v2380
      %v2382 = vrcp.pop %v2122
      %v2383 = vmul.f32 1.0, %v2382
      %v2384 = vrcp.pop %v2123
      %v2385 = vmul.f32 1.0, %v2384
      %v2386 = vrcp.pop %v2124
      %v2387 = vmul.f32 1.0, %v2386
      %v2388 = vrcp.pop %v2125
      %v2389 = vmul.f32 1.0, %v2388
      %v2390 = vrcp.pop %v2126
      %v2391 = vmul.f32 1.0, %v2390
      %v2392 = vrcp.pop %v2127
      %v2393 = vmul.f32 1.0, %v2392
      %v2394 = vrcp.pop %v2128
      %v2395 = vmul.f32 1.0, %v2394
      %v2396 = vrcp.pop %v2129
      %v2397 = vmul.f32 1.0, %v2396
      %v2398 = vrcp.pop %v2130
      %v2399 = vmul.f32 1.0, %v2398
      %v2400 = vrcp.pop %v2131
      %v2401 = vmul.f32 1.0, %v2400
      %v2402 = vrcp.pop %v2132
      %v2403 = vmul.f32 1.0, %v2402
      %v2404 = vrcp.pop %v2133
      %v2405 = vmul.f32 1.0, %v2404
      %v2406 = vrcp.pop %v2134
      %v2407 = vmul.f32 1.0, %v2406
      %v2408 = vrcp.pop %v2135
      %v2409 = vmul.f32 1.0, %v2408
      %v2410 = vrcp.pop %v2136
      %v2411 = vmul.f32 1.0, %v2410
      %v2412 = vrcp.pop %v2137
      %v2413 = vmul.f32 1.0, %v2412
      %v2414 = vrcp.pop %v2138
      %v2415 = vmul.f32 1.0, %v2414
      %v2416 = vrcp.pop %v2139
      %v2417 = vmul.f32 1.0, %v2416
      %v2418 = vrcp.pop %v2140
      %v2419 = vmul.f32 1.0, %v2418
      %v2420 = vrcp.pop %v2141
      %v2421 = vmul.f32 1.0, %v2420
      %v2422 = vrcp.pop %v2142
      %v2423 = vmul.f32 1.0, %v2422
      %v2424 = vrcp.pop %v2143
      %v2425 = vmul.f32 1.0, %v2424
      %v2426 = vrcp.pop %v2144
      %v2427 = vmul.f32 1.0, %v2426
      %v2428 = vrcp.pop %v2145
      %v2429 = vmul.f32 1.0, %v2428
      %v2430 = vrcp.pop %v2146
      %v2431 = vmul.f32 1.0, %v2430
      %v2432 = vrcp.pop %v2147
      %v2433 = vmul.f32 1.0, %v2432
      %v2434 = vrcp.pop %v2148
      %v2435 = vmul.f32 1.0, %v2434
      %v2436 = vrcp.pop %v2149
      %v2437 = vmul.f32 1.0, %v2436
      %v2438 = vrcp.pop %v2150
      %v2439 = vmul.f32 1.0, %v2438
      %v2440 = vrcp.pop %v2151
      %v2441 = vmul.f32 1.0, %v2440
      %v2442 = vrcp.pop %v2152
      %v2443 = vmul.f32 1.0, %v2442
      %v2444 = vrcp.pop %v2153
      %v2445 = vmul.f32 1.0, %v2444
      %v2446 = vrcp.pop %v2154
      %v2447 = vmul.f32 1.0, %v2446
      %v2448 = vrcp.pop %v2155
      %v2449 = vmul.f32 1.0, %v2448
      %v2450 = vrcp.pop %v2156
      %v2451 = vmul.f32 1.0, %v2450
      %v2452 = vrcp.pop %v2157
      %v2453 = vmul.f32 1.0, %v2452
      %v2454 = vrcp.pop %v2158
      %v2455 = vmul.f32 1.0, %v2454
      %v2456 = vrcp.pop %v2159
      %v2457 = vmul.f32 1.0, %v2456
      %v2458 = vrcp.pop %v2160
      %v2459 = vmul.f32 1.0, %v2458
      %v2460 = vrcp.pop %v2161
      %v2461 = vmul.f32 1.0, %v2460
      %v2462 = vrcp.pop %v2162
      %v2463 = vmul.f32 1.0, %v2462
      %v2464 = vrcp.pop %v2163
      %v2465 = vmul.f32 1.0, %v2464
      %v2466 = vrcp.pop %v2164
      %v2467 = vmul.f32 1.0, %v2466
      %v2468 = vrcp.pop %v2165
      %v2469 = vmul.f32 1.0, %v2468
      %v2470 = vrcp.pop %v2166
      %v2471 = vmul.f32 1.0, %v2470
      %v2472 = vrcp.pop %v2167
      %v2473 = vmul.f32 1.0, %v2472
      %v2474 = vrcp.pop %v2168
      %v2475 = vmul.f32 1.0, %v2474
      %v2476 = vrcp.pop %v2169
      %v2477 = vmul.f32 1.0, %v2476
      %v2478 = vrcp.pop %v2170
      %v2479 = vmul.f32 1.0, %v2478
      %v2480 = vrcp.pop %v2171
      %v2481 = vmul.f32 1.0, %v2480
      %v2482 = vrcp.pop %v2172
      %v2483 = vmul.f32 1.0, %v2482
      %v2484 = vrcp.pop %v2173
      %v2485 = vmul.f32 1.0, %v2484
      %v2486 = vrcp.pop %v2174
      %v2487 = vmul.f32 1.0, %v2486
      %v2488 = vrcp.pop %v2175
      %v2489 = vmul.f32 1.0, %v2488
      %v2490 = vrcp.pop %v2176
      %v2491 = vmul.f32 1.0, %v2490
      %v2492 = vrcp.pop %v2177
      %v2493 = vmul.f32 1.0, %v2492
      %v2494 = vrcp.pop %v2178
      %v2495 = vmul.f32 1.0, %v2494
      %v2496 = vrcp.pop %v2179
      %v2497 = vmul.f32 1.0, %v2496
      %v2498 = vrcp.pop %v2180
      %v2499 = vmul.f32 1.0, %v2498
      %v2500 = vrcp.pop %v2181
      %v2501 = vmul.f32 1.0, %v2500
      %v2502 = vrcp.pop %v2182
      %v2503 = vmul.f32 1.0, %v2502
      %v2504 = vrcp.pop %v2183
      %v2505 = vmul.f32 1.0, %v2504
      %v2506 = vrcp.pop %v2184
      %v2507 = vmul.f32 1.0, %v2506
      %v2508 = vrcp.pop %v2185
      %v2509 = vmul.f32 1.0, %v2508
      %v2510 = vrcp.pop %v2186
      %v2511 = vmul.f32 1.0, %v2510
      %v2512 = vrcp.pop %v2187
      %v2513 = vmul.f32 1.0, %v2512
      %v2514 = vrcp.pop %v2188
      %v2515 = vmul.f32 1.0, %v2514
      %v2516 = vrcp.pop %v2189
      %v2517 = vmul.f32 1.0, %v2516
      %v2518 = vrcp.pop %v2190
      %v2519 = vmul.f32 1.0, %v2518
      %v2520 = vrcp.pop %v2191
      %v2521 = vmul.f32 1.0, %v2520
      %v2522 = vrcp.pop %v2192
      %v2523 = vmul.f32 1.0, %v2522
      %v2524 = vrcp.pop %v2193
      %v2525 = vmul.f32 1.0, %v2524
      %v2526 = vrcp.pop %v2194
      %v2527 = vmul.f32 1.0, %v2526
      %v2528 = vrcp.pop %v2195
      %v2529 = vmul.f32 1.0, %v2528
      %v2530 = vrcp.pop %v2196
      %v2531 = vmul.f32 1.0, %v2530
      %v2532 = vrcp.pop %v2197
      %v2533 = vmul.f32 1.0, %v2532
      %v2534 = vrcp.pop %v2198
      %v2535 = vmul.f32 1.0, %v2534
      %v2536 = vrcp.pop %v2199
      %v2537 = vmul.f32 1.0, %v2536
      %v2538 = vrcp.pop %v2200
      %v2539 = vmul.f32 1.0, %v2538
      %v2540 = vrcp.pop %v2201
      %v2541 = vmul.f32 1.0, %v2540
      %v2542 = vrcp.pop %v2202
      %v2543 = vmul.f32 1.0, %v2542
      %v2544 = vrcp.pop %v2203
      %v2545 = vmul.f32 1.0, %v2544
      %v2546 = vrcp.pop %v2204
      %v2547 = vmul.f32 1.0, %v2546
      %v2548 = vrcp.pop %v2205
      %v2549 = vmul.f32 1.0, %v2548
      %v2550 = vrcp.pop %v2206
      %v2551 = vmul.f32 1.0, %v2550
      %v2552 = vrcp.pop %v2207
      %v2553 = vmul.f32 1.0, %v2552
      %v2554 = vrcp.pop %v2208
      %v2555 = vmul.f32 1.0, %v2554
      %v2556 = vrcp.pop %v2209
      %v2557 = vmul.f32 1.0, %v2556
      %v2558 = vrcp.pop %v2210
      %v2559 = vmul.f32 1.0, %v2558
      %v2560 = vrcp.pop %v2211
      %v2561 = vmul.f32 1.0, %v2560
      %v2562 = vrcp.pop %v2212
      %v2563 = vmul.f32 1.0, %v2562
      %v2564 = vrcp.pop %v2213
      %v2565 = vmul.f32 1.0, %v2564
      %v2566 = vrcp.pop %v2214
      %v2567 = vmul.f32 1.0, %v2566
      %v2568 = vrcp.pop %v2215
      %v2569 = vmul.f32 1.0, %v2568
      %v2570 = vrcp.pop %v2216
      %v2571 = vmul.f32 1.0, %v2570
      %v2572 = vrcp.pop %v2217
      %v2573 = vmul.f32 1.0, %v2572
      %v2574 = vrcp.pop %v2218
      %v2575 = vmul.f32 1.0, %v2574
      %v2576 = vrcp.pop %v2219
      %v2577 = vmul.f32 1.0, %v2576
      %v2578 = vrcp.pop %v2220
      %v2579 = vmul.f32 1.0, %v2578
      %v2580 = vrcp.pop %v2221
      %v2581 = vmul.f32 1.0, %v2580
      %v2582 = vrcp.pop %v2222
      %v2583 = vmul.f32 1.0, %v2582
      %v2584 = vrcp.pop %v2223
      %v2585 = vmul.f32 1.0, %v2584
      %v2586 = vrcp.pop %v2224
      %v2587 = vmul.f32 1.0, %v2586
      %v2588 = vrcp.pop %v2225
      %v2589 = vmul.f32 1.0, %v2588
      %v2590 = vrcp.pop %v2226
      %v2591 = vmul.f32 1.0, %v2590
      %v2592 = vrcp.pop %v2227
      %v2593 = vmul.f32 1.0, %v2592
      %v2594 = vrcp.pop %v2228
      %v2595 = vmul.f32 1.0, %v2594
      %v2596 = vrcp.pop %v2229
      %v2597 = vmul.f32 1.0, %v2596
      %v2598 = vrcp.pop %v2230
      %v2599 = vmul.f32 1.0, %v2598
      %v2600 = vrcp.pop %v2231
      %v2601 = vmul.f32 1.0, %v2600
      %v2602 = vrcp.pop %v2232
      %v2603 = vmul.f32 1.0, %v2602
      %v2604 = vrcp.pop %v2233
      %v2605 = vmul.f32 1.0, %v2604
      %v2606 = vrcp.pop %v2234
      %v2607 = vmul.f32 1.0, %v2606
      %v2608 = vrcp.pop %v2235
      %v2609 = vmul.f32 1.0, %v2608
      %v2610 = vrcp.pop %v2236
      %v2611 = vmul.f32 1.0, %v2610
      %v2612 = vrcp.pop %v2237
      %v2613 = vmul.f32 1.0, %v2612
      %v2614 = vrcp.pop %v2238
      %v2615 = vmul.f32 1.0, %v2614
      %v2616 = vrcp.pop %v2239
      %v2617 = vmul.f32 1.0, %v2616
      %v2618 = vrcp.pop %v2240
      %v2619 = vmul.f32 1.0, %v2618
      %v2620 = vrcp.pop %v2241
      %v2621 = vmul.f32 1.0, %v2620
      %v2622 = vrcp.pop %v2242
      %v2623 = vmul.f32 1.0, %v2622
      %v2624 = vrcp.pop %v2243
      %v2625 = vmul.f32 1.0, %v2624
      %v2626 = vrcp.pop %v2244
      %v2627 = vmul.f32 1.0, %v2626
      %v2628 = vrcp.pop %v2245
      %v2629 = vmul.f32 1.0, %v2628
      %v2630 = vrcp.pop %v2246
      %v2631 = vmul.f32 1.0, %v2630
      %v2632 = vrcp.pop %v2247
      %v2633 = vmul.f32 1.0, %v2632
      %v2634 = vrcp.pop %v2248
      %v2635 = vmul.f32 1.0, %v2634
      %v2636 = vrcp.pop %v2249
      %v2637 = vmul.f32 1.0, %v2636
      %v2638 = vrcp.pop %v2250
      %v2639 = vmul.f32 1.0, %v2638
      %v2640 = vrcp.pop %v2251
      %v2641 = vmul.f32 1.0, %v2640
      %v2642 = vrcp.pop %v2252
      %v2643 = vmul.f32 1.0, %v2642
      %v2644 = vrcp.pop %v2253
      %v2645 = vmul.f32 1.0, %v2644
      %v2646 = vrcp.pop %v2254
      %v2647 = vmul.f32 1.0, %v2646
      %v2648 = vrcp.pop %v2255
      %v2649 = vmul.f32 1.0, %v2648
      %v2650 = vrcp.pop %v2256
      %v2651 = vmul.f32 1.0, %v2650
      %v2652 = vrcp.pop %v2257
      %v2653 = vmul.f32 1.0, %v2652
      %v2654 = vrcp.pop %v2258
      %v2655 = vmul.f32 1.0, %v2654
      %v2656 = vrcp.pop %v2259
      %v2657 = vmul.f32 1.0, %v2656
      %v2658 = vrcp.pop %v2260
      %v2659 = vmul.f32 1.0, %v2658
      %v2660 = vrcp.pop %v2261
      %v2661 = vmul.f32 1.0, %v2660
      %vm2662 = vcmask 130048
      %2663 = vst.msk [vmem:[%s172] sm:$0xff] %vm2662, %v2263
      %2664 = vst.msk [vmem:[%s172 + $0x8] sm:$0xff] %vm2662, %v2265
      %2665 = vst.msk [vmem:[%s172 + $0x10] sm:$0xff] %vm2662, %v2267
      %2666 = vst.msk [vmem:[%s172 + $0x18] sm:$0xff] %vm2662, %v2269
      %2667 = vst.msk [vmem:[%s172 + $0x20] sm:$0xff] %vm2662, %v2271
      %2668 = vst.msk [vmem:[%s172 + $0x28] sm:$0xff] %vm2662, %v2273
      %2669 = vst.msk [vmem:[%s172 + $0x30] sm:$0xff] %vm2662, %v2275
      %2670 = vst.msk [vmem:[%s172 + $0x38] sm:$0xff] %vm2662, %v2277
      %2671 = vst.msk [vmem:[%s172 + $0x40] sm:$0xff] %vm2662, %v2279
      %2672 = vst.msk [vmem:[%s172 + $0x48] sm:$0xff] %vm2662, %v2281
      %2673 = vst.msk [vmem:[%s172 + $0x50] sm:$0xff] %vm2662, %v2283
      %2674 = vst.msk [vmem:[%s172 + $0x58] sm:$0xff] %vm2662, %v2285
      %2675 = vst.msk [vmem:[%s172 + $0x60] sm:$0xff] %vm2662, %v2287
      %2676 = vst.msk [vmem:[%s172 + $0x68] sm:$0xff] %vm2662, %v2289
      %2677 = vst.msk [vmem:[%s172 + $0x70] sm:$0xff] %vm2662, %v2291
      %2678 = vst.msk [vmem:[%s172 + $0x78] sm:$0xff] %vm2662, %v2293
      %2679 = vst.msk [vmem:[%s172 + $0x80] sm:$0xff] %vm2662, %v2295
      %2680 = vst.msk [vmem:[%s172 + $0x88] sm:$0xff] %vm2662, %v2297
      %2681 = vst.msk [vmem:[%s172 + $0x90] sm:$0xff] %vm2662, %v2299
      %2682 = vst.msk [vmem:[%s172 + $0x98] sm:$0xff] %vm2662, %v2301
      %2683 = vst.msk [vmem:[%s172 + $0xa0] sm:$0xff] %vm2662, %v2303
      %2684 = vst.msk [vmem:[%s172 + $0xa8] sm:$0xff] %vm2662, %v2305
      %2685 = vst.msk [vmem:[%s172 + $0xb0] sm:$0xff] %vm2662, %v2307
      %2686 = vst.msk [vmem:[%s172 + $0xb8] sm:$0xff] %vm2662, %v2309
      %2687 = vst.msk [vmem:[%s172 + $0xc0] sm:$0xff] %vm2662, %v2311
      %2688 = vst.msk [vmem:[%s172 + $0xc8] sm:$0xff] %vm2662, %v2313
      %2689 = vst.msk [vmem:[%s172 + $0xd0] sm:$0xff] %vm2662, %v2315
      %2690 = vst.msk [vmem:[%s172 + $0xd8] sm:$0xff] %vm2662, %v2317
      %2691 = vst.msk [vmem:[%s172 + $0xe0] sm:$0xff] %vm2662, %v2319
      %2692 = vst.msk [vmem:[%s172 + $0xe8] sm:$0xff] %vm2662, %v2321
      %2693 = vst.msk [vmem:[%s172 + $0xf0] sm:$0xff] %vm2662, %v2323
      %2694 = vst.msk [vmem:[%s172 + $0xf8] sm:$0xff] %vm2662, %v2325
      %2695 = vst.msk [vmem:[%s172 + $0x100] sm:$0xff] %vm2662, %v2327
      %2696 = vst.msk [vmem:[%s172 + $0x108] sm:$0xff] %vm2662, %v2329
      %2697 = vst.msk [vmem:[%s172 + $0x110] sm:$0xff] %vm2662, %v2331
      %2698 = vst.msk [vmem:[%s172 + $0x118] sm:$0xff] %vm2662, %v2333
      %2699 = vst.msk [vmem:[%s172 + $0x120] sm:$0xff] %vm2662, %v2335
      %2700 = vst.msk [vmem:[%s172 + $0x128] sm:$0xff] %vm2662, %v2337
      %2701 = vst.msk [vmem:[%s172 + $0x130] sm:$0xff] %vm2662, %v2339
      %2702 = vst.msk [vmem:[%s172 + $0x138] sm:$0xff] %vm2662, %v2341
      %2703 = vst.msk [vmem:[%s172 + $0x140] sm:$0xff] %vm2662, %v2343
      %2704 = vst.msk [vmem:[%s172 + $0x148] sm:$0xff] %vm2662, %v2345
      %2705 = vst.msk [vmem:[%s172 + $0x150] sm:$0xff] %vm2662, %v2347
      %2706 = vst.msk [vmem:[%s172 + $0x158] sm:$0xff] %vm2662, %v2349
      %2707 = vst.msk [vmem:[%s172 + $0x160] sm:$0xff] %vm2662, %v2351
      %2708 = vst.msk [vmem:[%s172 + $0x168] sm:$0xff] %vm2662, %v2353
      %2709 = vst.msk [vmem:[%s172 + $0x170] sm:$0xff] %vm2662, %v2355
      %2710 = vst.msk [vmem:[%s172 + $0x178] sm:$0xff] %vm2662, %v2357
      %2711 = vst.msk [vmem:[%s172 + $0x180] sm:$0xff] %vm2662, %v2359
      %2712 = vst.msk [vmem:[%s172 + $0x188] sm:$0xff] %vm2662, %v2361
      %2713 = vst.msk [vmem:[%s172 + $0x190] sm:$0xff] %vm2662, %v2363
      %2714 = vst.msk [vmem:[%s172 + $0x198] sm:$0xff] %vm2662, %v2365
      %2715 = vst.msk [vmem:[%s172 + $0x1a0] sm:$0xff] %vm2662, %v2367
      %2716 = vst.msk [vmem:[%s172 + $0x1a8] sm:$0xff] %vm2662, %v2369
      %2717 = vst.msk [vmem:[%s172 + $0x1b0] sm:$0xff] %vm2662, %v2371
      %2718 = vst.msk [vmem:[%s172 + $0x1b8] sm:$0xff] %vm2662, %v2373
      %2719 = vst.msk [vmem:[%s172 + $0x1c0] sm:$0xff] %vm2662, %v2375
      %2720 = vst.msk [vmem:[%s172 + $0x1c8] sm:$0xff] %vm2662, %v2377
      %2721 = vst.msk [vmem:[%s172 + $0x1d0] sm:$0xff] %vm2662, %v2379
      %2722 = vst.msk [vmem:[%s172 + $0x1d8] sm:$0xff] %vm2662, %v2381
      %2723 = vst.msk [vmem:[%s172 + $0x1e0] sm:$0xff] %vm2662, %v2383
      %2724 = vst.msk [vmem:[%s172 + $0x1e8] sm:$0xff] %vm2662, %v2385
      %2725 = vst.msk [vmem:[%s172 + $0x1f0] sm:$0xff] %vm2662, %v2387
      %2726 = vst.msk [vmem:[%s172 + $0x1f8] sm:$0xff] %vm2662, %v2389
      %2727 = vst.msk [vmem:[%s172 + $0x200] sm:$0xff] %vm2662, %v2391
      %2728 = vst.msk [vmem:[%s172 + $0x208] sm:$0xff] %vm2662, %v2393
      %2729 = vst.msk [vmem:[%s172 + $0x210] sm:$0xff] %vm2662, %v2395
      %2730 = vst.msk [vmem:[%s172 + $0x218] sm:$0xff] %vm2662, %v2397
      %2731 = vst.msk [vmem:[%s172 + $0x220] sm:$0xff] %vm2662, %v2399
      %2732 = vst.msk [vmem:[%s172 + $0x228] sm:$0xff] %vm2662, %v2401
      %2733 = vst.msk [vmem:[%s172 + $0x230] sm:$0xff] %vm2662, %v2403
      %2734 = vst.msk [vmem:[%s172 + $0x238] sm:$0xff] %vm2662, %v2405
      %2735 = vst.msk [vmem:[%s172 + $0x240] sm:$0xff] %vm2662, %v2407
      %2736 = vst.msk [vmem:[%s172 + $0x248] sm:$0xff] %vm2662, %v2409
      %2737 = vst.msk [vmem:[%s172 + $0x250] sm:$0xff] %vm2662, %v2411
      %2738 = vst.msk [vmem:[%s172 + $0x258] sm:$0xff] %vm2662, %v2413
      %2739 = vst.msk [vmem:[%s172 + $0x260] sm:$0xff] %vm2662, %v2415
      %2740 = vst.msk [vmem:[%s172 + $0x268] sm:$0xff] %vm2662, %v2417
      %2741 = vst.msk [vmem:[%s172 + $0x270] sm:$0xff] %vm2662, %v2419
      %2742 = vst.msk [vmem:[%s172 + $0x278] sm:$0xff] %vm2662, %v2421
      %2743 = vst.msk [vmem:[%s172 + $0x280] sm:$0xff] %vm2662, %v2423
      %2744 = vst.msk [vmem:[%s172 + $0x288] sm:$0xff] %vm2662, %v2425
      %2745 = vst.msk [vmem:[%s172 + $0x290] sm:$0xff] %vm2662, %v2427
      %2746 = vst.msk [vmem:[%s172 + $0x298] sm:$0xff] %vm2662, %v2429
      %2747 = vst.msk [vmem:[%s172 + $0x2a0] sm:$0xff] %vm2662, %v2431
      %2748 = vst.msk [vmem:[%s172 + $0x2a8] sm:$0xff] %vm2662, %v2433
      %2749 = vst.msk [vmem:[%s172 + $0x2b0] sm:$0xff] %vm2662, %v2435
      %2750 = vst.msk [vmem:[%s172 + $0x2b8] sm:$0xff] %vm2662, %v2437
      %2751 = vst.msk [vmem:[%s172 + $0x2c0] sm:$0xff] %vm2662, %v2439
      %2752 = vst.msk [vmem:[%s172 + $0x2c8] sm:$0xff] %vm2662, %v2441
      %2753 = vst.msk [vmem:[%s172 + $0x2d0] sm:$0xff] %vm2662, %v2443
      %2754 = vst.msk [vmem:[%s172 + $0x2d8] sm:$0xff] %vm2662, %v2445
      %2755 = vst.msk [vmem:[%s172 + $0x2e0] sm:$0xff] %vm2662, %v2447
      %2756 = vst.msk [vmem:[%s172 + $0x2e8] sm:$0xff] %vm2662, %v2449
      %2757 = vst.msk [vmem:[%s172 + $0x2f0] sm:$0xff] %vm2662, %v2451
      %2758 = vst.msk [vmem:[%s172 + $0x2f8] sm:$0xff] %vm2662, %v2453
      %2759 = vst.msk [vmem:[%s172 + $0x300] sm:$0xff] %vm2662, %v2455
      %2760 = vst.msk [vmem:[%s172 + $0x308] sm:$0xff] %vm2662, %v2457
      %2761 = vst.msk [vmem:[%s172 + $0x310] sm:$0xff] %vm2662, %v2459
      %2762 = vst.msk [vmem:[%s172 + $0x318] sm:$0xff] %vm2662, %v2461
      %2763 = vst.msk [vmem:[%s172 + $0x320] sm:$0xff] %vm2662, %v2463
      %2764 = vst.msk [vmem:[%s172 + $0x328] sm:$0xff] %vm2662, %v2465
      %2765 = vst.msk [vmem:[%s172 + $0x330] sm:$0xff] %vm2662, %v2467
      %2766 = vst.msk [vmem:[%s172 + $0x338] sm:$0xff] %vm2662, %v2469
      %2767 = vst.msk [vmem:[%s172 + $0x340] sm:$0xff] %vm2662, %v2471
      %2768 = vst.msk [vmem:[%s172 + $0x348] sm:$0xff] %vm2662, %v2473
      %2769 = vst.msk [vmem:[%s172 + $0x350] sm:$0xff] %vm2662, %v2475
      %2770 = vst.msk [vmem:[%s172 + $0x358] sm:$0xff] %vm2662, %v2477
      %2771 = vst.msk [vmem:[%s172 + $0x360] sm:$0xff] %vm2662, %v2479
      %2772 = vst.msk [vmem:[%s172 + $0x368] sm:$0xff] %vm2662, %v2481
      %2773 = vst.msk [vmem:[%s172 + $0x370] sm:$0xff] %vm2662, %v2483
      %2774 = vst.msk [vmem:[%s172 + $0x378] sm:$0xff] %vm2662, %v2485
      %2775 = vst.msk [vmem:[%s172 + $0x380] sm:$0xff] %vm2662, %v2487
      %2776 = vst.msk [vmem:[%s172 + $0x388] sm:$0xff] %vm2662, %v2489
      %2777 = vst.msk [vmem:[%s172 + $0x390] sm:$0xff] %vm2662, %v2491
      %2778 = vst.msk [vmem:[%s172 + $0x398] sm:$0xff] %vm2662, %v2493
      %2779 = vst.msk [vmem:[%s172 + $0x3a0] sm:$0xff] %vm2662, %v2495
      %2780 = vst.msk [vmem:[%s172 + $0x3a8] sm:$0xff] %vm2662, %v2497
      %2781 = vst.msk [vmem:[%s172 + $0x3b0] sm:$0xff] %vm2662, %v2499
      %2782 = vst.msk [vmem:[%s172 + $0x3b8] sm:$0xff] %vm2662, %v2501
      %2783 = vst.msk [vmem:[%s172 + $0x3c0] sm:$0xff] %vm2662, %v2503
      %2784 = vst.msk [vmem:[%s172 + $0x3c8] sm:$0xff] %vm2662, %v2505
      %2785 = vst.msk [vmem:[%s172 + $0x3d0] sm:$0xff] %vm2662, %v2507
      %2786 = vst.msk [vmem:[%s172 + $0x3d8] sm:$0xff] %vm2662, %v2509
      %2787 = vst.msk [vmem:[%s172 + $0x3e0] sm:$0xff] %vm2662, %v2511
      %2788 = vst.msk [vmem:[%s172 + $0x3e8] sm:$0xff] %vm2662, %v2513
      %2789 = vst.msk [vmem:[%s172 + $0x3f0] sm:$0xff] %vm2662, %v2515
      %2790 = vst.msk [vmem:[%s172 + $0x3f8] sm:$0xff] %vm2662, %v2517
      %2791 = vst.msk [vmem:[%s172 + $0x400] sm:$0xff] %vm2662, %v2519
      %2792 = vst.msk [vmem:[%s172 + $0x408] sm:$0xff] %vm2662, %v2521
      %2793 = vst.msk [vmem:[%s172 + $0x410] sm:$0xff] %vm2662, %v2523
      %2794 = vst.msk [vmem:[%s172 + $0x418] sm:$0xff] %vm2662, %v2525
      %2795 = vst.msk [vmem:[%s172 + $0x420] sm:$0xff] %vm2662, %v2527
      %2796 = vst.msk [vmem:[%s172 + $0x428] sm:$0xff] %vm2662, %v2529
      %2797 = vst.msk [vmem:[%s172 + $0x430] sm:$0xff] %vm2662, %v2531
      %2798 = vst.msk [vmem:[%s172 + $0x438] sm:$0xff] %vm2662, %v2533
      %2799 = vst.msk [vmem:[%s172 + $0x440] sm:$0xff] %vm2662, %v2535
      %2800 = vst.msk [vmem:[%s172 + $0x448] sm:$0xff] %vm2662, %v2537
      %2801 = vst.msk [vmem:[%s172 + $0x450] sm:$0xff] %vm2662, %v2539
      %2802 = vst.msk [vmem:[%s172 + $0x458] sm:$0xff] %vm2662, %v2541
      %2803 = vst.msk [vmem:[%s172 + $0x460] sm:$0xff] %vm2662, %v2543
      %2804 = vst.msk [vmem:[%s172 + $0x468] sm:$0xff] %vm2662, %v2545
      %2805 = vst.msk [vmem:[%s172 + $0x470] sm:$0xff] %vm2662, %v2547
      %2806 = vst.msk [vmem:[%s172 + $0x478] sm:$0xff] %vm2662, %v2549
      %2807 = vst.msk [vmem:[%s172 + $0x480] sm:$0xff] %vm2662, %v2551
      %2808 = vst.msk [vmem:[%s172 + $0x488] sm:$0xff] %vm2662, %v2553
      %2809 = vst.msk [vmem:[%s172 + $0x490] sm:$0xff] %vm2662, %v2555
      %2810 = vst.msk [vmem:[%s172 + $0x498] sm:$0xff] %vm2662, %v2557
      %2811 = vst.msk [vmem:[%s172 + $0x4a0] sm:$0xff] %vm2662, %v2559
      %2812 = vst.msk [vmem:[%s172 + $0x4a8] sm:$0xff] %vm2662, %v2561
      %2813 = vst.msk [vmem:[%s172 + $0x4b0] sm:$0xff] %vm2662, %v2563
      %2814 = vst.msk [vmem:[%s172 + $0x4b8] sm:$0xff] %vm2662, %v2565
      %2815 = vst.msk [vmem:[%s172 + $0x4c0] sm:$0xff] %vm2662, %v2567
      %2816 = vst.msk [vmem:[%s172 + $0x4c8] sm:$0xff] %vm2662, %v2569
      %2817 = vst.msk [vmem:[%s172 + $0x4d0] sm:$0xff] %vm2662, %v2571
      %2818 = vst.msk [vmem:[%s172 + $0x4d8] sm:$0xff] %vm2662, %v2573
      %2819 = vst.msk [vmem:[%s172 + $0x4e0] sm:$0xff] %vm2662, %v2575
      %2820 = vst.msk [vmem:[%s172 + $0x4e8] sm:$0xff] %vm2662, %v2577
      %2821 = vst.msk [vmem:[%s172 + $0x4f0] sm:$0xff] %vm2662, %v2579
      %2822 = vst.msk [vmem:[%s172 + $0x4f8] sm:$0xff] %vm2662, %v2581
      %2823 = vst.msk [vmem:[%s172 + $0x500] sm:$0xff] %vm2662, %v2583
      %2824 = vst.msk [vmem:[%s172 + $0x508] sm:$0xff] %vm2662, %v2585
      %2825 = vst.msk [vmem:[%s172 + $0x510] sm:$0xff] %vm2662, %v2587
      %2826 = vst.msk [vmem:[%s172 + $0x518] sm:$0xff] %vm2662, %v2589
      %2827 = vst.msk [vmem:[%s172 + $0x520] sm:$0xff] %vm2662, %v2591
      %2828 = vst.msk [vmem:[%s172 + $0x528] sm:$0xff] %vm2662, %v2593
      %2829 = vst.msk [vmem:[%s172 + $0x530] sm:$0xff] %vm2662, %v2595
      %2830 = vst.msk [vmem:[%s172 + $0x538] sm:$0xff] %vm2662, %v2597
      %2831 = vst.msk [vmem:[%s172 + $0x540] sm:$0xff] %vm2662, %v2599
      %2832 = vst.msk [vmem:[%s172 + $0x548] sm:$0xff] %vm2662, %v2601
      %2833 = vst.msk [vmem:[%s172 + $0x550] sm:$0xff] %vm2662, %v2603
      %2834 = vst.msk [vmem:[%s172 + $0x558] sm:$0xff] %vm2662, %v2605
      %2835 = vst.msk [vmem:[%s172 + $0x560] sm:$0xff] %vm2662, %v2607
      %2836 = vst.msk [vmem:[%s172 + $0x568] sm:$0xff] %vm2662, %v2609
      %2837 = vst.msk [vmem:[%s172 + $0x570] sm:$0xff] %vm2662, %v2611
      %2838 = vst.msk [vmem:[%s172 + $0x578] sm:$0xff] %vm2662, %v2613
      %2839 = vst.msk [vmem:[%s172 + $0x580] sm:$0xff] %vm2662, %v2615
      %2840 = vst.msk [vmem:[%s172 + $0x588] sm:$0xff] %vm2662, %v2617
      %2841 = vst.msk [vmem:[%s172 + $0x590] sm:$0xff] %vm2662, %v2619
      %2842 = vst.msk [vmem:[%s172 + $0x598] sm:$0xff] %vm2662, %v2621
      %2843 = vst.msk [vmem:[%s172 + $0x5a0] sm:$0xff] %vm2662, %v2623
      %2844 = vst.msk [vmem:[%s172 + $0x5a8] sm:$0xff] %vm2662, %v2625
      %2845 = vst.msk [vmem:[%s172 + $0x5b0] sm:$0xff] %vm2662, %v2627
      %2846 = vst.msk [vmem:[%s172 + $0x5b8] sm:$0xff] %vm2662, %v2629
      %2847 = vst.msk [vmem:[%s172 + $0x5c0] sm:$0xff] %vm2662, %v2631
      %2848 = vst.msk [vmem:[%s172 + $0x5c8] sm:$0xff] %vm2662, %v2633
      %2849 = vst.msk [vmem:[%s172 + $0x5d0] sm:$0xff] %vm2662, %v2635
      %2850 = vst.msk [vmem:[%s172 + $0x5d8] sm:$0xff] %vm2662, %v2637
      %2851 = vst.msk [vmem:[%s172 + $0x5e0] sm:$0xff] %vm2662, %v2639
      %2852 = vst.msk [vmem:[%s172 + $0x5e8] sm:$0xff] %vm2662, %v2641
      %2853 = vst.msk [vmem:[%s172 + $0x5f0] sm:$0xff] %vm2662, %v2643
      %2854 = vst.msk [vmem:[%s172 + $0x5f8] sm:$0xff] %vm2662, %v2645
      %2855 = vst.msk [vmem:[%s172 + $0x600] sm:$0xff] %vm2662, %v2647
      %2856 = vst.msk [vmem:[%s172 + $0x608] sm:$0xff] %vm2662, %v2649
      %2857 = vst.msk [vmem:[%s172 + $0x610] sm:$0xff] %vm2662, %v2651
      %2858 = vst.msk [vmem:[%s172 + $0x618] sm:$0xff] %vm2662, %v2653
      %2859 = vst.msk [vmem:[%s172 + $0x620] sm:$0xff] %vm2662, %v2655
      %2860 = vst.msk [vmem:[%s172 + $0x628] sm:$0xff] %vm2662, %v2657
      %2861 = vst.msk [vmem:[%s172 + $0x630] sm:$0xff] %vm2662, %v2659
      %2862 = vst.msk [vmem:[%s172 + $0x638] sm:$0xff] %vm2662, %v2661
      %s2863 = smul.u32 200, %s14
      %p2864 = scmp.lt.s32.totalorder %s2863, 399
      %s2865 = scalar_select %p2864, %s2863, 399
      %s2866 = smul.addr %s2865, 8
      %s2867 = scalar_lea.vmem %s3, %s2866
      // Predicated region
      $region33: #{forward.17} parent=31 // pred_check
        %p2868 = pneg %p100
      $region34: #{forward.17} parent=31 // pred_check_branch
        %2870 = sbr.rel (%p2868) target = $region36
      $region35: #{forward.17} parent=31 // pred_region
        %s2871 = smul.u32 200, %s14
      $region36: #{forward.17} parent=31 // pred_fallthru
        _
    $region32: #{forward.17} parent=5 // pred_fallthru
      _
    %p2872 = scmp.le.s32.totalorder 2, %s9
    // Predicated region
    $region37: #{forward.17} parent=5 // pred_check
      %p2873 = pneg %p2872
    $region38: #{forward.17} parent=5 // pred_check_branch
      %2875 = sbr.rel (%p2873) target = $region40
    $region39: #{forward.17} parent=5 // pred_region
      %s2876 = ssub.s32 %s9, 2
      // Predicated region
      $region41: #{forward.17} parent=39 // pred_check
        %p2877 = pneg %p106
      $region42: #{forward.17} parent=39 // pred_check_branch
        %2879 = sbr.rel (%p2877) target = $region44
      $region43: #{forward.17} parent=39 // pred_region
        %s2880 = smul.u32 200, %s15
        %p2881 = scmp.lt.s32.totalorder %s2880, 399
        %s2882 = scalar_select %p2881, %s2880, 399
        %s2883 = smul.addr %s2882, 8
        %s2884 = scalar_lea.vmem %s3, %s2883
      $region44: #{forward.17} parent=39 // pred_fallthru
        _
    $region40: #{forward.17} parent=5 // pred_fallthru
      _
  $region6: #{forward.17} parent=0 // loop_footer
    %s13 = sadd.s32 1, %s9
  $region7: #{forward.17} parent=0 // loop_footer_branch
    %8 = sbr.rel target = $region3
  $region8: #{forward.17} parent=0 // loop_exit
    _

</llo_original>
